<compile_context>
chip_gen: v5e
topology: v5e:2x2
jax: 0.10.0
libtpu: 0.0.40
codegen_flags: <defaults>
</compile_context>

<pallas_src>
import functools
import math

import jax
import jax.numpy as jnp
from jax.experimental import pallas as pl
from jax.experimental.pallas import tpu as pltpu

# ---- problem sizes (small but consistent with the module) -------------------
B = 2                          # batch
C_IN = 512                     # backbone channels
SPATIAL = 7                    # 7x7 map (required by the 7x7 valid conv)
K = C_IN * SPATIAL * SPATIAL   # 25088 reduction length
C1 = 512                       # EmbeddingHead c1 (identity embedding)
C2 = 32                        # EmbeddingHead c2 (mask embedding)
C_CAT = C1 + C2                # 544 fused conv output channels
IDENTITIES = 256               # ArcMargin out_features (small synthetic value)
ARC_S = 64.0
ARC_M = 0.5
BN_EPS = 1e-5

# K tile: 25088 / 3584 = 7 grid steps.  bf16 weight block = 3584*544*2 ~ 3.9 MB,
# double-buffered ~7.8 MB -> fits the default scoped-VMEM limit on v5e/v6e/v7x.
TK = 3584


# =============================================================================
# Fused kernel: (conv1|conv2 as one matmul) -> BN(+ReLU6) -> ArcMargin -> fc2
# =============================================================================
def _focus_face_kernel(x_ref, w_ref, scale_ref, bias_ref, arc_wt_ref,
                       label_ref, fc2_wt_ref, fc2_b_ref,
                       y_ref, e1_ref, e2_ref, y2_ref, acc_ref,
                       *, cos_m, sin_m, th, mm, s):
    k = pl.program_id(0)

    @pl.when(k == 0)
    def _():
        acc_ref[...] = jnp.zeros_like(acc_ref)

    # Both convs fused into one bf16 MXU matmul per K tile, f32 accumulator.
    acc_ref[...] += jnp.dot(x_ref[...].astype(jnp.bfloat16), w_ref[...],
                            preferred_element_type=jnp.float32)

    @pl.when(k == pl.num_programs(0) - 1)
    def _():
        # eval-mode BatchNorm folded into per-channel scale/bias
        z = acc_ref[...] * scale_ref[...] + bias_ref[...]          # (B, 544)
        e1 = z[:, :C1]                                             # (B, 512)
        e2 = jnp.clip(z[:, C1:], 0.0, 6.0)                         # ReLU6, (B, 32)
        e1_ref[...] = e1
        e2_ref[...] = e2

        # ArcMarginProduct: F.normalize(input); weight rows are pre-normalized
        # outside the kernel (label/batch independent), so only e1 is normalized.
        n1 = jnp.sqrt(jnp.sum(e1 * e1, axis=-1, keepdims=True))
        e1n = e1 / jnp.maximum(n1, 1e-12)
        cosine = jnp.dot(e1n, arc_wt_ref[...],
                         preferred_element_type=jnp.float32)       # (B, N)
        sine = jnp.sqrt(jnp.clip(1.0 - cosine * cosine, 1e-9, 1.0))
        phi = cosine * cos_m - sine * sin_m
        phi = jnp.where(cosine > th, phi, cosine - mm)
        cols = jax.lax.broadcasted_iota(jnp.int32, cosine.shape, 1)
        one_hot = (cols == label_ref[...]).astype(cosine.dtype)
        y_ref[...] = (one_hot * phi + (1.0 - one_hot) * cosine) * s

        # fc2: Linear(32, 2) on the mask embedding
        y2_ref[...] = (jnp.dot(e2, fc2_wt_ref[...],
                               preferred_element_type=jnp.float32)
                       + fc2_b_ref[...])


def focus_face_forward(x_feat, label, prep):
    """x_feat: (B, 512*7*7) backbone pre-fc features.  label: (B,) int32.
    Returns (y, e1, e2, y2) like FocusFace.forward(inference=False)."""
    kernel = functools.partial(
        _focus_face_kernel,
        cos_m=math.cos(ARC_M),
        sin_m=math.sin(ARC_M),
        th=math.cos(math.pi - ARC_M),
        mm=math.sin(math.pi - ARC_M) * ARC_M,
        s=ARC_S,
    )
    label2d = label.reshape(B, 1).astype(jnp.int32)
    kt = K // TK
    y, e1, e2, y2 = pl.pallas_call(
        kernel,
        out_shape=(jax.ShapeDtypeStruct((B, IDENTITIES), jnp.float32),
                   jax.ShapeDtypeStruct((B, C1), jnp.float32),
                   jax.ShapeDtypeStruct((B, C2), jnp.float32),
                   jax.ShapeDtypeStruct((B, 2), jnp.float32)),
        grid=(kt,),
        in_specs=[
            pl.BlockSpec((B, TK), lambda k: (0, k)),            # x (f32, cast in-kernel)
            pl.BlockSpec((TK, C_CAT), lambda k: (k, 0)),        # fused conv weight (bf16)
            pl.BlockSpec((1, C_CAT), lambda k: (0, 0)),         # BN scale
            pl.BlockSpec((1, C_CAT), lambda k: (0, 0)),         # BN bias
            pl.BlockSpec((C1, IDENTITIES), lambda k: (0, 0)),   # pre-normalized arc W^T
            pl.BlockSpec((B, 1), lambda k: (0, 0)),             # label
            pl.BlockSpec((C2, 2), lambda k: (0, 0)),            # fc2 W^T
            pl.BlockSpec((1, 2), lambda k: (0, 0)),             # fc2 bias
        ],
        out_specs=(pl.BlockSpec((B, IDENTITIES), lambda k: (0, 0)),
                   pl.BlockSpec((B, C1), lambda k: (0, 0)),
                   pl.BlockSpec((B, C2), lambda k: (0, 0)),
                   pl.BlockSpec((B, 2), lambda k: (0, 0))),
        scratch_shapes=[pltpu.VMEM((B, C_CAT), jnp.float32)],
        compiler_params=pltpu.CompilerParams(
            dimension_semantics=("arbitrary",)),
    )(x_feat, prep["w_cat"], prep["scale"], prep["bias"],
      prep["arc_wt_n"], label2d, prep["fc2_wt"], prep["fc2_b"])
    return y, e1, e2, y2


# =============================================================================
# Parameter init (PyTorch layout) + one-time layout prep (hoisted out of fwd)
# =============================================================================
def init_params(key):
    ks = jax.random.split(key, 12)
    p = {}
    # EmbeddingHead conv weights: (C_out, C_in, 7, 7), no bias
    p["w1"] = jax.random.normal(ks[0], (C1, C_IN, 7, 7), jnp.float32) * 0.02
    p["w2"] = jax.random.normal(ks[1], (C2, C_IN, 7, 7), jnp.float32) * 0.02
    # BatchNorm params + running stats (eval mode)
    p["bn1_gamma"] = 1.0 + 0.1 * jax.random.normal(ks[2], (C1,), jnp.float32)
    p["bn1_beta"] = 0.1 * jax.random.normal(ks[3], (C1,), jnp.float32)
    p["bn1_mean"] = 0.1 * jax.random.normal(ks[4], (C1,), jnp.float32)
    p["bn1_var"] = jax.random.uniform(ks[5], (C1,), jnp.float32, 0.5, 1.5)
    p["bn2_gamma"] = 1.0 + 0.1 * jax.random.normal(ks[6], (C2,), jnp.float32)
    p["bn2_beta"] = 0.1 * jax.random.normal(ks[7], (C2,), jnp.float32)
    p["bn2_mean"] = 0.1 * jax.random.normal(ks[8], (C2,), jnp.float32)
    p["bn2_var"] = jax.random.uniform(ks[9], (C2,), jnp.float32, 0.5, 1.5)
    # ArcMargin weight (out, in) — xavier uniform
    bound = math.sqrt(6.0 / (512 + IDENTITIES))
    p["arc_w"] = jax.random.uniform(ks[10], (IDENTITIES, 512), jnp.float32,
                                    -bound, bound)
    # fc2: Linear(32, 2)
    bound2 = 1.0 / math.sqrt(32.0)
    k_w, k_b = jax.random.split(ks[11])
    p["fc2_w"] = jax.random.uniform(k_w, (2, 32), jnp.float32, -bound2, bound2)
    p["fc2_b"] = jax.random.uniform(k_b, (2,), jnp.float32, -bound2, bound2)
    return p


def prepare_params(p):
    """One-time weight layout work, hoisted out of the per-call forward:
    flatten/transpose conv weights to (K, C_out), concatenate to (K, 544),
    cast to bf16 for the HBM-bandwidth-bound weight stream, fold BN running
    stats to scale/bias, pre-normalize ArcMargin rows, transpose fc2."""
    w1_t = p["w1"].reshape(C1, K).T                                # (K, 512)
    w2_t = p["w2"].reshape(C2, K).T                                # (K, 32)
    w_cat = jnp.concatenate([w1_t, w2_t], axis=1).astype(jnp.bfloat16)  # (K, 544)

    s1 = p["bn1_gamma"] / jnp.sqrt(p["bn1_var"] + BN_EPS)
    b1 = p["bn1_beta"] - p["bn1_mean"] * s1
    s2 = p["bn2_gamma"] / jnp.sqrt(p["bn2_var"] + BN_EPS)
    b2 = p["bn2_beta"] - p["bn2_mean"] * s2
    scale = jnp.concatenate([s1, s2]).reshape(1, C_CAT)
    bias = jnp.concatenate([b1, b2]).reshape(1, C_CAT)

    # F.normalize(weight) along in_features, applied once, then transposed.
    wn = jnp.sqrt(jnp.sum(p["arc_w"] * p["arc_w"], axis=1, keepdims=True))
    arc_wt_n = (p["arc_w"] / jnp.maximum(wn, 1e-12)).T             # (512, N) f32

    fc2_wt = p["fc2_w"].T                                          # (32, 2)
    fc2_b = p["fc2_b"].reshape(1, 2)
    return {"w_cat": w_cat, "scale": scale, "bias": bias,
            "arc_wt_n": arc_wt_n, "fc2_wt": fc2_wt, "fc2_b": fc2_b}


if __name__ == "__main__":
    key = jax.random.PRNGKey(0)
    k_param, k_x, k_lbl = jax.random.split(key, 3)

    params = init_params(k_param)
    prep = prepare_params(params)
    prep = jax.tree_util.tree_map(jax.block_until_ready, prep)

    x_feat = jax.random.normal(k_x, (B, K), jnp.float32)       # backbone features
    label = jax.random.randint(k_lbl, (B,), 0, IDENTITIES, jnp.int32)

    y, e1, e2, y2 = focus_face_forward(x_feat, label, prep)
    jax.block_until_ready((y, e1, e2, y2))

    assert y.shape == (B, IDENTITIES)
    assert e1.shape == (B, C1)
    assert e2.shape == (B, C2)
    assert y2.shape == (B, 2)
    assert bool(jnp.all(jnp.isfinite(y)))
    assert bool(jnp.all(jnp.isfinite(e1)))
    assert bool(jnp.all(jnp.isfinite(e2)))
    assert bool(jnp.all(jnp.isfinite(y2)))
    print("KERNEL_OK")
</pallas_src>

<mosaic_0001>
module attributes {stable_mosaic.version = 11 : i64} {
  func.func @_focus_face_kernel(%arg0: i32, %arg1: memref<2x3584xf32, #tpu.memory_space<vmem>>, %arg2: memref<3584x544xbf16, #tpu.memory_space<vmem>>, %arg3: memref<1x544xf32, #tpu.memory_space<vmem>>, %arg4: memref<1x544xf32, #tpu.memory_space<vmem>>, %arg5: memref<512x256xf32, #tpu.memory_space<vmem>>, %arg6: memref<2x1xi32, #tpu.memory_space<vmem>>, %arg7: memref<32x2xf32, #tpu.memory_space<vmem>>, %arg8: memref<1x2xf32, #tpu.memory_space<vmem>>, %arg9: memref<2x256xf32, #tpu.memory_space<vmem>>, %arg10: memref<2x512xf32, #tpu.memory_space<vmem>>, %arg11: memref<2x32xf32, #tpu.memory_space<vmem>>, %arg12: memref<2x2xf32, #tpu.memory_space<vmem>>, %arg13: memref<2x544xf32, #tpu.memory_space<vmem>>) attributes {dimension_semantics = [#tpu.dimension_semantics<arbitrary>], iteration_bounds = array<i64: 7>, scalar_prefetch = 0 : i64, scratch_operands = 1 : i64, tpu.core_type = #tpu.core_type<tc>, window_params = [{transform_indices = @transform_0, window_bounds = array<i64: 2, 3584>}, {transform_indices = @transform_1, window_bounds = array<i64: 3584, 544>}, {pipeline_mode = #tpu.pipeline_mode<synchronous>, transform_indices = @transform_2, window_bounds = array<i64: 1, 544>}, {pipeline_mode = #tpu.pipeline_mode<synchronous>, transform_indices = @transform_3, window_bounds = array<i64: 1, 544>}, {pipeline_mode = #tpu.pipeline_mode<synchronous>, transform_indices = @transform_4, window_bounds = array<i64: 512, 256>}, {pipeline_mode = #tpu.pipeline_mode<synchronous>, transform_indices = @transform_5, window_bounds = array<i64: 2, 1>}, {pipeline_mode = #tpu.pipeline_mode<synchronous>, transform_indices = @transform_6, window_bounds = array<i64: 32, 2>}, {pipeline_mode = #tpu.pipeline_mode<synchronous>, transform_indices = @transform_7, window_bounds = array<i64: 1, 2>}, {pipeline_mode = #tpu.pipeline_mode<synchronous>, transform_indices = @transform_8, window_bounds = array<i64: 2, 256>}, {pipeline_mode = #tpu.pipeline_mode<synchronous>, transform_indices = @transform_9, window_bounds = array<i64: 2, 512>}, {pipeline_mode = #tpu.pipeline_mode<synchronous>, transform_indices = @transform_10, window_bounds = array<i64: 2, 32>}, {pipeline_mode = #tpu.pipeline_mode<synchronous>, transform_indices = @transform_11, window_bounds = array<i64: 2, 2>}]} {
    %c0_i32 = arith.constant 0 : i32
    %0 = arith.cmpi eq, %arg0, %c0_i32 : i32
    %1 = arith.extui %0 : i1 to i32
    %c0_i32_0 = arith.constant 0 : i32
    %2 = arith.cmpi ne, %1, %c0_i32_0 : i32
    scf.if %2 {
      %cst_9 = arith.constant 0.000000e+00 : f32
      %13 = vector.broadcast %cst_9 : f32 to vector<2x544xf32>
      %c0_10 = arith.constant 0 : index
      %c0_11 = arith.constant 0 : index
      %14 = vector.load %arg13[%c0_10, %c0_11] : memref<2x544xf32, #tpu.memory_space<vmem>>, vector<2x544xf32>
      tpu.vector_store %arg13[%c0_10, %c0_11], %13 {strides = array<i32>} : memref<2x544xf32, #tpu.memory_space<vmem>>, vector<2x544xf32>,
    } else {
    }
    %c0 = arith.constant 0 : index
    %c0_1 = arith.constant 0 : index
    %3 = vector.load %arg13[%c0, %c0_1] : memref<2x544xf32, #tpu.memory_space<vmem>>, vector<2x544xf32>
    %c0_2 = arith.constant 0 : index
    %c0_3 = arith.constant 0 : index
    %4 = vector.load %arg1[%c0_2, %c0_3] : memref<2x3584xf32, #tpu.memory_space<vmem>>, vector<2x3584xf32>
    %5 = arith.truncf %4 : vector<2x3584xf32> to vector<2x3584xbf16>
    %c0_4 = arith.constant 0 : index
    %c0_5 = arith.constant 0 : index
    %6 = vector.load %arg2[%c0_4, %c0_5] : memref<3584x544xbf16, #tpu.memory_space<vmem>>, vector<3584x544xbf16>
    %cst = arith.constant dense<0.000000e+00> : vector<2x544xf32>
    %7 = tpu.matmul %5, %6, %cst {dimension_numbers = #tpu.dot_dimension_numbers<[1], [0], [0], [1], [0, 0, 1, 1], [], []>} : vector<2x3584xbf16>, vector<3584x544xbf16>, vector<2x544xf32> -> vector<2x544xf32>
    %8 = arith.addf %3, %7 : vector<2x544xf32>
    %c0_6 = arith.constant 0 : index
    %c0_7 = arith.constant 0 : index
    %9 = vector.load %arg13[%c0_6, %c0_7] : memref<2x544xf32, #tpu.memory_space<vmem>>, vector<2x544xf32>
    tpu.vector_store %arg13[%c0_6, %c0_7], %8 {strides = array<i32>} : memref<2x544xf32, #tpu.memory_space<vmem>>, vector<2x544xf32>,
    %c6_i32 = arith.constant 6 : i32
    %10 = arith.cmpi eq, %arg0, %c6_i32 : i32
    %11 = arith.extui %10 : i1 to i32
    %c0_i32_8 = arith.constant 0 : i32
    %12 = arith.cmpi ne, %11, %c0_i32_8 : i32
    scf.if %12 {
      %c0_9 = arith.constant 0 : index
      %c0_10 = arith.constant 0 : index
      %13 = vector.load %arg13[%c0_9, %c0_10] : memref<2x544xf32, #tpu.memory_space<vmem>>, vector<2x544xf32>
      %c0_11 = arith.constant 0 : index
      %c0_12 = arith.constant 0 : index
      %14 = vector.load %arg3[%c0_11, %c0_12] : memref<1x544xf32, #tpu.memory_space<vmem>>, vector<1x544xf32>
      %15 = vector.broadcast %14 : vector<1x544xf32> to vector<2x544xf32>
      %16 = arith.mulf %13, %15 : vector<2x544xf32>
      %c0_13 = arith.constant 0 : index
      %c0_14 = arith.constant 0 : index
      %17 = vector.load %arg4[%c0_13, %c0_14] : memref<1x544xf32, #tpu.memory_space<vmem>>, vector<1x544xf32>
      %18 = vector.broadcast %17 : vector<1x544xf32> to vector<2x544xf32>
      %19 = arith.addf %16, %18 : vector<2x544xf32>
      %20 = vector.extract_strided_slice %19 {offsets = [0, 0], sizes = [2, 512], strides = [1, 1]} : vector<2x544xf32> to vector<2x512xf32>
      %21 = vector.extract_strided_slice %19 {offsets = [0, 512], sizes = [2, 32], strides = [1, 1]} : vector<2x544xf32> to vector<2x32xf32>
      %cst_15 = arith.constant 0.000000e+00 : f32
      %cst_16 = arith.constant 6.000000e+00 : f32
      %22 = vector.broadcast %cst_15 : f32 to vector<2x32xf32>
      %23 = arith.maximumf %22, %21 : vector<2x32xf32>
      %24 = vector.broadcast %cst_16 : f32 to vector<2x32xf32>
      %25 = arith.minimumf %24, %23 : vector<2x32xf32>
      %c0_17 = arith.constant 0 : index
      %c0_18 = arith.constant 0 : index
      %26 = vector.load %arg10[%c0_17, %c0_18] : memref<2x512xf32, #tpu.memory_space<vmem>>, vector<2x512xf32>
      tpu.vector_store %arg10[%c0_17, %c0_18], %20 {strides = array<i32>} : memref<2x512xf32, #tpu.memory_space<vmem>>, vector<2x512xf32>,
      %c0_19 = arith.constant 0 : index
      %c0_20 = arith.constant 0 : index
      %27 = vector.load %arg11[%c0_19, %c0_20] : memref<2x32xf32, #tpu.memory_space<vmem>>, vector<2x32xf32>
      tpu.vector_store %arg11[%c0_19, %c0_20], %25 {strides = array<i32>} : memref<2x32xf32, #tpu.memory_space<vmem>>, vector<2x32xf32>,
      %28 = arith.mulf %20, %20 : vector<2x512xf32>
      %cst_21 = arith.constant dense<0.000000e+00> : vector<2xf32>
      %29 = vector.multi_reduction <add>, %28, %cst_21 [1] : vector<2x512xf32> to vector<2xf32>
      %30 = vector.shape_cast %29 : vector<2xf32> to vector<2x1xf32>
      %31 = math.sqrt %30 : vector<2x1xf32>
      %cst_22 = arith.constant 9.99999996E-13 : f32
      %32 = vector.broadcast %cst_22 : f32 to vector<2x1xf32>
      %33 = arith.maximumf %31, %32 : vector<2x1xf32>
      %34 = vector.broadcast %33 : vector<2x1xf32> to vector<2x512xf32>
      %35 = arith.divf %20, %34 : vector<2x512xf32>
      %c0_23 = arith.constant 0 : index
      %c0_24 = arith.constant 0 : index
      %36 = vector.load %arg5[%c0_23, %c0_24] : memref<512x256xf32, #tpu.memory_space<vmem>>, vector<512x256xf32>
      %cst_25 = arith.constant dense<0.000000e+00> : vector<2x256xf32>
      %37 = tpu.matmul %35, %36, %cst_25 {dimension_numbers = #tpu.dot_dimension_numbers<[1], [0], [0], [1], [0, 0, 1, 1], [], []>} : vector<2x512xf32>, vector<512x256xf32>, vector<2x256xf32> -> vector<2x256xf32>
      %38 = arith.mulf %37, %37 : vector<2x256xf32>
      %cst_26 = arith.constant 1.000000e+00 : f32
      %39 = vector.broadcast %cst_26 : f32 to vector<2x256xf32>
      %40 = arith.subf %39, %38 : vector<2x256xf32>
      %cst_27 = arith.constant 9.99999971E-10 : f32
      %cst_28 = arith.constant 1.000000e+00 : f32
      %41 = vector.broadcast %cst_27 : f32 to vector<2x256xf32>
      %42 = arith.maximumf %41, %40 : vector<2x256xf32>
      %43 = vector.broadcast %cst_28 : f32 to vector<2x256xf32>
      %44 = arith.minimumf %43, %42 : vector<2x256xf32>
      %45 = math.sqrt %44 : vector<2x256xf32>
      %cst_29 = arith.constant 0.87758255 : f32
      %46 = vector.broadcast %cst_29 : f32 to vector<2x256xf32>
      %47 = arith.mulf %37, %46 : vector<2x256xf32>
      %cst_30 = arith.constant 0.47942555 : f32
      %48 = vector.broadcast %cst_30 : f32 to vector<2x256xf32>
      %49 = arith.mulf %45, %48 : vector<2x256xf32>
      %50 = arith.subf %47, %49 : vector<2x256xf32>
      %cst_31 = arith.constant -0.87758255 : f32
      %51 = vector.broadcast %cst_31 : f32 to vector<2x256xf32>
      %52 = arith.cmpf ogt, %37, %51 : vector<2x256xf32>
      %cst_32 = arith.constant 0.239712775 : f32
      %53 = vector.broadcast %cst_32 : f32 to vector<2x256xf32>
      %54 = arith.subf %37, %53 : vector<2x256xf32>
      %55 = arith.select %52, %50, %54 : vector<2x256xi1>, vector<2x256xf32>
      %56 = tpu.iota {dimensions = array<i32: 1>} : vector<2x256xi32>
      %c0_33 = arith.constant 0 : index
      %c0_34 = arith.constant 0 : index
      %57 = vector.load %arg6[%c0_33, %c0_34] : memref<2x1xi32, #tpu.memory_space<vmem>>, vector<2x1xi32>
      %58 = vector.broadcast %57 : vector<2x1xi32> to vector<2x256xi32>
      %59 = arith.cmpi eq, %56, %58 : vector<2x256xi32>
      %60 = arith.extui %59 : vector<2x256xi1> to vector<2x256xi32>
      %61 = arith.sitofp %60 : vector<2x256xi32> to vector<2x256xf32>
      %62 = arith.mulf %61, %55 : vector<2x256xf32>
      %cst_35 = arith.constant 1.000000e+00 : f32
      %63 = vector.broadcast %cst_35 : f32 to vector<2x256xf32>
      %64 = arith.subf %63, %61 : vector<2x256xf32>
      %65 = arith.mulf %64, %37 : vector<2x256xf32>
      %66 = arith.addf %62, %65 : vector<2x256xf32>
      %cst_36 = arith.constant 6.400000e+01 : f32
      %67 = vector.broadcast %cst_36 : f32 to vector<2x256xf32>
      %68 = arith.mulf %66, %67 : vector<2x256xf32>
      %c0_37 = arith.constant 0 : index
      %c0_38 = arith.constant 0 : index
      %69 = vector.load %arg9[%c0_37, %c0_38] : memref<2x256xf32, #tpu.memory_space<vmem>>, vector<2x256xf32>
      tpu.vector_store %arg9[%c0_37, %c0_38], %68 {strides = array<i32>} : memref<2x256xf32, #tpu.memory_space<vmem>>, vector<2x256xf32>,
      %c0_39 = arith.constant 0 : index
      %c0_40 = arith.constant 0 : index
      %70 = vector.load %arg7[%c0_39, %c0_40] : memref<32x2xf32, #tpu.memory_space<vmem>>, vector<32x2xf32>
      %cst_41 = arith.constant dense<0.000000e+00> : vector<2x2xf32>
      %71 = tpu.matmul %25, %70, %cst_41 {dimension_numbers = #tpu.dot_dimension_numbers<[1], [0], [0], [1], [0, 0, 1, 1], [], []>} : vector<2x32xf32>, vector<32x2xf32>, vector<2x2xf32> -> vector<2x2xf32>
      %c0_42 = arith.constant 0 : index
      %c0_43 = arith.constant 0 : index
      %72 = vector.load %arg8[%c0_42, %c0_43] : memref<1x2xf32, #tpu.memory_space<vmem>>, vector<1x2xf32>
      %73 = vector.broadcast %72 : vector<1x2xf32> to vector<2x2xf32>
      %74 = arith.addf %71, %73 : vector<2x2xf32>
      %c0_44 = arith.constant 0 : index
      %c0_45 = arith.constant 0 : index
      %75 = vector.load %arg12[%c0_44, %c0_45] : memref<2x2xf32, #tpu.memory_space<vmem>>, vector<2x2xf32>
      tpu.vector_store %arg12[%c0_44, %c0_45], %74 {strides = array<i32>} : memref<2x2xf32, #tpu.memory_space<vmem>>, vector<2x2xf32>,
    } else {
    }
    return
  }
  func.func @transform_0(%arg0: i32) -> (i32, i32) {
    %c0_i32 = arith.constant 0 : i32
    %c0_i32_0 = arith.constant 0 : i32
    return %c0_i32, %arg0 : i32, i32
  }
  func.func @transform_1(%arg0: i32) -> (i32, i32) {
    %c0_i32 = arith.constant 0 : i32
    %c0_i32_0 = arith.constant 0 : i32
    return %arg0, %c0_i32 : i32, i32
  }
  func.func @transform_2(%arg0: i32) -> (i32, i32) {
    %c0_i32 = arith.constant 0 : i32
    %c0_i32_0 = arith.constant 0 : i32
    %c0_i32_1 = arith.constant 0 : i32
    return %c0_i32, %c0_i32_0 : i32, i32
  }
  func.func @transform_3(%arg0: i32) -> (i32, i32) {
    %c0_i32 = arith.constant 0 : i32
    %c0_i32_0 = arith.constant 0 : i32
    %c0_i32_1 = arith.constant 0 : i32
    return %c0_i32, %c0_i32_0 : i32, i32
  }
  func.func @transform_4(%arg0: i32) -> (i32, i32) {
    %c0_i32 = arith.constant 0 : i32
    %c0_i32_0 = arith.constant 0 : i32
    %c0_i32_1 = arith.constant 0 : i32
    return %c0_i32, %c0_i32_0 : i32, i32
  }
  func.func @transform_5(%arg0: i32) -> (i32, i32) {
    %c0_i32 = arith.constant 0 : i32
    %c0_i32_0 = arith.constant 0 : i32
    %c0_i32_1 = arith.constant 0 : i32
    return %c0_i32, %c0_i32_0 : i32, i32
  }
  func.func @transform_6(%arg0: i32) -> (i32, i32) {
    %c0_i32 = arith.constant 0 : i32
    %c0_i32_0 = arith.constant 0 : i32
    %c0_i32_1 = arith.constant 0 : i32
    return %c0_i32, %c0_i32_0 : i32, i32
  }
  func.func @transform_7(%arg0: i32) -> (i32, i32) {
    %c0_i32 = arith.constant 0 : i32
    %c0_i32_0 = arith.constant 0 : i32
    %c0_i32_1 = arith.constant 0 : i32
    return %c0_i32, %c0_i32_0 : i32, i32
  }
  func.func @transform_8(%arg0: i32) -> (i32, i32) {
    %c0_i32 = arith.constant 0 : i32
    %c0_i32_0 = arith.constant 0 : i32
    %c0_i32_1 = arith.constant 0 : i32
    return %c0_i32, %c0_i32_0 : i32, i32
  }
  func.func @transform_9(%arg0: i32) -> (i32, i32) {
    %c0_i32 = arith.constant 0 : i32
    %c0_i32_0 = arith.constant 0 : i32
    %c0_i32_1 = arith.constant 0 : i32
    return %c0_i32, %c0_i32_0 : i32, i32
  }
  func.func @transform_10(%arg0: i32) -> (i32, i32) {
    %c0_i32 = arith.constant 0 : i32
    %c0_i32_0 = arith.constant 0 : i32
    %c0_i32_1 = arith.constant 0 : i32
    return %c0_i32, %c0_i32_0 : i32, i32
  }
  func.func @transform_11(%arg0: i32) -> (i32, i32) {
    %c0_i32 = arith.constant 0 : i32
    %c0_i32_0 = arith.constant 0 : i32
    %c0_i32_1 = arith.constant 0 : i32
    return %c0_i32, %c0_i32_0 : i32, i32
  }
}

</mosaic_0001>

<llo_original>
// kernel: tpu_custom_call.1
$region0: #{tpu_custom_call.1}
  #allocation0 [shape = 'u32[]', space=smem, size = 0x4, offset = 0x4, fixed_abs, tag = 'smem constant byte address 0x4 - core index']
  #allocation1 [shape = 'u32[72,128]{1,0:T(1,128)}', space=vmem, size = 0x9000, scoped, tag = 'internal scratch']
  #allocation2 [shape = 'f32[2,544]{1,0:T(2,128)}', space=vmem, size = 0x1400, scoped, tag = 'scratch operand']
  %s0 = inlined_call_operand.vmem [shape: f32[2,25088], index: 0, kind: input, shape index: {}]
  %s1 = inlined_call_operand.vmem [shape: bf16[25088,544], index: 1, kind: input, shape index: {}]
  %s2 = inlined_call_operand.vmem [shape: f32[1,544], index: 2, kind: input, shape index: {}]
  %s3 = inlined_call_operand.vmem [shape: f32[1,544], index: 3, kind: input, shape index: {}]
  %s4 = inlined_call_operand.vmem [shape: f32[512,256], index: 4, kind: input, shape index: {}]
  %s5 = inlined_call_operand.vmem [shape: s32[2,1], index: 5, kind: input, shape index: {}]
  %s6 = inlined_call_operand.vmem [shape: f32[32,2], index: 6, kind: input, shape index: {}]
  %s7 = inlined_call_operand.vmem [shape: f32[1,2], index: 7, kind: input, shape index: {}]
  %s8 = inlined_call_operand.hbm [shape: f32[2,256], index: 8, kind: output, shape index: {0}]
  %s9 = inlined_call_operand.hbm [shape: f32[2,512], index: 9, kind: output, shape index: {1}]
  %s10 = inlined_call_operand.hbm [shape: f32[2,32], index: 10, kind: output, shape index: {2}]
  %s11 = inlined_call_operand.hbm [shape: f32[2,2], index: 11, kind: output, shape index: {3}]
  %12 = xla_tuple %s8, %s9, %s10, %s11
  %s13 = sld [smem:[#allocation0]]
  $region97: #{tpu_custom_call.1} parent=0
    _
  %s15 = ssub.s32 1, %s13
  %s16 = scalar_select 0, %s15, %s13
  $region1: #{tpu_custom_call.1} parent=0
    #allocation3 [shape = 'u8[2048]{0}', space=vmem, size = 0x800, scoped, tag = 'output window, operand 0, single buffered']
    #allocation4 [shape = 's32[2]{0}', space=sflag, size = 0x8, scoped, tag = 'scoped memory for tpu_custom_call.1']
    #allocation5 [shape = 'u8[4096]{0}', space=vmem, size = 0x1000, scoped, tag = 'output window, operand 1, single buffered']
    #allocation6 [shape = 's32[1]{0}', space=sflag, size = 0x4, scoped, tag = 'scoped memory for tpu_custom_call.1']
    #allocation7 [shape = 'u8[1024]{0}', space=vmem, size = 0x400, scoped, tag = 'output window, operand 2, single buffered']
    #allocation8 [shape = 'u8[1024]{0}', space=vmem, size = 0x400, scoped, tag = 'output window, operand 3, single buffered']
    #allocation9 [shape = 's32[1]{0}', space=sflag, size = 0x4, scoped, tag = 'scoped memory for tpu_custom_call.1']
    %17 = vsyncpa [#allocation4], 0
    %18 = vsyncpa [#allocation6], 0
    %19 = vsyncpa [#allocation9], 0
    loop: start=0, step=1, limit=9
    $region2: #{tpu_custom_call.1} parent=1 // loop_pre_header
      _
    $region3: #{tpu_custom_call.1} parent=1 // loop_header
      %s21 = sphi 0, %s25
      %p22 = scmp.ge.s32.totalorder %s21, 9
      %s31 = sphi 0, %s33
      %s34 = sphi 0, %s31
      %s35 = sphi 0, %s34
      %s51 = sphi 0, %s35
      %s57 = sphi 0, %s59
      %s60 = sphi 0, %s57
      %s61 = sphi 0, %s60
      %s77 = sphi 0, %s61
      %s81 = sphi 0, %s81
      %s83 = sphi 0, %s81
      %s84 = sphi 0, %s83
      %s98 = sphi 0, %s84
      %s102 = sphi 0, %s102
      %s104 = sphi 0, %s102
      %s105 = sphi 0, %s104
      %s119 = sphi 0, %s105
      %s123 = sphi 0, %s123
      %s125 = sphi 0, %s123
      %s126 = sphi 0, %s125
      %s140 = sphi 0, %s126
      %s144 = sphi 0, %s144
      %s146 = sphi 0, %s144
      %s147 = sphi 0, %s146
      %s161 = sphi 0, %s147
      %s165 = sphi 0, %s165
      %s167 = sphi 0, %s165
      %s168 = sphi 0, %s167
      %s182 = sphi 0, %s168
      %s186 = sphi 0, %s186
      %s188 = sphi 0, %s186
      %s189 = sphi 0, %s188
      %s203 = sphi 0, %s189
      %s207 = sphi 0, %s207
      %s209 = sphi 0, %s207
      %s210 = sphi 0, %s209
      %s224 = sphi 0, %s210
      %s228 = sphi 0, %s228
      %s230 = sphi 0, %s228
      %s231 = sphi 0, %s230
      %s245 = sphi 0, %s231
      %s249 = sphi 0, %s249
      %s251 = sphi 0, %s249
      %s252 = sphi 0, %s251
      %s266 = sphi 0, %s252
      %s270 = sphi 0, %s270
      %s272 = sphi 0, %s270
      %s273 = sphi 0, %s272
      %s287 = sphi 0, %s273
    $region4: #{tpu_custom_call.1} parent=1 // loop_header_branch
      %24 = sbr.rel (%p22) target = $region8
    $region5: #{tpu_custom_call.1} parent=1 // loop_body
      %s26 = ssub.s32 %s21, 1
      %s27 = ssub.s32 %s21, 2
      %s28 = sadd.s32 %s21, 1
      %s29 = ssub.s32 %s21, %s28
      %p30 = scmp.eq.s32.totalorder %s29, 0
      %s32 = sadd.s32 %s31, 1
      %s33 = scalar_select %p30, %s31, %s32
      %p36 = pneg %p30
      %p37 = scmp.eq.s32.totalorder %s21, 6
      %p38 = por %p36, %p37
      %p39 = scmp.ne.s32.totalorder %s31, %s34
      %p40 = scmp.eq.s32.totalorder %s21, 0
      %p41 = por %p39, %p40
      %p42 = scmp.ne.s32.totalorder %s31, %s34
      %p43 = scmp.eq.s32.totalorder %s26, 6
      %p44 = por %p42, %p43
      %p45 = scmp.ne.s32.totalorder %s34, %s35
      %p46 = scmp.eq.s32.totalorder %s26, 0
      %p47 = por %p45, %p46
      %p48 = scmp.ne.s32.totalorder %s34, %s35
      %p49 = scmp.eq.s32.totalorder %s27, 6
      %p50 = por %p48, %p49
      %p52 = scmp.ne.s32.totalorder %s35, %s51
      %p53 = scmp.eq.s32.totalorder %s27, 0
      %p54 = por %p52, %p53
      %s55 = ssub.s32 %s21, %s28
      %p56 = scmp.eq.s32.totalorder %s55, 0
      %s58 = sadd.s32 %s57, 1
      %s59 = scalar_select %p56, %s57, %s58
      %p62 = pneg %p56
      %p63 = scmp.eq.s32.totalorder %s21, 6
      %p64 = por %p62, %p63
      %p65 = scmp.ne.s32.totalorder %s57, %s60
      %p66 = scmp.eq.s32.totalorder %s21, 0
      %p67 = por %p65, %p66
      %p68 = scmp.ne.s32.totalorder %s57, %s60
      %p69 = scmp.eq.s32.totalorder %s26, 6
      %p70 = por %p68, %p69
      %p71 = scmp.ne.s32.totalorder %s60, %s61
      %p72 = scmp.eq.s32.totalorder %s26, 0
      %p73 = por %p71, %p72
      %p74 = scmp.ne.s32.totalorder %s60, %s61
      %p75 = scmp.eq.s32.totalorder %s27, 6
      %p76 = por %p74, %p75
      %p78 = scmp.ne.s32.totalorder %s61, %s77
      %p79 = scmp.eq.s32.totalorder %s27, 0
      %p80 = por %p78, %p79
      %s82 = sadd.s32 %s81, 1
      %p85 = scmp.eq.s32.totalorder %s21, 6
      %p86 = scmp.ne.s32.totalorder %s81, %s83
      %p87 = scmp.eq.s32.totalorder %s21, 0
      %p88 = por %p86, %p87
      %p89 = scmp.ne.s32.totalorder %s81, %s83
      %p90 = scmp.eq.s32.totalorder %s26, 6
      %p91 = por %p89, %p90
      %p92 = scmp.ne.s32.totalorder %s83, %s84
      %p93 = scmp.eq.s32.totalorder %s26, 0
      %p94 = por %p92, %p93
      %p95 = scmp.ne.s32.totalorder %s83, %s84
      %p96 = scmp.eq.s32.totalorder %s27, 6
      %p97 = por %p95, %p96
      %p99 = scmp.ne.s32.totalorder %s84, %s98
      %p100 = scmp.eq.s32.totalorder %s27, 0
      %p101 = por %p99, %p100
      %s103 = sadd.s32 %s102, 1
      %p106 = scmp.eq.s32.totalorder %s21, 6
      %p107 = scmp.ne.s32.totalorder %s102, %s104
      %p108 = scmp.eq.s32.totalorder %s21, 0
      %p109 = por %p107, %p108
      %p110 = scmp.ne.s32.totalorder %s102, %s104
      %p111 = scmp.eq.s32.totalorder %s26, 6
      %p112 = por %p110, %p111
      %p113 = scmp.ne.s32.totalorder %s104, %s105
      %p114 = scmp.eq.s32.totalorder %s26, 0
      %p115 = por %p113, %p114
      %p116 = scmp.ne.s32.totalorder %s104, %s105
      %p117 = scmp.eq.s32.totalorder %s27, 6
      %p118 = por %p116, %p117
      %p120 = scmp.ne.s32.totalorder %s105, %s119
      %p121 = scmp.eq.s32.totalorder %s27, 0
      %p122 = por %p120, %p121
      %s124 = sadd.s32 %s123, 1
      %p127 = scmp.eq.s32.totalorder %s21, 6
      %p128 = scmp.ne.s32.totalorder %s123, %s125
      %p129 = scmp.eq.s32.totalorder %s21, 0
      %p130 = por %p128, %p129
      %p131 = scmp.ne.s32.totalorder %s123, %s125
      %p132 = scmp.eq.s32.totalorder %s26, 6
      %p133 = por %p131, %p132
      %p134 = scmp.ne.s32.totalorder %s125, %s126
      %p135 = scmp.eq.s32.totalorder %s26, 0
      %p136 = por %p134, %p135
      %p137 = scmp.ne.s32.totalorder %s125, %s126
      %p138 = scmp.eq.s32.totalorder %s27, 6
      %p139 = por %p137, %p138
      %p141 = scmp.ne.s32.totalorder %s126, %s140
      %p142 = scmp.eq.s32.totalorder %s27, 0
      %p143 = por %p141, %p142
      %s145 = sadd.s32 %s144, 1
      %p148 = scmp.eq.s32.totalorder %s21, 6
      %p149 = scmp.ne.s32.totalorder %s144, %s146
      %p150 = scmp.eq.s32.totalorder %s21, 0
      %p151 = por %p149, %p150
      %p152 = scmp.ne.s32.totalorder %s144, %s146
      %p153 = scmp.eq.s32.totalorder %s26, 6
      %p154 = por %p152, %p153
      %p155 = scmp.ne.s32.totalorder %s146, %s147
      %p156 = scmp.eq.s32.totalorder %s26, 0
      %p157 = por %p155, %p156
      %p158 = scmp.ne.s32.totalorder %s146, %s147
      %p159 = scmp.eq.s32.totalorder %s27, 6
      %p160 = por %p158, %p159
      %p162 = scmp.ne.s32.totalorder %s147, %s161
      %p163 = scmp.eq.s32.totalorder %s27, 0
      %p164 = por %p162, %p163
      %s166 = sadd.s32 %s165, 1
      %p169 = scmp.eq.s32.totalorder %s21, 6
      %p170 = scmp.ne.s32.totalorder %s165, %s167
      %p171 = scmp.eq.s32.totalorder %s21, 0
      %p172 = por %p170, %p171
      %p173 = scmp.ne.s32.totalorder %s165, %s167
      %p174 = scmp.eq.s32.totalorder %s26, 6
      %p175 = por %p173, %p174
      %p176 = scmp.ne.s32.totalorder %s167, %s168
      %p177 = scmp.eq.s32.totalorder %s26, 0
      %p178 = por %p176, %p177
      %p179 = scmp.ne.s32.totalorder %s167, %s168
      %p180 = scmp.eq.s32.totalorder %s27, 6
      %p181 = por %p179, %p180
      %p183 = scmp.ne.s32.totalorder %s168, %s182
      %p184 = scmp.eq.s32.totalorder %s27, 0
      %p185 = por %p183, %p184
      %s187 = sadd.s32 %s186, 1
      %p190 = scmp.eq.s32.totalorder %s21, 6
      %p191 = scmp.ne.s32.totalorder %s186, %s188
      %p192 = scmp.eq.s32.totalorder %s21, 0
      %p193 = por %p191, %p192
      %p194 = scmp.ne.s32.totalorder %s186, %s188
      %p195 = scmp.eq.s32.totalorder %s26, 6
      %p196 = por %p194, %p195
      %p197 = scmp.ne.s32.totalorder %s188, %s189
      %p198 = scmp.eq.s32.totalorder %s26, 0
      %p199 = por %p197, %p198
      %p200 = scmp.ne.s32.totalorder %s188, %s189
      %p201 = scmp.eq.s32.totalorder %s27, 6
      %p202 = por %p200, %p201
      %p204 = scmp.ne.s32.totalorder %s189, %s203
      %p205 = scmp.eq.s32.totalorder %s27, 0
      %p206 = por %p204, %p205
      %s208 = sadd.s32 %s207, 1
      %p211 = scmp.eq.s32.totalorder %s21, 6
      %p212 = scmp.ne.s32.totalorder %s207, %s209
      %p213 = scmp.eq.s32.totalorder %s21, 0
      %p214 = por %p212, %p213
      %p215 = scmp.ne.s32.totalorder %s207, %s209
      %p216 = scmp.eq.s32.totalorder %s26, 6
      %p217 = por %p215, %p216
      %p218 = scmp.ne.s32.totalorder %s209, %s210
      %p219 = scmp.eq.s32.totalorder %s26, 0
      %p220 = por %p218, %p219
      %p221 = scmp.ne.s32.totalorder %s209, %s210
      %p222 = scmp.eq.s32.totalorder %s27, 6
      %p223 = por %p221, %p222
      %p225 = scmp.ne.s32.totalorder %s210, %s224
      %p226 = scmp.eq.s32.totalorder %s27, 0
      %p227 = por %p225, %p226
      %s229 = sadd.s32 %s228, 1
      %p232 = scmp.eq.s32.totalorder %s21, 6
      %p233 = scmp.ne.s32.totalorder %s228, %s230
      %p234 = scmp.eq.s32.totalorder %s21, 0
      %p235 = por %p233, %p234
      %p236 = scmp.ne.s32.totalorder %s228, %s230
      %p237 = scmp.eq.s32.totalorder %s26, 6
      %p238 = por %p236, %p237
      %p239 = scmp.ne.s32.totalorder %s230, %s231
      %p240 = scmp.eq.s32.totalorder %s26, 0
      %p241 = por %p239, %p240
      %p242 = scmp.ne.s32.totalorder %s230, %s231
      %p243 = scmp.eq.s32.totalorder %s27, 6
      %p244 = por %p242, %p243
      %p246 = scmp.ne.s32.totalorder %s231, %s245
      %p247 = scmp.eq.s32.totalorder %s27, 0
      %p248 = por %p246, %p247
      %s250 = sadd.s32 %s249, 1
      %p253 = scmp.eq.s32.totalorder %s21, 6
      %p254 = scmp.ne.s32.totalorder %s249, %s251
      %p255 = scmp.eq.s32.totalorder %s21, 0
      %p256 = por %p254, %p255
      %p257 = scmp.ne.s32.totalorder %s249, %s251
      %p258 = scmp.eq.s32.totalorder %s26, 6
      %p259 = por %p257, %p258
      %p260 = scmp.ne.s32.totalorder %s251, %s252
      %p261 = scmp.eq.s32.totalorder %s26, 0
      %p262 = por %p260, %p261
      %p263 = scmp.ne.s32.totalorder %s251, %s252
      %p264 = scmp.eq.s32.totalorder %s27, 6
      %p265 = por %p263, %p264
      %p267 = scmp.ne.s32.totalorder %s252, %s266
      %p268 = scmp.eq.s32.totalorder %s27, 0
      %p269 = por %p267, %p268
      %s271 = sadd.s32 %s270, 1
      %p274 = scmp.eq.s32.totalorder %s21, 6
      %p275 = scmp.ne.s32.totalorder %s270, %s272
      %p276 = scmp.eq.s32.totalorder %s21, 0
      %p277 = por %p275, %p276
      %p278 = scmp.ne.s32.totalorder %s270, %s272
      %p279 = scmp.eq.s32.totalorder %s26, 6
      %p280 = por %p278, %p279
      %p281 = scmp.ne.s32.totalorder %s272, %s273
      %p282 = scmp.eq.s32.totalorder %s26, 0
      %p283 = por %p281, %p282
      %p284 = scmp.ne.s32.totalorder %s272, %s273
      %p285 = scmp.eq.s32.totalorder %s27, 6
      %p286 = por %p284, %p285
      %p288 = scmp.ne.s32.totalorder %s273, %s287
      %p289 = scmp.eq.s32.totalorder %s27, 0
      %p290 = por %p288, %p289
      %p291 = scmp.le.s32.totalorder 1, %s21
      %p292 = scmp.lt.s32.totalorder %s21, 8
      %p293 = pnand %p291, %p292
      %p294 = pneg %p293
      // Predicated region
      $region9: #{tpu_custom_call.1} parent=5 // pred_check
        _
      $region10: #{tpu_custom_call.1} parent=5 // pred_check_branch
        %296 = sbr.rel (%p293) target = $region12
      $region11: #{tpu_custom_call.1} parent=5 // pred_region
        %s297 = ssub.s32 %s21, 1
        // Predicated region
        $region13: #{tpu_custom_call.1} parent=11 // pred_check
          %p298 = pneg %p94
        $region14: #{tpu_custom_call.1} parent=11 // pred_check_branch
          %300 = sbr.rel (%p298) target = $region16
        $region15: #{tpu_custom_call.1} parent=11 // pred_region
          _
        $region16: #{tpu_custom_call.1} parent=11 // pred_fallthru
          _
        // Predicated region
        $region17: #{tpu_custom_call.1} parent=11 // pred_check
          %p301 = pneg %p115
        $region18: #{tpu_custom_call.1} parent=11 // pred_check_branch
          %303 = sbr.rel (%p301) target = $region20
        $region19: #{tpu_custom_call.1} parent=11 // pred_region
          _
        $region20: #{tpu_custom_call.1} parent=11 // pred_fallthru
          _
        // Predicated region
        $region21: #{tpu_custom_call.1} parent=11 // pred_check
          %p304 = pneg %p136
        $region22: #{tpu_custom_call.1} parent=11 // pred_check_branch
          %306 = sbr.rel (%p304) target = $region24
        $region23: #{tpu_custom_call.1} parent=11 // pred_region
          _
        $region24: #{tpu_custom_call.1} parent=11 // pred_fallthru
          _
        // Predicated region
        $region25: #{tpu_custom_call.1} parent=11 // pred_check
          %p307 = pneg %p157
        $region26: #{tpu_custom_call.1} parent=11 // pred_check_branch
          %309 = sbr.rel (%p307) target = $region28
        $region27: #{tpu_custom_call.1} parent=11 // pred_region
          _
        $region28: #{tpu_custom_call.1} parent=11 // pred_fallthru
          _
        // Predicated region
        $region29: #{tpu_custom_call.1} parent=11 // pred_check
          %p310 = pneg %p178
        $region30: #{tpu_custom_call.1} parent=11 // pred_check_branch
          %312 = sbr.rel (%p310) target = $region32
        $region31: #{tpu_custom_call.1} parent=11 // pred_region
          _
        $region32: #{tpu_custom_call.1} parent=11 // pred_fallthru
          _
        // Predicated region
        $region33: #{tpu_custom_call.1} parent=11 // pred_check
          %p313 = pneg %p199
        $region34: #{tpu_custom_call.1} parent=11 // pred_check_branch
          %315 = sbr.rel (%p313) target = $region36
        $region35: #{tpu_custom_call.1} parent=11 // pred_region
          _
        $region36: #{tpu_custom_call.1} parent=11 // pred_fallthru
          _
      $region12: #{tpu_custom_call.1} parent=5 // pred_fallthru
        _
      %p316 = scmp.lt.s32.totalorder %s21, 7
      // Predicated region
      $region37: #{tpu_custom_call.1} parent=5 // pred_check
        %p317 = pneg %p316
      $region38: #{tpu_custom_call.1} parent=5 // pred_check_branch
        %319 = sbr.rel (%p317) target = $region40
      $region39: #{tpu_custom_call.1} parent=5 // pred_region
        // Predicated region
        $region41: #{tpu_custom_call.1} parent=39 // pred_check
          %p320 = pneg %p41
        $region42: #{tpu_custom_call.1} parent=39 // pred_check_branch
          %322 = sbr.rel (%p320) target = $region44
        $region43: #{tpu_custom_call.1} parent=39 // pred_region
          %s323 = smul.u32 28, %s21
          %p324 = scmp.lt.s32.totalorder %s323, 195
          %s325 = scalar_select %p324, %s323, 195
          %s326 = smul.addr %s325, 2
          %s327 = scalar_lea.vmem %s0, %s326
          %s328 = smul.u32 28, %s21
        $region44: #{tpu_custom_call.1} parent=39 // pred_fallthru
          _
        // Predicated region
        $region45: #{tpu_custom_call.1} parent=39 // pred_check
          %p329 = pneg %p67
        $region46: #{tpu_custom_call.1} parent=39 // pred_check_branch
          %331 = sbr.rel (%p329) target = $region48
        $region47: #{tpu_custom_call.1} parent=39 // pred_region
          %s332 = smul.u32 448, %s21
          %p333 = scmp.lt.s32.totalorder %s332, 3135
          %s334 = scalar_select %p333, %s332, 3135
          %s335 = smul.addr %s334, 5
          %s336 = smul.addr %s335, 4
          %s337 = scalar_lea.vmem %s1, %s336
          %s338 = smul.u32 448, %s21
        $region48: #{tpu_custom_call.1} parent=39 // pred_fallthru
          _
      $region40: #{tpu_custom_call.1} parent=5 // pred_fallthru
        _
      %p339 = scmp.le.s32.totalorder 1, %s21
      %p340 = scmp.lt.s32.totalorder %s21, 8
      %p341 = pnand %p339, %p340
      %p342 = pneg %p341
      // Predicated region
      $region49: #{tpu_custom_call.1} parent=5 // pred_check
        _
      $region50: #{tpu_custom_call.1} parent=5 // pred_check_branch
        %344 = sbr.rel (%p341) target = $region52
      $region51: #{tpu_custom_call.1} parent=5 // pred_region
        %s345 = ssub.s32 %s21, 1
        %s346 = smul.u32 28, %s26
        %p347 = scmp.lt.s32.totalorder %s346, 195
        %s348 = scalar_select %p347, %s346, 195
        %s349 = smul.addr %s348, 2
        %s350 = scalar_lea.vmem %s0, %s349
        %p351 = pneg %p47
        %p352 = pneg %p44
        %s353 = smul.u32 448, %s26
        %p354 = scmp.lt.s32.totalorder %s353, 3135
        %s355 = scalar_select %p354, %s353, 3135
        %s356 = smul.addr %s355, 5
        %s357 = smul.addr %s356, 4
        %s358 = scalar_lea.vmem %s1, %s357
        %p359 = pneg %p73
        %p360 = pneg %p70
        %p361 = pneg %p94
        %p362 = pneg %p91
        %p363 = pneg %p115
        %p364 = pneg %p112
        %p365 = pneg %p136
        %p366 = pneg %p133
        %p367 = pneg %p157
        %p368 = pneg %p154
        %p369 = pneg %p178
        %p370 = pneg %p175
        %p371 = pneg %p199
        %p372 = pneg %p196
        %p373 = pneg %p220
        %p374 = pneg %p217
        %p375 = pneg %p241
        %p376 = pneg %p238
        %p377 = pneg %p262
        %p378 = pneg %p259
        %p379 = pneg %p283
        %p380 = pneg %p280
        %s381 = smul.u32 28, %s26
        %p382 = scmp.lt.s32.totalorder %s381, 195
        %s383 = scalar_select %p382, %s381, 195
        %s384 = smul.addr %s383, 2
        %s385 = scalar_lea.vmem %s0, %s384
        %s386 = smul.u32 28, %s26
        %s387 = smul.u32 448, %s26
        %p388 = scmp.lt.s32.totalorder %s387, 3135
        %s389 = scalar_select %p388, %s387, 3135
        %s390 = smul.addr %s389, 5
        %s391 = smul.addr %s390, 4
        %s392 = scalar_lea.vmem %s1, %s391
        %s393 = smul.u32 448, %s26
        %p394 = scmp.eq.s32.totalorder %s26, 0
        // Predicated region
        $region53: #{tpu_custom_call.1} parent=51 // pred_check
          %p395 = pneg %p394
        $region54: #{tpu_custom_call.1} parent=51 // pred_check_branch
          %397 = sbr.rel (%p395) target = $region56
        $region55: #{tpu_custom_call.1} parent=51 // pred_region
          %398 = vst [vmem:[#allocation2] sm:$0xff] 0.0
          %vm399 = vcmask 254976
          %400 = vst.msk [vmem:[#allocation2 + $0x8] sm:$0x3] %vm399, 0.0
        $region56: #{tpu_custom_call.1} parent=51 // pred_fallthru
          _
        %v401 = vld [vmem:[#allocation2] sm:$0xff]
        %v402 = vld [vmem:[#allocation2 + $0x8] sm:$0x3]
        %v403 = vld [vmem:[%s385] sm:$0xff]
        %v404 = vld [vmem:[%s385 + $0x8] sm:$0xff]
        %v405 = vld [vmem:[%s385 + $0x10] sm:$0xff]
        %v406 = vld [vmem:[%s385 + $0x18] sm:$0xff]
        %v407 = vld [vmem:[%s385 + $0x20] sm:$0xff]
        %v408 = vld [vmem:[%s385 + $0x28] sm:$0xff]
        %v409 = vld [vmem:[%s385 + $0x30] sm:$0xff]
        %417 = vst [vmem:[#allocation1] ss:$4 sm:$0xff] %v403
        %s418 = scalar_lea.vmem [#allocation1], 32
        %419 = vst [vmem:[%s418] ss:$4 sm:$0xff] %v404
        %v420 = vld.sshfl [vmem:[#allocation1] sm:$0xff pattern:$0x73625140]
        %v421 = vld.sshfl [vmem:[#allocation1 + $0x8] sm:$0xff pattern:$0x73625140]
        %v422 = vld.sshfl [vmem:[#allocation1 + $0x10] sm:$0xff pattern:$0x73625140]
        %v423 = vld.sshfl [vmem:[#allocation1 + $0x18] sm:$0xff pattern:$0x73625140]
        %v424 = vld.sshfl [vmem:[#allocation1 + $0x20] sm:$0xff pattern:$0x73625140]
        %v425 = vld.sshfl [vmem:[#allocation1 + $0x28] sm:$0xff pattern:$0x73625140]
        %v426 = vld.sshfl [vmem:[#allocation1 + $0x30] sm:$0xff pattern:$0x73625140]
        %v427 = vld.sshfl [vmem:[#allocation1 + $0x38] sm:$0xff pattern:$0x73625140]
        %428 = vst [vmem:[#allocation1] ss:$4 sm:$0xff] %v405
        %429 = vst [vmem:[%s418] ss:$4 sm:$0xff] %v406
        %v430 = vld.sshfl [vmem:[#allocation1] sm:$0xff pattern:$0x73625140]
        %v431 = vld.sshfl [vmem:[#allocation1 + $0x8] sm:$0xff pattern:$0x73625140]
        %v432 = vld.sshfl [vmem:[#allocation1 + $0x10] sm:$0xff pattern:$0x73625140]
        %v433 = vld.sshfl [vmem:[#allocation1 + $0x18] sm:$0xff pattern:$0x73625140]
        %v434 = vld.sshfl [vmem:[#allocation1 + $0x20] sm:$0xff pattern:$0x73625140]
        %v435 = vld.sshfl [vmem:[#allocation1 + $0x28] sm:$0xff pattern:$0x73625140]
        %v436 = vld.sshfl [vmem:[#allocation1 + $0x30] sm:$0xff pattern:$0x73625140]
        %v437 = vld.sshfl [vmem:[#allocation1 + $0x38] sm:$0xff pattern:$0x73625140]
        %438 = vst [vmem:[#allocation1] ss:$4 sm:$0xff] %v407
        %439 = vst [vmem:[%s418] ss:$4 sm:$0xff] %v408
        %v440 = vld.sshfl [vmem:[#allocation1] sm:$0xff pattern:$0x73625140]
        %v441 = vld.sshfl [vmem:[#allocation1 + $0x8] sm:$0xff pattern:$0x73625140]
        %v442 = vld.sshfl [vmem:[#allocation1 + $0x10] sm:$0xff pattern:$0x73625140]
        %v443 = vld.sshfl [vmem:[#allocation1 + $0x18] sm:$0xff pattern:$0x73625140]
        %v444 = vld.sshfl [vmem:[#allocation1 + $0x20] sm:$0xff pattern:$0x73625140]
        %v445 = vld.sshfl [vmem:[#allocation1 + $0x28] sm:$0xff pattern:$0x73625140]
        %v446 = vld.sshfl [vmem:[#allocation1 + $0x30] sm:$0xff pattern:$0x73625140]
        %v447 = vld.sshfl [vmem:[#allocation1 + $0x38] sm:$0xff pattern:$0x73625140]
        %448 = vst [vmem:[#allocation1] ss:$4 sm:$0xff] %v409
        %v449 = vld.sshfl [vmem:[#allocation1] sm:$0xff pattern:$0x73625140]
        %v450 = vld.sshfl [vmem:[#allocation1 + $0x8] sm:$0xff pattern:$0x73625140]
        %v451 = vld.sshfl [vmem:[#allocation1 + $0x10] sm:$0xff pattern:$0x73625140]
        %v452 = vld.sshfl [vmem:[#allocation1 + $0x18] sm:$0xff pattern:$0x73625140]
        %v481 = vpack.c.bf16 %v420, %v420
        %v482 = vpack.c.bf16 %v421, %v421
        %v483 = vpack.c.bf16 %v422, %v422
        %v484 = vpack.c.bf16 %v423, %v423
        %v485 = vpack.c.bf16 %v424, %v424
        %v486 = vpack.c.bf16 %v425, %v425
        %v487 = vpack.c.bf16 %v426, %v426
        %v488 = vpack.c.bf16 %v427, %v427
        %v489 = vpack.c.bf16 %v430, %v430
        %v490 = vpack.c.bf16 %v431, %v431
        %v491 = vpack.c.bf16 %v432, %v432
        %v492 = vpack.c.bf16 %v433, %v433
        %v493 = vpack.c.bf16 %v434, %v434
        %v494 = vpack.c.bf16 %v435, %v435
        %v495 = vpack.c.bf16 %v436, %v436
        %v496 = vpack.c.bf16 %v437, %v437
        %v497 = vpack.c.bf16 %v440, %v440
        %v498 = vpack.c.bf16 %v441, %v441
        %v499 = vpack.c.bf16 %v442, %v442
        %v500 = vpack.c.bf16 %v443, %v443
        %v501 = vpack.c.bf16 %v444, %v444
        %v502 = vpack.c.bf16 %v445, %v445
        %v503 = vpack.c.bf16 %v446, %v446
        %v504 = vpack.c.bf16 %v447, %v447
        %v505 = vpack.c.bf16 %v449, %v449
        %v506 = vpack.c.bf16 %v450, %v450
        %v507 = vpack.c.bf16 %v451, %v451
        %v508 = vpack.c.bf16 %v452, %v452
        %v509 = vld [vmem:[%s392] sm:$0xff]
        %v510 = vld [vmem:[%s392 + $0x8] sm:$0xff]
        %v511 = vld [vmem:[%s392 + $0x10] sm:$0xf]
        %v512 = vld [vmem:[%s392 + $0x14] sm:$0xff]
        %v513 = vld [vmem:[%s392 + $0x1c] sm:$0xff]
        %v514 = vld [vmem:[%s392 + $0x24] sm:$0xf]
        %v515 = vld [vmem:[%s392 + $0x28] sm:$0xff]
        %v516 = vld [vmem:[%s392 + $0x30] sm:$0xff]
        %v517 = vld [vmem:[%s392 + $0x38] sm:$0xf]
        %v518 = vld [vmem:[%s392 + $0x3c] sm:$0xff]
        %v519 = vld [vmem:[%s392 + $0x44] sm:$0xff]
        %v520 = vld [vmem:[%s392 + $0x4c] sm:$0xf]
        %v521 = vld [vmem:[%s392 + $0x50] sm:$0xff]
        %v522 = vld [vmem:[%s392 + $0x58] sm:$0xff]
        %v523 = vld [vmem:[%s392 + $0x60] sm:$0xf]
        %v524 = vld [vmem:[%s392 + $0x64] sm:$0xff]
        %v525 = vld [vmem:[%s392 + $0x6c] sm:$0xff]
        %v526 = vld [vmem:[%s392 + $0x74] sm:$0xf]
        %v527 = vld [vmem:[%s392 + $0x78] sm:$0xff]
        %v528 = vld [vmem:[%s392 + $0x80] sm:$0xff]
        %v529 = vld [vmem:[%s392 + $0x88] sm:$0xf]
        %v530 = vld [vmem:[%s392 + $0x8c] sm:$0xff]
        %v531 = vld [vmem:[%s392 + $0x94] sm:$0xff]
        %v532 = vld [vmem:[%s392 + $0x9c] sm:$0xf]
        %v533 = vld [vmem:[%s392 + $0xa0] sm:$0xff]
        %v534 = vld [vmem:[%s392 + $0xa8] sm:$0xff]
        %v535 = vld [vmem:[%s392 + $0xb0] sm:$0xf]
        %v536 = vld [vmem:[%s392 + $0xb4] sm:$0xff]
        %v537 = vld [vmem:[%s392 + $0xbc] sm:$0xff]
        %v538 = vld [vmem:[%s392 + $0xc4] sm:$0xf]
        %v539 = vld [vmem:[%s392 + $0xc8] sm:$0xff]
        %v540 = vld [vmem:[%s392 + $0xd0] sm:$0xff]
        %v541 = vld [vmem:[%s392 + $0xd8] sm:$0xf]
        %v542 = vld [vmem:[%s392 + $0xdc] sm:$0xff]
        %v543 = vld [vmem:[%s392 + $0xe4] sm:$0xff]
        %v544 = vld [vmem:[%s392 + $0xec] sm:$0xf]
        %v545 = vld [vmem:[%s392 + $0xf0] sm:$0xff]
        %v546 = vld [vmem:[%s392 + $0xf8] sm:$0xff]
        %v547 = vld [vmem:[%s392 + $0x100] sm:$0xf]
        %v548 = vld [vmem:[%s392 + $0x104] sm:$0xff]
        %v549 = vld [vmem:[%s392 + $0x10c] sm:$0xff]
        %v550 = vld [vmem:[%s392 + $0x114] sm:$0xf]
        %v551 = vld [vmem:[%s392 + $0x118] sm:$0xff]
        %v552 = vld [vmem:[%s392 + $0x120] sm:$0xff]
        %v553 = vld [vmem:[%s392 + $0x128] sm:$0xf]
        %v554 = vld [vmem:[%s392 + $0x12c] sm:$0xff]
        %v555 = vld [vmem:[%s392 + $0x134] sm:$0xff]
        %v556 = vld [vmem:[%s392 + $0x13c] sm:$0xf]
        %v557 = vld [vmem:[%s392 + $0x140] sm:$0xff]
        %v558 = vld [vmem:[%s392 + $0x148] sm:$0xff]
        %v559 = vld [vmem:[%s392 + $0x150] sm:$0xf]
        %v560 = vld [vmem:[%s392 + $0x154] sm:$0xff]
        %v561 = vld [vmem:[%s392 + $0x15c] sm:$0xff]
        %v562 = vld [vmem:[%s392 + $0x164] sm:$0xf]
        %v563 = vld [vmem:[%s392 + $0x168] sm:$0xff]
        %v564 = vld [vmem:[%s392 + $0x170] sm:$0xff]
        %v565 = vld [vmem:[%s392 + $0x178] sm:$0xf]
        %v566 = vld [vmem:[%s392 + $0x17c] sm:$0xff]
        %v567 = vld [vmem:[%s392 + $0x184] sm:$0xff]
        %v568 = vld [vmem:[%s392 + $0x18c] sm:$0xf]
        %v569 = vld [vmem:[%s392 + $0x190] sm:$0xff]
        %v570 = vld [vmem:[%s392 + $0x198] sm:$0xff]
        %v571 = vld [vmem:[%s392 + $0x1a0] sm:$0xf]
        %v572 = vld [vmem:[%s392 + $0x1a4] sm:$0xff]
        %v573 = vld [vmem:[%s392 + $0x1ac] sm:$0xff]
        %v574 = vld [vmem:[%s392 + $0x1b4] sm:$0xf]
        %v575 = vld [vmem:[%s392 + $0x1b8] sm:$0xff]
        %v576 = vld [vmem:[%s392 + $0x1c0] sm:$0xff]
        %v577 = vld [vmem:[%s392 + $0x1c8] sm:$0xf]
        %v578 = vld [vmem:[%s392 + $0x1cc] sm:$0xff]
        %v579 = vld [vmem:[%s392 + $0x1d4] sm:$0xff]
        %v580 = vld [vmem:[%s392 + $0x1dc] sm:$0xf]
        %v581 = vld [vmem:[%s392 + $0x1e0] sm:$0xff]
        %v582 = vld [vmem:[%s392 + $0x1e8] sm:$0xff]
        %v583 = vld [vmem:[%s392 + $0x1f0] sm:$0xf]
        %v584 = vld [vmem:[%s392 + $0x1f4] sm:$0xff]
        %v585 = vld [vmem:[%s392 + $0x1fc] sm:$0xff]
        %v586 = vld [vmem:[%s392 + $0x204] sm:$0xf]
        %v587 = vld [vmem:[%s392 + $0x208] sm:$0xff]
        %v588 = vld [vmem:[%s392 + $0x210] sm:$0xff]
        %v589 = vld [vmem:[%s392 + $0x218] sm:$0xf]
        %v590 = vld [vmem:[%s392 + $0x21c] sm:$0xff]
        %v591 = vld [vmem:[%s392 + $0x224] sm:$0xff]
        %v592 = vld [vmem:[%s392 + $0x22c] sm:$0xf]
        %v593 = vld [vmem:[%s392 + $0x230] sm:$0xff]
        %v594 = vld [vmem:[%s392 + $0x238] sm:$0xff]
        %v595 = vld [vmem:[%s392 + $0x240] sm:$0xf]
        %v596 = vld [vmem:[%s392 + $0x244] sm:$0xff]
        %v597 = vld [vmem:[%s392 + $0x24c] sm:$0xff]
        %v598 = vld [vmem:[%s392 + $0x254] sm:$0xf]
        %v599 = vld [vmem:[%s392 + $0x258] sm:$0xff]
        %v600 = vld [vmem:[%s392 + $0x260] sm:$0xff]
        %v601 = vld [vmem:[%s392 + $0x268] sm:$0xf]
        %v602 = vld [vmem:[%s392 + $0x26c] sm:$0xff]
        %v603 = vld [vmem:[%s392 + $0x274] sm:$0xff]
        %v604 = vld [vmem:[%s392 + $0x27c] sm:$0xf]
        %v605 = vld [vmem:[%s392 + $0x280] sm:$0xff]
        %v606 = vld [vmem:[%s392 + $0x288] sm:$0xff]
        %v607 = vld [vmem:[%s392 + $0x290] sm:$0xf]
        %v608 = vld [vmem:[%s392 + $0x294] sm:$0xff]
        %v609 = vld [vmem:[%s392 + $0x29c] sm:$0xff]
        %v610 = vld [vmem:[%s392 + $0x2a4] sm:$0xf]
        %v611 = vld [vmem:[%s392 + $0x2a8] sm:$0xff]
        %v612 = vld [vmem:[%s392 + $0x2b0] sm:$0xff]
        %v613 = vld [vmem:[%s392 + $0x2b8] sm:$0xf]
        %v614 = vld [vmem:[%s392 + $0x2bc] sm:$0xff]
        %v615 = vld [vmem:[%s392 + $0x2c4] sm:$0xff]
        %v616 = vld [vmem:[%s392 + $0x2cc] sm:$0xf]
        %v617 = vld [vmem:[%s392 + $0x2d0] sm:$0xff]
        %v618 = vld [vmem:[%s392 + $0x2d8] sm:$0xff]
        %v619 = vld [vmem:[%s392 + $0x2e0] sm:$0xf]
        %v620 = vld [vmem:[%s392 + $0x2e4] sm:$0xff]
        %v621 = vld [vmem:[%s392 + $0x2ec] sm:$0xff]
        %v622 = vld [vmem:[%s392 + $0x2f4] sm:$0xf]
        %v623 = vld [vmem:[%s392 + $0x2f8] sm:$0xff]
        %v624 = vld [vmem:[%s392 + $0x300] sm:$0xff]
        %v625 = vld [vmem:[%s392 + $0x308] sm:$0xf]
        %v626 = vld [vmem:[%s392 + $0x30c] sm:$0xff]
        %v627 = vld [vmem:[%s392 + $0x314] sm:$0xff]
        %v628 = vld [vmem:[%s392 + $0x31c] sm:$0xf]
        %v629 = vld [vmem:[%s392 + $0x320] sm:$0xff]
        %v630 = vld [vmem:[%s392 + $0x328] sm:$0xff]
        %v631 = vld [vmem:[%s392 + $0x330] sm:$0xf]
        %v632 = vld [vmem:[%s392 + $0x334] sm:$0xff]
        %v633 = vld [vmem:[%s392 + $0x33c] sm:$0xff]
        %v634 = vld [vmem:[%s392 + $0x344] sm:$0xf]
        %v635 = vld [vmem:[%s392 + $0x348] sm:$0xff]
        %v636 = vld [vmem:[%s392 + $0x350] sm:$0xff]
        %v637 = vld [vmem:[%s392 + $0x358] sm:$0xf]
        %v638 = vld [vmem:[%s392 + $0x35c] sm:$0xff]
        %v639 = vld [vmem:[%s392 + $0x364] sm:$0xff]
        %v640 = vld [vmem:[%s392 + $0x36c] sm:$0xf]
        %v641 = vld [vmem:[%s392 + $0x370] sm:$0xff]
        %v642 = vld [vmem:[%s392 + $0x378] sm:$0xff]
        %v643 = vld [vmem:[%s392 + $0x380] sm:$0xf]
        %v644 = vld [vmem:[%s392 + $0x384] sm:$0xff]
        %v645 = vld [vmem:[%s392 + $0x38c] sm:$0xff]
        %v646 = vld [vmem:[%s392 + $0x394] sm:$0xf]
        %v647 = vld [vmem:[%s392 + $0x398] sm:$0xff]
        %v648 = vld [vmem:[%s392 + $0x3a0] sm:$0xff]
        %v649 = vld [vmem:[%s392 + $0x3a8] sm:$0xf]
        %v650 = vld [vmem:[%s392 + $0x3ac] sm:$0xff]
        %v651 = vld [vmem:[%s392 + $0x3b4] sm:$0xff]
        %v652 = vld [vmem:[%s392 + $0x3bc] sm:$0xf]
        %v653 = vld [vmem:[%s392 + $0x3c0] sm:$0xff]
        %v654 = vld [vmem:[%s392 + $0x3c8] sm:$0xff]
        %v655 = vld [vmem:[%s392 + $0x3d0] sm:$0xf]
        %v656 = vld [vmem:[%s392 + $0x3d4] sm:$0xff]
        %v657 = vld [vmem:[%s392 + $0x3dc] sm:$0xff]
        %v658 = vld [vmem:[%s392 + $0x3e4] sm:$0xf]
        %v659 = vld [vmem:[%s392 + $0x3e8] sm:$0xff]
        %v660 = vld [vmem:[%s392 + $0x3f0] sm:$0xff]
        %v661 = vld [vmem:[%s392 + $0x3f8] sm:$0xf]
        %v662 = vld [vmem:[%s392 + $0x3fc] sm:$0xff]
        %v663 = vld [vmem:[%s392 + $0x404] sm:$0xff]
        %v664 = vld [vmem:[%s392 + $0x40c] sm:$0xf]
        %v665 = vld [vmem:[%s392 + $0x410] sm:$0xff]
        %v666 = vld [vmem:[%s392 + $0x418] sm:$0xff]
        %v667 = vld [vmem:[%s392 + $0x420] sm:$0xf]
        %v668 = vld [vmem:[%s392 + $0x424] sm:$0xff]
        %v669 = vld [vmem:[%s392 + $0x42c] sm:$0xff]
        %v670 = vld [vmem:[%s392 + $0x434] sm:$0xf]
        %v671 = vld [vmem:[%s392 + $0x438] sm:$0xff]
        %v672 = vld [vmem:[%s392 + $0x440] sm:$0xff]
        %v673 = vld [vmem:[%s392 + $0x448] sm:$0xf]
        %v674 = vld [vmem:[%s392 + $0x44c] sm:$0xff]
        %v675 = vld [vmem:[%s392 + $0x454] sm:$0xff]
        %v676 = vld [vmem:[%s392 + $0x45c] sm:$0xf]
        %v677 = vld [vmem:[%s392 + $0x460] sm:$0xff]
        %v678 = vld [vmem:[%s392 + $0x468] sm:$0xff]
        %v679 = vld [vmem:[%s392 + $0x470] sm:$0xf]
        %v680 = vld [vmem:[%s392 + $0x474] sm:$0xff]
        %v681 = vld [vmem:[%s392 + $0x47c] sm:$0xff]
        %v682 = vld [vmem:[%s392 + $0x484] sm:$0xf]
        %v683 = vld [vmem:[%s392 + $0x488] sm:$0xff]
        %v684 = vld [vmem:[%s392 + $0x490] sm:$0xff]
        %v685 = vld [vmem:[%s392 + $0x498] sm:$0xf]
        %v686 = vld [vmem:[%s392 + $0x49c] sm:$0xff]
        %v687 = vld [vmem:[%s392 + $0x4a4] sm:$0xff]
        %v688 = vld [vmem:[%s392 + $0x4ac] sm:$0xf]
        %v689 = vld [vmem:[%s392 + $0x4b0] sm:$0xff]
        %v690 = vld [vmem:[%s392 + $0x4b8] sm:$0xff]
        %v691 = vld [vmem:[%s392 + $0x4c0] sm:$0xf]
        %v692 = vld [vmem:[%s392 + $0x4c4] sm:$0xff]
        %v693 = vld [vmem:[%s392 + $0x4cc] sm:$0xff]
        %v694 = vld [vmem:[%s392 + $0x4d4] sm:$0xf]
        %v695 = vld [vmem:[%s392 + $0x4d8] sm:$0xff]
        %v696 = vld [vmem:[%s392 + $0x4e0] sm:$0xff]
        %v697 = vld [vmem:[%s392 + $0x4e8] sm:$0xf]
        %v698 = vld [vmem:[%s392 + $0x4ec] sm:$0xff]
        %v699 = vld [vmem:[%s392 + $0x4f4] sm:$0xff]
        %v700 = vld [vmem:[%s392 + $0x4fc] sm:$0xf]
        %v701 = vld [vmem:[%s392 + $0x500] sm:$0xff]
        %v702 = vld [vmem:[%s392 + $0x508] sm:$0xff]
        %v703 = vld [vmem:[%s392 + $0x510] sm:$0xf]
        %v704 = vld [vmem:[%s392 + $0x514] sm:$0xff]
        %v705 = vld [vmem:[%s392 + $0x51c] sm:$0xff]
        %v706 = vld [vmem:[%s392 + $0x524] sm:$0xf]
        %v707 = vld [vmem:[%s392 + $0x528] sm:$0xff]
        %v708 = vld [vmem:[%s392 + $0x530] sm:$0xff]
        %v709 = vld [vmem:[%s392 + $0x538] sm:$0xf]
        %v710 = vld [vmem:[%s392 + $0x53c] sm:$0xff]
        %v711 = vld [vmem:[%s392 + $0x544] sm:$0xff]
        %v712 = vld [vmem:[%s392 + $0x54c] sm:$0xf]
        %v713 = vld [vmem:[%s392 + $0x550] sm:$0xff]
        %v714 = vld [vmem:[%s392 + $0x558] sm:$0xff]
        %v715 = vld [vmem:[%s392 + $0x560] sm:$0xf]
        %v716 = vld [vmem:[%s392 + $0x564] sm:$0xff]
        %v717 = vld [vmem:[%s392 + $0x56c] sm:$0xff]
        %v718 = vld [vmem:[%s392 + $0x574] sm:$0xf]
        %v719 = vld [vmem:[%s392 + $0x578] sm:$0xff]
        %v720 = vld [vmem:[%s392 + $0x580] sm:$0xff]
        %v721 = vld [vmem:[%s392 + $0x588] sm:$0xf]
        %v722 = vld [vmem:[%s392 + $0x58c] sm:$0xff]
        %v723 = vld [vmem:[%s392 + $0x594] sm:$0xff]
        %v724 = vld [vmem:[%s392 + $0x59c] sm:$0xf]
        %v725 = vld [vmem:[%s392 + $0x5a0] sm:$0xff]
        %v726 = vld [vmem:[%s392 + $0x5a8] sm:$0xff]
        %v727 = vld [vmem:[%s392 + $0x5b0] sm:$0xf]
        %v728 = vld [vmem:[%s392 + $0x5b4] sm:$0xff]
        %v729 = vld [vmem:[%s392 + $0x5bc] sm:$0xff]
        %v730 = vld [vmem:[%s392 + $0x5c4] sm:$0xf]
        %v731 = vld [vmem:[%s392 + $0x5c8] sm:$0xff]
        %v732 = vld [vmem:[%s392 + $0x5d0] sm:$0xff]
        %v733 = vld [vmem:[%s392 + $0x5d8] sm:$0xf]
        %v734 = vld [vmem:[%s392 + $0x5dc] sm:$0xff]
        %v735 = vld [vmem:[%s392 + $0x5e4] sm:$0xff]
        %v736 = vld [vmem:[%s392 + $0x5ec] sm:$0xf]
        %v737 = vld [vmem:[%s392 + $0x5f0] sm:$0xff]
        %v738 = vld [vmem:[%s392 + $0x5f8] sm:$0xff]
        %v739 = vld [vmem:[%s392 + $0x600] sm:$0xf]
        %v740 = vld [vmem:[%s392 + $0x604] sm:$0xff]
        %v741 = vld [vmem:[%s392 + $0x60c] sm:$0xff]
        %v742 = vld [vmem:[%s392 + $0x614] sm:$0xf]
        %v743 = vld [vmem:[%s392 + $0x618] sm:$0xff]
        %v744 = vld [vmem:[%s392 + $0x620] sm:$0xff]
        %v745 = vld [vmem:[%s392 + $0x628] sm:$0xf]
        %v746 = vld [vmem:[%s392 + $0x62c] sm:$0xff]
        %v747 = vld [vmem:[%s392 + $0x634] sm:$0xff]
        %v748 = vld [vmem:[%s392 + $0x63c] sm:$0xf]
        %v749 = vld [vmem:[%s392 + $0x640] sm:$0xff]
        %v750 = vld [vmem:[%s392 + $0x648] sm:$0xff]
        %v751 = vld [vmem:[%s392 + $0x650] sm:$0xf]
        %v752 = vld [vmem:[%s392 + $0x654] sm:$0xff]
        %v753 = vld [vmem:[%s392 + $0x65c] sm:$0xff]
        %v754 = vld [vmem:[%s392 + $0x664] sm:$0xf]
        %v755 = vld [vmem:[%s392 + $0x668] sm:$0xff]
        %v756 = vld [vmem:[%s392 + $0x670] sm:$0xff]
        %v757 = vld [vmem:[%s392 + $0x678] sm:$0xf]
        %v758 = vld [vmem:[%s392 + $0x67c] sm:$0xff]
        %v759 = vld [vmem:[%s392 + $0x684] sm:$0xff]
        %v760 = vld [vmem:[%s392 + $0x68c] sm:$0xf]
        %v761 = vld [vmem:[%s392 + $0x690] sm:$0xff]
        %v762 = vld [vmem:[%s392 + $0x698] sm:$0xff]
        %v763 = vld [vmem:[%s392 + $0x6a0] sm:$0xf]
        %v764 = vld [vmem:[%s392 + $0x6a4] sm:$0xff]
        %v765 = vld [vmem:[%s392 + $0x6ac] sm:$0xff]
        %v766 = vld [vmem:[%s392 + $0x6b4] sm:$0xf]
        %v767 = vld [vmem:[%s392 + $0x6b8] sm:$0xff]
        %v768 = vld [vmem:[%s392 + $0x6c0] sm:$0xff]
        %v769 = vld [vmem:[%s392 + $0x6c8] sm:$0xf]
        %v770 = vld [vmem:[%s392 + $0x6cc] sm:$0xff]
        %v771 = vld [vmem:[%s392 + $0x6d4] sm:$0xff]
        %v772 = vld [vmem:[%s392 + $0x6dc] sm:$0xf]
        %v773 = vld [vmem:[%s392 + $0x6e0] sm:$0xff]
        %v774 = vld [vmem:[%s392 + $0x6e8] sm:$0xff]
        %v775 = vld [vmem:[%s392 + $0x6f0] sm:$0xf]
        %v776 = vld [vmem:[%s392 + $0x6f4] sm:$0xff]
        %v777 = vld [vmem:[%s392 + $0x6fc] sm:$0xff]
        %v778 = vld [vmem:[%s392 + $0x704] sm:$0xf]
        %v779 = vld [vmem:[%s392 + $0x708] sm:$0xff]
        %v780 = vld [vmem:[%s392 + $0x710] sm:$0xff]
        %v781 = vld [vmem:[%s392 + $0x718] sm:$0xf]
        %v782 = vld [vmem:[%s392 + $0x71c] sm:$0xff]
        %v783 = vld [vmem:[%s392 + $0x724] sm:$0xff]
        %v784 = vld [vmem:[%s392 + $0x72c] sm:$0xf]
        %v785 = vld [vmem:[%s392 + $0x730] sm:$0xff]
        %v786 = vld [vmem:[%s392 + $0x738] sm:$0xff]
        %v787 = vld [vmem:[%s392 + $0x740] sm:$0xf]
        %v788 = vld [vmem:[%s392 + $0x744] sm:$0xff]
        %v789 = vld [vmem:[%s392 + $0x74c] sm:$0xff]
        %v790 = vld [vmem:[%s392 + $0x754] sm:$0xf]
        %v791 = vld [vmem:[%s392 + $0x758] sm:$0xff]
        %v792 = vld [vmem:[%s392 + $0x760] sm:$0xff]
        %v793 = vld [vmem:[%s392 + $0x768] sm:$0xf]
        %v794 = vld [vmem:[%s392 + $0x76c] sm:$0xff]
        %v795 = vld [vmem:[%s392 + $0x774] sm:$0xff]
        %v796 = vld [vmem:[%s392 + $0x77c] sm:$0xf]
        %v797 = vld [vmem:[%s392 + $0x780] sm:$0xff]
        %v798 = vld [vmem:[%s392 + $0x788] sm:$0xff]
        %v799 = vld [vmem:[%s392 + $0x790] sm:$0xf]
        %v800 = vld [vmem:[%s392 + $0x794] sm:$0xff]
        %v801 = vld [vmem:[%s392 + $0x79c] sm:$0xff]
        %v802 = vld [vmem:[%s392 + $0x7a4] sm:$0xf]
        %v803 = vld [vmem:[%s392 + $0x7a8] sm:$0xff]
        %v804 = vld [vmem:[%s392 + $0x7b0] sm:$0xff]
        %v805 = vld [vmem:[%s392 + $0x7b8] sm:$0xf]
        %v806 = vld [vmem:[%s392 + $0x7bc] sm:$0xff]
        %v807 = vld [vmem:[%s392 + $0x7c4] sm:$0xff]
        %v808 = vld [vmem:[%s392 + $0x7cc] sm:$0xf]
        %v809 = vld [vmem:[%s392 + $0x7d0] sm:$0xff]
        %v810 = vld [vmem:[%s392 + $0x7d8] sm:$0xff]
        %v811 = vld [vmem:[%s392 + $0x7e0] sm:$0xf]
        %v812 = vld [vmem:[%s392 + $0x7e4] sm:$0xff]
        %v813 = vld [vmem:[%s392 + $0x7ec] sm:$0xff]
        %v814 = vld [vmem:[%s392 + $0x7f4] sm:$0xf]
        %v815 = vld [vmem:[%s392 + $0x7f8] sm:$0xff]
        %v816 = vld [vmem:[%s392 + $0x800] sm:$0xff]
        %v817 = vld [vmem:[%s392 + $0x808] sm:$0xf]
        %v818 = vld [vmem:[%s392 + $0x80c] sm:$0xff]
        %v819 = vld [vmem:[%s392 + $0x814] sm:$0xff]
        %v820 = vld [vmem:[%s392 + $0x81c] sm:$0xf]
        %v821 = vld [vmem:[%s392 + $0x820] sm:$0xff]
        %v822 = vld [vmem:[%s392 + $0x828] sm:$0xff]
        %v823 = vld [vmem:[%s392 + $0x830] sm:$0xf]
        %v824 = vld [vmem:[%s392 + $0x834] sm:$0xff]
        %v825 = vld [vmem:[%s392 + $0x83c] sm:$0xff]
        %v826 = vld [vmem:[%s392 + $0x844] sm:$0xf]
        %v827 = vld [vmem:[%s392 + $0x848] sm:$0xff]
        %v828 = vld [vmem:[%s392 + $0x850] sm:$0xff]
        %v829 = vld [vmem:[%s392 + $0x858] sm:$0xf]
        %v830 = vld [vmem:[%s392 + $0x85c] sm:$0xff]
        %v831 = vld [vmem:[%s392 + $0x864] sm:$0xff]
        %v832 = vld [vmem:[%s392 + $0x86c] sm:$0xf]
        %v833 = vld [vmem:[%s392 + $0x870] sm:$0xff]
        %v834 = vld [vmem:[%s392 + $0x878] sm:$0xff]
        %v835 = vld [vmem:[%s392 + $0x880] sm:$0xf]
        %v836 = vld [vmem:[%s392 + $0x884] sm:$0xff]
        %v837 = vld [vmem:[%s392 + $0x88c] sm:$0xff]
        %v838 = vld [vmem:[%s392 + $0x894] sm:$0xf]
        %v839 = vld [vmem:[%s392 + $0x898] sm:$0xff]
        %v840 = vld [vmem:[%s392 + $0x8a0] sm:$0xff]
        %v841 = vld [vmem:[%s392 + $0x8a8] sm:$0xf]
        %v842 = vld [vmem:[%s392 + $0x8ac] sm:$0xff]
        %v843 = vld [vmem:[%s392 + $0x8b4] sm:$0xff]
        %v844 = vld [vmem:[%s392 + $0x8bc] sm:$0xf]
        %v845 = vld [vmem:[%s392 + $0x8c0] sm:$0xff]
        %v846 = vld [vmem:[%s392 + $0x8c8] sm:$0xff]
        %v847 = vld [vmem:[%s392 + $0x8d0] sm:$0xf]
        %v848 = vld [vmem:[%s392 + $0x8d4] sm:$0xff]
        %v849 = vld [vmem:[%s392 + $0x8dc] sm:$0xff]
        %v850 = vld [vmem:[%s392 + $0x8e4] sm:$0xf]
        %v851 = vld [vmem:[%s392 + $0x8e8] sm:$0xff]
        %v852 = vld [vmem:[%s392 + $0x8f0] sm:$0xff]
        %v853 = vld [vmem:[%s392 + $0x8f8] sm:$0xf]
        %v854 = vld [vmem:[%s392 + $0x8fc] sm:$0xff]
        %v855 = vld [vmem:[%s392 + $0x904] sm:$0xff]
        %v856 = vld [vmem:[%s392 + $0x90c] sm:$0xf]
        %v857 = vld [vmem:[%s392 + $0x910] sm:$0xff]
        %v858 = vld [vmem:[%s392 + $0x918] sm:$0xff]
        %v859 = vld [vmem:[%s392 + $0x920] sm:$0xf]
        %v860 = vld [vmem:[%s392 + $0x924] sm:$0xff]
        %v861 = vld [vmem:[%s392 + $0x92c] sm:$0xff]
        %v862 = vld [vmem:[%s392 + $0x934] sm:$0xf]
        %v863 = vld [vmem:[%s392 + $0x938] sm:$0xff]
        %v864 = vld [vmem:[%s392 + $0x940] sm:$0xff]
        %v865 = vld [vmem:[%s392 + $0x948] sm:$0xf]
        %v866 = vld [vmem:[%s392 + $0x94c] sm:$0xff]
        %v867 = vld [vmem:[%s392 + $0x954] sm:$0xff]
        %v868 = vld [vmem:[%s392 + $0x95c] sm:$0xf]
        %v869 = vld [vmem:[%s392 + $0x960] sm:$0xff]
        %v870 = vld [vmem:[%s392 + $0x968] sm:$0xff]
        %v871 = vld [vmem:[%s392 + $0x970] sm:$0xf]
        %v872 = vld [vmem:[%s392 + $0x974] sm:$0xff]
        %v873 = vld [vmem:[%s392 + $0x97c] sm:$0xff]
        %v874 = vld [vmem:[%s392 + $0x984] sm:$0xf]
        %v875 = vld [vmem:[%s392 + $0x988] sm:$0xff]
        %v876 = vld [vmem:[%s392 + $0x990] sm:$0xff]
        %v877 = vld [vmem:[%s392 + $0x998] sm:$0xf]
        %v878 = vld [vmem:[%s392 + $0x99c] sm:$0xff]
        %v879 = vld [vmem:[%s392 + $0x9a4] sm:$0xff]
        %v880 = vld [vmem:[%s392 + $0x9ac] sm:$0xf]
        %v881 = vld [vmem:[%s392 + $0x9b0] sm:$0xff]
        %v882 = vld [vmem:[%s392 + $0x9b8] sm:$0xff]
        %v883 = vld [vmem:[%s392 + $0x9c0] sm:$0xf]
        %v884 = vld [vmem:[%s392 + $0x9c4] sm:$0xff]
        %v885 = vld [vmem:[%s392 + $0x9cc] sm:$0xff]
        %v886 = vld [vmem:[%s392 + $0x9d4] sm:$0xf]
        %v887 = vld [vmem:[%s392 + $0x9d8] sm:$0xff]
        %v888 = vld [vmem:[%s392 + $0x9e0] sm:$0xff]
        %v889 = vld [vmem:[%s392 + $0x9e8] sm:$0xf]
        %v890 = vld [vmem:[%s392 + $0x9ec] sm:$0xff]
        %v891 = vld [vmem:[%s392 + $0x9f4] sm:$0xff]
        %v892 = vld [vmem:[%s392 + $0x9fc] sm:$0xf]
        %v893 = vld [vmem:[%s392 + $0xa00] sm:$0xff]
        %v894 = vld [vmem:[%s392 + $0xa08] sm:$0xff]
        %v895 = vld [vmem:[%s392 + $0xa10] sm:$0xf]
        %v896 = vld [vmem:[%s392 + $0xa14] sm:$0xff]
        %v897 = vld [vmem:[%s392 + $0xa1c] sm:$0xff]
        %v898 = vld [vmem:[%s392 + $0xa24] sm:$0xf]
        %v899 = vld [vmem:[%s392 + $0xa28] sm:$0xff]
        %v900 = vld [vmem:[%s392 + $0xa30] sm:$0xff]
        %v901 = vld [vmem:[%s392 + $0xa38] sm:$0xf]
        %v902 = vld [vmem:[%s392 + $0xa3c] sm:$0xff]
        %v903 = vld [vmem:[%s392 + $0xa44] sm:$0xff]
        %v904 = vld [vmem:[%s392 + $0xa4c] sm:$0xf]
        %v905 = vld [vmem:[%s392 + $0xa50] sm:$0xff]
        %v906 = vld [vmem:[%s392 + $0xa58] sm:$0xff]
        %v907 = vld [vmem:[%s392 + $0xa60] sm:$0xf]
        %v908 = vld [vmem:[%s392 + $0xa64] sm:$0xff]
        %v909 = vld [vmem:[%s392 + $0xa6c] sm:$0xff]
        %v910 = vld [vmem:[%s392 + $0xa74] sm:$0xf]
        %v911 = vld [vmem:[%s392 + $0xa78] sm:$0xff]
        %v912 = vld [vmem:[%s392 + $0xa80] sm:$0xff]
        %v913 = vld [vmem:[%s392 + $0xa88] sm:$0xf]
        %v914 = vld [vmem:[%s392 + $0xa8c] sm:$0xff]
        %v915 = vld [vmem:[%s392 + $0xa94] sm:$0xff]
        %v916 = vld [vmem:[%s392 + $0xa9c] sm:$0xf]
        %v917 = vld [vmem:[%s392 + $0xaa0] sm:$0xff]
        %v918 = vld [vmem:[%s392 + $0xaa8] sm:$0xff]
        %v919 = vld [vmem:[%s392 + $0xab0] sm:$0xf]
        %v920 = vld [vmem:[%s392 + $0xab4] sm:$0xff]
        %v921 = vld [vmem:[%s392 + $0xabc] sm:$0xff]
        %v922 = vld [vmem:[%s392 + $0xac4] sm:$0xf]
        %v923 = vld [vmem:[%s392 + $0xac8] sm:$0xff]
        %v924 = vld [vmem:[%s392 + $0xad0] sm:$0xff]
        %v925 = vld [vmem:[%s392 + $0xad8] sm:$0xf]
        %v926 = vld [vmem:[%s392 + $0xadc] sm:$0xff]
        %v927 = vld [vmem:[%s392 + $0xae4] sm:$0xff]
        %v928 = vld [vmem:[%s392 + $0xaec] sm:$0xf]
        %v929 = vld [vmem:[%s392 + $0xaf0] sm:$0xff]
        %v930 = vld [vmem:[%s392 + $0xaf8] sm:$0xff]
        %v931 = vld [vmem:[%s392 + $0xb00] sm:$0xf]
        %v932 = vld [vmem:[%s392 + $0xb04] sm:$0xff]
        %v933 = vld [vmem:[%s392 + $0xb0c] sm:$0xff]
        %v934 = vld [vmem:[%s392 + $0xb14] sm:$0xf]
        %v935 = vld [vmem:[%s392 + $0xb18] sm:$0xff]
        %v936 = vld [vmem:[%s392 + $0xb20] sm:$0xff]
        %v937 = vld [vmem:[%s392 + $0xb28] sm:$0xf]
        %v938 = vld [vmem:[%s392 + $0xb2c] sm:$0xff]
        %v939 = vld [vmem:[%s392 + $0xb34] sm:$0xff]
        %v940 = vld [vmem:[%s392 + $0xb3c] sm:$0xf]
        %v941 = vld [vmem:[%s392 + $0xb40] sm:$0xff]
        %v942 = vld [vmem:[%s392 + $0xb48] sm:$0xff]
        %v943 = vld [vmem:[%s392 + $0xb50] sm:$0xf]
        %v944 = vld [vmem:[%s392 + $0xb54] sm:$0xff]
        %v945 = vld [vmem:[%s392 + $0xb5c] sm:$0xff]
        %v946 = vld [vmem:[%s392 + $0xb64] sm:$0xf]
        %v947 = vld [vmem:[%s392 + $0xb68] sm:$0xff]
        %v948 = vld [vmem:[%s392 + $0xb70] sm:$0xff]
        %v949 = vld [vmem:[%s392 + $0xb78] sm:$0xf]
        %v950 = vld [vmem:[%s392 + $0xb7c] sm:$0xff]
        %v951 = vld [vmem:[%s392 + $0xb84] sm:$0xff]
        %v952 = vld [vmem:[%s392 + $0xb8c] sm:$0xf]
        %v953 = vld [vmem:[%s392 + $0xb90] sm:$0xff]
        %v954 = vld [vmem:[%s392 + $0xb98] sm:$0xff]
        %v955 = vld [vmem:[%s392 + $0xba0] sm:$0xf]
        %v956 = vld [vmem:[%s392 + $0xba4] sm:$0xff]
        %v957 = vld [vmem:[%s392 + $0xbac] sm:$0xff]
        %v958 = vld [vmem:[%s392 + $0xbb4] sm:$0xf]
        %v959 = vld [vmem:[%s392 + $0xbb8] sm:$0xff]
        %v960 = vld [vmem:[%s392 + $0xbc0] sm:$0xff]
        %v961 = vld [vmem:[%s392 + $0xbc8] sm:$0xf]
        %v962 = vld [vmem:[%s392 + $0xbcc] sm:$0xff]
        %v963 = vld [vmem:[%s392 + $0xbd4] sm:$0xff]
        %v964 = vld [vmem:[%s392 + $0xbdc] sm:$0xf]
        %v965 = vld [vmem:[%s392 + $0xbe0] sm:$0xff]
        %v966 = vld [vmem:[%s392 + $0xbe8] sm:$0xff]
        %v967 = vld [vmem:[%s392 + $0xbf0] sm:$0xf]
        %v968 = vld [vmem:[%s392 + $0xbf4] sm:$0xff]
        %v969 = vld [vmem:[%s392 + $0xbfc] sm:$0xff]
        %v970 = vld [vmem:[%s392 + $0xc04] sm:$0xf]
        %v971 = vld [vmem:[%s392 + $0xc08] sm:$0xff]
        %v972 = vld [vmem:[%s392 + $0xc10] sm:$0xff]
        %v973 = vld [vmem:[%s392 + $0xc18] sm:$0xf]
        %v974 = vld [vmem:[%s392 + $0xc1c] sm:$0xff]
        %v975 = vld [vmem:[%s392 + $0xc24] sm:$0xff]
        %v976 = vld [vmem:[%s392 + $0xc2c] sm:$0xf]
        %v977 = vld [vmem:[%s392 + $0xc30] sm:$0xff]
        %v978 = vld [vmem:[%s392 + $0xc38] sm:$0xff]
        %v979 = vld [vmem:[%s392 + $0xc40] sm:$0xf]
        %v980 = vld [vmem:[%s392 + $0xc44] sm:$0xff]
        %v981 = vld [vmem:[%s392 + $0xc4c] sm:$0xff]
        %v982 = vld [vmem:[%s392 + $0xc54] sm:$0xf]
        %v983 = vld [vmem:[%s392 + $0xc58] sm:$0xff]
        %v984 = vld [vmem:[%s392 + $0xc60] sm:$0xff]
        %v985 = vld [vmem:[%s392 + $0xc68] sm:$0xf]
        %v986 = vld [vmem:[%s392 + $0xc6c] sm:$0xff]
        %v987 = vld [vmem:[%s392 + $0xc74] sm:$0xff]
        %v988 = vld [vmem:[%s392 + $0xc7c] sm:$0xf]
        %v989 = vld [vmem:[%s392 + $0xc80] sm:$0xff]
        %v990 = vld [vmem:[%s392 + $0xc88] sm:$0xff]
        %v991 = vld [vmem:[%s392 + $0xc90] sm:$0xf]
        %v992 = vld [vmem:[%s392 + $0xc94] sm:$0xff]
        %v993 = vld [vmem:[%s392 + $0xc9c] sm:$0xff]
        %v994 = vld [vmem:[%s392 + $0xca4] sm:$0xf]
        %v995 = vld [vmem:[%s392 + $0xca8] sm:$0xff]
        %v996 = vld [vmem:[%s392 + $0xcb0] sm:$0xff]
        %v997 = vld [vmem:[%s392 + $0xcb8] sm:$0xf]
        %v998 = vld [vmem:[%s392 + $0xcbc] sm:$0xff]
        %v999 = vld [vmem:[%s392 + $0xcc4] sm:$0xff]
        %v1000 = vld [vmem:[%s392 + $0xccc] sm:$0xf]
        %v1001 = vld [vmem:[%s392 + $0xcd0] sm:$0xff]
        %v1002 = vld [vmem:[%s392 + $0xcd8] sm:$0xff]
        %v1003 = vld [vmem:[%s392 + $0xce0] sm:$0xf]
        %v1004 = vld [vmem:[%s392 + $0xce4] sm:$0xff]
        %v1005 = vld [vmem:[%s392 + $0xcec] sm:$0xff]
        %v1006 = vld [vmem:[%s392 + $0xcf4] sm:$0xf]
        %v1007 = vld [vmem:[%s392 + $0xcf8] sm:$0xff]
        %v1008 = vld [vmem:[%s392 + $0xd00] sm:$0xff]
        %v1009 = vld [vmem:[%s392 + $0xd08] sm:$0xf]
        %v1010 = vld [vmem:[%s392 + $0xd0c] sm:$0xff]
        %v1011 = vld [vmem:[%s392 + $0xd14] sm:$0xff]
        %v1012 = vld [vmem:[%s392 + $0xd1c] sm:$0xf]
        %v1013 = vld [vmem:[%s392 + $0xd20] sm:$0xff]
        %v1014 = vld [vmem:[%s392 + $0xd28] sm:$0xff]
        %v1015 = vld [vmem:[%s392 + $0xd30] sm:$0xf]
        %v1016 = vld [vmem:[%s392 + $0xd34] sm:$0xff]
        %v1017 = vld [vmem:[%s392 + $0xd3c] sm:$0xff]
        %v1018 = vld [vmem:[%s392 + $0xd44] sm:$0xf]
        %v1019 = vld [vmem:[%s392 + $0xd48] sm:$0xff]
        %v1020 = vld [vmem:[%s392 + $0xd50] sm:$0xff]
        %v1021 = vld [vmem:[%s392 + $0xd58] sm:$0xf]
        %v1022 = vld [vmem:[%s392 + $0xd5c] sm:$0xff]
        %v1023 = vld [vmem:[%s392 + $0xd64] sm:$0xff]
        %v1024 = vld [vmem:[%s392 + $0xd6c] sm:$0xf]
        %v1025 = vld [vmem:[%s392 + $0xd70] sm:$0xff]
        %v1026 = vld [vmem:[%s392 + $0xd78] sm:$0xff]
        %v1027 = vld [vmem:[%s392 + $0xd80] sm:$0xf]
        %v1028 = vld [vmem:[%s392 + $0xd84] sm:$0xff]
        %v1029 = vld [vmem:[%s392 + $0xd8c] sm:$0xff]
        %v1030 = vld [vmem:[%s392 + $0xd94] sm:$0xf]
        %v1031 = vld [vmem:[%s392 + $0xd98] sm:$0xff]
        %v1032 = vld [vmem:[%s392 + $0xda0] sm:$0xff]
        %v1033 = vld [vmem:[%s392 + $0xda8] sm:$0xf]
        %v1034 = vld [vmem:[%s392 + $0xdac] sm:$0xff]
        %v1035 = vld [vmem:[%s392 + $0xdb4] sm:$0xff]
        %v1036 = vld [vmem:[%s392 + $0xdbc] sm:$0xf]
        %v1037 = vld [vmem:[%s392 + $0xdc0] sm:$0xff]
        %v1038 = vld [vmem:[%s392 + $0xdc8] sm:$0xff]
        %v1039 = vld [vmem:[%s392 + $0xdd0] sm:$0xf]
        %v1040 = vld [vmem:[%s392 + $0xdd4] sm:$0xff]
        %v1041 = vld [vmem:[%s392 + $0xddc] sm:$0xff]
        %v1042 = vld [vmem:[%s392 + $0xde4] sm:$0xf]
        %v1043 = vld [vmem:[%s392 + $0xde8] sm:$0xff]
        %v1044 = vld [vmem:[%s392 + $0xdf0] sm:$0xff]
        %v1045 = vld [vmem:[%s392 + $0xdf8] sm:$0xf]
        %v1046 = vld [vmem:[%s392 + $0xdfc] sm:$0xff]
        %v1047 = vld [vmem:[%s392 + $0xe04] sm:$0xff]
        %v1048 = vld [vmem:[%s392 + $0xe0c] sm:$0xf]
        %v1049 = vld [vmem:[%s392 + $0xe10] sm:$0xff]
        %v1050 = vld [vmem:[%s392 + $0xe18] sm:$0xff]
        %v1051 = vld [vmem:[%s392 + $0xe20] sm:$0xf]
        %v1052 = vld [vmem:[%s392 + $0xe24] sm:$0xff]
        %v1053 = vld [vmem:[%s392 + $0xe2c] sm:$0xff]
        %v1054 = vld [vmem:[%s392 + $0xe34] sm:$0xf]
        %v1055 = vld [vmem:[%s392 + $0xe38] sm:$0xff]
        %v1056 = vld [vmem:[%s392 + $0xe40] sm:$0xff]
        %v1057 = vld [vmem:[%s392 + $0xe48] sm:$0xf]
        %v1058 = vld [vmem:[%s392 + $0xe4c] sm:$0xff]
        %v1059 = vld [vmem:[%s392 + $0xe54] sm:$0xff]
        %v1060 = vld [vmem:[%s392 + $0xe5c] sm:$0xf]
        %v1061 = vld [vmem:[%s392 + $0xe60] sm:$0xff]
        %v1062 = vld [vmem:[%s392 + $0xe68] sm:$0xff]
        %v1063 = vld [vmem:[%s392 + $0xe70] sm:$0xf]
        %v1064 = vld [vmem:[%s392 + $0xe74] sm:$0xff]
        %v1065 = vld [vmem:[%s392 + $0xe7c] sm:$0xff]
        %v1066 = vld [vmem:[%s392 + $0xe84] sm:$0xf]
        %v1067 = vld [vmem:[%s392 + $0xe88] sm:$0xff]
        %v1068 = vld [vmem:[%s392 + $0xe90] sm:$0xff]
        %v1069 = vld [vmem:[%s392 + $0xe98] sm:$0xf]
        %v1070 = vld [vmem:[%s392 + $0xe9c] sm:$0xff]
        %v1071 = vld [vmem:[%s392 + $0xea4] sm:$0xff]
        %v1072 = vld [vmem:[%s392 + $0xeac] sm:$0xf]
        %v1073 = vld [vmem:[%s392 + $0xeb0] sm:$0xff]
        %v1074 = vld [vmem:[%s392 + $0xeb8] sm:$0xff]
        %v1075 = vld [vmem:[%s392 + $0xec0] sm:$0xf]
        %v1076 = vld [vmem:[%s392 + $0xec4] sm:$0xff]
        %v1077 = vld [vmem:[%s392 + $0xecc] sm:$0xff]
        %v1078 = vld [vmem:[%s392 + $0xed4] sm:$0xf]
        %v1079 = vld [vmem:[%s392 + $0xed8] sm:$0xff]
        %v1080 = vld [vmem:[%s392 + $0xee0] sm:$0xff]
        %v1081 = vld [vmem:[%s392 + $0xee8] sm:$0xf]
        %v1082 = vld [vmem:[%s392 + $0xeec] sm:$0xff]
        %v1083 = vld [vmem:[%s392 + $0xef4] sm:$0xff]
        %v1084 = vld [vmem:[%s392 + $0xefc] sm:$0xf]
        %v1085 = vld [vmem:[%s392 + $0xf00] sm:$0xff]
        %v1086 = vld [vmem:[%s392 + $0xf08] sm:$0xff]
        %v1087 = vld [vmem:[%s392 + $0xf10] sm:$0xf]
        %v1088 = vld [vmem:[%s392 + $0xf14] sm:$0xff]
        %v1089 = vld [vmem:[%s392 + $0xf1c] sm:$0xff]
        %v1090 = vld [vmem:[%s392 + $0xf24] sm:$0xf]
        %v1091 = vld [vmem:[%s392 + $0xf28] sm:$0xff]
        %v1092 = vld [vmem:[%s392 + $0xf30] sm:$0xff]
        %v1093 = vld [vmem:[%s392 + $0xf38] sm:$0xf]
        %v1094 = vld [vmem:[%s392 + $0xf3c] sm:$0xff]
        %v1095 = vld [vmem:[%s392 + $0xf44] sm:$0xff]
        %v1096 = vld [vmem:[%s392 + $0xf4c] sm:$0xf]
        %v1097 = vld [vmem:[%s392 + $0xf50] sm:$0xff]
        %v1098 = vld [vmem:[%s392 + $0xf58] sm:$0xff]
        %v1099 = vld [vmem:[%s392 + $0xf60] sm:$0xf]
        %v1100 = vld [vmem:[%s392 + $0xf64] sm:$0xff]
        %v1101 = vld [vmem:[%s392 + $0xf6c] sm:$0xff]
        %v1102 = vld [vmem:[%s392 + $0xf74] sm:$0xf]
        %v1103 = vld [vmem:[%s392 + $0xf78] sm:$0xff]
        %v1104 = vld [vmem:[%s392 + $0xf80] sm:$0xff]
        %v1105 = vld [vmem:[%s392 + $0xf88] sm:$0xf]
        %v1106 = vld [vmem:[%s392 + $0xf8c] sm:$0xff]
        %v1107 = vld [vmem:[%s392 + $0xf94] sm:$0xff]
        %v1108 = vld [vmem:[%s392 + $0xf9c] sm:$0xf]
        %v1109 = vld [vmem:[%s392 + $0xfa0] sm:$0xff]
        %v1110 = vld [vmem:[%s392 + $0xfa8] sm:$0xff]
        %v1111 = vld [vmem:[%s392 + $0xfb0] sm:$0xf]
        %v1112 = vld [vmem:[%s392 + $0xfb4] sm:$0xff]
        %v1113 = vld [vmem:[%s392 + $0xfbc] sm:$0xff]
        %v1114 = vld [vmem:[%s392 + $0xfc4] sm:$0xf]
        %v1115 = vld [vmem:[%s392 + $0xfc8] sm:$0xff]
        %v1116 = vld [vmem:[%s392 + $0xfd0] sm:$0xff]
        %v1117 = vld [vmem:[%s392 + $0xfd8] sm:$0xf]
        %v1118 = vld [vmem:[%s392 + $0xfdc] sm:$0xff]
        %v1119 = vld [vmem:[%s392 + $0xfe4] sm:$0xff]
        %v1120 = vld [vmem:[%s392 + $0xfec] sm:$0xf]
        %v1121 = vld [vmem:[%s392 + $0xff0] sm:$0xff]
        %v1122 = vld [vmem:[%s392 + $0xff8] sm:$0xff]
        %v1123 = vld [vmem:[%s392 + $0x1000] sm:$0xf]
        %v1124 = vld [vmem:[%s392 + $0x1004] sm:$0xff]
        %v1125 = vld [vmem:[%s392 + $0x100c] sm:$0xff]
        %v1126 = vld [vmem:[%s392 + $0x1014] sm:$0xf]
        %v1127 = vld [vmem:[%s392 + $0x1018] sm:$0xff]
        %v1128 = vld [vmem:[%s392 + $0x1020] sm:$0xff]
        %v1129 = vld [vmem:[%s392 + $0x1028] sm:$0xf]
        %v1130 = vld [vmem:[%s392 + $0x102c] sm:$0xff]
        %v1131 = vld [vmem:[%s392 + $0x1034] sm:$0xff]
        %v1132 = vld [vmem:[%s392 + $0x103c] sm:$0xf]
        %v1133 = vld [vmem:[%s392 + $0x1040] sm:$0xff]
        %v1134 = vld [vmem:[%s392 + $0x1048] sm:$0xff]
        %v1135 = vld [vmem:[%s392 + $0x1050] sm:$0xf]
        %v1136 = vld [vmem:[%s392 + $0x1054] sm:$0xff]
        %v1137 = vld [vmem:[%s392 + $0x105c] sm:$0xff]
        %v1138 = vld [vmem:[%s392 + $0x1064] sm:$0xf]
        %v1139 = vld [vmem:[%s392 + $0x1068] sm:$0xff]
        %v1140 = vld [vmem:[%s392 + $0x1070] sm:$0xff]
        %v1141 = vld [vmem:[%s392 + $0x1078] sm:$0xf]
        %v1142 = vld [vmem:[%s392 + $0x107c] sm:$0xff]
        %v1143 = vld [vmem:[%s392 + $0x1084] sm:$0xff]
        %v1144 = vld [vmem:[%s392 + $0x108c] sm:$0xf]
        %v1145 = vld [vmem:[%s392 + $0x1090] sm:$0xff]
        %v1146 = vld [vmem:[%s392 + $0x1098] sm:$0xff]
        %v1147 = vld [vmem:[%s392 + $0x10a0] sm:$0xf]
        %v1148 = vld [vmem:[%s392 + $0x10a4] sm:$0xff]
        %v1149 = vld [vmem:[%s392 + $0x10ac] sm:$0xff]
        %v1150 = vld [vmem:[%s392 + $0x10b4] sm:$0xf]
        %v1151 = vld [vmem:[%s392 + $0x10b8] sm:$0xff]
        %v1152 = vld [vmem:[%s392 + $0x10c0] sm:$0xff]
        %v1153 = vld [vmem:[%s392 + $0x10c8] sm:$0xf]
        %v1154 = vld [vmem:[%s392 + $0x10cc] sm:$0xff]
        %v1155 = vld [vmem:[%s392 + $0x10d4] sm:$0xff]
        %v1156 = vld [vmem:[%s392 + $0x10dc] sm:$0xf]
        %v1157 = vld [vmem:[%s392 + $0x10e0] sm:$0xff]
        %v1158 = vld [vmem:[%s392 + $0x10e8] sm:$0xff]
        %v1159 = vld [vmem:[%s392 + $0x10f0] sm:$0xf]
        %v1160 = vld [vmem:[%s392 + $0x10f4] sm:$0xff]
        %v1161 = vld [vmem:[%s392 + $0x10fc] sm:$0xff]
        %v1162 = vld [vmem:[%s392 + $0x1104] sm:$0xf]
        %v1163 = vld [vmem:[%s392 + $0x1108] sm:$0xff]
        %v1164 = vld [vmem:[%s392 + $0x1110] sm:$0xff]
        %v1165 = vld [vmem:[%s392 + $0x1118] sm:$0xf]
        %v1166 = vld [vmem:[%s392 + $0x111c] sm:$0xff]
        %v1167 = vld [vmem:[%s392 + $0x1124] sm:$0xff]
        %v1168 = vld [vmem:[%s392 + $0x112c] sm:$0xf]
        %v1169 = vld [vmem:[%s392 + $0x1130] sm:$0xff]
        %v1170 = vld [vmem:[%s392 + $0x1138] sm:$0xff]
        %v1171 = vld [vmem:[%s392 + $0x1140] sm:$0xf]
        %v1172 = vld [vmem:[%s392 + $0x1144] sm:$0xff]
        %v1173 = vld [vmem:[%s392 + $0x114c] sm:$0xff]
        %v1174 = vld [vmem:[%s392 + $0x1154] sm:$0xf]
        %v1175 = vld [vmem:[%s392 + $0x1158] sm:$0xff]
        %v1176 = vld [vmem:[%s392 + $0x1160] sm:$0xff]
        %v1177 = vld [vmem:[%s392 + $0x1168] sm:$0xf]
        %v1178 = vld [vmem:[%s392 + $0x116c] sm:$0xff]
        %v1179 = vld [vmem:[%s392 + $0x1174] sm:$0xff]
        %v1180 = vld [vmem:[%s392 + $0x117c] sm:$0xf]
        %v1181 = vld [vmem:[%s392 + $0x1180] sm:$0xff]
        %v1182 = vld [vmem:[%s392 + $0x1188] sm:$0xff]
        %v1183 = vld [vmem:[%s392 + $0x1190] sm:$0xf]
        %v1184 = vld [vmem:[%s392 + $0x1194] sm:$0xff]
        %v1185 = vld [vmem:[%s392 + $0x119c] sm:$0xff]
        %v1186 = vld [vmem:[%s392 + $0x11a4] sm:$0xf]
        %v1187 = vld [vmem:[%s392 + $0x11a8] sm:$0xff]
        %v1188 = vld [vmem:[%s392 + $0x11b0] sm:$0xff]
        %v1189 = vld [vmem:[%s392 + $0x11b8] sm:$0xf]
        %v1190 = vld [vmem:[%s392 + $0x11bc] sm:$0xff]
        %v1191 = vld [vmem:[%s392 + $0x11c4] sm:$0xff]
        %v1192 = vld [vmem:[%s392 + $0x11cc] sm:$0xf]
        %v1193 = vld [vmem:[%s392 + $0x11d0] sm:$0xff]
        %v1194 = vld [vmem:[%s392 + $0x11d8] sm:$0xff]
        %v1195 = vld [vmem:[%s392 + $0x11e0] sm:$0xf]
        %v1196 = vld [vmem:[%s392 + $0x11e4] sm:$0xff]
        %v1197 = vld [vmem:[%s392 + $0x11ec] sm:$0xff]
        %v1198 = vld [vmem:[%s392 + $0x11f4] sm:$0xf]
        %v1199 = vld [vmem:[%s392 + $0x11f8] sm:$0xff]
        %v1200 = vld [vmem:[%s392 + $0x1200] sm:$0xff]
        %v1201 = vld [vmem:[%s392 + $0x1208] sm:$0xf]
        %v1202 = vld [vmem:[%s392 + $0x120c] sm:$0xff]
        %v1203 = vld [vmem:[%s392 + $0x1214] sm:$0xff]
        %v1204 = vld [vmem:[%s392 + $0x121c] sm:$0xf]
        %v1205 = vld [vmem:[%s392 + $0x1220] sm:$0xff]
        %v1206 = vld [vmem:[%s392 + $0x1228] sm:$0xff]
        %v1207 = vld [vmem:[%s392 + $0x1230] sm:$0xf]
        %v1208 = vld [vmem:[%s392 + $0x1234] sm:$0xff]
        %v1209 = vld [vmem:[%s392 + $0x123c] sm:$0xff]
        %v1210 = vld [vmem:[%s392 + $0x1244] sm:$0xf]
        %v1211 = vld [vmem:[%s392 + $0x1248] sm:$0xff]
        %v1212 = vld [vmem:[%s392 + $0x1250] sm:$0xff]
        %v1213 = vld [vmem:[%s392 + $0x1258] sm:$0xf]
        %v1214 = vld [vmem:[%s392 + $0x125c] sm:$0xff]
        %v1215 = vld [vmem:[%s392 + $0x1264] sm:$0xff]
        %v1216 = vld [vmem:[%s392 + $0x126c] sm:$0xf]
        %v1217 = vld [vmem:[%s392 + $0x1270] sm:$0xff]
        %v1218 = vld [vmem:[%s392 + $0x1278] sm:$0xff]
        %v1219 = vld [vmem:[%s392 + $0x1280] sm:$0xf]
        %v1220 = vld [vmem:[%s392 + $0x1284] sm:$0xff]
        %v1221 = vld [vmem:[%s392 + $0x128c] sm:$0xff]
        %v1222 = vld [vmem:[%s392 + $0x1294] sm:$0xf]
        %v1223 = vld [vmem:[%s392 + $0x1298] sm:$0xff]
        %v1224 = vld [vmem:[%s392 + $0x12a0] sm:$0xff]
        %v1225 = vld [vmem:[%s392 + $0x12a8] sm:$0xf]
        %v1226 = vld [vmem:[%s392 + $0x12ac] sm:$0xff]
        %v1227 = vld [vmem:[%s392 + $0x12b4] sm:$0xff]
        %v1228 = vld [vmem:[%s392 + $0x12bc] sm:$0xf]
        %v1229 = vld [vmem:[%s392 + $0x12c0] sm:$0xff]
        %v1230 = vld [vmem:[%s392 + $0x12c8] sm:$0xff]
        %v1231 = vld [vmem:[%s392 + $0x12d0] sm:$0xf]
        %v1232 = vld [vmem:[%s392 + $0x12d4] sm:$0xff]
        %v1233 = vld [vmem:[%s392 + $0x12dc] sm:$0xff]
        %v1234 = vld [vmem:[%s392 + $0x12e4] sm:$0xf]
        %v1235 = vld [vmem:[%s392 + $0x12e8] sm:$0xff]
        %v1236 = vld [vmem:[%s392 + $0x12f0] sm:$0xff]
        %v1237 = vld [vmem:[%s392 + $0x12f8] sm:$0xf]
        %v1238 = vld [vmem:[%s392 + $0x12fc] sm:$0xff]
        %v1239 = vld [vmem:[%s392 + $0x1304] sm:$0xff]
        %v1240 = vld [vmem:[%s392 + $0x130c] sm:$0xf]
        %v1241 = vld [vmem:[%s392 + $0x1310] sm:$0xff]
        %v1242 = vld [vmem:[%s392 + $0x1318] sm:$0xff]
        %v1243 = vld [vmem:[%s392 + $0x1320] sm:$0xf]
        %v1244 = vld [vmem:[%s392 + $0x1324] sm:$0xff]
        %v1245 = vld [vmem:[%s392 + $0x132c] sm:$0xff]
        %v1246 = vld [vmem:[%s392 + $0x1334] sm:$0xf]
        %v1247 = vld [vmem:[%s392 + $0x1338] sm:$0xff]
        %v1248 = vld [vmem:[%s392 + $0x1340] sm:$0xff]
        %v1249 = vld [vmem:[%s392 + $0x1348] sm:$0xf]
        %v1250 = vld [vmem:[%s392 + $0x134c] sm:$0xff]
        %v1251 = vld [vmem:[%s392 + $0x1354] sm:$0xff]
        %v1252 = vld [vmem:[%s392 + $0x135c] sm:$0xf]
        %v1253 = vld [vmem:[%s392 + $0x1360] sm:$0xff]
        %v1254 = vld [vmem:[%s392 + $0x1368] sm:$0xff]
        %v1255 = vld [vmem:[%s392 + $0x1370] sm:$0xf]
        %v1256 = vld [vmem:[%s392 + $0x1374] sm:$0xff]
        %v1257 = vld [vmem:[%s392 + $0x137c] sm:$0xff]
        %v1258 = vld [vmem:[%s392 + $0x1384] sm:$0xf]
        %v1259 = vld [vmem:[%s392 + $0x1388] sm:$0xff]
        %v1260 = vld [vmem:[%s392 + $0x1390] sm:$0xff]
        %v1261 = vld [vmem:[%s392 + $0x1398] sm:$0xf]
        %v1262 = vld [vmem:[%s392 + $0x139c] sm:$0xff]
        %v1263 = vld [vmem:[%s392 + $0x13a4] sm:$0xff]
        %v1264 = vld [vmem:[%s392 + $0x13ac] sm:$0xf]
        %v1265 = vld [vmem:[%s392 + $0x13b0] sm:$0xff]
        %v1266 = vld [vmem:[%s392 + $0x13b8] sm:$0xff]
        %v1267 = vld [vmem:[%s392 + $0x13c0] sm:$0xf]
        %v1268 = vld [vmem:[%s392 + $0x13c4] sm:$0xff]
        %v1269 = vld [vmem:[%s392 + $0x13cc] sm:$0xff]
        %v1270 = vld [vmem:[%s392 + $0x13d4] sm:$0xf]
        %v1271 = vld [vmem:[%s392 + $0x13d8] sm:$0xff]
        %v1272 = vld [vmem:[%s392 + $0x13e0] sm:$0xff]
        %v1273 = vld [vmem:[%s392 + $0x13e8] sm:$0xf]
        %v1274 = vld [vmem:[%s392 + $0x13ec] sm:$0xff]
        %v1275 = vld [vmem:[%s392 + $0x13f4] sm:$0xff]
        %v1276 = vld [vmem:[%s392 + $0x13fc] sm:$0xf]
        %v1277 = vld [vmem:[%s392 + $0x1400] sm:$0xff]
        %v1278 = vld [vmem:[%s392 + $0x1408] sm:$0xff]
        %v1279 = vld [vmem:[%s392 + $0x1410] sm:$0xf]
        %v1280 = vld [vmem:[%s392 + $0x1414] sm:$0xff]
        %v1281 = vld [vmem:[%s392 + $0x141c] sm:$0xff]
        %v1282 = vld [vmem:[%s392 + $0x1424] sm:$0xf]
        %v1283 = vld [vmem:[%s392 + $0x1428] sm:$0xff]
        %v1284 = vld [vmem:[%s392 + $0x1430] sm:$0xff]
        %v1285 = vld [vmem:[%s392 + $0x1438] sm:$0xf]
        %v1286 = vld [vmem:[%s392 + $0x143c] sm:$0xff]
        %v1287 = vld [vmem:[%s392 + $0x1444] sm:$0xff]
        %v1288 = vld [vmem:[%s392 + $0x144c] sm:$0xf]
        %v1289 = vld [vmem:[%s392 + $0x1450] sm:$0xff]
        %v1290 = vld [vmem:[%s392 + $0x1458] sm:$0xff]
        %v1291 = vld [vmem:[%s392 + $0x1460] sm:$0xf]
        %v1292 = vld [vmem:[%s392 + $0x1464] sm:$0xff]
        %v1293 = vld [vmem:[%s392 + $0x146c] sm:$0xff]
        %v1294 = vld [vmem:[%s392 + $0x1474] sm:$0xf]
        %v1295 = vld [vmem:[%s392 + $0x1478] sm:$0xff]
        %v1296 = vld [vmem:[%s392 + $0x1480] sm:$0xff]
        %v1297 = vld [vmem:[%s392 + $0x1488] sm:$0xf]
        %v1298 = vld [vmem:[%s392 + $0x148c] sm:$0xff]
        %v1299 = vld [vmem:[%s392 + $0x1494] sm:$0xff]
        %v1300 = vld [vmem:[%s392 + $0x149c] sm:$0xf]
        %v1301 = vld [vmem:[%s392 + $0x14a0] sm:$0xff]
        %v1302 = vld [vmem:[%s392 + $0x14a8] sm:$0xff]
        %v1303 = vld [vmem:[%s392 + $0x14b0] sm:$0xf]
        %v1304 = vld [vmem:[%s392 + $0x14b4] sm:$0xff]
        %v1305 = vld [vmem:[%s392 + $0x14bc] sm:$0xff]
        %v1306 = vld [vmem:[%s392 + $0x14c4] sm:$0xf]
        %v1307 = vld [vmem:[%s392 + $0x14c8] sm:$0xff]
        %v1308 = vld [vmem:[%s392 + $0x14d0] sm:$0xff]
        %v1309 = vld [vmem:[%s392 + $0x14d8] sm:$0xf]
        %v1310 = vld [vmem:[%s392 + $0x14dc] sm:$0xff]
        %v1311 = vld [vmem:[%s392 + $0x14e4] sm:$0xff]
        %v1312 = vld [vmem:[%s392 + $0x14ec] sm:$0xf]
        %v1313 = vld [vmem:[%s392 + $0x14f0] sm:$0xff]
        %v1314 = vld [vmem:[%s392 + $0x14f8] sm:$0xff]
        %v1315 = vld [vmem:[%s392 + $0x1500] sm:$0xf]
        %v1316 = vld [vmem:[%s392 + $0x1504] sm:$0xff]
        %v1317 = vld [vmem:[%s392 + $0x150c] sm:$0xff]
        %v1318 = vld [vmem:[%s392 + $0x1514] sm:$0xf]
        %v1319 = vld [vmem:[%s392 + $0x1518] sm:$0xff]
        %v1320 = vld [vmem:[%s392 + $0x1520] sm:$0xff]
        %v1321 = vld [vmem:[%s392 + $0x1528] sm:$0xf]
        %v1322 = vld [vmem:[%s392 + $0x152c] sm:$0xff]
        %v1323 = vld [vmem:[%s392 + $0x1534] sm:$0xff]
        %v1324 = vld [vmem:[%s392 + $0x153c] sm:$0xf]
        %v1325 = vld [vmem:[%s392 + $0x1540] sm:$0xff]
        %v1326 = vld [vmem:[%s392 + $0x1548] sm:$0xff]
        %v1327 = vld [vmem:[%s392 + $0x1550] sm:$0xf]
        %v1328 = vld [vmem:[%s392 + $0x1554] sm:$0xff]
        %v1329 = vld [vmem:[%s392 + $0x155c] sm:$0xff]
        %v1330 = vld [vmem:[%s392 + $0x1564] sm:$0xf]
        %v1331 = vld [vmem:[%s392 + $0x1568] sm:$0xff]
        %v1332 = vld [vmem:[%s392 + $0x1570] sm:$0xff]
        %v1333 = vld [vmem:[%s392 + $0x1578] sm:$0xf]
        %v1334 = vld [vmem:[%s392 + $0x157c] sm:$0xff]
        %v1335 = vld [vmem:[%s392 + $0x1584] sm:$0xff]
        %v1336 = vld [vmem:[%s392 + $0x158c] sm:$0xf]
        %v1337 = vld [vmem:[%s392 + $0x1590] sm:$0xff]
        %v1338 = vld [vmem:[%s392 + $0x1598] sm:$0xff]
        %v1339 = vld [vmem:[%s392 + $0x15a0] sm:$0xf]
        %v1340 = vld [vmem:[%s392 + $0x15a4] sm:$0xff]
        %v1341 = vld [vmem:[%s392 + $0x15ac] sm:$0xff]
        %v1342 = vld [vmem:[%s392 + $0x15b4] sm:$0xf]
        %v1343 = vld [vmem:[%s392 + $0x15b8] sm:$0xff]
        %v1344 = vld [vmem:[%s392 + $0x15c0] sm:$0xff]
        %v1345 = vld [vmem:[%s392 + $0x15c8] sm:$0xf]
        %v1346 = vld [vmem:[%s392 + $0x15cc] sm:$0xff]
        %v1347 = vld [vmem:[%s392 + $0x15d4] sm:$0xff]
        %v1348 = vld [vmem:[%s392 + $0x15dc] sm:$0xf]
        %v1349 = vld [vmem:[%s392 + $0x15e0] sm:$0xff]
        %v1350 = vld [vmem:[%s392 + $0x15e8] sm:$0xff]
        %v1351 = vld [vmem:[%s392 + $0x15f0] sm:$0xf]
        %v1352 = vld [vmem:[%s392 + $0x15f4] sm:$0xff]
        %v1353 = vld [vmem:[%s392 + $0x15fc] sm:$0xff]
        %v1354 = vld [vmem:[%s392 + $0x1604] sm:$0xf]
        %v1355 = vld [vmem:[%s392 + $0x1608] sm:$0xff]
        %v1356 = vld [vmem:[%s392 + $0x1610] sm:$0xff]
        %v1357 = vld [vmem:[%s392 + $0x1618] sm:$0xf]
        %v1358 = vld [vmem:[%s392 + $0x161c] sm:$0xff]
        %v1359 = vld [vmem:[%s392 + $0x1624] sm:$0xff]
        %v1360 = vld [vmem:[%s392 + $0x162c] sm:$0xf]
        %v1361 = vld [vmem:[%s392 + $0x1630] sm:$0xff]
        %v1362 = vld [vmem:[%s392 + $0x1638] sm:$0xff]
        %v1363 = vld [vmem:[%s392 + $0x1640] sm:$0xf]
        %v1364 = vld [vmem:[%s392 + $0x1644] sm:$0xff]
        %v1365 = vld [vmem:[%s392 + $0x164c] sm:$0xff]
        %v1366 = vld [vmem:[%s392 + $0x1654] sm:$0xf]
        %v1367 = vld [vmem:[%s392 + $0x1658] sm:$0xff]
        %v1368 = vld [vmem:[%s392 + $0x1660] sm:$0xff]
        %v1369 = vld [vmem:[%s392 + $0x1668] sm:$0xf]
        %v1370 = vld [vmem:[%s392 + $0x166c] sm:$0xff]
        %v1371 = vld [vmem:[%s392 + $0x1674] sm:$0xff]
        %v1372 = vld [vmem:[%s392 + $0x167c] sm:$0xf]
        %v1373 = vld [vmem:[%s392 + $0x1680] sm:$0xff]
        %v1374 = vld [vmem:[%s392 + $0x1688] sm:$0xff]
        %v1375 = vld [vmem:[%s392 + $0x1690] sm:$0xf]
        %v1376 = vld [vmem:[%s392 + $0x1694] sm:$0xff]
        %v1377 = vld [vmem:[%s392 + $0x169c] sm:$0xff]
        %v1378 = vld [vmem:[%s392 + $0x16a4] sm:$0xf]
        %v1379 = vld [vmem:[%s392 + $0x16a8] sm:$0xff]
        %v1380 = vld [vmem:[%s392 + $0x16b0] sm:$0xff]
        %v1381 = vld [vmem:[%s392 + $0x16b8] sm:$0xf]
        %v1382 = vld [vmem:[%s392 + $0x16bc] sm:$0xff]
        %v1383 = vld [vmem:[%s392 + $0x16c4] sm:$0xff]
        %v1384 = vld [vmem:[%s392 + $0x16cc] sm:$0xf]
        %v1385 = vld [vmem:[%s392 + $0x16d0] sm:$0xff]
        %v1386 = vld [vmem:[%s392 + $0x16d8] sm:$0xff]
        %v1387 = vld [vmem:[%s392 + $0x16e0] sm:$0xf]
        %v1388 = vld [vmem:[%s392 + $0x16e4] sm:$0xff]
        %v1389 = vld [vmem:[%s392 + $0x16ec] sm:$0xff]
        %v1390 = vld [vmem:[%s392 + $0x16f4] sm:$0xf]
        %v1391 = vld [vmem:[%s392 + $0x16f8] sm:$0xff]
        %v1392 = vld [vmem:[%s392 + $0x1700] sm:$0xff]
        %v1393 = vld [vmem:[%s392 + $0x1708] sm:$0xf]
        %v1394 = vld [vmem:[%s392 + $0x170c] sm:$0xff]
        %v1395 = vld [vmem:[%s392 + $0x1714] sm:$0xff]
        %v1396 = vld [vmem:[%s392 + $0x171c] sm:$0xf]
        %v1397 = vld [vmem:[%s392 + $0x1720] sm:$0xff]
        %v1398 = vld [vmem:[%s392 + $0x1728] sm:$0xff]
        %v1399 = vld [vmem:[%s392 + $0x1730] sm:$0xf]
        %v1400 = vld [vmem:[%s392 + $0x1734] sm:$0xff]
        %v1401 = vld [vmem:[%s392 + $0x173c] sm:$0xff]
        %v1402 = vld [vmem:[%s392 + $0x1744] sm:$0xf]
        %v1403 = vld [vmem:[%s392 + $0x1748] sm:$0xff]
        %v1404 = vld [vmem:[%s392 + $0x1750] sm:$0xff]
        %v1405 = vld [vmem:[%s392 + $0x1758] sm:$0xf]
        %v1406 = vld [vmem:[%s392 + $0x175c] sm:$0xff]
        %v1407 = vld [vmem:[%s392 + $0x1764] sm:$0xff]
        %v1408 = vld [vmem:[%s392 + $0x176c] sm:$0xf]
        %v1409 = vld [vmem:[%s392 + $0x1770] sm:$0xff]
        %v1410 = vld [vmem:[%s392 + $0x1778] sm:$0xff]
        %v1411 = vld [vmem:[%s392 + $0x1780] sm:$0xf]
        %v1412 = vld [vmem:[%s392 + $0x1784] sm:$0xff]
        %v1413 = vld [vmem:[%s392 + $0x178c] sm:$0xff]
        %v1414 = vld [vmem:[%s392 + $0x1794] sm:$0xf]
        %v1415 = vld [vmem:[%s392 + $0x1798] sm:$0xff]
        %v1416 = vld [vmem:[%s392 + $0x17a0] sm:$0xff]
        %v1417 = vld [vmem:[%s392 + $0x17a8] sm:$0xf]
        %v1418 = vld [vmem:[%s392 + $0x17ac] sm:$0xff]
        %v1419 = vld [vmem:[%s392 + $0x17b4] sm:$0xff]
        %v1420 = vld [vmem:[%s392 + $0x17bc] sm:$0xf]
        %v1421 = vld [vmem:[%s392 + $0x17c0] sm:$0xff]
        %v1422 = vld [vmem:[%s392 + $0x17c8] sm:$0xff]
        %v1423 = vld [vmem:[%s392 + $0x17d0] sm:$0xf]
        %v1424 = vld [vmem:[%s392 + $0x17d4] sm:$0xff]
        %v1425 = vld [vmem:[%s392 + $0x17dc] sm:$0xff]
        %v1426 = vld [vmem:[%s392 + $0x17e4] sm:$0xf]
        %v1427 = vld [vmem:[%s392 + $0x17e8] sm:$0xff]
        %v1428 = vld [vmem:[%s392 + $0x17f0] sm:$0xff]
        %v1429 = vld [vmem:[%s392 + $0x17f8] sm:$0xf]
        %v1430 = vld [vmem:[%s392 + $0x17fc] sm:$0xff]
        %v1431 = vld [vmem:[%s392 + $0x1804] sm:$0xff]
        %v1432 = vld [vmem:[%s392 + $0x180c] sm:$0xf]
        %v1433 = vld [vmem:[%s392 + $0x1810] sm:$0xff]
        %v1434 = vld [vmem:[%s392 + $0x1818] sm:$0xff]
        %v1435 = vld [vmem:[%s392 + $0x1820] sm:$0xf]
        %v1436 = vld [vmem:[%s392 + $0x1824] sm:$0xff]
        %v1437 = vld [vmem:[%s392 + $0x182c] sm:$0xff]
        %v1438 = vld [vmem:[%s392 + $0x1834] sm:$0xf]
        %v1439 = vld [vmem:[%s392 + $0x1838] sm:$0xff]
        %v1440 = vld [vmem:[%s392 + $0x1840] sm:$0xff]
        %v1441 = vld [vmem:[%s392 + $0x1848] sm:$0xf]
        %v1442 = vld [vmem:[%s392 + $0x184c] sm:$0xff]
        %v1443 = vld [vmem:[%s392 + $0x1854] sm:$0xff]
        %v1444 = vld [vmem:[%s392 + $0x185c] sm:$0xf]
        %v1445 = vld [vmem:[%s392 + $0x1860] sm:$0xff]
        %v1446 = vld [vmem:[%s392 + $0x1868] sm:$0xff]
        %v1447 = vld [vmem:[%s392 + $0x1870] sm:$0xf]
        %v1448 = vld [vmem:[%s392 + $0x1874] sm:$0xff]
        %v1449 = vld [vmem:[%s392 + $0x187c] sm:$0xff]
        %v1450 = vld [vmem:[%s392 + $0x1884] sm:$0xf]
        %v1451 = vld [vmem:[%s392 + $0x1888] sm:$0xff]
        %v1452 = vld [vmem:[%s392 + $0x1890] sm:$0xff]
        %v1453 = vld [vmem:[%s392 + $0x1898] sm:$0xf]
        %v1454 = vld [vmem:[%s392 + $0x189c] sm:$0xff]
        %v1455 = vld [vmem:[%s392 + $0x18a4] sm:$0xff]
        %v1456 = vld [vmem:[%s392 + $0x18ac] sm:$0xf]
        %v1457 = vld [vmem:[%s392 + $0x18b0] sm:$0xff]
        %v1458 = vld [vmem:[%s392 + $0x18b8] sm:$0xff]
        %v1459 = vld [vmem:[%s392 + $0x18c0] sm:$0xf]
        %v1460 = vld [vmem:[%s392 + $0x18c4] sm:$0xff]
        %v1461 = vld [vmem:[%s392 + $0x18cc] sm:$0xff]
        %v1462 = vld [vmem:[%s392 + $0x18d4] sm:$0xf]
        %v1463 = vld [vmem:[%s392 + $0x18d8] sm:$0xff]
        %v1464 = vld [vmem:[%s392 + $0x18e0] sm:$0xff]
        %v1465 = vld [vmem:[%s392 + $0x18e8] sm:$0xf]
        %v1466 = vld [vmem:[%s392 + $0x18ec] sm:$0xff]
        %v1467 = vld [vmem:[%s392 + $0x18f4] sm:$0xff]
        %v1468 = vld [vmem:[%s392 + $0x18fc] sm:$0xf]
        %v1469 = vld [vmem:[%s392 + $0x1900] sm:$0xff]
        %v1470 = vld [vmem:[%s392 + $0x1908] sm:$0xff]
        %v1471 = vld [vmem:[%s392 + $0x1910] sm:$0xf]
        %v1472 = vld [vmem:[%s392 + $0x1914] sm:$0xff]
        %v1473 = vld [vmem:[%s392 + $0x191c] sm:$0xff]
        %v1474 = vld [vmem:[%s392 + $0x1924] sm:$0xf]
        %v1475 = vld [vmem:[%s392 + $0x1928] sm:$0xff]
        %v1476 = vld [vmem:[%s392 + $0x1930] sm:$0xff]
        %v1477 = vld [vmem:[%s392 + $0x1938] sm:$0xf]
        %v1478 = vld [vmem:[%s392 + $0x193c] sm:$0xff]
        %v1479 = vld [vmem:[%s392 + $0x1944] sm:$0xff]
        %v1480 = vld [vmem:[%s392 + $0x194c] sm:$0xf]
        %v1481 = vld [vmem:[%s392 + $0x1950] sm:$0xff]
        %v1482 = vld [vmem:[%s392 + $0x1958] sm:$0xff]
        %v1483 = vld [vmem:[%s392 + $0x1960] sm:$0xf]
        %v1484 = vld [vmem:[%s392 + $0x1964] sm:$0xff]
        %v1485 = vld [vmem:[%s392 + $0x196c] sm:$0xff]
        %v1486 = vld [vmem:[%s392 + $0x1974] sm:$0xf]
        %v1487 = vld [vmem:[%s392 + $0x1978] sm:$0xff]
        %v1488 = vld [vmem:[%s392 + $0x1980] sm:$0xff]
        %v1489 = vld [vmem:[%s392 + $0x1988] sm:$0xf]
        %v1490 = vld [vmem:[%s392 + $0x198c] sm:$0xff]
        %v1491 = vld [vmem:[%s392 + $0x1994] sm:$0xff]
        %v1492 = vld [vmem:[%s392 + $0x199c] sm:$0xf]
        %v1493 = vld [vmem:[%s392 + $0x19a0] sm:$0xff]
        %v1494 = vld [vmem:[%s392 + $0x19a8] sm:$0xff]
        %v1495 = vld [vmem:[%s392 + $0x19b0] sm:$0xf]
        %v1496 = vld [vmem:[%s392 + $0x19b4] sm:$0xff]
        %v1497 = vld [vmem:[%s392 + $0x19bc] sm:$0xff]
        %v1498 = vld [vmem:[%s392 + $0x19c4] sm:$0xf]
        %v1499 = vld [vmem:[%s392 + $0x19c8] sm:$0xff]
        %v1500 = vld [vmem:[%s392 + $0x19d0] sm:$0xff]
        %v1501 = vld [vmem:[%s392 + $0x19d8] sm:$0xf]
        %v1502 = vld [vmem:[%s392 + $0x19dc] sm:$0xff]
        %v1503 = vld [vmem:[%s392 + $0x19e4] sm:$0xff]
        %v1504 = vld [vmem:[%s392 + $0x19ec] sm:$0xf]
        %v1505 = vld [vmem:[%s392 + $0x19f0] sm:$0xff]
        %v1506 = vld [vmem:[%s392 + $0x19f8] sm:$0xff]
        %v1507 = vld [vmem:[%s392 + $0x1a00] sm:$0xf]
        %v1508 = vld [vmem:[%s392 + $0x1a04] sm:$0xff]
        %v1509 = vld [vmem:[%s392 + $0x1a0c] sm:$0xff]
        %v1510 = vld [vmem:[%s392 + $0x1a14] sm:$0xf]
        %v1511 = vld [vmem:[%s392 + $0x1a18] sm:$0xff]
        %v1512 = vld [vmem:[%s392 + $0x1a20] sm:$0xff]
        %v1513 = vld [vmem:[%s392 + $0x1a28] sm:$0xf]
        %v1514 = vld [vmem:[%s392 + $0x1a2c] sm:$0xff]
        %v1515 = vld [vmem:[%s392 + $0x1a34] sm:$0xff]
        %v1516 = vld [vmem:[%s392 + $0x1a3c] sm:$0xf]
        %v1517 = vld [vmem:[%s392 + $0x1a40] sm:$0xff]
        %v1518 = vld [vmem:[%s392 + $0x1a48] sm:$0xff]
        %v1519 = vld [vmem:[%s392 + $0x1a50] sm:$0xf]
        %v1520 = vld [vmem:[%s392 + $0x1a54] sm:$0xff]
        %v1521 = vld [vmem:[%s392 + $0x1a5c] sm:$0xff]
        %v1522 = vld [vmem:[%s392 + $0x1a64] sm:$0xf]
        %v1523 = vld [vmem:[%s392 + $0x1a68] sm:$0xff]
        %v1524 = vld [vmem:[%s392 + $0x1a70] sm:$0xff]
        %v1525 = vld [vmem:[%s392 + $0x1a78] sm:$0xf]
        %v1526 = vld [vmem:[%s392 + $0x1a7c] sm:$0xff]
        %v1527 = vld [vmem:[%s392 + $0x1a84] sm:$0xff]
        %v1528 = vld [vmem:[%s392 + $0x1a8c] sm:$0xf]
        %v1529 = vld [vmem:[%s392 + $0x1a90] sm:$0xff]
        %v1530 = vld [vmem:[%s392 + $0x1a98] sm:$0xff]
        %v1531 = vld [vmem:[%s392 + $0x1aa0] sm:$0xf]
        %v1532 = vld [vmem:[%s392 + $0x1aa4] sm:$0xff]
        %v1533 = vld [vmem:[%s392 + $0x1aac] sm:$0xff]
        %v1534 = vld [vmem:[%s392 + $0x1ab4] sm:$0xf]
        %v1535 = vld [vmem:[%s392 + $0x1ab8] sm:$0xff]
        %v1536 = vld [vmem:[%s392 + $0x1ac0] sm:$0xff]
        %v1537 = vld [vmem:[%s392 + $0x1ac8] sm:$0xf]
        %v1538 = vld [vmem:[%s392 + $0x1acc] sm:$0xff]
        %v1539 = vld [vmem:[%s392 + $0x1ad4] sm:$0xff]
        %v1540 = vld [vmem:[%s392 + $0x1adc] sm:$0xf]
        %v1541 = vld [vmem:[%s392 + $0x1ae0] sm:$0xff]
        %v1542 = vld [vmem:[%s392 + $0x1ae8] sm:$0xff]
        %v1543 = vld [vmem:[%s392 + $0x1af0] sm:$0xf]
        %v1544 = vld [vmem:[%s392 + $0x1af4] sm:$0xff]
        %v1545 = vld [vmem:[%s392 + $0x1afc] sm:$0xff]
        %v1546 = vld [vmem:[%s392 + $0x1b04] sm:$0xf]
        %v1547 = vld [vmem:[%s392 + $0x1b08] sm:$0xff]
        %v1548 = vld [vmem:[%s392 + $0x1b10] sm:$0xff]
        %v1549 = vld [vmem:[%s392 + $0x1b18] sm:$0xf]
        %v1550 = vld [vmem:[%s392 + $0x1b1c] sm:$0xff]
        %v1551 = vld [vmem:[%s392 + $0x1b24] sm:$0xff]
        %v1552 = vld [vmem:[%s392 + $0x1b2c] sm:$0xf]
        %v1553 = vld [vmem:[%s392 + $0x1b30] sm:$0xff]
        %v1554 = vld [vmem:[%s392 + $0x1b38] sm:$0xff]
        %v1555 = vld [vmem:[%s392 + $0x1b40] sm:$0xf]
        %v1556 = vld [vmem:[%s392 + $0x1b44] sm:$0xff]
        %v1557 = vld [vmem:[%s392 + $0x1b4c] sm:$0xff]
        %v1558 = vld [vmem:[%s392 + $0x1b54] sm:$0xf]
        %v1559 = vld [vmem:[%s392 + $0x1b58] sm:$0xff]
        %v1560 = vld [vmem:[%s392 + $0x1b60] sm:$0xff]
        %v1561 = vld [vmem:[%s392 + $0x1b68] sm:$0xf]
        %v1562 = vld [vmem:[%s392 + $0x1b6c] sm:$0xff]
        %v1563 = vld [vmem:[%s392 + $0x1b74] sm:$0xff]
        %v1564 = vld [vmem:[%s392 + $0x1b7c] sm:$0xf]
        %v1565 = vld [vmem:[%s392 + $0x1b80] sm:$0xff]
        %v1566 = vld [vmem:[%s392 + $0x1b88] sm:$0xff]
        %v1567 = vld [vmem:[%s392 + $0x1b90] sm:$0xf]
        %v1568 = vld [vmem:[%s392 + $0x1b94] sm:$0xff]
        %v1569 = vld [vmem:[%s392 + $0x1b9c] sm:$0xff]
        %v1570 = vld [vmem:[%s392 + $0x1ba4] sm:$0xf]
        %v1571 = vld [vmem:[%s392 + $0x1ba8] sm:$0xff]
        %v1572 = vld [vmem:[%s392 + $0x1bb0] sm:$0xff]
        %v1573 = vld [vmem:[%s392 + $0x1bb8] sm:$0xf]
        %v1574 = vld [vmem:[%s392 + $0x1bbc] sm:$0xff]
        %v1575 = vld [vmem:[%s392 + $0x1bc4] sm:$0xff]
        %v1576 = vld [vmem:[%s392 + $0x1bcc] sm:$0xf]
        %v1577 = vld [vmem:[%s392 + $0x1bd0] sm:$0xff]
        %v1578 = vld [vmem:[%s392 + $0x1bd8] sm:$0xff]
        %v1579 = vld [vmem:[%s392 + $0x1be0] sm:$0xf]
        %v1580 = vld [vmem:[%s392 + $0x1be4] sm:$0xff]
        %v1581 = vld [vmem:[%s392 + $0x1bec] sm:$0xff]
        %v1582 = vld [vmem:[%s392 + $0x1bf4] sm:$0xf]
        %v1583 = vld [vmem:[%s392 + $0x1bf8] sm:$0xff]
        %v1584 = vld [vmem:[%s392 + $0x1c00] sm:$0xff]
        %v1585 = vld [vmem:[%s392 + $0x1c08] sm:$0xf]
        %v1586 = vld [vmem:[%s392 + $0x1c0c] sm:$0xff]
        %v1587 = vld [vmem:[%s392 + $0x1c14] sm:$0xff]
        %v1588 = vld [vmem:[%s392 + $0x1c1c] sm:$0xf]
        %v1589 = vld [vmem:[%s392 + $0x1c20] sm:$0xff]
        %v1590 = vld [vmem:[%s392 + $0x1c28] sm:$0xff]
        %v1591 = vld [vmem:[%s392 + $0x1c30] sm:$0xf]
        %v1592 = vld [vmem:[%s392 + $0x1c34] sm:$0xff]
        %v1593 = vld [vmem:[%s392 + $0x1c3c] sm:$0xff]
        %v1594 = vld [vmem:[%s392 + $0x1c44] sm:$0xf]
        %v1595 = vld [vmem:[%s392 + $0x1c48] sm:$0xff]
        %v1596 = vld [vmem:[%s392 + $0x1c50] sm:$0xff]
        %v1597 = vld [vmem:[%s392 + $0x1c58] sm:$0xf]
        %v1598 = vld [vmem:[%s392 + $0x1c5c] sm:$0xff]
        %v1599 = vld [vmem:[%s392 + $0x1c64] sm:$0xff]
        %v1600 = vld [vmem:[%s392 + $0x1c6c] sm:$0xf]
        %v1601 = vld [vmem:[%s392 + $0x1c70] sm:$0xff]
        %v1602 = vld [vmem:[%s392 + $0x1c78] sm:$0xff]
        %v1603 = vld [vmem:[%s392 + $0x1c80] sm:$0xf]
        %v1604 = vld [vmem:[%s392 + $0x1c84] sm:$0xff]
        %v1605 = vld [vmem:[%s392 + $0x1c8c] sm:$0xff]
        %v1606 = vld [vmem:[%s392 + $0x1c94] sm:$0xf]
        %v1607 = vld [vmem:[%s392 + $0x1c98] sm:$0xff]
        %v1608 = vld [vmem:[%s392 + $0x1ca0] sm:$0xff]
        %v1609 = vld [vmem:[%s392 + $0x1ca8] sm:$0xf]
        %v1610 = vld [vmem:[%s392 + $0x1cac] sm:$0xff]
        %v1611 = vld [vmem:[%s392 + $0x1cb4] sm:$0xff]
        %v1612 = vld [vmem:[%s392 + $0x1cbc] sm:$0xf]
        %v1613 = vld [vmem:[%s392 + $0x1cc0] sm:$0xff]
        %v1614 = vld [vmem:[%s392 + $0x1cc8] sm:$0xff]
        %v1615 = vld [vmem:[%s392 + $0x1cd0] sm:$0xf]
        %v1616 = vld [vmem:[%s392 + $0x1cd4] sm:$0xff]
        %v1617 = vld [vmem:[%s392 + $0x1cdc] sm:$0xff]
        %v1618 = vld [vmem:[%s392 + $0x1ce4] sm:$0xf]
        %v1619 = vld [vmem:[%s392 + $0x1ce8] sm:$0xff]
        %v1620 = vld [vmem:[%s392 + $0x1cf0] sm:$0xff]
        %v1621 = vld [vmem:[%s392 + $0x1cf8] sm:$0xf]
        %v1622 = vld [vmem:[%s392 + $0x1cfc] sm:$0xff]
        %v1623 = vld [vmem:[%s392 + $0x1d04] sm:$0xff]
        %v1624 = vld [vmem:[%s392 + $0x1d0c] sm:$0xf]
        %v1625 = vld [vmem:[%s392 + $0x1d10] sm:$0xff]
        %v1626 = vld [vmem:[%s392 + $0x1d18] sm:$0xff]
        %v1627 = vld [vmem:[%s392 + $0x1d20] sm:$0xf]
        %v1628 = vld [vmem:[%s392 + $0x1d24] sm:$0xff]
        %v1629 = vld [vmem:[%s392 + $0x1d2c] sm:$0xff]
        %v1630 = vld [vmem:[%s392 + $0x1d34] sm:$0xf]
        %v1631 = vld [vmem:[%s392 + $0x1d38] sm:$0xff]
        %v1632 = vld [vmem:[%s392 + $0x1d40] sm:$0xff]
        %v1633 = vld [vmem:[%s392 + $0x1d48] sm:$0xf]
        %v1634 = vld [vmem:[%s392 + $0x1d4c] sm:$0xff]
        %v1635 = vld [vmem:[%s392 + $0x1d54] sm:$0xff]
        %v1636 = vld [vmem:[%s392 + $0x1d5c] sm:$0xf]
        %v1637 = vld [vmem:[%s392 + $0x1d60] sm:$0xff]
        %v1638 = vld [vmem:[%s392 + $0x1d68] sm:$0xff]
        %v1639 = vld [vmem:[%s392 + $0x1d70] sm:$0xf]
        %v1640 = vld [vmem:[%s392 + $0x1d74] sm:$0xff]
        %v1641 = vld [vmem:[%s392 + $0x1d7c] sm:$0xff]
        %v1642 = vld [vmem:[%s392 + $0x1d84] sm:$0xf]
        %v1643 = vld [vmem:[%s392 + $0x1d88] sm:$0xff]
        %v1644 = vld [vmem:[%s392 + $0x1d90] sm:$0xff]
        %v1645 = vld [vmem:[%s392 + $0x1d98] sm:$0xf]
        %v1646 = vld [vmem:[%s392 + $0x1d9c] sm:$0xff]
        %v1647 = vld [vmem:[%s392 + $0x1da4] sm:$0xff]
        %v1648 = vld [vmem:[%s392 + $0x1dac] sm:$0xf]
        %v1649 = vld [vmem:[%s392 + $0x1db0] sm:$0xff]
        %v1650 = vld [vmem:[%s392 + $0x1db8] sm:$0xff]
        %v1651 = vld [vmem:[%s392 + $0x1dc0] sm:$0xf]
        %v1652 = vld [vmem:[%s392 + $0x1dc4] sm:$0xff]
        %v1653 = vld [vmem:[%s392 + $0x1dcc] sm:$0xff]
        %v1654 = vld [vmem:[%s392 + $0x1dd4] sm:$0xf]
        %v1655 = vld [vmem:[%s392 + $0x1dd8] sm:$0xff]
        %v1656 = vld [vmem:[%s392 + $0x1de0] sm:$0xff]
        %v1657 = vld [vmem:[%s392 + $0x1de8] sm:$0xf]
        %v1658 = vld [vmem:[%s392 + $0x1dec] sm:$0xff]
        %v1659 = vld [vmem:[%s392 + $0x1df4] sm:$0xff]
        %v1660 = vld [vmem:[%s392 + $0x1dfc] sm:$0xf]
        %v1661 = vld [vmem:[%s392 + $0x1e00] sm:$0xff]
        %v1662 = vld [vmem:[%s392 + $0x1e08] sm:$0xff]
        %v1663 = vld [vmem:[%s392 + $0x1e10] sm:$0xf]
        %v1664 = vld [vmem:[%s392 + $0x1e14] sm:$0xff]
        %v1665 = vld [vmem:[%s392 + $0x1e1c] sm:$0xff]
        %v1666 = vld [vmem:[%s392 + $0x1e24] sm:$0xf]
        %v1667 = vld [vmem:[%s392 + $0x1e28] sm:$0xff]
        %v1668 = vld [vmem:[%s392 + $0x1e30] sm:$0xff]
        %v1669 = vld [vmem:[%s392 + $0x1e38] sm:$0xf]
        %v1670 = vld [vmem:[%s392 + $0x1e3c] sm:$0xff]
        %v1671 = vld [vmem:[%s392 + $0x1e44] sm:$0xff]
        %v1672 = vld [vmem:[%s392 + $0x1e4c] sm:$0xf]
        %v1673 = vld [vmem:[%s392 + $0x1e50] sm:$0xff]
        %v1674 = vld [vmem:[%s392 + $0x1e58] sm:$0xff]
        %v1675 = vld [vmem:[%s392 + $0x1e60] sm:$0xf]
        %v1676 = vld [vmem:[%s392 + $0x1e64] sm:$0xff]
        %v1677 = vld [vmem:[%s392 + $0x1e6c] sm:$0xff]
        %v1678 = vld [vmem:[%s392 + $0x1e74] sm:$0xf]
        %v1679 = vld [vmem:[%s392 + $0x1e78] sm:$0xff]
        %v1680 = vld [vmem:[%s392 + $0x1e80] sm:$0xff]
        %v1681 = vld [vmem:[%s392 + $0x1e88] sm:$0xf]
        %v1682 = vld [vmem:[%s392 + $0x1e8c] sm:$0xff]
        %v1683 = vld [vmem:[%s392 + $0x1e94] sm:$0xff]
        %v1684 = vld [vmem:[%s392 + $0x1e9c] sm:$0xf]
        %v1685 = vld [vmem:[%s392 + $0x1ea0] sm:$0xff]
        %v1686 = vld [vmem:[%s392 + $0x1ea8] sm:$0xff]
        %v1687 = vld [vmem:[%s392 + $0x1eb0] sm:$0xf]
        %v1688 = vld [vmem:[%s392 + $0x1eb4] sm:$0xff]
        %v1689 = vld [vmem:[%s392 + $0x1ebc] sm:$0xff]
        %v1690 = vld [vmem:[%s392 + $0x1ec4] sm:$0xf]
        %v1691 = vld [vmem:[%s392 + $0x1ec8] sm:$0xff]
        %v1692 = vld [vmem:[%s392 + $0x1ed0] sm:$0xff]
        %v1693 = vld [vmem:[%s392 + $0x1ed8] sm:$0xf]
        %v1694 = vld [vmem:[%s392 + $0x1edc] sm:$0xff]
        %v1695 = vld [vmem:[%s392 + $0x1ee4] sm:$0xff]
        %v1696 = vld [vmem:[%s392 + $0x1eec] sm:$0xf]
        %v1697 = vld [vmem:[%s392 + $0x1ef0] sm:$0xff]
        %v1698 = vld [vmem:[%s392 + $0x1ef8] sm:$0xff]
        %v1699 = vld [vmem:[%s392 + $0x1f00] sm:$0xf]
        %v1700 = vld [vmem:[%s392 + $0x1f04] sm:$0xff]
        %v1701 = vld [vmem:[%s392 + $0x1f0c] sm:$0xff]
        %v1702 = vld [vmem:[%s392 + $0x1f14] sm:$0xf]
        %v1703 = vld [vmem:[%s392 + $0x1f18] sm:$0xff]
        %v1704 = vld [vmem:[%s392 + $0x1f20] sm:$0xff]
        %v1705 = vld [vmem:[%s392 + $0x1f28] sm:$0xf]
        %v1706 = vld [vmem:[%s392 + $0x1f2c] sm:$0xff]
        %v1707 = vld [vmem:[%s392 + $0x1f34] sm:$0xff]
        %v1708 = vld [vmem:[%s392 + $0x1f3c] sm:$0xf]
        %v1709 = vld [vmem:[%s392 + $0x1f40] sm:$0xff]
        %v1710 = vld [vmem:[%s392 + $0x1f48] sm:$0xff]
        %v1711 = vld [vmem:[%s392 + $0x1f50] sm:$0xf]
        %v1712 = vld [vmem:[%s392 + $0x1f54] sm:$0xff]
        %v1713 = vld [vmem:[%s392 + $0x1f5c] sm:$0xff]
        %v1714 = vld [vmem:[%s392 + $0x1f64] sm:$0xf]
        %v1715 = vld [vmem:[%s392 + $0x1f68] sm:$0xff]
        %v1716 = vld [vmem:[%s392 + $0x1f70] sm:$0xff]
        %v1717 = vld [vmem:[%s392 + $0x1f78] sm:$0xf]
        %v1718 = vld [vmem:[%s392 + $0x1f7c] sm:$0xff]
        %v1719 = vld [vmem:[%s392 + $0x1f84] sm:$0xff]
        %v1720 = vld [vmem:[%s392 + $0x1f8c] sm:$0xf]
        %v1721 = vld [vmem:[%s392 + $0x1f90] sm:$0xff]
        %v1722 = vld [vmem:[%s392 + $0x1f98] sm:$0xff]
        %v1723 = vld [vmem:[%s392 + $0x1fa0] sm:$0xf]
        %v1724 = vld [vmem:[%s392 + $0x1fa4] sm:$0xff]
        %v1725 = vld [vmem:[%s392 + $0x1fac] sm:$0xff]
        %v1726 = vld [vmem:[%s392 + $0x1fb4] sm:$0xf]
        %v1727 = vld [vmem:[%s392 + $0x1fb8] sm:$0xff]
        %v1728 = vld [vmem:[%s392 + $0x1fc0] sm:$0xff]
        %v1729 = vld [vmem:[%s392 + $0x1fc8] sm:$0xf]
        %v1730 = vld [vmem:[%s392 + $0x1fcc] sm:$0xff]
        %v1731 = vld [vmem:[%s392 + $0x1fd4] sm:$0xff]
        %v1732 = vld [vmem:[%s392 + $0x1fdc] sm:$0xf]
        %v1733 = vld [vmem:[%s392 + $0x1fe0] sm:$0xff]
        %v1734 = vld [vmem:[%s392 + $0x1fe8] sm:$0xff]
        %v1735 = vld [vmem:[%s392 + $0x1ff0] sm:$0xf]
        %v1736 = vld [vmem:[%s392 + $0x1ff4] sm:$0xff]
        %v1737 = vld [vmem:[%s392 + $0x1ffc] sm:$0xff]
        %v1738 = vld [vmem:[%s392 + $0x2004] sm:$0xf]
        %v1739 = vld [vmem:[%s392 + $0x2008] sm:$0xff]
        %v1740 = vld [vmem:[%s392 + $0x2010] sm:$0xff]
        %v1741 = vld [vmem:[%s392 + $0x2018] sm:$0xf]
        %v1742 = vld [vmem:[%s392 + $0x201c] sm:$0xff]
        %v1743 = vld [vmem:[%s392 + $0x2024] sm:$0xff]
        %v1744 = vld [vmem:[%s392 + $0x202c] sm:$0xf]
        %v1745 = vld [vmem:[%s392 + $0x2030] sm:$0xff]
        %v1746 = vld [vmem:[%s392 + $0x2038] sm:$0xff]
        %v1747 = vld [vmem:[%s392 + $0x2040] sm:$0xf]
        %v1748 = vld [vmem:[%s392 + $0x2044] sm:$0xff]
        %v1749 = vld [vmem:[%s392 + $0x204c] sm:$0xff]
        %v1750 = vld [vmem:[%s392 + $0x2054] sm:$0xf]
        %v1751 = vld [vmem:[%s392 + $0x2058] sm:$0xff]
        %v1752 = vld [vmem:[%s392 + $0x2060] sm:$0xff]
        %v1753 = vld [vmem:[%s392 + $0x2068] sm:$0xf]
        %v1754 = vld [vmem:[%s392 + $0x206c] sm:$0xff]
        %v1755 = vld [vmem:[%s392 + $0x2074] sm:$0xff]
        %v1756 = vld [vmem:[%s392 + $0x207c] sm:$0xf]
        %v1757 = vld [vmem:[%s392 + $0x2080] sm:$0xff]
        %v1758 = vld [vmem:[%s392 + $0x2088] sm:$0xff]
        %v1759 = vld [vmem:[%s392 + $0x2090] sm:$0xf]
        %v1760 = vld [vmem:[%s392 + $0x2094] sm:$0xff]
        %v1761 = vld [vmem:[%s392 + $0x209c] sm:$0xff]
        %v1762 = vld [vmem:[%s392 + $0x20a4] sm:$0xf]
        %v1763 = vld [vmem:[%s392 + $0x20a8] sm:$0xff]
        %v1764 = vld [vmem:[%s392 + $0x20b0] sm:$0xff]
        %v1765 = vld [vmem:[%s392 + $0x20b8] sm:$0xf]
        %v1766 = vld [vmem:[%s392 + $0x20bc] sm:$0xff]
        %v1767 = vld [vmem:[%s392 + $0x20c4] sm:$0xff]
        %v1768 = vld [vmem:[%s392 + $0x20cc] sm:$0xf]
        %v1769 = vld [vmem:[%s392 + $0x20d0] sm:$0xff]
        %v1770 = vld [vmem:[%s392 + $0x20d8] sm:$0xff]
        %v1771 = vld [vmem:[%s392 + $0x20e0] sm:$0xf]
        %v1772 = vld [vmem:[%s392 + $0x20e4] sm:$0xff]
        %v1773 = vld [vmem:[%s392 + $0x20ec] sm:$0xff]
        %v1774 = vld [vmem:[%s392 + $0x20f4] sm:$0xf]
        %v1775 = vld [vmem:[%s392 + $0x20f8] sm:$0xff]
        %v1776 = vld [vmem:[%s392 + $0x2100] sm:$0xff]
        %v1777 = vld [vmem:[%s392 + $0x2108] sm:$0xf]
        %v1778 = vld [vmem:[%s392 + $0x210c] sm:$0xff]
        %v1779 = vld [vmem:[%s392 + $0x2114] sm:$0xff]
        %v1780 = vld [vmem:[%s392 + $0x211c] sm:$0xf]
        %v1781 = vld [vmem:[%s392 + $0x2120] sm:$0xff]
        %v1782 = vld [vmem:[%s392 + $0x2128] sm:$0xff]
        %v1783 = vld [vmem:[%s392 + $0x2130] sm:$0xf]
        %v1784 = vld [vmem:[%s392 + $0x2134] sm:$0xff]
        %v1785 = vld [vmem:[%s392 + $0x213c] sm:$0xff]
        %v1786 = vld [vmem:[%s392 + $0x2144] sm:$0xf]
        %v1787 = vld [vmem:[%s392 + $0x2148] sm:$0xff]
        %v1788 = vld [vmem:[%s392 + $0x2150] sm:$0xff]
        %v1789 = vld [vmem:[%s392 + $0x2158] sm:$0xf]
        %v1790 = vld [vmem:[%s392 + $0x215c] sm:$0xff]
        %v1791 = vld [vmem:[%s392 + $0x2164] sm:$0xff]
        %v1792 = vld [vmem:[%s392 + $0x216c] sm:$0xf]
        %v1793 = vld [vmem:[%s392 + $0x2170] sm:$0xff]
        %v1794 = vld [vmem:[%s392 + $0x2178] sm:$0xff]
        %v1795 = vld [vmem:[%s392 + $0x2180] sm:$0xf]
        %v1796 = vld [vmem:[%s392 + $0x2184] sm:$0xff]
        %v1797 = vld [vmem:[%s392 + $0x218c] sm:$0xff]
        %v1798 = vld [vmem:[%s392 + $0x2194] sm:$0xf]
        %v1799 = vld [vmem:[%s392 + $0x2198] sm:$0xff]
        %v1800 = vld [vmem:[%s392 + $0x21a0] sm:$0xff]
        %v1801 = vld [vmem:[%s392 + $0x21a8] sm:$0xf]
        %v1802 = vld [vmem:[%s392 + $0x21ac] sm:$0xff]
        %v1803 = vld [vmem:[%s392 + $0x21b4] sm:$0xff]
        %v1804 = vld [vmem:[%s392 + $0x21bc] sm:$0xf]
        %v1805 = vld [vmem:[%s392 + $0x21c0] sm:$0xff]
        %v1806 = vld [vmem:[%s392 + $0x21c8] sm:$0xff]
        %v1807 = vld [vmem:[%s392 + $0x21d0] sm:$0xf]
        %v1808 = vld [vmem:[%s392 + $0x21d4] sm:$0xff]
        %v1809 = vld [vmem:[%s392 + $0x21dc] sm:$0xff]
        %v1810 = vld [vmem:[%s392 + $0x21e4] sm:$0xf]
        %v1811 = vld [vmem:[%s392 + $0x21e8] sm:$0xff]
        %v1812 = vld [vmem:[%s392 + $0x21f0] sm:$0xff]
        %v1813 = vld [vmem:[%s392 + $0x21f8] sm:$0xf]
        %v1814 = vld [vmem:[%s392 + $0x21fc] sm:$0xff]
        %v1815 = vld [vmem:[%s392 + $0x2204] sm:$0xff]
        %v1816 = vld [vmem:[%s392 + $0x220c] sm:$0xf]
        %v1817 = vld [vmem:[%s392 + $0x2210] sm:$0xff]
        %v1818 = vld [vmem:[%s392 + $0x2218] sm:$0xff]
        %v1819 = vld [vmem:[%s392 + $0x2220] sm:$0xf]
        %v1820 = vld [vmem:[%s392 + $0x2224] sm:$0xff]
        %v1821 = vld [vmem:[%s392 + $0x222c] sm:$0xff]
        %v1822 = vld [vmem:[%s392 + $0x2234] sm:$0xf]
        %v1823 = vld [vmem:[%s392 + $0x2238] sm:$0xff]
        %v1824 = vld [vmem:[%s392 + $0x2240] sm:$0xff]
        %v1825 = vld [vmem:[%s392 + $0x2248] sm:$0xf]
        %v1826 = vld [vmem:[%s392 + $0x224c] sm:$0xff]
        %v1827 = vld [vmem:[%s392 + $0x2254] sm:$0xff]
        %v1828 = vld [vmem:[%s392 + $0x225c] sm:$0xf]
        %v1829 = vld [vmem:[%s392 + $0x2260] sm:$0xff]
        %v1830 = vld [vmem:[%s392 + $0x2268] sm:$0xff]
        %v1831 = vld [vmem:[%s392 + $0x2270] sm:$0xf]
        %v1832 = vld [vmem:[%s392 + $0x2274] sm:$0xff]
        %v1833 = vld [vmem:[%s392 + $0x227c] sm:$0xff]
        %v1834 = vld [vmem:[%s392 + $0x2284] sm:$0xf]
        %v1835 = vld [vmem:[%s392 + $0x2288] sm:$0xff]
        %v1836 = vld [vmem:[%s392 + $0x2290] sm:$0xff]
        %v1837 = vld [vmem:[%s392 + $0x2298] sm:$0xf]
        %v1838 = vld [vmem:[%s392 + $0x229c] sm:$0xff]
        %v1839 = vld [vmem:[%s392 + $0x22a4] sm:$0xff]
        %v1840 = vld [vmem:[%s392 + $0x22ac] sm:$0xf]
        %v1841 = vld [vmem:[%s392 + $0x22b0] sm:$0xff]
        %v1842 = vld [vmem:[%s392 + $0x22b8] sm:$0xff]
        %v1843 = vld [vmem:[%s392 + $0x22c0] sm:$0xf]
        %v1844 = vld [vmem:[%s392 + $0x22c4] sm:$0xff]
        %v1845 = vld [vmem:[%s392 + $0x22cc] sm:$0xff]
        %v1846 = vld [vmem:[%s392 + $0x22d4] sm:$0xf]
        %v1847 = vld [vmem:[%s392 + $0x22d8] sm:$0xff]
        %v1848 = vld [vmem:[%s392 + $0x22e0] sm:$0xff]
        %v1849 = vld [vmem:[%s392 + $0x22e8] sm:$0xf]
        %v1850 = vld [vmem:[%s392 + $0x22ec] sm:$0xff]
        %v1851 = vld [vmem:[%s392 + $0x22f4] sm:$0xff]
        %v1852 = vld [vmem:[%s392 + $0x22fc] sm:$0xf]
        %v3197 = vunpack.c.l.b16 %v509
        %v3198 = vunpack.c.h.b16 %v509
        %v3199 = vunpack.c.l.b16 %v510
        %v3200 = vunpack.c.h.b16 %v510
        %v3201 = vunpack.c.l.b16 %v511
        %v3202 = vunpack.c.l.b16 %v512
        %v3203 = vunpack.c.h.b16 %v512
        %v3204 = vunpack.c.l.b16 %v513
        %v3205 = vunpack.c.h.b16 %v513
        %v3206 = vunpack.c.l.b16 %v514
        %v3207 = vunpack.c.l.b16 %v515
        %v3208 = vunpack.c.h.b16 %v515
        %v3209 = vunpack.c.l.b16 %v516
        %v3210 = vunpack.c.h.b16 %v516
        %v3211 = vunpack.c.l.b16 %v517
        %v3212 = vunpack.c.l.b16 %v518
        %v3213 = vunpack.c.h.b16 %v518
        %v3214 = vunpack.c.l.b16 %v519
        %v3215 = vunpack.c.h.b16 %v519
        %v3216 = vunpack.c.l.b16 %v520
        %v3217 = vunpack.c.l.b16 %v521
        %v3218 = vunpack.c.h.b16 %v521
        %v3219 = vunpack.c.l.b16 %v522
        %v3220 = vunpack.c.h.b16 %v522
        %v3221 = vunpack.c.l.b16 %v523
        %v3222 = vunpack.c.l.b16 %v524
        %v3223 = vunpack.c.h.b16 %v524
        %v3224 = vunpack.c.l.b16 %v525
        %v3225 = vunpack.c.h.b16 %v525
        %v3226 = vunpack.c.l.b16 %v526
        %v3227 = vunpack.c.l.b16 %v527
        %v3228 = vunpack.c.h.b16 %v527
        %v3229 = vunpack.c.l.b16 %v528
        %v3230 = vunpack.c.h.b16 %v528
        %v3231 = vunpack.c.l.b16 %v529
        %v3232 = vunpack.c.l.b16 %v530
        %v3233 = vunpack.c.h.b16 %v530
        %v3234 = vunpack.c.l.b16 %v531
        %v3235 = vunpack.c.h.b16 %v531
        %v3236 = vunpack.c.l.b16 %v532
        %v3237 = vunpack.c.l.b16 %v533
        %v3238 = vunpack.c.h.b16 %v533
        %v3239 = vunpack.c.l.b16 %v534
        %v3240 = vunpack.c.h.b16 %v534
        %v3241 = vunpack.c.l.b16 %v535
        %v3242 = vunpack.c.l.b16 %v536
        %v3243 = vunpack.c.h.b16 %v536
        %v3244 = vunpack.c.l.b16 %v537
        %v3245 = vunpack.c.h.b16 %v537
        %v3246 = vunpack.c.l.b16 %v538
        %v3247 = vunpack.c.l.b16 %v539
        %v3248 = vunpack.c.h.b16 %v539
        %v3249 = vunpack.c.l.b16 %v540
        %v3250 = vunpack.c.h.b16 %v540
        %v3251 = vunpack.c.l.b16 %v541
        %v3252 = vunpack.c.l.b16 %v542
        %v3253 = vunpack.c.h.b16 %v542
        %v3254 = vunpack.c.l.b16 %v543
        %v3255 = vunpack.c.h.b16 %v543
        %v3256 = vunpack.c.l.b16 %v544
        %v3257 = vunpack.c.l.b16 %v545
        %v3258 = vunpack.c.h.b16 %v545
        %v3259 = vunpack.c.l.b16 %v546
        %v3260 = vunpack.c.h.b16 %v546
        %v3261 = vunpack.c.l.b16 %v547
        %v3262 = vunpack.c.l.b16 %v548
        %v3263 = vunpack.c.h.b16 %v548
        %v3264 = vunpack.c.l.b16 %v549
        %v3265 = vunpack.c.h.b16 %v549
        %v3266 = vunpack.c.l.b16 %v550
        %v3267 = vunpack.c.l.b16 %v551
        %v3268 = vunpack.c.h.b16 %v551
        %v3269 = vunpack.c.l.b16 %v552
        %v3270 = vunpack.c.h.b16 %v552
        %v3271 = vunpack.c.l.b16 %v553
        %v3272 = vunpack.c.l.b16 %v554
        %v3273 = vunpack.c.h.b16 %v554
        %v3274 = vunpack.c.l.b16 %v555
        %v3275 = vunpack.c.h.b16 %v555
        %v3276 = vunpack.c.l.b16 %v556
        %v3277 = vunpack.c.l.b16 %v557
        %v3278 = vunpack.c.h.b16 %v557
        %v3279 = vunpack.c.l.b16 %v558
        %v3280 = vunpack.c.h.b16 %v558
        %v3281 = vunpack.c.l.b16 %v559
        %v3282 = vunpack.c.l.b16 %v560
        %v3283 = vunpack.c.h.b16 %v560
        %v3284 = vunpack.c.l.b16 %v561
        %v3285 = vunpack.c.h.b16 %v561
        %v3286 = vunpack.c.l.b16 %v562
        %v3287 = vunpack.c.l.b16 %v563
        %v3288 = vunpack.c.h.b16 %v563
        %v3289 = vunpack.c.l.b16 %v564
        %v3290 = vunpack.c.h.b16 %v564
        %v3291 = vunpack.c.l.b16 %v565
        %v3292 = vunpack.c.l.b16 %v566
        %v3293 = vunpack.c.h.b16 %v566
        %v3294 = vunpack.c.l.b16 %v567
        %v3295 = vunpack.c.h.b16 %v567
        %v3296 = vunpack.c.l.b16 %v568
        %v3297 = vunpack.c.l.b16 %v569
        %v3298 = vunpack.c.h.b16 %v569
        %v3299 = vunpack.c.l.b16 %v570
        %v3300 = vunpack.c.h.b16 %v570
        %v3301 = vunpack.c.l.b16 %v571
        %v3302 = vunpack.c.l.b16 %v572
        %v3303 = vunpack.c.h.b16 %v572
        %v3304 = vunpack.c.l.b16 %v573
        %v3305 = vunpack.c.h.b16 %v573
        %v3306 = vunpack.c.l.b16 %v574
        %v3307 = vunpack.c.l.b16 %v575
        %v3308 = vunpack.c.h.b16 %v575
        %v3309 = vunpack.c.l.b16 %v576
        %v3310 = vunpack.c.h.b16 %v576
        %v3311 = vunpack.c.l.b16 %v577
        %v3312 = vunpack.c.l.b16 %v578
        %v3313 = vunpack.c.h.b16 %v578
        %v3314 = vunpack.c.l.b16 %v579
        %v3315 = vunpack.c.h.b16 %v579
        %v3316 = vunpack.c.l.b16 %v580
        %v3317 = vunpack.c.l.b16 %v581
        %v3318 = vunpack.c.h.b16 %v581
        %v3319 = vunpack.c.l.b16 %v582
        %v3320 = vunpack.c.h.b16 %v582
        %v3321 = vunpack.c.l.b16 %v583
        %v3322 = vunpack.c.l.b16 %v584
        %v3323 = vunpack.c.h.b16 %v584
        %v3324 = vunpack.c.l.b16 %v585
        %v3325 = vunpack.c.h.b16 %v585
        %v3326 = vunpack.c.l.b16 %v586
        %v3327 = vunpack.c.l.b16 %v587
        %v3328 = vunpack.c.h.b16 %v587
        %v3329 = vunpack.c.l.b16 %v588
        %v3330 = vunpack.c.h.b16 %v588
        %v3331 = vunpack.c.l.b16 %v589
        %v3332 = vunpack.c.l.b16 %v590
        %v3333 = vunpack.c.h.b16 %v590
        %v3334 = vunpack.c.l.b16 %v591
        %v3335 = vunpack.c.h.b16 %v591
        %v3336 = vunpack.c.l.b16 %v592
        %v3337 = vunpack.c.l.b16 %v593
        %v3338 = vunpack.c.h.b16 %v593
        %v3339 = vunpack.c.l.b16 %v594
        %v3340 = vunpack.c.h.b16 %v594
        %v3341 = vunpack.c.l.b16 %v595
        %v3342 = vunpack.c.l.b16 %v596
        %v3343 = vunpack.c.h.b16 %v596
        %v3344 = vunpack.c.l.b16 %v597
        %v3345 = vunpack.c.h.b16 %v597
        %v3346 = vunpack.c.l.b16 %v598
        %v3347 = vunpack.c.l.b16 %v599
        %v3348 = vunpack.c.h.b16 %v599
        %v3349 = vunpack.c.l.b16 %v600
        %v3350 = vunpack.c.h.b16 %v600
        %v3351 = vunpack.c.l.b16 %v601
        %v3352 = vunpack.c.l.b16 %v602
        %v3353 = vunpack.c.h.b16 %v602
        %v3354 = vunpack.c.l.b16 %v603
        %v3355 = vunpack.c.h.b16 %v603
        %v3356 = vunpack.c.l.b16 %v604
        %v3357 = vunpack.c.l.b16 %v605
        %v3358 = vunpack.c.h.b16 %v605
        %v3359 = vunpack.c.l.b16 %v606
        %v3360 = vunpack.c.h.b16 %v606
        %v3361 = vunpack.c.l.b16 %v607
        %v3362 = vunpack.c.l.b16 %v608
        %v3363 = vunpack.c.h.b16 %v608
        %v3364 = vunpack.c.l.b16 %v609
        %v3365 = vunpack.c.h.b16 %v609
        %v3366 = vunpack.c.l.b16 %v610
        %v3367 = vunpack.c.l.b16 %v611
        %v3368 = vunpack.c.h.b16 %v611
        %v3369 = vunpack.c.l.b16 %v612
        %v3370 = vunpack.c.h.b16 %v612
        %v3371 = vunpack.c.l.b16 %v613
        %v3372 = vunpack.c.l.b16 %v614
        %v3373 = vunpack.c.h.b16 %v614
        %v3374 = vunpack.c.l.b16 %v615
        %v3375 = vunpack.c.h.b16 %v615
        %v3376 = vunpack.c.l.b16 %v616
        %v3377 = vunpack.c.l.b16 %v617
        %v3378 = vunpack.c.h.b16 %v617
        %v3379 = vunpack.c.l.b16 %v618
        %v3380 = vunpack.c.h.b16 %v618
        %v3381 = vunpack.c.l.b16 %v619
        %v3382 = vunpack.c.l.b16 %v620
        %v3383 = vunpack.c.h.b16 %v620
        %v3384 = vunpack.c.l.b16 %v621
        %v3385 = vunpack.c.h.b16 %v621
        %v3386 = vunpack.c.l.b16 %v622
        %v3387 = vunpack.c.l.b16 %v623
        %v3388 = vunpack.c.h.b16 %v623
        %v3389 = vunpack.c.l.b16 %v624
        %v3390 = vunpack.c.h.b16 %v624
        %v3391 = vunpack.c.l.b16 %v625
        %v3392 = vunpack.c.l.b16 %v626
        %v3393 = vunpack.c.h.b16 %v626
        %v3394 = vunpack.c.l.b16 %v627
        %v3395 = vunpack.c.h.b16 %v627
        %v3396 = vunpack.c.l.b16 %v628
        %v3397 = vunpack.c.l.b16 %v629
        %v3398 = vunpack.c.h.b16 %v629
        %v3399 = vunpack.c.l.b16 %v630
        %v3400 = vunpack.c.h.b16 %v630
        %v3401 = vunpack.c.l.b16 %v631
        %v3402 = vunpack.c.l.b16 %v632
        %v3403 = vunpack.c.h.b16 %v632
        %v3404 = vunpack.c.l.b16 %v633
        %v3405 = vunpack.c.h.b16 %v633
        %v3406 = vunpack.c.l.b16 %v634
        %v3407 = vunpack.c.l.b16 %v635
        %v3408 = vunpack.c.h.b16 %v635
        %v3409 = vunpack.c.l.b16 %v636
        %v3410 = vunpack.c.h.b16 %v636
        %v3411 = vunpack.c.l.b16 %v637
        %v3412 = vunpack.c.l.b16 %v638
        %v3413 = vunpack.c.h.b16 %v638
        %v3414 = vunpack.c.l.b16 %v639
        %v3415 = vunpack.c.h.b16 %v639
        %v3416 = vunpack.c.l.b16 %v640
        %v3417 = vunpack.c.l.b16 %v641
        %v3418 = vunpack.c.h.b16 %v641
        %v3419 = vunpack.c.l.b16 %v642
        %v3420 = vunpack.c.h.b16 %v642
        %v3421 = vunpack.c.l.b16 %v643
        %v3422 = vunpack.c.l.b16 %v644
        %v3423 = vunpack.c.h.b16 %v644
        %v3424 = vunpack.c.l.b16 %v645
        %v3425 = vunpack.c.h.b16 %v645
        %v3426 = vunpack.c.l.b16 %v646
        %v3427 = vunpack.c.l.b16 %v647
        %v3428 = vunpack.c.h.b16 %v647
        %v3429 = vunpack.c.l.b16 %v648
        %v3430 = vunpack.c.h.b16 %v648
        %v3431 = vunpack.c.l.b16 %v649
        %v3432 = vunpack.c.l.b16 %v650
        %v3433 = vunpack.c.h.b16 %v650
        %v3434 = vunpack.c.l.b16 %v651
        %v3435 = vunpack.c.h.b16 %v651
        %v3436 = vunpack.c.l.b16 %v652
        %v3437 = vunpack.c.l.b16 %v653
        %v3438 = vunpack.c.h.b16 %v653
        %v3439 = vunpack.c.l.b16 %v654
        %v3440 = vunpack.c.h.b16 %v654
        %v3441 = vunpack.c.l.b16 %v655
        %v3442 = vunpack.c.l.b16 %v656
        %v3443 = vunpack.c.h.b16 %v656
        %v3444 = vunpack.c.l.b16 %v657
        %v3445 = vunpack.c.h.b16 %v657
        %v3446 = vunpack.c.l.b16 %v658
        %v3447 = vunpack.c.l.b16 %v659
        %v3448 = vunpack.c.h.b16 %v659
        %v3449 = vunpack.c.l.b16 %v660
        %v3450 = vunpack.c.h.b16 %v660
        %v3451 = vunpack.c.l.b16 %v661
        %v3452 = vunpack.c.l.b16 %v662
        %v3453 = vunpack.c.h.b16 %v662
        %v3454 = vunpack.c.l.b16 %v663
        %v3455 = vunpack.c.h.b16 %v663
        %v3456 = vunpack.c.l.b16 %v664
        %v3457 = vunpack.c.l.b16 %v665
        %v3458 = vunpack.c.h.b16 %v665
        %v3459 = vunpack.c.l.b16 %v666
        %v3460 = vunpack.c.h.b16 %v666
        %v3461 = vunpack.c.l.b16 %v667
        %v3462 = vunpack.c.l.b16 %v668
        %v3463 = vunpack.c.h.b16 %v668
        %v3464 = vunpack.c.l.b16 %v669
        %v3465 = vunpack.c.h.b16 %v669
        %v3466 = vunpack.c.l.b16 %v670
        %v3467 = vunpack.c.l.b16 %v671
        %v3468 = vunpack.c.h.b16 %v671
        %v3469 = vunpack.c.l.b16 %v672
        %v3470 = vunpack.c.h.b16 %v672
        %v3471 = vunpack.c.l.b16 %v673
        %v3472 = vunpack.c.l.b16 %v674
        %v3473 = vunpack.c.h.b16 %v674
        %v3474 = vunpack.c.l.b16 %v675
        %v3475 = vunpack.c.h.b16 %v675
        %v3476 = vunpack.c.l.b16 %v676
        %v3477 = vunpack.c.l.b16 %v677
        %v3478 = vunpack.c.h.b16 %v677
        %v3479 = vunpack.c.l.b16 %v678
        %v3480 = vunpack.c.h.b16 %v678
        %v3481 = vunpack.c.l.b16 %v679
        %v3482 = vunpack.c.l.b16 %v680
        %v3483 = vunpack.c.h.b16 %v680
        %v3484 = vunpack.c.l.b16 %v681
        %v3485 = vunpack.c.h.b16 %v681
        %v3486 = vunpack.c.l.b16 %v682
        %v3487 = vunpack.c.l.b16 %v683
        %v3488 = vunpack.c.h.b16 %v683
        %v3489 = vunpack.c.l.b16 %v684
        %v3490 = vunpack.c.h.b16 %v684
        %v3491 = vunpack.c.l.b16 %v685
        %v3492 = vunpack.c.l.b16 %v686
        %v3493 = vunpack.c.h.b16 %v686
        %v3494 = vunpack.c.l.b16 %v687
        %v3495 = vunpack.c.h.b16 %v687
        %v3496 = vunpack.c.l.b16 %v688
        %v3497 = vunpack.c.l.b16 %v689
        %v3498 = vunpack.c.h.b16 %v689
        %v3499 = vunpack.c.l.b16 %v690
        %v3500 = vunpack.c.h.b16 %v690
        %v3501 = vunpack.c.l.b16 %v691
        %v3502 = vunpack.c.l.b16 %v692
        %v3503 = vunpack.c.h.b16 %v692
        %v3504 = vunpack.c.l.b16 %v693
        %v3505 = vunpack.c.h.b16 %v693
        %v3506 = vunpack.c.l.b16 %v694
        %v3507 = vunpack.c.l.b16 %v695
        %v3508 = vunpack.c.h.b16 %v695
        %v3509 = vunpack.c.l.b16 %v696
        %v3510 = vunpack.c.h.b16 %v696
        %v3511 = vunpack.c.l.b16 %v697
        %v3512 = vunpack.c.l.b16 %v698
        %v3513 = vunpack.c.h.b16 %v698
        %v3514 = vunpack.c.l.b16 %v699
        %v3515 = vunpack.c.h.b16 %v699
        %v3516 = vunpack.c.l.b16 %v700
        %v3517 = vunpack.c.l.b16 %v701
        %v3518 = vunpack.c.h.b16 %v701
        %v3519 = vunpack.c.l.b16 %v702
        %v3520 = vunpack.c.h.b16 %v702
        %v3521 = vunpack.c.l.b16 %v703
        %v3522 = vunpack.c.l.b16 %v704
        %v3523 = vunpack.c.h.b16 %v704
        %v3524 = vunpack.c.l.b16 %v705
        %v3525 = vunpack.c.h.b16 %v705
        %v3526 = vunpack.c.l.b16 %v706
        %v3527 = vunpack.c.l.b16 %v707
        %v3528 = vunpack.c.h.b16 %v707
        %v3529 = vunpack.c.l.b16 %v708
        %v3530 = vunpack.c.h.b16 %v708
        %v3531 = vunpack.c.l.b16 %v709
        %v3532 = vunpack.c.l.b16 %v710
        %v3533 = vunpack.c.h.b16 %v710
        %v3534 = vunpack.c.l.b16 %v711
        %v3535 = vunpack.c.h.b16 %v711
        %v3536 = vunpack.c.l.b16 %v712
        %v3537 = vunpack.c.l.b16 %v713
        %v3538 = vunpack.c.h.b16 %v713
        %v3539 = vunpack.c.l.b16 %v714
        %v3540 = vunpack.c.h.b16 %v714
        %v3541 = vunpack.c.l.b16 %v715
        %v3542 = vunpack.c.l.b16 %v716
        %v3543 = vunpack.c.h.b16 %v716
        %v3544 = vunpack.c.l.b16 %v717
        %v3545 = vunpack.c.h.b16 %v717
        %v3546 = vunpack.c.l.b16 %v718
        %v3547 = vunpack.c.l.b16 %v719
        %v3548 = vunpack.c.h.b16 %v719
        %v3549 = vunpack.c.l.b16 %v720
        %v3550 = vunpack.c.h.b16 %v720
        %v3551 = vunpack.c.l.b16 %v721
        %v3552 = vunpack.c.l.b16 %v722
        %v3553 = vunpack.c.h.b16 %v722
        %v3554 = vunpack.c.l.b16 %v723
        %v3555 = vunpack.c.h.b16 %v723
        %v3556 = vunpack.c.l.b16 %v724
        %v3557 = vunpack.c.l.b16 %v725
        %v3558 = vunpack.c.h.b16 %v725
        %v3559 = vunpack.c.l.b16 %v726
        %v3560 = vunpack.c.h.b16 %v726
        %v3561 = vunpack.c.l.b16 %v727
        %v3562 = vunpack.c.l.b16 %v728
        %v3563 = vunpack.c.h.b16 %v728
        %v3564 = vunpack.c.l.b16 %v729
        %v3565 = vunpack.c.h.b16 %v729
        %v3566 = vunpack.c.l.b16 %v730
        %v3567 = vunpack.c.l.b16 %v731
        %v3568 = vunpack.c.h.b16 %v731
        %v3569 = vunpack.c.l.b16 %v732
        %v3570 = vunpack.c.h.b16 %v732
        %v3571 = vunpack.c.l.b16 %v733
        %v3572 = vunpack.c.l.b16 %v734
        %v3573 = vunpack.c.h.b16 %v734
        %v3574 = vunpack.c.l.b16 %v735
        %v3575 = vunpack.c.h.b16 %v735
        %v3576 = vunpack.c.l.b16 %v736
        %v3577 = vunpack.c.l.b16 %v737
        %v3578 = vunpack.c.h.b16 %v737
        %v3579 = vunpack.c.l.b16 %v738
        %v3580 = vunpack.c.h.b16 %v738
        %v3581 = vunpack.c.l.b16 %v739
        %v3582 = vunpack.c.l.b16 %v740
        %v3583 = vunpack.c.h.b16 %v740
        %v3584 = vunpack.c.l.b16 %v741
        %v3585 = vunpack.c.h.b16 %v741
        %v3586 = vunpack.c.l.b16 %v742
        %v3587 = vunpack.c.l.b16 %v743
        %v3588 = vunpack.c.h.b16 %v743
        %v3589 = vunpack.c.l.b16 %v744
        %v3590 = vunpack.c.h.b16 %v744
        %v3591 = vunpack.c.l.b16 %v745
        %v3592 = vunpack.c.l.b16 %v746
        %v3593 = vunpack.c.h.b16 %v746
        %v3594 = vunpack.c.l.b16 %v747
        %v3595 = vunpack.c.h.b16 %v747
        %v3596 = vunpack.c.l.b16 %v748
        %v3597 = vunpack.c.l.b16 %v749
        %v3598 = vunpack.c.h.b16 %v749
        %v3599 = vunpack.c.l.b16 %v750
        %v3600 = vunpack.c.h.b16 %v750
        %v3601 = vunpack.c.l.b16 %v751
        %v3602 = vunpack.c.l.b16 %v752
        %v3603 = vunpack.c.h.b16 %v752
        %v3604 = vunpack.c.l.b16 %v753
        %v3605 = vunpack.c.h.b16 %v753
        %v3606 = vunpack.c.l.b16 %v754
        %v3607 = vunpack.c.l.b16 %v755
        %v3608 = vunpack.c.h.b16 %v755
        %v3609 = vunpack.c.l.b16 %v756
        %v3610 = vunpack.c.h.b16 %v756
        %v3611 = vunpack.c.l.b16 %v757
        %v3612 = vunpack.c.l.b16 %v758
        %v3613 = vunpack.c.h.b16 %v758
        %v3614 = vunpack.c.l.b16 %v759
        %v3615 = vunpack.c.h.b16 %v759
        %v3616 = vunpack.c.l.b16 %v760
        %v3617 = vunpack.c.l.b16 %v761
        %v3618 = vunpack.c.h.b16 %v761
        %v3619 = vunpack.c.l.b16 %v762
        %v3620 = vunpack.c.h.b16 %v762
        %v3621 = vunpack.c.l.b16 %v763
        %v3622 = vunpack.c.l.b16 %v764
        %v3623 = vunpack.c.h.b16 %v764
        %v3624 = vunpack.c.l.b16 %v765
        %v3625 = vunpack.c.h.b16 %v765
        %v3626 = vunpack.c.l.b16 %v766
        %v3627 = vunpack.c.l.b16 %v767
        %v3628 = vunpack.c.h.b16 %v767
        %v3629 = vunpack.c.l.b16 %v768
        %v3630 = vunpack.c.h.b16 %v768
        %v3631 = vunpack.c.l.b16 %v769
        %v3632 = vunpack.c.l.b16 %v770
        %v3633 = vunpack.c.h.b16 %v770
        %v3634 = vunpack.c.l.b16 %v771
        %v3635 = vunpack.c.h.b16 %v771
        %v3636 = vunpack.c.l.b16 %v772
        %v3637 = vunpack.c.l.b16 %v773
        %v3638 = vunpack.c.h.b16 %v773
        %v3639 = vunpack.c.l.b16 %v774
        %v3640 = vunpack.c.h.b16 %v774
        %v3641 = vunpack.c.l.b16 %v775
        %v3642 = vunpack.c.l.b16 %v776
        %v3643 = vunpack.c.h.b16 %v776
        %v3644 = vunpack.c.l.b16 %v777
        %v3645 = vunpack.c.h.b16 %v777
        %v3646 = vunpack.c.l.b16 %v778
        %v3647 = vunpack.c.l.b16 %v779
        %v3648 = vunpack.c.h.b16 %v779
        %v3649 = vunpack.c.l.b16 %v780
        %v3650 = vunpack.c.h.b16 %v780
        %v3651 = vunpack.c.l.b16 %v781
        %v3652 = vunpack.c.l.b16 %v782
        %v3653 = vunpack.c.h.b16 %v782
        %v3654 = vunpack.c.l.b16 %v783
        %v3655 = vunpack.c.h.b16 %v783
        %v3656 = vunpack.c.l.b16 %v784
        %v3657 = vunpack.c.l.b16 %v785
        %v3658 = vunpack.c.h.b16 %v785
        %v3659 = vunpack.c.l.b16 %v786
        %v3660 = vunpack.c.h.b16 %v786
        %v3661 = vunpack.c.l.b16 %v787
        %v3662 = vunpack.c.l.b16 %v788
        %v3663 = vunpack.c.h.b16 %v788
        %v3664 = vunpack.c.l.b16 %v789
        %v3665 = vunpack.c.h.b16 %v789
        %v3666 = vunpack.c.l.b16 %v790
        %v3667 = vunpack.c.l.b16 %v791
        %v3668 = vunpack.c.h.b16 %v791
        %v3669 = vunpack.c.l.b16 %v792
        %v3670 = vunpack.c.h.b16 %v792
        %v3671 = vunpack.c.l.b16 %v793
        %v3672 = vunpack.c.l.b16 %v794
        %v3673 = vunpack.c.h.b16 %v794
        %v3674 = vunpack.c.l.b16 %v795
        %v3675 = vunpack.c.h.b16 %v795
        %v3676 = vunpack.c.l.b16 %v796
        %v3677 = vunpack.c.l.b16 %v797
        %v3678 = vunpack.c.h.b16 %v797
        %v3679 = vunpack.c.l.b16 %v798
        %v3680 = vunpack.c.h.b16 %v798
        %v3681 = vunpack.c.l.b16 %v799
        %v3682 = vunpack.c.l.b16 %v800
        %v3683 = vunpack.c.h.b16 %v800
        %v3684 = vunpack.c.l.b16 %v801
        %v3685 = vunpack.c.h.b16 %v801
        %v3686 = vunpack.c.l.b16 %v802
        %v3687 = vunpack.c.l.b16 %v803
        %v3688 = vunpack.c.h.b16 %v803
        %v3689 = vunpack.c.l.b16 %v804
        %v3690 = vunpack.c.h.b16 %v804
        %v3691 = vunpack.c.l.b16 %v805
        %v3692 = vunpack.c.l.b16 %v806
        %v3693 = vunpack.c.h.b16 %v806
        %v3694 = vunpack.c.l.b16 %v807
        %v3695 = vunpack.c.h.b16 %v807
        %v3696 = vunpack.c.l.b16 %v808
        %v3697 = vunpack.c.l.b16 %v809
        %v3698 = vunpack.c.h.b16 %v809
        %v3699 = vunpack.c.l.b16 %v810
        %v3700 = vunpack.c.h.b16 %v810
        %v3701 = vunpack.c.l.b16 %v811
        %v3702 = vunpack.c.l.b16 %v812
        %v3703 = vunpack.c.h.b16 %v812
        %v3704 = vunpack.c.l.b16 %v813
        %v3705 = vunpack.c.h.b16 %v813
        %v3706 = vunpack.c.l.b16 %v814
        %v3707 = vunpack.c.l.b16 %v815
        %v3708 = vunpack.c.h.b16 %v815
        %v3709 = vunpack.c.l.b16 %v816
        %v3710 = vunpack.c.h.b16 %v816
        %v3711 = vunpack.c.l.b16 %v817
        %v3712 = vunpack.c.l.b16 %v818
        %v3713 = vunpack.c.h.b16 %v818
        %v3714 = vunpack.c.l.b16 %v819
        %v3715 = vunpack.c.h.b16 %v819
        %v3716 = vunpack.c.l.b16 %v820
        %v3717 = vunpack.c.l.b16 %v821
        %v3718 = vunpack.c.h.b16 %v821
        %v3719 = vunpack.c.l.b16 %v822
        %v3720 = vunpack.c.h.b16 %v822
        %v3721 = vunpack.c.l.b16 %v823
        %v3722 = vunpack.c.l.b16 %v824
        %v3723 = vunpack.c.h.b16 %v824
        %v3724 = vunpack.c.l.b16 %v825
        %v3725 = vunpack.c.h.b16 %v825
        %v3726 = vunpack.c.l.b16 %v826
        %v3727 = vunpack.c.l.b16 %v827
        %v3728 = vunpack.c.h.b16 %v827
        %v3729 = vunpack.c.l.b16 %v828
        %v3730 = vunpack.c.h.b16 %v828
        %v3731 = vunpack.c.l.b16 %v829
        %v3732 = vunpack.c.l.b16 %v830
        %v3733 = vunpack.c.h.b16 %v830
        %v3734 = vunpack.c.l.b16 %v831
        %v3735 = vunpack.c.h.b16 %v831
        %v3736 = vunpack.c.l.b16 %v832
        %v3737 = vunpack.c.l.b16 %v833
        %v3738 = vunpack.c.h.b16 %v833
        %v3739 = vunpack.c.l.b16 %v834
        %v3740 = vunpack.c.h.b16 %v834
        %v3741 = vunpack.c.l.b16 %v835
        %v3742 = vunpack.c.l.b16 %v836
        %v3743 = vunpack.c.h.b16 %v836
        %v3744 = vunpack.c.l.b16 %v837
        %v3745 = vunpack.c.h.b16 %v837
        %v3746 = vunpack.c.l.b16 %v838
        %v3747 = vunpack.c.l.b16 %v839
        %v3748 = vunpack.c.h.b16 %v839
        %v3749 = vunpack.c.l.b16 %v840
        %v3750 = vunpack.c.h.b16 %v840
        %v3751 = vunpack.c.l.b16 %v841
        %v3752 = vunpack.c.l.b16 %v842
        %v3753 = vunpack.c.h.b16 %v842
        %v3754 = vunpack.c.l.b16 %v843
        %v3755 = vunpack.c.h.b16 %v843
        %v3756 = vunpack.c.l.b16 %v844
        %v3757 = vunpack.c.l.b16 %v845
        %v3758 = vunpack.c.h.b16 %v845
        %v3759 = vunpack.c.l.b16 %v846
        %v3760 = vunpack.c.h.b16 %v846
        %v3761 = vunpack.c.l.b16 %v847
        %v3762 = vunpack.c.l.b16 %v848
        %v3763 = vunpack.c.h.b16 %v848
        %v3764 = vunpack.c.l.b16 %v849
        %v3765 = vunpack.c.h.b16 %v849
        %v3766 = vunpack.c.l.b16 %v850
        %v3767 = vunpack.c.l.b16 %v851
        %v3768 = vunpack.c.h.b16 %v851
        %v3769 = vunpack.c.l.b16 %v852
        %v3770 = vunpack.c.h.b16 %v852
        %v3771 = vunpack.c.l.b16 %v853
        %v3772 = vunpack.c.l.b16 %v854
        %v3773 = vunpack.c.h.b16 %v854
        %v3774 = vunpack.c.l.b16 %v855
        %v3775 = vunpack.c.h.b16 %v855
        %v3776 = vunpack.c.l.b16 %v856
        %v3777 = vunpack.c.l.b16 %v857
        %v3778 = vunpack.c.h.b16 %v857
        %v3779 = vunpack.c.l.b16 %v858
        %v3780 = vunpack.c.h.b16 %v858
        %v3781 = vunpack.c.l.b16 %v859
        %v3782 = vunpack.c.l.b16 %v860
        %v3783 = vunpack.c.h.b16 %v860
        %v3784 = vunpack.c.l.b16 %v861
        %v3785 = vunpack.c.h.b16 %v861
        %v3786 = vunpack.c.l.b16 %v862
        %v3787 = vunpack.c.l.b16 %v863
        %v3788 = vunpack.c.h.b16 %v863
        %v3789 = vunpack.c.l.b16 %v864
        %v3790 = vunpack.c.h.b16 %v864
        %v3791 = vunpack.c.l.b16 %v865
        %v3792 = vunpack.c.l.b16 %v866
        %v3793 = vunpack.c.h.b16 %v866
        %v3794 = vunpack.c.l.b16 %v867
        %v3795 = vunpack.c.h.b16 %v867
        %v3796 = vunpack.c.l.b16 %v868
        %v3797 = vunpack.c.l.b16 %v869
        %v3798 = vunpack.c.h.b16 %v869
        %v3799 = vunpack.c.l.b16 %v870
        %v3800 = vunpack.c.h.b16 %v870
        %v3801 = vunpack.c.l.b16 %v871
        %v3802 = vunpack.c.l.b16 %v872
        %v3803 = vunpack.c.h.b16 %v872
        %v3804 = vunpack.c.l.b16 %v873
        %v3805 = vunpack.c.h.b16 %v873
        %v3806 = vunpack.c.l.b16 %v874
        %v3807 = vunpack.c.l.b16 %v875
        %v3808 = vunpack.c.h.b16 %v875
        %v3809 = vunpack.c.l.b16 %v876
        %v3810 = vunpack.c.h.b16 %v876
        %v3811 = vunpack.c.l.b16 %v877
        %v3812 = vunpack.c.l.b16 %v878
        %v3813 = vunpack.c.h.b16 %v878
        %v3814 = vunpack.c.l.b16 %v879
        %v3815 = vunpack.c.h.b16 %v879
        %v3816 = vunpack.c.l.b16 %v880
        %v3817 = vunpack.c.l.b16 %v881
        %v3818 = vunpack.c.h.b16 %v881
        %v3819 = vunpack.c.l.b16 %v882
        %v3820 = vunpack.c.h.b16 %v882
        %v3821 = vunpack.c.l.b16 %v883
        %v3822 = vunpack.c.l.b16 %v884
        %v3823 = vunpack.c.h.b16 %v884
        %v3824 = vunpack.c.l.b16 %v885
        %v3825 = vunpack.c.h.b16 %v885
        %v3826 = vunpack.c.l.b16 %v886
        %v3827 = vunpack.c.l.b16 %v887
        %v3828 = vunpack.c.h.b16 %v887
        %v3829 = vunpack.c.l.b16 %v888
        %v3830 = vunpack.c.h.b16 %v888
        %v3831 = vunpack.c.l.b16 %v889
        %v3832 = vunpack.c.l.b16 %v890
        %v3833 = vunpack.c.h.b16 %v890
        %v3834 = vunpack.c.l.b16 %v891
        %v3835 = vunpack.c.h.b16 %v891
        %v3836 = vunpack.c.l.b16 %v892
        %v3837 = vunpack.c.l.b16 %v893
        %v3838 = vunpack.c.h.b16 %v893
        %v3839 = vunpack.c.l.b16 %v894
        %v3840 = vunpack.c.h.b16 %v894
        %v3841 = vunpack.c.l.b16 %v895
        %v3842 = vunpack.c.l.b16 %v896
        %v3843 = vunpack.c.h.b16 %v896
        %v3844 = vunpack.c.l.b16 %v897
        %v3845 = vunpack.c.h.b16 %v897
        %v3846 = vunpack.c.l.b16 %v898
        %v3847 = vunpack.c.l.b16 %v899
        %v3848 = vunpack.c.h.b16 %v899
        %v3849 = vunpack.c.l.b16 %v900
        %v3850 = vunpack.c.h.b16 %v900
        %v3851 = vunpack.c.l.b16 %v901
        %v3852 = vunpack.c.l.b16 %v902
        %v3853 = vunpack.c.h.b16 %v902
        %v3854 = vunpack.c.l.b16 %v903
        %v3855 = vunpack.c.h.b16 %v903
        %v3856 = vunpack.c.l.b16 %v904
        %v3857 = vunpack.c.l.b16 %v905
        %v3858 = vunpack.c.h.b16 %v905
        %v3859 = vunpack.c.l.b16 %v906
        %v3860 = vunpack.c.h.b16 %v906
        %v3861 = vunpack.c.l.b16 %v907
        %v3862 = vunpack.c.l.b16 %v908
        %v3863 = vunpack.c.h.b16 %v908
        %v3864 = vunpack.c.l.b16 %v909
        %v3865 = vunpack.c.h.b16 %v909
        %v3866 = vunpack.c.l.b16 %v910
        %v3867 = vunpack.c.l.b16 %v911
        %v3868 = vunpack.c.h.b16 %v911
        %v3869 = vunpack.c.l.b16 %v912
        %v3870 = vunpack.c.h.b16 %v912
        %v3871 = vunpack.c.l.b16 %v913
        %v3872 = vunpack.c.l.b16 %v914
        %v3873 = vunpack.c.h.b16 %v914
        %v3874 = vunpack.c.l.b16 %v915
        %v3875 = vunpack.c.h.b16 %v915
        %v3876 = vunpack.c.l.b16 %v916
        %v3877 = vunpack.c.l.b16 %v917
        %v3878 = vunpack.c.h.b16 %v917
        %v3879 = vunpack.c.l.b16 %v918
        %v3880 = vunpack.c.h.b16 %v918
        %v3881 = vunpack.c.l.b16 %v919
        %v3882 = vunpack.c.l.b16 %v920
        %v3883 = vunpack.c.h.b16 %v920
        %v3884 = vunpack.c.l.b16 %v921
        %v3885 = vunpack.c.h.b16 %v921
        %v3886 = vunpack.c.l.b16 %v922
        %v3887 = vunpack.c.l.b16 %v923
        %v3888 = vunpack.c.h.b16 %v923
        %v3889 = vunpack.c.l.b16 %v924
        %v3890 = vunpack.c.h.b16 %v924
        %v3891 = vunpack.c.l.b16 %v925
        %v3892 = vunpack.c.l.b16 %v926
        %v3893 = vunpack.c.h.b16 %v926
        %v3894 = vunpack.c.l.b16 %v927
        %v3895 = vunpack.c.h.b16 %v927
        %v3896 = vunpack.c.l.b16 %v928
        %v3897 = vunpack.c.l.b16 %v929
        %v3898 = vunpack.c.h.b16 %v929
        %v3899 = vunpack.c.l.b16 %v930
        %v3900 = vunpack.c.h.b16 %v930
        %v3901 = vunpack.c.l.b16 %v931
        %v3902 = vunpack.c.l.b16 %v932
        %v3903 = vunpack.c.h.b16 %v932
        %v3904 = vunpack.c.l.b16 %v933
        %v3905 = vunpack.c.h.b16 %v933
        %v3906 = vunpack.c.l.b16 %v934
        %v3907 = vunpack.c.l.b16 %v935
        %v3908 = vunpack.c.h.b16 %v935
        %v3909 = vunpack.c.l.b16 %v936
        %v3910 = vunpack.c.h.b16 %v936
        %v3911 = vunpack.c.l.b16 %v937
        %v3912 = vunpack.c.l.b16 %v938
        %v3913 = vunpack.c.h.b16 %v938
        %v3914 = vunpack.c.l.b16 %v939
        %v3915 = vunpack.c.h.b16 %v939
        %v3916 = vunpack.c.l.b16 %v940
        %v3917 = vunpack.c.l.b16 %v941
        %v3918 = vunpack.c.h.b16 %v941
        %v3919 = vunpack.c.l.b16 %v942
        %v3920 = vunpack.c.h.b16 %v942
        %v3921 = vunpack.c.l.b16 %v943
        %v3922 = vunpack.c.l.b16 %v944
        %v3923 = vunpack.c.h.b16 %v944
        %v3924 = vunpack.c.l.b16 %v945
        %v3925 = vunpack.c.h.b16 %v945
        %v3926 = vunpack.c.l.b16 %v946
        %v3927 = vunpack.c.l.b16 %v947
        %v3928 = vunpack.c.h.b16 %v947
        %v3929 = vunpack.c.l.b16 %v948
        %v3930 = vunpack.c.h.b16 %v948
        %v3931 = vunpack.c.l.b16 %v949
        %v3932 = vunpack.c.l.b16 %v950
        %v3933 = vunpack.c.h.b16 %v950
        %v3934 = vunpack.c.l.b16 %v951
        %v3935 = vunpack.c.h.b16 %v951
        %v3936 = vunpack.c.l.b16 %v952
        %v3937 = vunpack.c.l.b16 %v953
        %v3938 = vunpack.c.h.b16 %v953
        %v3939 = vunpack.c.l.b16 %v954
        %v3940 = vunpack.c.h.b16 %v954
        %v3941 = vunpack.c.l.b16 %v955
        %v3942 = vunpack.c.l.b16 %v956
        %v3943 = vunpack.c.h.b16 %v956
        %v3944 = vunpack.c.l.b16 %v957
        %v3945 = vunpack.c.h.b16 %v957
        %v3946 = vunpack.c.l.b16 %v958
        %v3947 = vunpack.c.l.b16 %v959
        %v3948 = vunpack.c.h.b16 %v959
        %v3949 = vunpack.c.l.b16 %v960
        %v3950 = vunpack.c.h.b16 %v960
        %v3951 = vunpack.c.l.b16 %v961
        %v3952 = vunpack.c.l.b16 %v962
        %v3953 = vunpack.c.h.b16 %v962
        %v3954 = vunpack.c.l.b16 %v963
        %v3955 = vunpack.c.h.b16 %v963
        %v3956 = vunpack.c.l.b16 %v964
        %v3957 = vunpack.c.l.b16 %v965
        %v3958 = vunpack.c.h.b16 %v965
        %v3959 = vunpack.c.l.b16 %v966
        %v3960 = vunpack.c.h.b16 %v966
        %v3961 = vunpack.c.l.b16 %v967
        %v3962 = vunpack.c.l.b16 %v968
        %v3963 = vunpack.c.h.b16 %v968
        %v3964 = vunpack.c.l.b16 %v969
        %v3965 = vunpack.c.h.b16 %v969
        %v3966 = vunpack.c.l.b16 %v970
        %v3967 = vunpack.c.l.b16 %v971
        %v3968 = vunpack.c.h.b16 %v971
        %v3969 = vunpack.c.l.b16 %v972
        %v3970 = vunpack.c.h.b16 %v972
        %v3971 = vunpack.c.l.b16 %v973
        %v3972 = vunpack.c.l.b16 %v974
        %v3973 = vunpack.c.h.b16 %v974
        %v3974 = vunpack.c.l.b16 %v975
        %v3975 = vunpack.c.h.b16 %v975
        %v3976 = vunpack.c.l.b16 %v976
        %v3977 = vunpack.c.l.b16 %v977
        %v3978 = vunpack.c.h.b16 %v977
        %v3979 = vunpack.c.l.b16 %v978
        %v3980 = vunpack.c.h.b16 %v978
        %v3981 = vunpack.c.l.b16 %v979
        %v3982 = vunpack.c.l.b16 %v980
        %v3983 = vunpack.c.h.b16 %v980
        %v3984 = vunpack.c.l.b16 %v981
        %v3985 = vunpack.c.h.b16 %v981
        %v3986 = vunpack.c.l.b16 %v982
        %v3987 = vunpack.c.l.b16 %v983
        %v3988 = vunpack.c.h.b16 %v983
        %v3989 = vunpack.c.l.b16 %v984
        %v3990 = vunpack.c.h.b16 %v984
        %v3991 = vunpack.c.l.b16 %v985
        %v3992 = vunpack.c.l.b16 %v986
        %v3993 = vunpack.c.h.b16 %v986
        %v3994 = vunpack.c.l.b16 %v987
        %v3995 = vunpack.c.h.b16 %v987
        %v3996 = vunpack.c.l.b16 %v988
        %v3997 = vunpack.c.l.b16 %v989
        %v3998 = vunpack.c.h.b16 %v989
        %v3999 = vunpack.c.l.b16 %v990
        %v4000 = vunpack.c.h.b16 %v990
        %v4001 = vunpack.c.l.b16 %v991
        %v4002 = vunpack.c.l.b16 %v992
        %v4003 = vunpack.c.h.b16 %v992
        %v4004 = vunpack.c.l.b16 %v993
        %v4005 = vunpack.c.h.b16 %v993
        %v4006 = vunpack.c.l.b16 %v994
        %v4007 = vunpack.c.l.b16 %v995
        %v4008 = vunpack.c.h.b16 %v995
        %v4009 = vunpack.c.l.b16 %v996
        %v4010 = vunpack.c.h.b16 %v996
        %v4011 = vunpack.c.l.b16 %v997
        %v4012 = vunpack.c.l.b16 %v998
        %v4013 = vunpack.c.h.b16 %v998
        %v4014 = vunpack.c.l.b16 %v999
        %v4015 = vunpack.c.h.b16 %v999
        %v4016 = vunpack.c.l.b16 %v1000
        %v4017 = vunpack.c.l.b16 %v1001
        %v4018 = vunpack.c.h.b16 %v1001
        %v4019 = vunpack.c.l.b16 %v1002
        %v4020 = vunpack.c.h.b16 %v1002
        %v4021 = vunpack.c.l.b16 %v1003
        %v4022 = vunpack.c.l.b16 %v1004
        %v4023 = vunpack.c.h.b16 %v1004
        %v4024 = vunpack.c.l.b16 %v1005
        %v4025 = vunpack.c.h.b16 %v1005
        %v4026 = vunpack.c.l.b16 %v1006
        %v4027 = vunpack.c.l.b16 %v1007
        %v4028 = vunpack.c.h.b16 %v1007
        %v4029 = vunpack.c.l.b16 %v1008
        %v4030 = vunpack.c.h.b16 %v1008
        %v4031 = vunpack.c.l.b16 %v1009
        %v4032 = vunpack.c.l.b16 %v1010
        %v4033 = vunpack.c.h.b16 %v1010
        %v4034 = vunpack.c.l.b16 %v1011
        %v4035 = vunpack.c.h.b16 %v1011
        %v4036 = vunpack.c.l.b16 %v1012
        %v4037 = vunpack.c.l.b16 %v1013
        %v4038 = vunpack.c.h.b16 %v1013
        %v4039 = vunpack.c.l.b16 %v1014
        %v4040 = vunpack.c.h.b16 %v1014
        %v4041 = vunpack.c.l.b16 %v1015
        %v4042 = vunpack.c.l.b16 %v1016
        %v4043 = vunpack.c.h.b16 %v1016
        %v4044 = vunpack.c.l.b16 %v1017
        %v4045 = vunpack.c.h.b16 %v1017
        %v4046 = vunpack.c.l.b16 %v1018
        %v4047 = vunpack.c.l.b16 %v1019
        %v4048 = vunpack.c.h.b16 %v1019
        %v4049 = vunpack.c.l.b16 %v1020
        %v4050 = vunpack.c.h.b16 %v1020
        %v4051 = vunpack.c.l.b16 %v1021
        %v4052 = vunpack.c.l.b16 %v1022
        %v4053 = vunpack.c.h.b16 %v1022
        %v4054 = vunpack.c.l.b16 %v1023
        %v4055 = vunpack.c.h.b16 %v1023
        %v4056 = vunpack.c.l.b16 %v1024
        %v4057 = vunpack.c.l.b16 %v1025
        %v4058 = vunpack.c.h.b16 %v1025
        %v4059 = vunpack.c.l.b16 %v1026
        %v4060 = vunpack.c.h.b16 %v1026
        %v4061 = vunpack.c.l.b16 %v1027
        %v4062 = vunpack.c.l.b16 %v1028
        %v4063 = vunpack.c.h.b16 %v1028
        %v4064 = vunpack.c.l.b16 %v1029
        %v4065 = vunpack.c.h.b16 %v1029
        %v4066 = vunpack.c.l.b16 %v1030
        %v4067 = vunpack.c.l.b16 %v1031
        %v4068 = vunpack.c.h.b16 %v1031
        %v4069 = vunpack.c.l.b16 %v1032
        %v4070 = vunpack.c.h.b16 %v1032
        %v4071 = vunpack.c.l.b16 %v1033
        %v4072 = vunpack.c.l.b16 %v1034
        %v4073 = vunpack.c.h.b16 %v1034
        %v4074 = vunpack.c.l.b16 %v1035
        %v4075 = vunpack.c.h.b16 %v1035
        %v4076 = vunpack.c.l.b16 %v1036
        %v4077 = vunpack.c.l.b16 %v1037
        %v4078 = vunpack.c.h.b16 %v1037
        %v4079 = vunpack.c.l.b16 %v1038
        %v4080 = vunpack.c.h.b16 %v1038
        %v4081 = vunpack.c.l.b16 %v1039
        %v4082 = vunpack.c.l.b16 %v1040
        %v4083 = vunpack.c.h.b16 %v1040
        %v4084 = vunpack.c.l.b16 %v1041
        %v4085 = vunpack.c.h.b16 %v1041
        %v4086 = vunpack.c.l.b16 %v1042
        %v4087 = vunpack.c.l.b16 %v1043
        %v4088 = vunpack.c.h.b16 %v1043
        %v4089 = vunpack.c.l.b16 %v1044
        %v4090 = vunpack.c.h.b16 %v1044
        %v4091 = vunpack.c.l.b16 %v1045
        %v4092 = vunpack.c.l.b16 %v1046
        %v4093 = vunpack.c.h.b16 %v1046
        %v4094 = vunpack.c.l.b16 %v1047
        %v4095 = vunpack.c.h.b16 %v1047
        %v4096 = vunpack.c.l.b16 %v1048
        %v4097 = vunpack.c.l.b16 %v1049
        %v4098 = vunpack.c.h.b16 %v1049
        %v4099 = vunpack.c.l.b16 %v1050
        %v4100 = vunpack.c.h.b16 %v1050
        %v4101 = vunpack.c.l.b16 %v1051
        %v4102 = vunpack.c.l.b16 %v1052
        %v4103 = vunpack.c.h.b16 %v1052
        %v4104 = vunpack.c.l.b16 %v1053
        %v4105 = vunpack.c.h.b16 %v1053
        %v4106 = vunpack.c.l.b16 %v1054
        %v4107 = vunpack.c.l.b16 %v1055
        %v4108 = vunpack.c.h.b16 %v1055
        %v4109 = vunpack.c.l.b16 %v1056
        %v4110 = vunpack.c.h.b16 %v1056
        %v4111 = vunpack.c.l.b16 %v1057
        %v4112 = vunpack.c.l.b16 %v1058
        %v4113 = vunpack.c.h.b16 %v1058
        %v4114 = vunpack.c.l.b16 %v1059
        %v4115 = vunpack.c.h.b16 %v1059
        %v4116 = vunpack.c.l.b16 %v1060
        %v4117 = vunpack.c.l.b16 %v1061
        %v4118 = vunpack.c.h.b16 %v1061
        %v4119 = vunpack.c.l.b16 %v1062
        %v4120 = vunpack.c.h.b16 %v1062
        %v4121 = vunpack.c.l.b16 %v1063
        %v4122 = vunpack.c.l.b16 %v1064
        %v4123 = vunpack.c.h.b16 %v1064
        %v4124 = vunpack.c.l.b16 %v1065
        %v4125 = vunpack.c.h.b16 %v1065
        %v4126 = vunpack.c.l.b16 %v1066
        %v4127 = vunpack.c.l.b16 %v1067
        %v4128 = vunpack.c.h.b16 %v1067
        %v4129 = vunpack.c.l.b16 %v1068
        %v4130 = vunpack.c.h.b16 %v1068
        %v4131 = vunpack.c.l.b16 %v1069
        %v4132 = vunpack.c.l.b16 %v1070
        %v4133 = vunpack.c.h.b16 %v1070
        %v4134 = vunpack.c.l.b16 %v1071
        %v4135 = vunpack.c.h.b16 %v1071
        %v4136 = vunpack.c.l.b16 %v1072
        %v4137 = vunpack.c.l.b16 %v1073
        %v4138 = vunpack.c.h.b16 %v1073
        %v4139 = vunpack.c.l.b16 %v1074
        %v4140 = vunpack.c.h.b16 %v1074
        %v4141 = vunpack.c.l.b16 %v1075
        %v4142 = vunpack.c.l.b16 %v1076
        %v4143 = vunpack.c.h.b16 %v1076
        %v4144 = vunpack.c.l.b16 %v1077
        %v4145 = vunpack.c.h.b16 %v1077
        %v4146 = vunpack.c.l.b16 %v1078
        %v4147 = vunpack.c.l.b16 %v1079
        %v4148 = vunpack.c.h.b16 %v1079
        %v4149 = vunpack.c.l.b16 %v1080
        %v4150 = vunpack.c.h.b16 %v1080
        %v4151 = vunpack.c.l.b16 %v1081
        %v4152 = vunpack.c.l.b16 %v1082
        %v4153 = vunpack.c.h.b16 %v1082
        %v4154 = vunpack.c.l.b16 %v1083
        %v4155 = vunpack.c.h.b16 %v1083
        %v4156 = vunpack.c.l.b16 %v1084
        %v4157 = vunpack.c.l.b16 %v1085
        %v4158 = vunpack.c.h.b16 %v1085
        %v4159 = vunpack.c.l.b16 %v1086
        %v4160 = vunpack.c.h.b16 %v1086
        %v4161 = vunpack.c.l.b16 %v1087
        %v4162 = vunpack.c.l.b16 %v1088
        %v4163 = vunpack.c.h.b16 %v1088
        %v4164 = vunpack.c.l.b16 %v1089
        %v4165 = vunpack.c.h.b16 %v1089
        %v4166 = vunpack.c.l.b16 %v1090
        %v4167 = vunpack.c.l.b16 %v1091
        %v4168 = vunpack.c.h.b16 %v1091
        %v4169 = vunpack.c.l.b16 %v1092
        %v4170 = vunpack.c.h.b16 %v1092
        %v4171 = vunpack.c.l.b16 %v1093
        %v4172 = vunpack.c.l.b16 %v1094
        %v4173 = vunpack.c.h.b16 %v1094
        %v4174 = vunpack.c.l.b16 %v1095
        %v4175 = vunpack.c.h.b16 %v1095
        %v4176 = vunpack.c.l.b16 %v1096
        %v4177 = vunpack.c.l.b16 %v1097
        %v4178 = vunpack.c.h.b16 %v1097
        %v4179 = vunpack.c.l.b16 %v1098
        %v4180 = vunpack.c.h.b16 %v1098
        %v4181 = vunpack.c.l.b16 %v1099
        %v4182 = vunpack.c.l.b16 %v1100
        %v4183 = vunpack.c.h.b16 %v1100
        %v4184 = vunpack.c.l.b16 %v1101
        %v4185 = vunpack.c.h.b16 %v1101
        %v4186 = vunpack.c.l.b16 %v1102
        %v4187 = vunpack.c.l.b16 %v1103
        %v4188 = vunpack.c.h.b16 %v1103
        %v4189 = vunpack.c.l.b16 %v1104
        %v4190 = vunpack.c.h.b16 %v1104
        %v4191 = vunpack.c.l.b16 %v1105
        %v4192 = vunpack.c.l.b16 %v1106
        %v4193 = vunpack.c.h.b16 %v1106
        %v4194 = vunpack.c.l.b16 %v1107
        %v4195 = vunpack.c.h.b16 %v1107
        %v4196 = vunpack.c.l.b16 %v1108
        %v4197 = vunpack.c.l.b16 %v1109
        %v4198 = vunpack.c.h.b16 %v1109
        %v4199 = vunpack.c.l.b16 %v1110
        %v4200 = vunpack.c.h.b16 %v1110
        %v4201 = vunpack.c.l.b16 %v1111
        %v4202 = vunpack.c.l.b16 %v1112
        %v4203 = vunpack.c.h.b16 %v1112
        %v4204 = vunpack.c.l.b16 %v1113
        %v4205 = vunpack.c.h.b16 %v1113
        %v4206 = vunpack.c.l.b16 %v1114
        %v4207 = vunpack.c.l.b16 %v1115
        %v4208 = vunpack.c.h.b16 %v1115
        %v4209 = vunpack.c.l.b16 %v1116
        %v4210 = vunpack.c.h.b16 %v1116
        %v4211 = vunpack.c.l.b16 %v1117
        %v4212 = vunpack.c.l.b16 %v1118
        %v4213 = vunpack.c.h.b16 %v1118
        %v4214 = vunpack.c.l.b16 %v1119
        %v4215 = vunpack.c.h.b16 %v1119
        %v4216 = vunpack.c.l.b16 %v1120
        %v4217 = vunpack.c.l.b16 %v1121
        %v4218 = vunpack.c.h.b16 %v1121
        %v4219 = vunpack.c.l.b16 %v1122
        %v4220 = vunpack.c.h.b16 %v1122
        %v4221 = vunpack.c.l.b16 %v1123
        %v4222 = vunpack.c.l.b16 %v1124
        %v4223 = vunpack.c.h.b16 %v1124
        %v4224 = vunpack.c.l.b16 %v1125
        %v4225 = vunpack.c.h.b16 %v1125
        %v4226 = vunpack.c.l.b16 %v1126
        %v4227 = vunpack.c.l.b16 %v1127
        %v4228 = vunpack.c.h.b16 %v1127
        %v4229 = vunpack.c.l.b16 %v1128
        %v4230 = vunpack.c.h.b16 %v1128
        %v4231 = vunpack.c.l.b16 %v1129
        %v4232 = vunpack.c.l.b16 %v1130
        %v4233 = vunpack.c.h.b16 %v1130
        %v4234 = vunpack.c.l.b16 %v1131
        %v4235 = vunpack.c.h.b16 %v1131
        %v4236 = vunpack.c.l.b16 %v1132
        %v4237 = vunpack.c.l.b16 %v1133
        %v4238 = vunpack.c.h.b16 %v1133
        %v4239 = vunpack.c.l.b16 %v1134
        %v4240 = vunpack.c.h.b16 %v1134
        %v4241 = vunpack.c.l.b16 %v1135
        %v4242 = vunpack.c.l.b16 %v1136
        %v4243 = vunpack.c.h.b16 %v1136
        %v4244 = vunpack.c.l.b16 %v1137
        %v4245 = vunpack.c.h.b16 %v1137
        %v4246 = vunpack.c.l.b16 %v1138
        %v4247 = vunpack.c.l.b16 %v1139
        %v4248 = vunpack.c.h.b16 %v1139
        %v4249 = vunpack.c.l.b16 %v1140
        %v4250 = vunpack.c.h.b16 %v1140
        %v4251 = vunpack.c.l.b16 %v1141
        %v4252 = vunpack.c.l.b16 %v1142
        %v4253 = vunpack.c.h.b16 %v1142
        %v4254 = vunpack.c.l.b16 %v1143
        %v4255 = vunpack.c.h.b16 %v1143
        %v4256 = vunpack.c.l.b16 %v1144
        %v4257 = vunpack.c.l.b16 %v1145
        %v4258 = vunpack.c.h.b16 %v1145
        %v4259 = vunpack.c.l.b16 %v1146
        %v4260 = vunpack.c.h.b16 %v1146
        %v4261 = vunpack.c.l.b16 %v1147
        %v4262 = vunpack.c.l.b16 %v1148
        %v4263 = vunpack.c.h.b16 %v1148
        %v4264 = vunpack.c.l.b16 %v1149
        %v4265 = vunpack.c.h.b16 %v1149
        %v4266 = vunpack.c.l.b16 %v1150
        %v4267 = vunpack.c.l.b16 %v1151
        %v4268 = vunpack.c.h.b16 %v1151
        %v4269 = vunpack.c.l.b16 %v1152
        %v4270 = vunpack.c.h.b16 %v1152
        %v4271 = vunpack.c.l.b16 %v1153
        %v4272 = vunpack.c.l.b16 %v1154
        %v4273 = vunpack.c.h.b16 %v1154
        %v4274 = vunpack.c.l.b16 %v1155
        %v4275 = vunpack.c.h.b16 %v1155
        %v4276 = vunpack.c.l.b16 %v1156
        %v4277 = vunpack.c.l.b16 %v1157
        %v4278 = vunpack.c.h.b16 %v1157
        %v4279 = vunpack.c.l.b16 %v1158
        %v4280 = vunpack.c.h.b16 %v1158
        %v4281 = vunpack.c.l.b16 %v1159
        %v4282 = vunpack.c.l.b16 %v1160
        %v4283 = vunpack.c.h.b16 %v1160
        %v4284 = vunpack.c.l.b16 %v1161
        %v4285 = vunpack.c.h.b16 %v1161
        %v4286 = vunpack.c.l.b16 %v1162
        %v4287 = vunpack.c.l.b16 %v1163
        %v4288 = vunpack.c.h.b16 %v1163
        %v4289 = vunpack.c.l.b16 %v1164
        %v4290 = vunpack.c.h.b16 %v1164
        %v4291 = vunpack.c.l.b16 %v1165
        %v4292 = vunpack.c.l.b16 %v1166
        %v4293 = vunpack.c.h.b16 %v1166
        %v4294 = vunpack.c.l.b16 %v1167
        %v4295 = vunpack.c.h.b16 %v1167
        %v4296 = vunpack.c.l.b16 %v1168
        %v4297 = vunpack.c.l.b16 %v1169
        %v4298 = vunpack.c.h.b16 %v1169
        %v4299 = vunpack.c.l.b16 %v1170
        %v4300 = vunpack.c.h.b16 %v1170
        %v4301 = vunpack.c.l.b16 %v1171
        %v4302 = vunpack.c.l.b16 %v1172
        %v4303 = vunpack.c.h.b16 %v1172
        %v4304 = vunpack.c.l.b16 %v1173
        %v4305 = vunpack.c.h.b16 %v1173
        %v4306 = vunpack.c.l.b16 %v1174
        %v4307 = vunpack.c.l.b16 %v1175
        %v4308 = vunpack.c.h.b16 %v1175
        %v4309 = vunpack.c.l.b16 %v1176
        %v4310 = vunpack.c.h.b16 %v1176
        %v4311 = vunpack.c.l.b16 %v1177
        %v4312 = vunpack.c.l.b16 %v1178
        %v4313 = vunpack.c.h.b16 %v1178
        %v4314 = vunpack.c.l.b16 %v1179
        %v4315 = vunpack.c.h.b16 %v1179
        %v4316 = vunpack.c.l.b16 %v1180
        %v4317 = vunpack.c.l.b16 %v1181
        %v4318 = vunpack.c.h.b16 %v1181
        %v4319 = vunpack.c.l.b16 %v1182
        %v4320 = vunpack.c.h.b16 %v1182
        %v4321 = vunpack.c.l.b16 %v1183
        %v4322 = vunpack.c.l.b16 %v1184
        %v4323 = vunpack.c.h.b16 %v1184
        %v4324 = vunpack.c.l.b16 %v1185
        %v4325 = vunpack.c.h.b16 %v1185
        %v4326 = vunpack.c.l.b16 %v1186
        %v4327 = vunpack.c.l.b16 %v1187
        %v4328 = vunpack.c.h.b16 %v1187
        %v4329 = vunpack.c.l.b16 %v1188
        %v4330 = vunpack.c.h.b16 %v1188
        %v4331 = vunpack.c.l.b16 %v1189
        %v4332 = vunpack.c.l.b16 %v1190
        %v4333 = vunpack.c.h.b16 %v1190
        %v4334 = vunpack.c.l.b16 %v1191
        %v4335 = vunpack.c.h.b16 %v1191
        %v4336 = vunpack.c.l.b16 %v1192
        %v4337 = vunpack.c.l.b16 %v1193
        %v4338 = vunpack.c.h.b16 %v1193
        %v4339 = vunpack.c.l.b16 %v1194
        %v4340 = vunpack.c.h.b16 %v1194
        %v4341 = vunpack.c.l.b16 %v1195
        %v4342 = vunpack.c.l.b16 %v1196
        %v4343 = vunpack.c.h.b16 %v1196
        %v4344 = vunpack.c.l.b16 %v1197
        %v4345 = vunpack.c.h.b16 %v1197
        %v4346 = vunpack.c.l.b16 %v1198
        %v4347 = vunpack.c.l.b16 %v1199
        %v4348 = vunpack.c.h.b16 %v1199
        %v4349 = vunpack.c.l.b16 %v1200
        %v4350 = vunpack.c.h.b16 %v1200
        %v4351 = vunpack.c.l.b16 %v1201
        %v4352 = vunpack.c.l.b16 %v1202
        %v4353 = vunpack.c.h.b16 %v1202
        %v4354 = vunpack.c.l.b16 %v1203
        %v4355 = vunpack.c.h.b16 %v1203
        %v4356 = vunpack.c.l.b16 %v1204
        %v4357 = vunpack.c.l.b16 %v1205
        %v4358 = vunpack.c.h.b16 %v1205
        %v4359 = vunpack.c.l.b16 %v1206
        %v4360 = vunpack.c.h.b16 %v1206
        %v4361 = vunpack.c.l.b16 %v1207
        %v4362 = vunpack.c.l.b16 %v1208
        %v4363 = vunpack.c.h.b16 %v1208
        %v4364 = vunpack.c.l.b16 %v1209
        %v4365 = vunpack.c.h.b16 %v1209
        %v4366 = vunpack.c.l.b16 %v1210
        %v4367 = vunpack.c.l.b16 %v1211
        %v4368 = vunpack.c.h.b16 %v1211
        %v4369 = vunpack.c.l.b16 %v1212
        %v4370 = vunpack.c.h.b16 %v1212
        %v4371 = vunpack.c.l.b16 %v1213
        %v4372 = vunpack.c.l.b16 %v1214
        %v4373 = vunpack.c.h.b16 %v1214
        %v4374 = vunpack.c.l.b16 %v1215
        %v4375 = vunpack.c.h.b16 %v1215
        %v4376 = vunpack.c.l.b16 %v1216
        %v4377 = vunpack.c.l.b16 %v1217
        %v4378 = vunpack.c.h.b16 %v1217
        %v4379 = vunpack.c.l.b16 %v1218
        %v4380 = vunpack.c.h.b16 %v1218
        %v4381 = vunpack.c.l.b16 %v1219
        %v4382 = vunpack.c.l.b16 %v1220
        %v4383 = vunpack.c.h.b16 %v1220
        %v4384 = vunpack.c.l.b16 %v1221
        %v4385 = vunpack.c.h.b16 %v1221
        %v4386 = vunpack.c.l.b16 %v1222
        %v4387 = vunpack.c.l.b16 %v1223
        %v4388 = vunpack.c.h.b16 %v1223
        %v4389 = vunpack.c.l.b16 %v1224
        %v4390 = vunpack.c.h.b16 %v1224
        %v4391 = vunpack.c.l.b16 %v1225
        %v4392 = vunpack.c.l.b16 %v1226
        %v4393 = vunpack.c.h.b16 %v1226
        %v4394 = vunpack.c.l.b16 %v1227
        %v4395 = vunpack.c.h.b16 %v1227
        %v4396 = vunpack.c.l.b16 %v1228
        %v4397 = vunpack.c.l.b16 %v1229
        %v4398 = vunpack.c.h.b16 %v1229
        %v4399 = vunpack.c.l.b16 %v1230
        %v4400 = vunpack.c.h.b16 %v1230
        %v4401 = vunpack.c.l.b16 %v1231
        %v4402 = vunpack.c.l.b16 %v1232
        %v4403 = vunpack.c.h.b16 %v1232
        %v4404 = vunpack.c.l.b16 %v1233
        %v4405 = vunpack.c.h.b16 %v1233
        %v4406 = vunpack.c.l.b16 %v1234
        %v4407 = vunpack.c.l.b16 %v1235
        %v4408 = vunpack.c.h.b16 %v1235
        %v4409 = vunpack.c.l.b16 %v1236
        %v4410 = vunpack.c.h.b16 %v1236
        %v4411 = vunpack.c.l.b16 %v1237
        %v4412 = vunpack.c.l.b16 %v1238
        %v4413 = vunpack.c.h.b16 %v1238
        %v4414 = vunpack.c.l.b16 %v1239
        %v4415 = vunpack.c.h.b16 %v1239
        %v4416 = vunpack.c.l.b16 %v1240
        %v4417 = vunpack.c.l.b16 %v1241
        %v4418 = vunpack.c.h.b16 %v1241
        %v4419 = vunpack.c.l.b16 %v1242
        %v4420 = vunpack.c.h.b16 %v1242
        %v4421 = vunpack.c.l.b16 %v1243
        %v4422 = vunpack.c.l.b16 %v1244
        %v4423 = vunpack.c.h.b16 %v1244
        %v4424 = vunpack.c.l.b16 %v1245
        %v4425 = vunpack.c.h.b16 %v1245
        %v4426 = vunpack.c.l.b16 %v1246
        %v4427 = vunpack.c.l.b16 %v1247
        %v4428 = vunpack.c.h.b16 %v1247
        %v4429 = vunpack.c.l.b16 %v1248
        %v4430 = vunpack.c.h.b16 %v1248
        %v4431 = vunpack.c.l.b16 %v1249
        %v4432 = vunpack.c.l.b16 %v1250
        %v4433 = vunpack.c.h.b16 %v1250
        %v4434 = vunpack.c.l.b16 %v1251
        %v4435 = vunpack.c.h.b16 %v1251
        %v4436 = vunpack.c.l.b16 %v1252
        %v4437 = vunpack.c.l.b16 %v1253
        %v4438 = vunpack.c.h.b16 %v1253
        %v4439 = vunpack.c.l.b16 %v1254
        %v4440 = vunpack.c.h.b16 %v1254
        %v4441 = vunpack.c.l.b16 %v1255
        %v4442 = vunpack.c.l.b16 %v1256
        %v4443 = vunpack.c.h.b16 %v1256
        %v4444 = vunpack.c.l.b16 %v1257
        %v4445 = vunpack.c.h.b16 %v1257
        %v4446 = vunpack.c.l.b16 %v1258
        %v4447 = vunpack.c.l.b16 %v1259
        %v4448 = vunpack.c.h.b16 %v1259
        %v4449 = vunpack.c.l.b16 %v1260
        %v4450 = vunpack.c.h.b16 %v1260
        %v4451 = vunpack.c.l.b16 %v1261
        %v4452 = vunpack.c.l.b16 %v1262
        %v4453 = vunpack.c.h.b16 %v1262
        %v4454 = vunpack.c.l.b16 %v1263
        %v4455 = vunpack.c.h.b16 %v1263
        %v4456 = vunpack.c.l.b16 %v1264
        %v4457 = vunpack.c.l.b16 %v1265
        %v4458 = vunpack.c.h.b16 %v1265
        %v4459 = vunpack.c.l.b16 %v1266
        %v4460 = vunpack.c.h.b16 %v1266
        %v4461 = vunpack.c.l.b16 %v1267
        %v4462 = vunpack.c.l.b16 %v1268
        %v4463 = vunpack.c.h.b16 %v1268
        %v4464 = vunpack.c.l.b16 %v1269
        %v4465 = vunpack.c.h.b16 %v1269
        %v4466 = vunpack.c.l.b16 %v1270
        %v4467 = vunpack.c.l.b16 %v1271
        %v4468 = vunpack.c.h.b16 %v1271
        %v4469 = vunpack.c.l.b16 %v1272
        %v4470 = vunpack.c.h.b16 %v1272
        %v4471 = vunpack.c.l.b16 %v1273
        %v4472 = vunpack.c.l.b16 %v1274
        %v4473 = vunpack.c.h.b16 %v1274
        %v4474 = vunpack.c.l.b16 %v1275
        %v4475 = vunpack.c.h.b16 %v1275
        %v4476 = vunpack.c.l.b16 %v1276
        %v4477 = vunpack.c.l.b16 %v1277
        %v4478 = vunpack.c.h.b16 %v1277
        %v4479 = vunpack.c.l.b16 %v1278
        %v4480 = vunpack.c.h.b16 %v1278
        %v4481 = vunpack.c.l.b16 %v1279
        %v4482 = vunpack.c.l.b16 %v1280
        %v4483 = vunpack.c.h.b16 %v1280
        %v4484 = vunpack.c.l.b16 %v1281
        %v4485 = vunpack.c.h.b16 %v1281
        %v4486 = vunpack.c.l.b16 %v1282
        %v4487 = vunpack.c.l.b16 %v1283
        %v4488 = vunpack.c.h.b16 %v1283
        %v4489 = vunpack.c.l.b16 %v1284
        %v4490 = vunpack.c.h.b16 %v1284
        %v4491 = vunpack.c.l.b16 %v1285
        %v4492 = vunpack.c.l.b16 %v1286
        %v4493 = vunpack.c.h.b16 %v1286
        %v4494 = vunpack.c.l.b16 %v1287
        %v4495 = vunpack.c.h.b16 %v1287
        %v4496 = vunpack.c.l.b16 %v1288
        %v4497 = vunpack.c.l.b16 %v1289
        %v4498 = vunpack.c.h.b16 %v1289
        %v4499 = vunpack.c.l.b16 %v1290
        %v4500 = vunpack.c.h.b16 %v1290
        %v4501 = vunpack.c.l.b16 %v1291
        %v4502 = vunpack.c.l.b16 %v1292
        %v4503 = vunpack.c.h.b16 %v1292
        %v4504 = vunpack.c.l.b16 %v1293
        %v4505 = vunpack.c.h.b16 %v1293
        %v4506 = vunpack.c.l.b16 %v1294
        %v4507 = vunpack.c.l.b16 %v1295
        %v4508 = vunpack.c.h.b16 %v1295
        %v4509 = vunpack.c.l.b16 %v1296
        %v4510 = vunpack.c.h.b16 %v1296
        %v4511 = vunpack.c.l.b16 %v1297
        %v4512 = vunpack.c.l.b16 %v1298
        %v4513 = vunpack.c.h.b16 %v1298
        %v4514 = vunpack.c.l.b16 %v1299
        %v4515 = vunpack.c.h.b16 %v1299
        %v4516 = vunpack.c.l.b16 %v1300
        %v4517 = vunpack.c.l.b16 %v1301
        %v4518 = vunpack.c.h.b16 %v1301
        %v4519 = vunpack.c.l.b16 %v1302
        %v4520 = vunpack.c.h.b16 %v1302
        %v4521 = vunpack.c.l.b16 %v1303
        %v4522 = vunpack.c.l.b16 %v1304
        %v4523 = vunpack.c.h.b16 %v1304
        %v4524 = vunpack.c.l.b16 %v1305
        %v4525 = vunpack.c.h.b16 %v1305
        %v4526 = vunpack.c.l.b16 %v1306
        %v4527 = vunpack.c.l.b16 %v1307
        %v4528 = vunpack.c.h.b16 %v1307
        %v4529 = vunpack.c.l.b16 %v1308
        %v4530 = vunpack.c.h.b16 %v1308
        %v4531 = vunpack.c.l.b16 %v1309
        %v4532 = vunpack.c.l.b16 %v1310
        %v4533 = vunpack.c.h.b16 %v1310
        %v4534 = vunpack.c.l.b16 %v1311
        %v4535 = vunpack.c.h.b16 %v1311
        %v4536 = vunpack.c.l.b16 %v1312
        %v4537 = vunpack.c.l.b16 %v1313
        %v4538 = vunpack.c.h.b16 %v1313
        %v4539 = vunpack.c.l.b16 %v1314
        %v4540 = vunpack.c.h.b16 %v1314
        %v4541 = vunpack.c.l.b16 %v1315
        %v4542 = vunpack.c.l.b16 %v1316
        %v4543 = vunpack.c.h.b16 %v1316
        %v4544 = vunpack.c.l.b16 %v1317
        %v4545 = vunpack.c.h.b16 %v1317
        %v4546 = vunpack.c.l.b16 %v1318
        %v4547 = vunpack.c.l.b16 %v1319
        %v4548 = vunpack.c.h.b16 %v1319
        %v4549 = vunpack.c.l.b16 %v1320
        %v4550 = vunpack.c.h.b16 %v1320
        %v4551 = vunpack.c.l.b16 %v1321
        %v4552 = vunpack.c.l.b16 %v1322
        %v4553 = vunpack.c.h.b16 %v1322
        %v4554 = vunpack.c.l.b16 %v1323
        %v4555 = vunpack.c.h.b16 %v1323
        %v4556 = vunpack.c.l.b16 %v1324
        %v4557 = vunpack.c.l.b16 %v1325
        %v4558 = vunpack.c.h.b16 %v1325
        %v4559 = vunpack.c.l.b16 %v1326
        %v4560 = vunpack.c.h.b16 %v1326
        %v4561 = vunpack.c.l.b16 %v1327
        %v4562 = vunpack.c.l.b16 %v1328
        %v4563 = vunpack.c.h.b16 %v1328
        %v4564 = vunpack.c.l.b16 %v1329
        %v4565 = vunpack.c.h.b16 %v1329
        %v4566 = vunpack.c.l.b16 %v1330
        %v4567 = vunpack.c.l.b16 %v1331
        %v4568 = vunpack.c.h.b16 %v1331
        %v4569 = vunpack.c.l.b16 %v1332
        %v4570 = vunpack.c.h.b16 %v1332
        %v4571 = vunpack.c.l.b16 %v1333
        %v4572 = vunpack.c.l.b16 %v1334
        %v4573 = vunpack.c.h.b16 %v1334
        %v4574 = vunpack.c.l.b16 %v1335
        %v4575 = vunpack.c.h.b16 %v1335
        %v4576 = vunpack.c.l.b16 %v1336
        %v4577 = vunpack.c.l.b16 %v1337
        %v4578 = vunpack.c.h.b16 %v1337
        %v4579 = vunpack.c.l.b16 %v1338
        %v4580 = vunpack.c.h.b16 %v1338
        %v4581 = vunpack.c.l.b16 %v1339
        %v4582 = vunpack.c.l.b16 %v1340
        %v4583 = vunpack.c.h.b16 %v1340
        %v4584 = vunpack.c.l.b16 %v1341
        %v4585 = vunpack.c.h.b16 %v1341
        %v4586 = vunpack.c.l.b16 %v1342
        %v4587 = vunpack.c.l.b16 %v1343
        %v4588 = vunpack.c.h.b16 %v1343
        %v4589 = vunpack.c.l.b16 %v1344
        %v4590 = vunpack.c.h.b16 %v1344
        %v4591 = vunpack.c.l.b16 %v1345
        %v4592 = vunpack.c.l.b16 %v1346
        %v4593 = vunpack.c.h.b16 %v1346
        %v4594 = vunpack.c.l.b16 %v1347
        %v4595 = vunpack.c.h.b16 %v1347
        %v4596 = vunpack.c.l.b16 %v1348
        %v4597 = vunpack.c.l.b16 %v1349
        %v4598 = vunpack.c.h.b16 %v1349
        %v4599 = vunpack.c.l.b16 %v1350
        %v4600 = vunpack.c.h.b16 %v1350
        %v4601 = vunpack.c.l.b16 %v1351
        %v4602 = vunpack.c.l.b16 %v1352
        %v4603 = vunpack.c.h.b16 %v1352
        %v4604 = vunpack.c.l.b16 %v1353
        %v4605 = vunpack.c.h.b16 %v1353
        %v4606 = vunpack.c.l.b16 %v1354
        %v4607 = vunpack.c.l.b16 %v1355
        %v4608 = vunpack.c.h.b16 %v1355
        %v4609 = vunpack.c.l.b16 %v1356
        %v4610 = vunpack.c.h.b16 %v1356
        %v4611 = vunpack.c.l.b16 %v1357
        %v4612 = vunpack.c.l.b16 %v1358
        %v4613 = vunpack.c.h.b16 %v1358
        %v4614 = vunpack.c.l.b16 %v1359
        %v4615 = vunpack.c.h.b16 %v1359
        %v4616 = vunpack.c.l.b16 %v1360
        %v4617 = vunpack.c.l.b16 %v1361
        %v4618 = vunpack.c.h.b16 %v1361
        %v4619 = vunpack.c.l.b16 %v1362
        %v4620 = vunpack.c.h.b16 %v1362
        %v4621 = vunpack.c.l.b16 %v1363
        %v4622 = vunpack.c.l.b16 %v1364
        %v4623 = vunpack.c.h.b16 %v1364
        %v4624 = vunpack.c.l.b16 %v1365
        %v4625 = vunpack.c.h.b16 %v1365
        %v4626 = vunpack.c.l.b16 %v1366
        %v4627 = vunpack.c.l.b16 %v1367
        %v4628 = vunpack.c.h.b16 %v1367
        %v4629 = vunpack.c.l.b16 %v1368
        %v4630 = vunpack.c.h.b16 %v1368
        %v4631 = vunpack.c.l.b16 %v1369
        %v4632 = vunpack.c.l.b16 %v1370
        %v4633 = vunpack.c.h.b16 %v1370
        %v4634 = vunpack.c.l.b16 %v1371
        %v4635 = vunpack.c.h.b16 %v1371
        %v4636 = vunpack.c.l.b16 %v1372
        %v4637 = vunpack.c.l.b16 %v1373
        %v4638 = vunpack.c.h.b16 %v1373
        %v4639 = vunpack.c.l.b16 %v1374
        %v4640 = vunpack.c.h.b16 %v1374
        %v4641 = vunpack.c.l.b16 %v1375
        %v4642 = vunpack.c.l.b16 %v1376
        %v4643 = vunpack.c.h.b16 %v1376
        %v4644 = vunpack.c.l.b16 %v1377
        %v4645 = vunpack.c.h.b16 %v1377
        %v4646 = vunpack.c.l.b16 %v1378
        %v4647 = vunpack.c.l.b16 %v1379
        %v4648 = vunpack.c.h.b16 %v1379
        %v4649 = vunpack.c.l.b16 %v1380
        %v4650 = vunpack.c.h.b16 %v1380
        %v4651 = vunpack.c.l.b16 %v1381
        %v4652 = vunpack.c.l.b16 %v1382
        %v4653 = vunpack.c.h.b16 %v1382
        %v4654 = vunpack.c.l.b16 %v1383
        %v4655 = vunpack.c.h.b16 %v1383
        %v4656 = vunpack.c.l.b16 %v1384
        %v4657 = vunpack.c.l.b16 %v1385
        %v4658 = vunpack.c.h.b16 %v1385
        %v4659 = vunpack.c.l.b16 %v1386
        %v4660 = vunpack.c.h.b16 %v1386
        %v4661 = vunpack.c.l.b16 %v1387
        %v4662 = vunpack.c.l.b16 %v1388
        %v4663 = vunpack.c.h.b16 %v1388
        %v4664 = vunpack.c.l.b16 %v1389
        %v4665 = vunpack.c.h.b16 %v1389
        %v4666 = vunpack.c.l.b16 %v1390
        %v4667 = vunpack.c.l.b16 %v1391
        %v4668 = vunpack.c.h.b16 %v1391
        %v4669 = vunpack.c.l.b16 %v1392
        %v4670 = vunpack.c.h.b16 %v1392
        %v4671 = vunpack.c.l.b16 %v1393
        %v4672 = vunpack.c.l.b16 %v1394
        %v4673 = vunpack.c.h.b16 %v1394
        %v4674 = vunpack.c.l.b16 %v1395
        %v4675 = vunpack.c.h.b16 %v1395
        %v4676 = vunpack.c.l.b16 %v1396
        %v4677 = vunpack.c.l.b16 %v1397
        %v4678 = vunpack.c.h.b16 %v1397
        %v4679 = vunpack.c.l.b16 %v1398
        %v4680 = vunpack.c.h.b16 %v1398
        %v4681 = vunpack.c.l.b16 %v1399
        %v4682 = vunpack.c.l.b16 %v1400
        %v4683 = vunpack.c.h.b16 %v1400
        %v4684 = vunpack.c.l.b16 %v1401
        %v4685 = vunpack.c.h.b16 %v1401
        %v4686 = vunpack.c.l.b16 %v1402
        %v4687 = vunpack.c.l.b16 %v1403
        %v4688 = vunpack.c.h.b16 %v1403
        %v4689 = vunpack.c.l.b16 %v1404
        %v4690 = vunpack.c.h.b16 %v1404
        %v4691 = vunpack.c.l.b16 %v1405
        %v4692 = vunpack.c.l.b16 %v1406
        %v4693 = vunpack.c.h.b16 %v1406
        %v4694 = vunpack.c.l.b16 %v1407
        %v4695 = vunpack.c.h.b16 %v1407
        %v4696 = vunpack.c.l.b16 %v1408
        %v4697 = vunpack.c.l.b16 %v1409
        %v4698 = vunpack.c.h.b16 %v1409
        %v4699 = vunpack.c.l.b16 %v1410
        %v4700 = vunpack.c.h.b16 %v1410
        %v4701 = vunpack.c.l.b16 %v1411
        %v4702 = vunpack.c.l.b16 %v1412
        %v4703 = vunpack.c.h.b16 %v1412
        %v4704 = vunpack.c.l.b16 %v1413
        %v4705 = vunpack.c.h.b16 %v1413
        %v4706 = vunpack.c.l.b16 %v1414
        %v4707 = vunpack.c.l.b16 %v1415
        %v4708 = vunpack.c.h.b16 %v1415
        %v4709 = vunpack.c.l.b16 %v1416
        %v4710 = vunpack.c.h.b16 %v1416
        %v4711 = vunpack.c.l.b16 %v1417
        %v4712 = vunpack.c.l.b16 %v1418
        %v4713 = vunpack.c.h.b16 %v1418
        %v4714 = vunpack.c.l.b16 %v1419
        %v4715 = vunpack.c.h.b16 %v1419
        %v4716 = vunpack.c.l.b16 %v1420
        %v4717 = vunpack.c.l.b16 %v1421
        %v4718 = vunpack.c.h.b16 %v1421
        %v4719 = vunpack.c.l.b16 %v1422
        %v4720 = vunpack.c.h.b16 %v1422
        %v4721 = vunpack.c.l.b16 %v1423
        %v4722 = vunpack.c.l.b16 %v1424
        %v4723 = vunpack.c.h.b16 %v1424
        %v4724 = vunpack.c.l.b16 %v1425
        %v4725 = vunpack.c.h.b16 %v1425
        %v4726 = vunpack.c.l.b16 %v1426
        %v4727 = vunpack.c.l.b16 %v1427
        %v4728 = vunpack.c.h.b16 %v1427
        %v4729 = vunpack.c.l.b16 %v1428
        %v4730 = vunpack.c.h.b16 %v1428
        %v4731 = vunpack.c.l.b16 %v1429
        %v4732 = vunpack.c.l.b16 %v1430
        %v4733 = vunpack.c.h.b16 %v1430
        %v4734 = vunpack.c.l.b16 %v1431
        %v4735 = vunpack.c.h.b16 %v1431
        %v4736 = vunpack.c.l.b16 %v1432
        %v4737 = vunpack.c.l.b16 %v1433
        %v4738 = vunpack.c.h.b16 %v1433
        %v4739 = vunpack.c.l.b16 %v1434
        %v4740 = vunpack.c.h.b16 %v1434
        %v4741 = vunpack.c.l.b16 %v1435
        %v4742 = vunpack.c.l.b16 %v1436
        %v4743 = vunpack.c.h.b16 %v1436
        %v4744 = vunpack.c.l.b16 %v1437
        %v4745 = vunpack.c.h.b16 %v1437
        %v4746 = vunpack.c.l.b16 %v1438
        %v4747 = vunpack.c.l.b16 %v1439
        %v4748 = vunpack.c.h.b16 %v1439
        %v4749 = vunpack.c.l.b16 %v1440
        %v4750 = vunpack.c.h.b16 %v1440
        %v4751 = vunpack.c.l.b16 %v1441
        %v4752 = vunpack.c.l.b16 %v1442
        %v4753 = vunpack.c.h.b16 %v1442
        %v4754 = vunpack.c.l.b16 %v1443
        %v4755 = vunpack.c.h.b16 %v1443
        %v4756 = vunpack.c.l.b16 %v1444
        %v4757 = vunpack.c.l.b16 %v1445
        %v4758 = vunpack.c.h.b16 %v1445
        %v4759 = vunpack.c.l.b16 %v1446
        %v4760 = vunpack.c.h.b16 %v1446
        %v4761 = vunpack.c.l.b16 %v1447
        %v4762 = vunpack.c.l.b16 %v1448
        %v4763 = vunpack.c.h.b16 %v1448
        %v4764 = vunpack.c.l.b16 %v1449
        %v4765 = vunpack.c.h.b16 %v1449
        %v4766 = vunpack.c.l.b16 %v1450
        %v4767 = vunpack.c.l.b16 %v1451
        %v4768 = vunpack.c.h.b16 %v1451
        %v4769 = vunpack.c.l.b16 %v1452
        %v4770 = vunpack.c.h.b16 %v1452
        %v4771 = vunpack.c.l.b16 %v1453
        %v4772 = vunpack.c.l.b16 %v1454
        %v4773 = vunpack.c.h.b16 %v1454
        %v4774 = vunpack.c.l.b16 %v1455
        %v4775 = vunpack.c.h.b16 %v1455
        %v4776 = vunpack.c.l.b16 %v1456
        %v4777 = vunpack.c.l.b16 %v1457
        %v4778 = vunpack.c.h.b16 %v1457
        %v4779 = vunpack.c.l.b16 %v1458
        %v4780 = vunpack.c.h.b16 %v1458
        %v4781 = vunpack.c.l.b16 %v1459
        %v4782 = vunpack.c.l.b16 %v1460
        %v4783 = vunpack.c.h.b16 %v1460
        %v4784 = vunpack.c.l.b16 %v1461
        %v4785 = vunpack.c.h.b16 %v1461
        %v4786 = vunpack.c.l.b16 %v1462
        %v4787 = vunpack.c.l.b16 %v1463
        %v4788 = vunpack.c.h.b16 %v1463
        %v4789 = vunpack.c.l.b16 %v1464
        %v4790 = vunpack.c.h.b16 %v1464
        %v4791 = vunpack.c.l.b16 %v1465
        %v4792 = vunpack.c.l.b16 %v1466
        %v4793 = vunpack.c.h.b16 %v1466
        %v4794 = vunpack.c.l.b16 %v1467
        %v4795 = vunpack.c.h.b16 %v1467
        %v4796 = vunpack.c.l.b16 %v1468
        %v4797 = vunpack.c.l.b16 %v1469
        %v4798 = vunpack.c.h.b16 %v1469
        %v4799 = vunpack.c.l.b16 %v1470
        %v4800 = vunpack.c.h.b16 %v1470
        %v4801 = vunpack.c.l.b16 %v1471
        %v4802 = vunpack.c.l.b16 %v1472
        %v4803 = vunpack.c.h.b16 %v1472
        %v4804 = vunpack.c.l.b16 %v1473
        %v4805 = vunpack.c.h.b16 %v1473
        %v4806 = vunpack.c.l.b16 %v1474
        %v4807 = vunpack.c.l.b16 %v1475
        %v4808 = vunpack.c.h.b16 %v1475
        %v4809 = vunpack.c.l.b16 %v1476
        %v4810 = vunpack.c.h.b16 %v1476
        %v4811 = vunpack.c.l.b16 %v1477
        %v4812 = vunpack.c.l.b16 %v1478
        %v4813 = vunpack.c.h.b16 %v1478
        %v4814 = vunpack.c.l.b16 %v1479
        %v4815 = vunpack.c.h.b16 %v1479
        %v4816 = vunpack.c.l.b16 %v1480
        %v4817 = vunpack.c.l.b16 %v1481
        %v4818 = vunpack.c.h.b16 %v1481
        %v4819 = vunpack.c.l.b16 %v1482
        %v4820 = vunpack.c.h.b16 %v1482
        %v4821 = vunpack.c.l.b16 %v1483
        %v4822 = vunpack.c.l.b16 %v1484
        %v4823 = vunpack.c.h.b16 %v1484
        %v4824 = vunpack.c.l.b16 %v1485
        %v4825 = vunpack.c.h.b16 %v1485
        %v4826 = vunpack.c.l.b16 %v1486
        %v4827 = vunpack.c.l.b16 %v1487
        %v4828 = vunpack.c.h.b16 %v1487
        %v4829 = vunpack.c.l.b16 %v1488
        %v4830 = vunpack.c.h.b16 %v1488
        %v4831 = vunpack.c.l.b16 %v1489
        %v4832 = vunpack.c.l.b16 %v1490
        %v4833 = vunpack.c.h.b16 %v1490
        %v4834 = vunpack.c.l.b16 %v1491
        %v4835 = vunpack.c.h.b16 %v1491
        %v4836 = vunpack.c.l.b16 %v1492
        %v4837 = vunpack.c.l.b16 %v1493
        %v4838 = vunpack.c.h.b16 %v1493
        %v4839 = vunpack.c.l.b16 %v1494
        %v4840 = vunpack.c.h.b16 %v1494
        %v4841 = vunpack.c.l.b16 %v1495
        %v4842 = vunpack.c.l.b16 %v1496
        %v4843 = vunpack.c.h.b16 %v1496
        %v4844 = vunpack.c.l.b16 %v1497
        %v4845 = vunpack.c.h.b16 %v1497
        %v4846 = vunpack.c.l.b16 %v1498
        %v4847 = vunpack.c.l.b16 %v1499
        %v4848 = vunpack.c.h.b16 %v1499
        %v4849 = vunpack.c.l.b16 %v1500
        %v4850 = vunpack.c.h.b16 %v1500
        %v4851 = vunpack.c.l.b16 %v1501
        %v4852 = vunpack.c.l.b16 %v1502
        %v4853 = vunpack.c.h.b16 %v1502
        %v4854 = vunpack.c.l.b16 %v1503
        %v4855 = vunpack.c.h.b16 %v1503
        %v4856 = vunpack.c.l.b16 %v1504
        %v4857 = vunpack.c.l.b16 %v1505
        %v4858 = vunpack.c.h.b16 %v1505
        %v4859 = vunpack.c.l.b16 %v1506
        %v4860 = vunpack.c.h.b16 %v1506
        %v4861 = vunpack.c.l.b16 %v1507
        %v4862 = vunpack.c.l.b16 %v1508
        %v4863 = vunpack.c.h.b16 %v1508
        %v4864 = vunpack.c.l.b16 %v1509
        %v4865 = vunpack.c.h.b16 %v1509
        %v4866 = vunpack.c.l.b16 %v1510
        %v4867 = vunpack.c.l.b16 %v1511
        %v4868 = vunpack.c.h.b16 %v1511
        %v4869 = vunpack.c.l.b16 %v1512
        %v4870 = vunpack.c.h.b16 %v1512
        %v4871 = vunpack.c.l.b16 %v1513
        %v4872 = vunpack.c.l.b16 %v1514
        %v4873 = vunpack.c.h.b16 %v1514
        %v4874 = vunpack.c.l.b16 %v1515
        %v4875 = vunpack.c.h.b16 %v1515
        %v4876 = vunpack.c.l.b16 %v1516
        %v4877 = vunpack.c.l.b16 %v1517
        %v4878 = vunpack.c.h.b16 %v1517
        %v4879 = vunpack.c.l.b16 %v1518
        %v4880 = vunpack.c.h.b16 %v1518
        %v4881 = vunpack.c.l.b16 %v1519
        %v4882 = vunpack.c.l.b16 %v1520
        %v4883 = vunpack.c.h.b16 %v1520
        %v4884 = vunpack.c.l.b16 %v1521
        %v4885 = vunpack.c.h.b16 %v1521
        %v4886 = vunpack.c.l.b16 %v1522
        %v4887 = vunpack.c.l.b16 %v1523
        %v4888 = vunpack.c.h.b16 %v1523
        %v4889 = vunpack.c.l.b16 %v1524
        %v4890 = vunpack.c.h.b16 %v1524
        %v4891 = vunpack.c.l.b16 %v1525
        %v4892 = vunpack.c.l.b16 %v1526
        %v4893 = vunpack.c.h.b16 %v1526
        %v4894 = vunpack.c.l.b16 %v1527
        %v4895 = vunpack.c.h.b16 %v1527
        %v4896 = vunpack.c.l.b16 %v1528
        %v4897 = vunpack.c.l.b16 %v1529
        %v4898 = vunpack.c.h.b16 %v1529
        %v4899 = vunpack.c.l.b16 %v1530
        %v4900 = vunpack.c.h.b16 %v1530
        %v4901 = vunpack.c.l.b16 %v1531
        %v4902 = vunpack.c.l.b16 %v1532
        %v4903 = vunpack.c.h.b16 %v1532
        %v4904 = vunpack.c.l.b16 %v1533
        %v4905 = vunpack.c.h.b16 %v1533
        %v4906 = vunpack.c.l.b16 %v1534
        %v4907 = vunpack.c.l.b16 %v1535
        %v4908 = vunpack.c.h.b16 %v1535
        %v4909 = vunpack.c.l.b16 %v1536
        %v4910 = vunpack.c.h.b16 %v1536
        %v4911 = vunpack.c.l.b16 %v1537
        %v4912 = vunpack.c.l.b16 %v1538
        %v4913 = vunpack.c.h.b16 %v1538
        %v4914 = vunpack.c.l.b16 %v1539
        %v4915 = vunpack.c.h.b16 %v1539
        %v4916 = vunpack.c.l.b16 %v1540
        %v4917 = vunpack.c.l.b16 %v1541
        %v4918 = vunpack.c.h.b16 %v1541
        %v4919 = vunpack.c.l.b16 %v1542
        %v4920 = vunpack.c.h.b16 %v1542
        %v4921 = vunpack.c.l.b16 %v1543
        %v4922 = vunpack.c.l.b16 %v1544
        %v4923 = vunpack.c.h.b16 %v1544
        %v4924 = vunpack.c.l.b16 %v1545
        %v4925 = vunpack.c.h.b16 %v1545
        %v4926 = vunpack.c.l.b16 %v1546
        %v4927 = vunpack.c.l.b16 %v1547
        %v4928 = vunpack.c.h.b16 %v1547
        %v4929 = vunpack.c.l.b16 %v1548
        %v4930 = vunpack.c.h.b16 %v1548
        %v4931 = vunpack.c.l.b16 %v1549
        %v4932 = vunpack.c.l.b16 %v1550
        %v4933 = vunpack.c.h.b16 %v1550
        %v4934 = vunpack.c.l.b16 %v1551
        %v4935 = vunpack.c.h.b16 %v1551
        %v4936 = vunpack.c.l.b16 %v1552
        %v4937 = vunpack.c.l.b16 %v1553
        %v4938 = vunpack.c.h.b16 %v1553
        %v4939 = vunpack.c.l.b16 %v1554
        %v4940 = vunpack.c.h.b16 %v1554
        %v4941 = vunpack.c.l.b16 %v1555
        %v4942 = vunpack.c.l.b16 %v1556
        %v4943 = vunpack.c.h.b16 %v1556
        %v4944 = vunpack.c.l.b16 %v1557
        %v4945 = vunpack.c.h.b16 %v1557
        %v4946 = vunpack.c.l.b16 %v1558
        %v4947 = vunpack.c.l.b16 %v1559
        %v4948 = vunpack.c.h.b16 %v1559
        %v4949 = vunpack.c.l.b16 %v1560
        %v4950 = vunpack.c.h.b16 %v1560
        %v4951 = vunpack.c.l.b16 %v1561
        %v4952 = vunpack.c.l.b16 %v1562
        %v4953 = vunpack.c.h.b16 %v1562
        %v4954 = vunpack.c.l.b16 %v1563
        %v4955 = vunpack.c.h.b16 %v1563
        %v4956 = vunpack.c.l.b16 %v1564
        %v4957 = vunpack.c.l.b16 %v1565
        %v4958 = vunpack.c.h.b16 %v1565
        %v4959 = vunpack.c.l.b16 %v1566
        %v4960 = vunpack.c.h.b16 %v1566
        %v4961 = vunpack.c.l.b16 %v1567
        %v4962 = vunpack.c.l.b16 %v1568
        %v4963 = vunpack.c.h.b16 %v1568
        %v4964 = vunpack.c.l.b16 %v1569
        %v4965 = vunpack.c.h.b16 %v1569
        %v4966 = vunpack.c.l.b16 %v1570
        %v4967 = vunpack.c.l.b16 %v1571
        %v4968 = vunpack.c.h.b16 %v1571
        %v4969 = vunpack.c.l.b16 %v1572
        %v4970 = vunpack.c.h.b16 %v1572
        %v4971 = vunpack.c.l.b16 %v1573
        %v4972 = vunpack.c.l.b16 %v1574
        %v4973 = vunpack.c.h.b16 %v1574
        %v4974 = vunpack.c.l.b16 %v1575
        %v4975 = vunpack.c.h.b16 %v1575
        %v4976 = vunpack.c.l.b16 %v1576
        %v4977 = vunpack.c.l.b16 %v1577
        %v4978 = vunpack.c.h.b16 %v1577
        %v4979 = vunpack.c.l.b16 %v1578
        %v4980 = vunpack.c.h.b16 %v1578
        %v4981 = vunpack.c.l.b16 %v1579
        %v4982 = vunpack.c.l.b16 %v1580
        %v4983 = vunpack.c.h.b16 %v1580
        %v4984 = vunpack.c.l.b16 %v1581
        %v4985 = vunpack.c.h.b16 %v1581
        %v4986 = vunpack.c.l.b16 %v1582
        %v4987 = vunpack.c.l.b16 %v1583
        %v4988 = vunpack.c.h.b16 %v1583
        %v4989 = vunpack.c.l.b16 %v1584
        %v4990 = vunpack.c.h.b16 %v1584
        %v4991 = vunpack.c.l.b16 %v1585
        %v4992 = vunpack.c.l.b16 %v1586
        %v4993 = vunpack.c.h.b16 %v1586
        %v4994 = vunpack.c.l.b16 %v1587
        %v4995 = vunpack.c.h.b16 %v1587
        %v4996 = vunpack.c.l.b16 %v1588
        %v4997 = vunpack.c.l.b16 %v1589
        %v4998 = vunpack.c.h.b16 %v1589
        %v4999 = vunpack.c.l.b16 %v1590
        %v5000 = vunpack.c.h.b16 %v1590
        %v5001 = vunpack.c.l.b16 %v1591
        %v5002 = vunpack.c.l.b16 %v1592
        %v5003 = vunpack.c.h.b16 %v1592
        %v5004 = vunpack.c.l.b16 %v1593
        %v5005 = vunpack.c.h.b16 %v1593
        %v5006 = vunpack.c.l.b16 %v1594
        %v5007 = vunpack.c.l.b16 %v1595
        %v5008 = vunpack.c.h.b16 %v1595
        %v5009 = vunpack.c.l.b16 %v1596
        %v5010 = vunpack.c.h.b16 %v1596
        %v5011 = vunpack.c.l.b16 %v1597
        %v5012 = vunpack.c.l.b16 %v1598
        %v5013 = vunpack.c.h.b16 %v1598
        %v5014 = vunpack.c.l.b16 %v1599
        %v5015 = vunpack.c.h.b16 %v1599
        %v5016 = vunpack.c.l.b16 %v1600
        %v5017 = vunpack.c.l.b16 %v1601
        %v5018 = vunpack.c.h.b16 %v1601
        %v5019 = vunpack.c.l.b16 %v1602
        %v5020 = vunpack.c.h.b16 %v1602
        %v5021 = vunpack.c.l.b16 %v1603
        %v5022 = vunpack.c.l.b16 %v1604
        %v5023 = vunpack.c.h.b16 %v1604
        %v5024 = vunpack.c.l.b16 %v1605
        %v5025 = vunpack.c.h.b16 %v1605
        %v5026 = vunpack.c.l.b16 %v1606
        %v5027 = vunpack.c.l.b16 %v1607
        %v5028 = vunpack.c.h.b16 %v1607
        %v5029 = vunpack.c.l.b16 %v1608
        %v5030 = vunpack.c.h.b16 %v1608
        %v5031 = vunpack.c.l.b16 %v1609
        %v5032 = vunpack.c.l.b16 %v1610
        %v5033 = vunpack.c.h.b16 %v1610
        %v5034 = vunpack.c.l.b16 %v1611
        %v5035 = vunpack.c.h.b16 %v1611
        %v5036 = vunpack.c.l.b16 %v1612
        %v5037 = vunpack.c.l.b16 %v1613
        %v5038 = vunpack.c.h.b16 %v1613
        %v5039 = vunpack.c.l.b16 %v1614
        %v5040 = vunpack.c.h.b16 %v1614
        %v5041 = vunpack.c.l.b16 %v1615
        %v5042 = vunpack.c.l.b16 %v1616
        %v5043 = vunpack.c.h.b16 %v1616
        %v5044 = vunpack.c.l.b16 %v1617
        %v5045 = vunpack.c.h.b16 %v1617
        %v5046 = vunpack.c.l.b16 %v1618
        %v5047 = vunpack.c.l.b16 %v1619
        %v5048 = vunpack.c.h.b16 %v1619
        %v5049 = vunpack.c.l.b16 %v1620
        %v5050 = vunpack.c.h.b16 %v1620
        %v5051 = vunpack.c.l.b16 %v1621
        %v5052 = vunpack.c.l.b16 %v1622
        %v5053 = vunpack.c.h.b16 %v1622
        %v5054 = vunpack.c.l.b16 %v1623
        %v5055 = vunpack.c.h.b16 %v1623
        %v5056 = vunpack.c.l.b16 %v1624
        %v5057 = vunpack.c.l.b16 %v1625
        %v5058 = vunpack.c.h.b16 %v1625
        %v5059 = vunpack.c.l.b16 %v1626
        %v5060 = vunpack.c.h.b16 %v1626
        %v5061 = vunpack.c.l.b16 %v1627
        %v5062 = vunpack.c.l.b16 %v1628
        %v5063 = vunpack.c.h.b16 %v1628
        %v5064 = vunpack.c.l.b16 %v1629
        %v5065 = vunpack.c.h.b16 %v1629
        %v5066 = vunpack.c.l.b16 %v1630
        %v5067 = vunpack.c.l.b16 %v1631
        %v5068 = vunpack.c.h.b16 %v1631
        %v5069 = vunpack.c.l.b16 %v1632
        %v5070 = vunpack.c.h.b16 %v1632
        %v5071 = vunpack.c.l.b16 %v1633
        %v5072 = vunpack.c.l.b16 %v1634
        %v5073 = vunpack.c.h.b16 %v1634
        %v5074 = vunpack.c.l.b16 %v1635
        %v5075 = vunpack.c.h.b16 %v1635
        %v5076 = vunpack.c.l.b16 %v1636
        %v5077 = vunpack.c.l.b16 %v1637
        %v5078 = vunpack.c.h.b16 %v1637
        %v5079 = vunpack.c.l.b16 %v1638
        %v5080 = vunpack.c.h.b16 %v1638
        %v5081 = vunpack.c.l.b16 %v1639
        %v5082 = vunpack.c.l.b16 %v1640
        %v5083 = vunpack.c.h.b16 %v1640
        %v5084 = vunpack.c.l.b16 %v1641
        %v5085 = vunpack.c.h.b16 %v1641
        %v5086 = vunpack.c.l.b16 %v1642
        %v5087 = vunpack.c.l.b16 %v1643
        %v5088 = vunpack.c.h.b16 %v1643
        %v5089 = vunpack.c.l.b16 %v1644
        %v5090 = vunpack.c.h.b16 %v1644
        %v5091 = vunpack.c.l.b16 %v1645
        %v5092 = vunpack.c.l.b16 %v1646
        %v5093 = vunpack.c.h.b16 %v1646
        %v5094 = vunpack.c.l.b16 %v1647
        %v5095 = vunpack.c.h.b16 %v1647
        %v5096 = vunpack.c.l.b16 %v1648
        %v5097 = vunpack.c.l.b16 %v1649
        %v5098 = vunpack.c.h.b16 %v1649
        %v5099 = vunpack.c.l.b16 %v1650
        %v5100 = vunpack.c.h.b16 %v1650
        %v5101 = vunpack.c.l.b16 %v1651
        %v5102 = vunpack.c.l.b16 %v1652
        %v5103 = vunpack.c.h.b16 %v1652
        %v5104 = vunpack.c.l.b16 %v1653
        %v5105 = vunpack.c.h.b16 %v1653
        %v5106 = vunpack.c.l.b16 %v1654
        %v5107 = vunpack.c.l.b16 %v1655
        %v5108 = vunpack.c.h.b16 %v1655
        %v5109 = vunpack.c.l.b16 %v1656
        %v5110 = vunpack.c.h.b16 %v1656
        %v5111 = vunpack.c.l.b16 %v1657
        %v5112 = vunpack.c.l.b16 %v1658
        %v5113 = vunpack.c.h.b16 %v1658
        %v5114 = vunpack.c.l.b16 %v1659
        %v5115 = vunpack.c.h.b16 %v1659
        %v5116 = vunpack.c.l.b16 %v1660
        %v5117 = vunpack.c.l.b16 %v1661
        %v5118 = vunpack.c.h.b16 %v1661
        %v5119 = vunpack.c.l.b16 %v1662
        %v5120 = vunpack.c.h.b16 %v1662
        %v5121 = vunpack.c.l.b16 %v1663
        %v5122 = vunpack.c.l.b16 %v1664
        %v5123 = vunpack.c.h.b16 %v1664
        %v5124 = vunpack.c.l.b16 %v1665
        %v5125 = vunpack.c.h.b16 %v1665
        %v5126 = vunpack.c.l.b16 %v1666
        %v5127 = vunpack.c.l.b16 %v1667
        %v5128 = vunpack.c.h.b16 %v1667
        %v5129 = vunpack.c.l.b16 %v1668
        %v5130 = vunpack.c.h.b16 %v1668
        %v5131 = vunpack.c.l.b16 %v1669
        %v5132 = vunpack.c.l.b16 %v1670
        %v5133 = vunpack.c.h.b16 %v1670
        %v5134 = vunpack.c.l.b16 %v1671
        %v5135 = vunpack.c.h.b16 %v1671
        %v5136 = vunpack.c.l.b16 %v1672
        %v5137 = vunpack.c.l.b16 %v1673
        %v5138 = vunpack.c.h.b16 %v1673
        %v5139 = vunpack.c.l.b16 %v1674
        %v5140 = vunpack.c.h.b16 %v1674
        %v5141 = vunpack.c.l.b16 %v1675
        %v5142 = vunpack.c.l.b16 %v1676
        %v5143 = vunpack.c.h.b16 %v1676
        %v5144 = vunpack.c.l.b16 %v1677
        %v5145 = vunpack.c.h.b16 %v1677
        %v5146 = vunpack.c.l.b16 %v1678
        %v5147 = vunpack.c.l.b16 %v1679
        %v5148 = vunpack.c.h.b16 %v1679
        %v5149 = vunpack.c.l.b16 %v1680
        %v5150 = vunpack.c.h.b16 %v1680
        %v5151 = vunpack.c.l.b16 %v1681
        %v5152 = vunpack.c.l.b16 %v1682
        %v5153 = vunpack.c.h.b16 %v1682
        %v5154 = vunpack.c.l.b16 %v1683
        %v5155 = vunpack.c.h.b16 %v1683
        %v5156 = vunpack.c.l.b16 %v1684
        %v5157 = vunpack.c.l.b16 %v1685
        %v5158 = vunpack.c.h.b16 %v1685
        %v5159 = vunpack.c.l.b16 %v1686
        %v5160 = vunpack.c.h.b16 %v1686
        %v5161 = vunpack.c.l.b16 %v1687
        %v5162 = vunpack.c.l.b16 %v1688
        %v5163 = vunpack.c.h.b16 %v1688
        %v5164 = vunpack.c.l.b16 %v1689
        %v5165 = vunpack.c.h.b16 %v1689
        %v5166 = vunpack.c.l.b16 %v1690
        %v5167 = vunpack.c.l.b16 %v1691
        %v5168 = vunpack.c.h.b16 %v1691
        %v5169 = vunpack.c.l.b16 %v1692
        %v5170 = vunpack.c.h.b16 %v1692
        %v5171 = vunpack.c.l.b16 %v1693
        %v5172 = vunpack.c.l.b16 %v1694
        %v5173 = vunpack.c.h.b16 %v1694
        %v5174 = vunpack.c.l.b16 %v1695
        %v5175 = vunpack.c.h.b16 %v1695
        %v5176 = vunpack.c.l.b16 %v1696
        %v5177 = vunpack.c.l.b16 %v1697
        %v5178 = vunpack.c.h.b16 %v1697
        %v5179 = vunpack.c.l.b16 %v1698
        %v5180 = vunpack.c.h.b16 %v1698
        %v5181 = vunpack.c.l.b16 %v1699
        %v5182 = vunpack.c.l.b16 %v1700
        %v5183 = vunpack.c.h.b16 %v1700
        %v5184 = vunpack.c.l.b16 %v1701
        %v5185 = vunpack.c.h.b16 %v1701
        %v5186 = vunpack.c.l.b16 %v1702
        %v5187 = vunpack.c.l.b16 %v1703
        %v5188 = vunpack.c.h.b16 %v1703
        %v5189 = vunpack.c.l.b16 %v1704
        %v5190 = vunpack.c.h.b16 %v1704
        %v5191 = vunpack.c.l.b16 %v1705
        %v5192 = vunpack.c.l.b16 %v1706
        %v5193 = vunpack.c.h.b16 %v1706
        %v5194 = vunpack.c.l.b16 %v1707
        %v5195 = vunpack.c.h.b16 %v1707
        %v5196 = vunpack.c.l.b16 %v1708
        %v5197 = vunpack.c.l.b16 %v1709
        %v5198 = vunpack.c.h.b16 %v1709
        %v5199 = vunpack.c.l.b16 %v1710
        %v5200 = vunpack.c.h.b16 %v1710
        %v5201 = vunpack.c.l.b16 %v1711
        %v5202 = vunpack.c.l.b16 %v1712
        %v5203 = vunpack.c.h.b16 %v1712
        %v5204 = vunpack.c.l.b16 %v1713
        %v5205 = vunpack.c.h.b16 %v1713
        %v5206 = vunpack.c.l.b16 %v1714
        %v5207 = vunpack.c.l.b16 %v1715
        %v5208 = vunpack.c.h.b16 %v1715
        %v5209 = vunpack.c.l.b16 %v1716
        %v5210 = vunpack.c.h.b16 %v1716
        %v5211 = vunpack.c.l.b16 %v1717
        %v5212 = vunpack.c.l.b16 %v1718
        %v5213 = vunpack.c.h.b16 %v1718
        %v5214 = vunpack.c.l.b16 %v1719
        %v5215 = vunpack.c.h.b16 %v1719
        %v5216 = vunpack.c.l.b16 %v1720
        %v5217 = vunpack.c.l.b16 %v1721
        %v5218 = vunpack.c.h.b16 %v1721
        %v5219 = vunpack.c.l.b16 %v1722
        %v5220 = vunpack.c.h.b16 %v1722
        %v5221 = vunpack.c.l.b16 %v1723
        %v5222 = vunpack.c.l.b16 %v1724
        %v5223 = vunpack.c.h.b16 %v1724
        %v5224 = vunpack.c.l.b16 %v1725
        %v5225 = vunpack.c.h.b16 %v1725
        %v5226 = vunpack.c.l.b16 %v1726
        %v5227 = vunpack.c.l.b16 %v1727
        %v5228 = vunpack.c.h.b16 %v1727
        %v5229 = vunpack.c.l.b16 %v1728
        %v5230 = vunpack.c.h.b16 %v1728
        %v5231 = vunpack.c.l.b16 %v1729
        %v5232 = vunpack.c.l.b16 %v1730
        %v5233 = vunpack.c.h.b16 %v1730
        %v5234 = vunpack.c.l.b16 %v1731
        %v5235 = vunpack.c.h.b16 %v1731
        %v5236 = vunpack.c.l.b16 %v1732
        %v5237 = vunpack.c.l.b16 %v1733
        %v5238 = vunpack.c.h.b16 %v1733
        %v5239 = vunpack.c.l.b16 %v1734
        %v5240 = vunpack.c.h.b16 %v1734
        %v5241 = vunpack.c.l.b16 %v1735
        %v5242 = vunpack.c.l.b16 %v1736
        %v5243 = vunpack.c.h.b16 %v1736
        %v5244 = vunpack.c.l.b16 %v1737
        %v5245 = vunpack.c.h.b16 %v1737
        %v5246 = vunpack.c.l.b16 %v1738
        %v5247 = vunpack.c.l.b16 %v1739
        %v5248 = vunpack.c.h.b16 %v1739
        %v5249 = vunpack.c.l.b16 %v1740
        %v5250 = vunpack.c.h.b16 %v1740
        %v5251 = vunpack.c.l.b16 %v1741
        %v5252 = vunpack.c.l.b16 %v1742
        %v5253 = vunpack.c.h.b16 %v1742
        %v5254 = vunpack.c.l.b16 %v1743
        %v5255 = vunpack.c.h.b16 %v1743
        %v5256 = vunpack.c.l.b16 %v1744
        %v5257 = vunpack.c.l.b16 %v1745
        %v5258 = vunpack.c.h.b16 %v1745
        %v5259 = vunpack.c.l.b16 %v1746
        %v5260 = vunpack.c.h.b16 %v1746
        %v5261 = vunpack.c.l.b16 %v1747
        %v5262 = vunpack.c.l.b16 %v1748
        %v5263 = vunpack.c.h.b16 %v1748
        %v5264 = vunpack.c.l.b16 %v1749
        %v5265 = vunpack.c.h.b16 %v1749
        %v5266 = vunpack.c.l.b16 %v1750
        %v5267 = vunpack.c.l.b16 %v1751
        %v5268 = vunpack.c.h.b16 %v1751
        %v5269 = vunpack.c.l.b16 %v1752
        %v5270 = vunpack.c.h.b16 %v1752
        %v5271 = vunpack.c.l.b16 %v1753
        %v5272 = vunpack.c.l.b16 %v1754
        %v5273 = vunpack.c.h.b16 %v1754
        %v5274 = vunpack.c.l.b16 %v1755
        %v5275 = vunpack.c.h.b16 %v1755
        %v5276 = vunpack.c.l.b16 %v1756
        %v5277 = vunpack.c.l.b16 %v1757
        %v5278 = vunpack.c.h.b16 %v1757
        %v5279 = vunpack.c.l.b16 %v1758
        %v5280 = vunpack.c.h.b16 %v1758
        %v5281 = vunpack.c.l.b16 %v1759
        %v5282 = vunpack.c.l.b16 %v1760
        %v5283 = vunpack.c.h.b16 %v1760
        %v5284 = vunpack.c.l.b16 %v1761
        %v5285 = vunpack.c.h.b16 %v1761
        %v5286 = vunpack.c.l.b16 %v1762
        %v5287 = vunpack.c.l.b16 %v1763
        %v5288 = vunpack.c.h.b16 %v1763
        %v5289 = vunpack.c.l.b16 %v1764
        %v5290 = vunpack.c.h.b16 %v1764
        %v5291 = vunpack.c.l.b16 %v1765
        %v5292 = vunpack.c.l.b16 %v1766
        %v5293 = vunpack.c.h.b16 %v1766
        %v5294 = vunpack.c.l.b16 %v1767
        %v5295 = vunpack.c.h.b16 %v1767
        %v5296 = vunpack.c.l.b16 %v1768
        %v5297 = vunpack.c.l.b16 %v1769
        %v5298 = vunpack.c.h.b16 %v1769
        %v5299 = vunpack.c.l.b16 %v1770
        %v5300 = vunpack.c.h.b16 %v1770
        %v5301 = vunpack.c.l.b16 %v1771
        %v5302 = vunpack.c.l.b16 %v1772
        %v5303 = vunpack.c.h.b16 %v1772
        %v5304 = vunpack.c.l.b16 %v1773
        %v5305 = vunpack.c.h.b16 %v1773
        %v5306 = vunpack.c.l.b16 %v1774
        %v5307 = vunpack.c.l.b16 %v1775
        %v5308 = vunpack.c.h.b16 %v1775
        %v5309 = vunpack.c.l.b16 %v1776
        %v5310 = vunpack.c.h.b16 %v1776
        %v5311 = vunpack.c.l.b16 %v1777
        %v5312 = vunpack.c.l.b16 %v1778
        %v5313 = vunpack.c.h.b16 %v1778
        %v5314 = vunpack.c.l.b16 %v1779
        %v5315 = vunpack.c.h.b16 %v1779
        %v5316 = vunpack.c.l.b16 %v1780
        %v5317 = vunpack.c.l.b16 %v1781
        %v5318 = vunpack.c.h.b16 %v1781
        %v5319 = vunpack.c.l.b16 %v1782
        %v5320 = vunpack.c.h.b16 %v1782
        %v5321 = vunpack.c.l.b16 %v1783
        %v5322 = vunpack.c.l.b16 %v1784
        %v5323 = vunpack.c.h.b16 %v1784
        %v5324 = vunpack.c.l.b16 %v1785
        %v5325 = vunpack.c.h.b16 %v1785
        %v5326 = vunpack.c.l.b16 %v1786
        %v5327 = vunpack.c.l.b16 %v1787
        %v5328 = vunpack.c.h.b16 %v1787
        %v5329 = vunpack.c.l.b16 %v1788
        %v5330 = vunpack.c.h.b16 %v1788
        %v5331 = vunpack.c.l.b16 %v1789
        %v5332 = vunpack.c.l.b16 %v1790
        %v5333 = vunpack.c.h.b16 %v1790
        %v5334 = vunpack.c.l.b16 %v1791
        %v5335 = vunpack.c.h.b16 %v1791
        %v5336 = vunpack.c.l.b16 %v1792
        %v5337 = vunpack.c.l.b16 %v1793
        %v5338 = vunpack.c.h.b16 %v1793
        %v5339 = vunpack.c.l.b16 %v1794
        %v5340 = vunpack.c.h.b16 %v1794
        %v5341 = vunpack.c.l.b16 %v1795
        %v5342 = vunpack.c.l.b16 %v1796
        %v5343 = vunpack.c.h.b16 %v1796
        %v5344 = vunpack.c.l.b16 %v1797
        %v5345 = vunpack.c.h.b16 %v1797
        %v5346 = vunpack.c.l.b16 %v1798
        %v5347 = vunpack.c.l.b16 %v1799
        %v5348 = vunpack.c.h.b16 %v1799
        %v5349 = vunpack.c.l.b16 %v1800
        %v5350 = vunpack.c.h.b16 %v1800
        %v5351 = vunpack.c.l.b16 %v1801
        %v5352 = vunpack.c.l.b16 %v1802
        %v5353 = vunpack.c.h.b16 %v1802
        %v5354 = vunpack.c.l.b16 %v1803
        %v5355 = vunpack.c.h.b16 %v1803
        %v5356 = vunpack.c.l.b16 %v1804
        %v5357 = vunpack.c.l.b16 %v1805
        %v5358 = vunpack.c.h.b16 %v1805
        %v5359 = vunpack.c.l.b16 %v1806
        %v5360 = vunpack.c.h.b16 %v1806
        %v5361 = vunpack.c.l.b16 %v1807
        %v5362 = vunpack.c.l.b16 %v1808
        %v5363 = vunpack.c.h.b16 %v1808
        %v5364 = vunpack.c.l.b16 %v1809
        %v5365 = vunpack.c.h.b16 %v1809
        %v5366 = vunpack.c.l.b16 %v1810
        %v5367 = vunpack.c.l.b16 %v1811
        %v5368 = vunpack.c.h.b16 %v1811
        %v5369 = vunpack.c.l.b16 %v1812
        %v5370 = vunpack.c.h.b16 %v1812
        %v5371 = vunpack.c.l.b16 %v1813
        %v5372 = vunpack.c.l.b16 %v1814
        %v5373 = vunpack.c.h.b16 %v1814
        %v5374 = vunpack.c.l.b16 %v1815
        %v5375 = vunpack.c.h.b16 %v1815
        %v5376 = vunpack.c.l.b16 %v1816
        %v5377 = vunpack.c.l.b16 %v1817
        %v5378 = vunpack.c.h.b16 %v1817
        %v5379 = vunpack.c.l.b16 %v1818
        %v5380 = vunpack.c.h.b16 %v1818
        %v5381 = vunpack.c.l.b16 %v1819
        %v5382 = vunpack.c.l.b16 %v1820
        %v5383 = vunpack.c.h.b16 %v1820
        %v5384 = vunpack.c.l.b16 %v1821
        %v5385 = vunpack.c.h.b16 %v1821
        %v5386 = vunpack.c.l.b16 %v1822
        %v5387 = vunpack.c.l.b16 %v1823
        %v5388 = vunpack.c.h.b16 %v1823
        %v5389 = vunpack.c.l.b16 %v1824
        %v5390 = vunpack.c.h.b16 %v1824
        %v5391 = vunpack.c.l.b16 %v1825
        %v5392 = vunpack.c.l.b16 %v1826
        %v5393 = vunpack.c.h.b16 %v1826
        %v5394 = vunpack.c.l.b16 %v1827
        %v5395 = vunpack.c.h.b16 %v1827
        %v5396 = vunpack.c.l.b16 %v1828
        %v5397 = vunpack.c.l.b16 %v1829
        %v5398 = vunpack.c.h.b16 %v1829
        %v5399 = vunpack.c.l.b16 %v1830
        %v5400 = vunpack.c.h.b16 %v1830
        %v5401 = vunpack.c.l.b16 %v1831
        %v5402 = vunpack.c.l.b16 %v1832
        %v5403 = vunpack.c.h.b16 %v1832
        %v5404 = vunpack.c.l.b16 %v1833
        %v5405 = vunpack.c.h.b16 %v1833
        %v5406 = vunpack.c.l.b16 %v1834
        %v5407 = vunpack.c.l.b16 %v1835
        %v5408 = vunpack.c.h.b16 %v1835
        %v5409 = vunpack.c.l.b16 %v1836
        %v5410 = vunpack.c.h.b16 %v1836
        %v5411 = vunpack.c.l.b16 %v1837
        %v5412 = vunpack.c.l.b16 %v1838
        %v5413 = vunpack.c.h.b16 %v1838
        %v5414 = vunpack.c.l.b16 %v1839
        %v5415 = vunpack.c.h.b16 %v1839
        %v5416 = vunpack.c.l.b16 %v1840
        %v5417 = vunpack.c.l.b16 %v1841
        %v5418 = vunpack.c.h.b16 %v1841
        %v5419 = vunpack.c.l.b16 %v1842
        %v5420 = vunpack.c.h.b16 %v1842
        %v5421 = vunpack.c.l.b16 %v1843
        %v5422 = vunpack.c.l.b16 %v1844
        %v5423 = vunpack.c.h.b16 %v1844
        %v5424 = vunpack.c.l.b16 %v1845
        %v5425 = vunpack.c.h.b16 %v1845
        %v5426 = vunpack.c.l.b16 %v1846
        %v5427 = vunpack.c.l.b16 %v1847
        %v5428 = vunpack.c.h.b16 %v1847
        %v5429 = vunpack.c.l.b16 %v1848
        %v5430 = vunpack.c.h.b16 %v1848
        %v5431 = vunpack.c.l.b16 %v1849
        %v5432 = vunpack.c.l.b16 %v1850
        %v5433 = vunpack.c.h.b16 %v1850
        %v5434 = vunpack.c.l.b16 %v1851
        %v5435 = vunpack.c.h.b16 %v1851
        %v5436 = vunpack.c.l.b16 %v1852
        %v5437 = vpack.c.b16 %v3202, %v3197
        %v5438 = vpack.c.b16 %v3203, %v3198
        %v5439 = vpack.c.b16 %v3204, %v3199
        %v5440 = vpack.c.b16 %v3205, %v3200
        %v5441 = vpack.c.b16 %v3206, %v3201
        %v5442 = vpack.c.b16 %v3212, %v3207
        %v5443 = vpack.c.b16 %v3213, %v3208
        %v5444 = vpack.c.b16 %v3214, %v3209
        %v5445 = vpack.c.b16 %v3215, %v3210
        %v5446 = vpack.c.b16 %v3216, %v3211
        %v5447 = vpack.c.b16 %v3222, %v3217
        %v5448 = vpack.c.b16 %v3223, %v3218
        %v5449 = vpack.c.b16 %v3224, %v3219
        %v5450 = vpack.c.b16 %v3225, %v3220
        %v5451 = vpack.c.b16 %v3226, %v3221
        %v5452 = vpack.c.b16 %v3232, %v3227
        %v5453 = vpack.c.b16 %v3233, %v3228
        %v5454 = vpack.c.b16 %v3234, %v3229
        %v5455 = vpack.c.b16 %v3235, %v3230
        %v5456 = vpack.c.b16 %v3236, %v3231
        %v5457 = vpack.c.b16 %v3242, %v3237
        %v5458 = vpack.c.b16 %v3243, %v3238
        %v5459 = vpack.c.b16 %v3244, %v3239
        %v5460 = vpack.c.b16 %v3245, %v3240
        %v5461 = vpack.c.b16 %v3246, %v3241
        %v5462 = vpack.c.b16 %v3252, %v3247
        %v5463 = vpack.c.b16 %v3253, %v3248
        %v5464 = vpack.c.b16 %v3254, %v3249
        %v5465 = vpack.c.b16 %v3255, %v3250
        %v5466 = vpack.c.b16 %v3256, %v3251
        %v5467 = vpack.c.b16 %v3262, %v3257
        %v5468 = vpack.c.b16 %v3263, %v3258
        %v5469 = vpack.c.b16 %v3264, %v3259
        %v5470 = vpack.c.b16 %v3265, %v3260
        %v5471 = vpack.c.b16 %v3266, %v3261
        %v5472 = vpack.c.b16 %v3272, %v3267
        %v5473 = vpack.c.b16 %v3273, %v3268
        %v5474 = vpack.c.b16 %v3274, %v3269
        %v5475 = vpack.c.b16 %v3275, %v3270
        %v5476 = vpack.c.b16 %v3276, %v3271
        %v5477 = vpack.c.b16 %v3282, %v3277
        %v5478 = vpack.c.b16 %v3283, %v3278
        %v5479 = vpack.c.b16 %v3284, %v3279
        %v5480 = vpack.c.b16 %v3285, %v3280
        %v5481 = vpack.c.b16 %v3286, %v3281
        %v5482 = vpack.c.b16 %v3292, %v3287
        %v5483 = vpack.c.b16 %v3293, %v3288
        %v5484 = vpack.c.b16 %v3294, %v3289
        %v5485 = vpack.c.b16 %v3295, %v3290
        %v5486 = vpack.c.b16 %v3296, %v3291
        %v5487 = vpack.c.b16 %v3302, %v3297
        %v5488 = vpack.c.b16 %v3303, %v3298
        %v5489 = vpack.c.b16 %v3304, %v3299
        %v5490 = vpack.c.b16 %v3305, %v3300
        %v5491 = vpack.c.b16 %v3306, %v3301
        %v5492 = vpack.c.b16 %v3312, %v3307
        %v5493 = vpack.c.b16 %v3313, %v3308
        %v5494 = vpack.c.b16 %v3314, %v3309
        %v5495 = vpack.c.b16 %v3315, %v3310
        %v5496 = vpack.c.b16 %v3316, %v3311
        %v5497 = vpack.c.b16 %v3322, %v3317
        %v5498 = vpack.c.b16 %v3323, %v3318
        %v5499 = vpack.c.b16 %v3324, %v3319
        %v5500 = vpack.c.b16 %v3325, %v3320
        %v5501 = vpack.c.b16 %v3326, %v3321
        %v5502 = vpack.c.b16 %v3332, %v3327
        %v5503 = vpack.c.b16 %v3333, %v3328
        %v5504 = vpack.c.b16 %v3334, %v3329
        %v5505 = vpack.c.b16 %v3335, %v3330
        %v5506 = vpack.c.b16 %v3336, %v3331
        %v5507 = vpack.c.b16 %v3342, %v3337
        %v5508 = vpack.c.b16 %v3343, %v3338
        %v5509 = vpack.c.b16 %v3344, %v3339
        %v5510 = vpack.c.b16 %v3345, %v3340
        %v5511 = vpack.c.b16 %v3346, %v3341
        %v5512 = vpack.c.b16 %v3352, %v3347
        %v5513 = vpack.c.b16 %v3353, %v3348
        %v5514 = vpack.c.b16 %v3354, %v3349
        %v5515 = vpack.c.b16 %v3355, %v3350
        %v5516 = vpack.c.b16 %v3356, %v3351
        %v5517 = vpack.c.b16 %v3362, %v3357
        %v5518 = vpack.c.b16 %v3363, %v3358
        %v5519 = vpack.c.b16 %v3364, %v3359
        %v5520 = vpack.c.b16 %v3365, %v3360
        %v5521 = vpack.c.b16 %v3366, %v3361
        %v5522 = vpack.c.b16 %v3372, %v3367
        %v5523 = vpack.c.b16 %v3373, %v3368
        %v5524 = vpack.c.b16 %v3374, %v3369
        %v5525 = vpack.c.b16 %v3375, %v3370
        %v5526 = vpack.c.b16 %v3376, %v3371
        %v5527 = vpack.c.b16 %v3382, %v3377
        %v5528 = vpack.c.b16 %v3383, %v3378
        %v5529 = vpack.c.b16 %v3384, %v3379
        %v5530 = vpack.c.b16 %v3385, %v3380
        %v5531 = vpack.c.b16 %v3386, %v3381
        %v5532 = vpack.c.b16 %v3392, %v3387
        %v5533 = vpack.c.b16 %v3393, %v3388
        %v5534 = vpack.c.b16 %v3394, %v3389
        %v5535 = vpack.c.b16 %v3395, %v3390
        %v5536 = vpack.c.b16 %v3396, %v3391
        %v5537 = vpack.c.b16 %v3402, %v3397
        %v5538 = vpack.c.b16 %v3403, %v3398
        %v5539 = vpack.c.b16 %v3404, %v3399
        %v5540 = vpack.c.b16 %v3405, %v3400
        %v5541 = vpack.c.b16 %v3406, %v3401
        %v5542 = vpack.c.b16 %v3412, %v3407
        %v5543 = vpack.c.b16 %v3413, %v3408
        %v5544 = vpack.c.b16 %v3414, %v3409
        %v5545 = vpack.c.b16 %v3415, %v3410
        %v5546 = vpack.c.b16 %v3416, %v3411
        %v5547 = vpack.c.b16 %v3422, %v3417
        %v5548 = vpack.c.b16 %v3423, %v3418
        %v5549 = vpack.c.b16 %v3424, %v3419
        %v5550 = vpack.c.b16 %v3425, %v3420
        %v5551 = vpack.c.b16 %v3426, %v3421
        %v5552 = vpack.c.b16 %v3432, %v3427
        %v5553 = vpack.c.b16 %v3433, %v3428
        %v5554 = vpack.c.b16 %v3434, %v3429
        %v5555 = vpack.c.b16 %v3435, %v3430
        %v5556 = vpack.c.b16 %v3436, %v3431
        %v5557 = vpack.c.b16 %v3442, %v3437
        %v5558 = vpack.c.b16 %v3443, %v3438
        %v5559 = vpack.c.b16 %v3444, %v3439
        %v5560 = vpack.c.b16 %v3445, %v3440
        %v5561 = vpack.c.b16 %v3446, %v3441
        %v5562 = vpack.c.b16 %v3452, %v3447
        %v5563 = vpack.c.b16 %v3453, %v3448
        %v5564 = vpack.c.b16 %v3454, %v3449
        %v5565 = vpack.c.b16 %v3455, %v3450
        %v5566 = vpack.c.b16 %v3456, %v3451
        %v5567 = vpack.c.b16 %v3462, %v3457
        %v5568 = vpack.c.b16 %v3463, %v3458
        %v5569 = vpack.c.b16 %v3464, %v3459
        %v5570 = vpack.c.b16 %v3465, %v3460
        %v5571 = vpack.c.b16 %v3466, %v3461
        %v5572 = vpack.c.b16 %v3472, %v3467
        %v5573 = vpack.c.b16 %v3473, %v3468
        %v5574 = vpack.c.b16 %v3474, %v3469
        %v5575 = vpack.c.b16 %v3475, %v3470
        %v5576 = vpack.c.b16 %v3476, %v3471
        %v5577 = vpack.c.b16 %v3482, %v3477
        %v5578 = vpack.c.b16 %v3483, %v3478
        %v5579 = vpack.c.b16 %v3484, %v3479
        %v5580 = vpack.c.b16 %v3485, %v3480
        %v5581 = vpack.c.b16 %v3486, %v3481
        %v5582 = vpack.c.b16 %v3492, %v3487
        %v5583 = vpack.c.b16 %v3493, %v3488
        %v5584 = vpack.c.b16 %v3494, %v3489
        %v5585 = vpack.c.b16 %v3495, %v3490
        %v5586 = vpack.c.b16 %v3496, %v3491
        %v5587 = vpack.c.b16 %v3502, %v3497
        %v5588 = vpack.c.b16 %v3503, %v3498
        %v5589 = vpack.c.b16 %v3504, %v3499
        %v5590 = vpack.c.b16 %v3505, %v3500
        %v5591 = vpack.c.b16 %v3506, %v3501
        %v5592 = vpack.c.b16 %v3512, %v3507
        %v5593 = vpack.c.b16 %v3513, %v3508
        %v5594 = vpack.c.b16 %v3514, %v3509
        %v5595 = vpack.c.b16 %v3515, %v3510
        %v5596 = vpack.c.b16 %v3516, %v3511
        %v5597 = vpack.c.b16 %v3522, %v3517
        %v5598 = vpack.c.b16 %v3523, %v3518
        %v5599 = vpack.c.b16 %v3524, %v3519
        %v5600 = vpack.c.b16 %v3525, %v3520
        %v5601 = vpack.c.b16 %v3526, %v3521
        %v5602 = vpack.c.b16 %v3532, %v3527
        %v5603 = vpack.c.b16 %v3533, %v3528
        %v5604 = vpack.c.b16 %v3534, %v3529
        %v5605 = vpack.c.b16 %v3535, %v3530
        %v5606 = vpack.c.b16 %v3536, %v3531
        %v5607 = vpack.c.b16 %v3542, %v3537
        %v5608 = vpack.c.b16 %v3543, %v3538
        %v5609 = vpack.c.b16 %v3544, %v3539
        %v5610 = vpack.c.b16 %v3545, %v3540
        %v5611 = vpack.c.b16 %v3546, %v3541
        %v5612 = vpack.c.b16 %v3552, %v3547
        %v5613 = vpack.c.b16 %v3553, %v3548
        %v5614 = vpack.c.b16 %v3554, %v3549
        %v5615 = vpack.c.b16 %v3555, %v3550
        %v5616 = vpack.c.b16 %v3556, %v3551
        %v5617 = vpack.c.b16 %v3562, %v3557
        %v5618 = vpack.c.b16 %v3563, %v3558
        %v5619 = vpack.c.b16 %v3564, %v3559
        %v5620 = vpack.c.b16 %v3565, %v3560
        %v5621 = vpack.c.b16 %v3566, %v3561
        %v5622 = vpack.c.b16 %v3572, %v3567
        %v5623 = vpack.c.b16 %v3573, %v3568
        %v5624 = vpack.c.b16 %v3574, %v3569
        %v5625 = vpack.c.b16 %v3575, %v3570
        %v5626 = vpack.c.b16 %v3576, %v3571
        %v5627 = vpack.c.b16 %v3582, %v3577
        %v5628 = vpack.c.b16 %v3583, %v3578
        %v5629 = vpack.c.b16 %v3584, %v3579
        %v5630 = vpack.c.b16 %v3585, %v3580
        %v5631 = vpack.c.b16 %v3586, %v3581
        %v5632 = vpack.c.b16 %v3592, %v3587
        %v5633 = vpack.c.b16 %v3593, %v3588
        %v5634 = vpack.c.b16 %v3594, %v3589
        %v5635 = vpack.c.b16 %v3595, %v3590
        %v5636 = vpack.c.b16 %v3596, %v3591
        %v5637 = vpack.c.b16 %v3602, %v3597
        %v5638 = vpack.c.b16 %v3603, %v3598
        %v5639 = vpack.c.b16 %v3604, %v3599
        %v5640 = vpack.c.b16 %v3605, %v3600
        %v5641 = vpack.c.b16 %v3606, %v3601
        %v5642 = vpack.c.b16 %v3612, %v3607
        %v5643 = vpack.c.b16 %v3613, %v3608
        %v5644 = vpack.c.b16 %v3614, %v3609
        %v5645 = vpack.c.b16 %v3615, %v3610
        %v5646 = vpack.c.b16 %v3616, %v3611
        %v5647 = vpack.c.b16 %v3622, %v3617
        %v5648 = vpack.c.b16 %v3623, %v3618
        %v5649 = vpack.c.b16 %v3624, %v3619
        %v5650 = vpack.c.b16 %v3625, %v3620
        %v5651 = vpack.c.b16 %v3626, %v3621
        %v5652 = vpack.c.b16 %v3632, %v3627
        %v5653 = vpack.c.b16 %v3633, %v3628
        %v5654 = vpack.c.b16 %v3634, %v3629
        %v5655 = vpack.c.b16 %v3635, %v3630
        %v5656 = vpack.c.b16 %v3636, %v3631
        %v5657 = vpack.c.b16 %v3642, %v3637
        %v5658 = vpack.c.b16 %v3643, %v3638
        %v5659 = vpack.c.b16 %v3644, %v3639
        %v5660 = vpack.c.b16 %v3645, %v3640
        %v5661 = vpack.c.b16 %v3646, %v3641
        %v5662 = vpack.c.b16 %v3652, %v3647
        %v5663 = vpack.c.b16 %v3653, %v3648
        %v5664 = vpack.c.b16 %v3654, %v3649
        %v5665 = vpack.c.b16 %v3655, %v3650
        %v5666 = vpack.c.b16 %v3656, %v3651
        %v5667 = vpack.c.b16 %v3662, %v3657
        %v5668 = vpack.c.b16 %v3663, %v3658
        %v5669 = vpack.c.b16 %v3664, %v3659
        %v5670 = vpack.c.b16 %v3665, %v3660
        %v5671 = vpack.c.b16 %v3666, %v3661
        %v5672 = vpack.c.b16 %v3672, %v3667
        %v5673 = vpack.c.b16 %v3673, %v3668
        %v5674 = vpack.c.b16 %v3674, %v3669
        %v5675 = vpack.c.b16 %v3675, %v3670
        %v5676 = vpack.c.b16 %v3676, %v3671
        %v5677 = vpack.c.b16 %v3682, %v3677
        %v5678 = vpack.c.b16 %v3683, %v3678
        %v5679 = vpack.c.b16 %v3684, %v3679
        %v5680 = vpack.c.b16 %v3685, %v3680
        %v5681 = vpack.c.b16 %v3686, %v3681
        %v5682 = vpack.c.b16 %v3692, %v3687
        %v5683 = vpack.c.b16 %v3693, %v3688
        %v5684 = vpack.c.b16 %v3694, %v3689
        %v5685 = vpack.c.b16 %v3695, %v3690
        %v5686 = vpack.c.b16 %v3696, %v3691
        %v5687 = vpack.c.b16 %v3702, %v3697
        %v5688 = vpack.c.b16 %v3703, %v3698
        %v5689 = vpack.c.b16 %v3704, %v3699
        %v5690 = vpack.c.b16 %v3705, %v3700
        %v5691 = vpack.c.b16 %v3706, %v3701
        %v5692 = vpack.c.b16 %v3712, %v3707
        %v5693 = vpack.c.b16 %v3713, %v3708
        %v5694 = vpack.c.b16 %v3714, %v3709
        %v5695 = vpack.c.b16 %v3715, %v3710
        %v5696 = vpack.c.b16 %v3716, %v3711
        %v5697 = vpack.c.b16 %v3722, %v3717
        %v5698 = vpack.c.b16 %v3723, %v3718
        %v5699 = vpack.c.b16 %v3724, %v3719
        %v5700 = vpack.c.b16 %v3725, %v3720
        %v5701 = vpack.c.b16 %v3726, %v3721
        %v5702 = vpack.c.b16 %v3732, %v3727
        %v5703 = vpack.c.b16 %v3733, %v3728
        %v5704 = vpack.c.b16 %v3734, %v3729
        %v5705 = vpack.c.b16 %v3735, %v3730
        %v5706 = vpack.c.b16 %v3736, %v3731
        %v5707 = vpack.c.b16 %v3742, %v3737
        %v5708 = vpack.c.b16 %v3743, %v3738
        %v5709 = vpack.c.b16 %v3744, %v3739
        %v5710 = vpack.c.b16 %v3745, %v3740
        %v5711 = vpack.c.b16 %v3746, %v3741
        %v5712 = vpack.c.b16 %v3752, %v3747
        %v5713 = vpack.c.b16 %v3753, %v3748
        %v5714 = vpack.c.b16 %v3754, %v3749
        %v5715 = vpack.c.b16 %v3755, %v3750
        %v5716 = vpack.c.b16 %v3756, %v3751
        %v5717 = vpack.c.b16 %v3762, %v3757
        %v5718 = vpack.c.b16 %v3763, %v3758
        %v5719 = vpack.c.b16 %v3764, %v3759
        %v5720 = vpack.c.b16 %v3765, %v3760
        %v5721 = vpack.c.b16 %v3766, %v3761
        %v5722 = vpack.c.b16 %v3772, %v3767
        %v5723 = vpack.c.b16 %v3773, %v3768
        %v5724 = vpack.c.b16 %v3774, %v3769
        %v5725 = vpack.c.b16 %v3775, %v3770
        %v5726 = vpack.c.b16 %v3776, %v3771
        %v5727 = vpack.c.b16 %v3782, %v3777
        %v5728 = vpack.c.b16 %v3783, %v3778
        %v5729 = vpack.c.b16 %v3784, %v3779
        %v5730 = vpack.c.b16 %v3785, %v3780
        %v5731 = vpack.c.b16 %v3786, %v3781
        %v5732 = vpack.c.b16 %v3792, %v3787
        %v5733 = vpack.c.b16 %v3793, %v3788
        %v5734 = vpack.c.b16 %v3794, %v3789
        %v5735 = vpack.c.b16 %v3795, %v3790
        %v5736 = vpack.c.b16 %v3796, %v3791
        %v5737 = vpack.c.b16 %v3802, %v3797
        %v5738 = vpack.c.b16 %v3803, %v3798
        %v5739 = vpack.c.b16 %v3804, %v3799
        %v5740 = vpack.c.b16 %v3805, %v3800
        %v5741 = vpack.c.b16 %v3806, %v3801
        %v5742 = vpack.c.b16 %v3812, %v3807
        %v5743 = vpack.c.b16 %v3813, %v3808
        %v5744 = vpack.c.b16 %v3814, %v3809
        %v5745 = vpack.c.b16 %v3815, %v3810
        %v5746 = vpack.c.b16 %v3816, %v3811
        %v5747 = vpack.c.b16 %v3822, %v3817
        %v5748 = vpack.c.b16 %v3823, %v3818
        %v5749 = vpack.c.b16 %v3824, %v3819
        %v5750 = vpack.c.b16 %v3825, %v3820
        %v5751 = vpack.c.b16 %v3826, %v3821
        %v5752 = vpack.c.b16 %v3832, %v3827
        %v5753 = vpack.c.b16 %v3833, %v3828
        %v5754 = vpack.c.b16 %v3834, %v3829
        %v5755 = vpack.c.b16 %v3835, %v3830
        %v5756 = vpack.c.b16 %v3836, %v3831
        %v5757 = vpack.c.b16 %v3842, %v3837
        %v5758 = vpack.c.b16 %v3843, %v3838
        %v5759 = vpack.c.b16 %v3844, %v3839
        %v5760 = vpack.c.b16 %v3845, %v3840
        %v5761 = vpack.c.b16 %v3846, %v3841
        %v5762 = vpack.c.b16 %v3852, %v3847
        %v5763 = vpack.c.b16 %v3853, %v3848
        %v5764 = vpack.c.b16 %v3854, %v3849
        %v5765 = vpack.c.b16 %v3855, %v3850
        %v5766 = vpack.c.b16 %v3856, %v3851
        %v5767 = vpack.c.b16 %v3862, %v3857
        %v5768 = vpack.c.b16 %v3863, %v3858
        %v5769 = vpack.c.b16 %v3864, %v3859
        %v5770 = vpack.c.b16 %v3865, %v3860
        %v5771 = vpack.c.b16 %v3866, %v3861
        %v5772 = vpack.c.b16 %v3872, %v3867
        %v5773 = vpack.c.b16 %v3873, %v3868
        %v5774 = vpack.c.b16 %v3874, %v3869
        %v5775 = vpack.c.b16 %v3875, %v3870
        %v5776 = vpack.c.b16 %v3876, %v3871
        %v5777 = vpack.c.b16 %v3882, %v3877
        %v5778 = vpack.c.b16 %v3883, %v3878
        %v5779 = vpack.c.b16 %v3884, %v3879
        %v5780 = vpack.c.b16 %v3885, %v3880
        %v5781 = vpack.c.b16 %v3886, %v3881
        %v5782 = vpack.c.b16 %v3892, %v3887
        %v5783 = vpack.c.b16 %v3893, %v3888
        %v5784 = vpack.c.b16 %v3894, %v3889
        %v5785 = vpack.c.b16 %v3895, %v3890
        %v5786 = vpack.c.b16 %v3896, %v3891
        %v5787 = vpack.c.b16 %v3902, %v3897
        %v5788 = vpack.c.b16 %v3903, %v3898
        %v5789 = vpack.c.b16 %v3904, %v3899
        %v5790 = vpack.c.b16 %v3905, %v3900
        %v5791 = vpack.c.b16 %v3906, %v3901
        %v5792 = vpack.c.b16 %v3912, %v3907
        %v5793 = vpack.c.b16 %v3913, %v3908
        %v5794 = vpack.c.b16 %v3914, %v3909
        %v5795 = vpack.c.b16 %v3915, %v3910
        %v5796 = vpack.c.b16 %v3916, %v3911
        %v5797 = vpack.c.b16 %v3922, %v3917
        %v5798 = vpack.c.b16 %v3923, %v3918
        %v5799 = vpack.c.b16 %v3924, %v3919
        %v5800 = vpack.c.b16 %v3925, %v3920
        %v5801 = vpack.c.b16 %v3926, %v3921
        %v5802 = vpack.c.b16 %v3932, %v3927
        %v5803 = vpack.c.b16 %v3933, %v3928
        %v5804 = vpack.c.b16 %v3934, %v3929
        %v5805 = vpack.c.b16 %v3935, %v3930
        %v5806 = vpack.c.b16 %v3936, %v3931
        %v5807 = vpack.c.b16 %v3942, %v3937
        %v5808 = vpack.c.b16 %v3943, %v3938
        %v5809 = vpack.c.b16 %v3944, %v3939
        %v5810 = vpack.c.b16 %v3945, %v3940
        %v5811 = vpack.c.b16 %v3946, %v3941
        %v5812 = vpack.c.b16 %v3952, %v3947
        %v5813 = vpack.c.b16 %v3953, %v3948
        %v5814 = vpack.c.b16 %v3954, %v3949
        %v5815 = vpack.c.b16 %v3955, %v3950
        %v5816 = vpack.c.b16 %v3956, %v3951
        %v5817 = vpack.c.b16 %v3962, %v3957
        %v5818 = vpack.c.b16 %v3963, %v3958
        %v5819 = vpack.c.b16 %v3964, %v3959
        %v5820 = vpack.c.b16 %v3965, %v3960
        %v5821 = vpack.c.b16 %v3966, %v3961
        %v5822 = vpack.c.b16 %v3972, %v3967
        %v5823 = vpack.c.b16 %v3973, %v3968
        %v5824 = vpack.c.b16 %v3974, %v3969
        %v5825 = vpack.c.b16 %v3975, %v3970
        %v5826 = vpack.c.b16 %v3976, %v3971
        %v5827 = vpack.c.b16 %v3982, %v3977
        %v5828 = vpack.c.b16 %v3983, %v3978
        %v5829 = vpack.c.b16 %v3984, %v3979
        %v5830 = vpack.c.b16 %v3985, %v3980
        %v5831 = vpack.c.b16 %v3986, %v3981
        %v5832 = vpack.c.b16 %v3992, %v3987
        %v5833 = vpack.c.b16 %v3993, %v3988
        %v5834 = vpack.c.b16 %v3994, %v3989
        %v5835 = vpack.c.b16 %v3995, %v3990
        %v5836 = vpack.c.b16 %v3996, %v3991
        %v5837 = vpack.c.b16 %v4002, %v3997
        %v5838 = vpack.c.b16 %v4003, %v3998
        %v5839 = vpack.c.b16 %v4004, %v3999
        %v5840 = vpack.c.b16 %v4005, %v4000
        %v5841 = vpack.c.b16 %v4006, %v4001
        %v5842 = vpack.c.b16 %v4012, %v4007
        %v5843 = vpack.c.b16 %v4013, %v4008
        %v5844 = vpack.c.b16 %v4014, %v4009
        %v5845 = vpack.c.b16 %v4015, %v4010
        %v5846 = vpack.c.b16 %v4016, %v4011
        %v5847 = vpack.c.b16 %v4022, %v4017
        %v5848 = vpack.c.b16 %v4023, %v4018
        %v5849 = vpack.c.b16 %v4024, %v4019
        %v5850 = vpack.c.b16 %v4025, %v4020
        %v5851 = vpack.c.b16 %v4026, %v4021
        %v5852 = vpack.c.b16 %v4032, %v4027
        %v5853 = vpack.c.b16 %v4033, %v4028
        %v5854 = vpack.c.b16 %v4034, %v4029
        %v5855 = vpack.c.b16 %v4035, %v4030
        %v5856 = vpack.c.b16 %v4036, %v4031
        %v5857 = vpack.c.b16 %v4042, %v4037
        %v5858 = vpack.c.b16 %v4043, %v4038
        %v5859 = vpack.c.b16 %v4044, %v4039
        %v5860 = vpack.c.b16 %v4045, %v4040
        %v5861 = vpack.c.b16 %v4046, %v4041
        %v5862 = vpack.c.b16 %v4052, %v4047
        %v5863 = vpack.c.b16 %v4053, %v4048
        %v5864 = vpack.c.b16 %v4054, %v4049
        %v5865 = vpack.c.b16 %v4055, %v4050
        %v5866 = vpack.c.b16 %v4056, %v4051
        %v5867 = vpack.c.b16 %v4062, %v4057
        %v5868 = vpack.c.b16 %v4063, %v4058
        %v5869 = vpack.c.b16 %v4064, %v4059
        %v5870 = vpack.c.b16 %v4065, %v4060
        %v5871 = vpack.c.b16 %v4066, %v4061
        %v5872 = vpack.c.b16 %v4072, %v4067
        %v5873 = vpack.c.b16 %v4073, %v4068
        %v5874 = vpack.c.b16 %v4074, %v4069
        %v5875 = vpack.c.b16 %v4075, %v4070
        %v5876 = vpack.c.b16 %v4076, %v4071
        %v5877 = vpack.c.b16 %v4082, %v4077
        %v5878 = vpack.c.b16 %v4083, %v4078
        %v5879 = vpack.c.b16 %v4084, %v4079
        %v5880 = vpack.c.b16 %v4085, %v4080
        %v5881 = vpack.c.b16 %v4086, %v4081
        %v5882 = vpack.c.b16 %v4092, %v4087
        %v5883 = vpack.c.b16 %v4093, %v4088
        %v5884 = vpack.c.b16 %v4094, %v4089
        %v5885 = vpack.c.b16 %v4095, %v4090
        %v5886 = vpack.c.b16 %v4096, %v4091
        %v5887 = vpack.c.b16 %v4102, %v4097
        %v5888 = vpack.c.b16 %v4103, %v4098
        %v5889 = vpack.c.b16 %v4104, %v4099
        %v5890 = vpack.c.b16 %v4105, %v4100
        %v5891 = vpack.c.b16 %v4106, %v4101
        %v5892 = vpack.c.b16 %v4112, %v4107
        %v5893 = vpack.c.b16 %v4113, %v4108
        %v5894 = vpack.c.b16 %v4114, %v4109
        %v5895 = vpack.c.b16 %v4115, %v4110
        %v5896 = vpack.c.b16 %v4116, %v4111
        %v5897 = vpack.c.b16 %v4122, %v4117
        %v5898 = vpack.c.b16 %v4123, %v4118
        %v5899 = vpack.c.b16 %v4124, %v4119
        %v5900 = vpack.c.b16 %v4125, %v4120
        %v5901 = vpack.c.b16 %v4126, %v4121
        %v5902 = vpack.c.b16 %v4132, %v4127
        %v5903 = vpack.c.b16 %v4133, %v4128
        %v5904 = vpack.c.b16 %v4134, %v4129
        %v5905 = vpack.c.b16 %v4135, %v4130
        %v5906 = vpack.c.b16 %v4136, %v4131
        %v5907 = vpack.c.b16 %v4142, %v4137
        %v5908 = vpack.c.b16 %v4143, %v4138
        %v5909 = vpack.c.b16 %v4144, %v4139
        %v5910 = vpack.c.b16 %v4145, %v4140
        %v5911 = vpack.c.b16 %v4146, %v4141
        %v5912 = vpack.c.b16 %v4152, %v4147
        %v5913 = vpack.c.b16 %v4153, %v4148
        %v5914 = vpack.c.b16 %v4154, %v4149
        %v5915 = vpack.c.b16 %v4155, %v4150
        %v5916 = vpack.c.b16 %v4156, %v4151
        %v5917 = vpack.c.b16 %v4162, %v4157
        %v5918 = vpack.c.b16 %v4163, %v4158
        %v5919 = vpack.c.b16 %v4164, %v4159
        %v5920 = vpack.c.b16 %v4165, %v4160
        %v5921 = vpack.c.b16 %v4166, %v4161
        %v5922 = vpack.c.b16 %v4172, %v4167
        %v5923 = vpack.c.b16 %v4173, %v4168
        %v5924 = vpack.c.b16 %v4174, %v4169
        %v5925 = vpack.c.b16 %v4175, %v4170
        %v5926 = vpack.c.b16 %v4176, %v4171
        %v5927 = vpack.c.b16 %v4182, %v4177
        %v5928 = vpack.c.b16 %v4183, %v4178
        %v5929 = vpack.c.b16 %v4184, %v4179
        %v5930 = vpack.c.b16 %v4185, %v4180
        %v5931 = vpack.c.b16 %v4186, %v4181
        %v5932 = vpack.c.b16 %v4192, %v4187
        %v5933 = vpack.c.b16 %v4193, %v4188
        %v5934 = vpack.c.b16 %v4194, %v4189
        %v5935 = vpack.c.b16 %v4195, %v4190
        %v5936 = vpack.c.b16 %v4196, %v4191
        %v5937 = vpack.c.b16 %v4202, %v4197
        %v5938 = vpack.c.b16 %v4203, %v4198
        %v5939 = vpack.c.b16 %v4204, %v4199
        %v5940 = vpack.c.b16 %v4205, %v4200
        %v5941 = vpack.c.b16 %v4206, %v4201
        %v5942 = vpack.c.b16 %v4212, %v4207
        %v5943 = vpack.c.b16 %v4213, %v4208
        %v5944 = vpack.c.b16 %v4214, %v4209
        %v5945 = vpack.c.b16 %v4215, %v4210
        %v5946 = vpack.c.b16 %v4216, %v4211
        %v5947 = vpack.c.b16 %v4222, %v4217
        %v5948 = vpack.c.b16 %v4223, %v4218
        %v5949 = vpack.c.b16 %v4224, %v4219
        %v5950 = vpack.c.b16 %v4225, %v4220
        %v5951 = vpack.c.b16 %v4226, %v4221
        %v5952 = vpack.c.b16 %v4232, %v4227
        %v5953 = vpack.c.b16 %v4233, %v4228
        %v5954 = vpack.c.b16 %v4234, %v4229
        %v5955 = vpack.c.b16 %v4235, %v4230
        %v5956 = vpack.c.b16 %v4236, %v4231
        %v5957 = vpack.c.b16 %v4242, %v4237
        %v5958 = vpack.c.b16 %v4243, %v4238
        %v5959 = vpack.c.b16 %v4244, %v4239
        %v5960 = vpack.c.b16 %v4245, %v4240
        %v5961 = vpack.c.b16 %v4246, %v4241
        %v5962 = vpack.c.b16 %v4252, %v4247
        %v5963 = vpack.c.b16 %v4253, %v4248
        %v5964 = vpack.c.b16 %v4254, %v4249
        %v5965 = vpack.c.b16 %v4255, %v4250
        %v5966 = vpack.c.b16 %v4256, %v4251
        %v5967 = vpack.c.b16 %v4262, %v4257
        %v5968 = vpack.c.b16 %v4263, %v4258
        %v5969 = vpack.c.b16 %v4264, %v4259
        %v5970 = vpack.c.b16 %v4265, %v4260
        %v5971 = vpack.c.b16 %v4266, %v4261
        %v5972 = vpack.c.b16 %v4272, %v4267
        %v5973 = vpack.c.b16 %v4273, %v4268
        %v5974 = vpack.c.b16 %v4274, %v4269
        %v5975 = vpack.c.b16 %v4275, %v4270
        %v5976 = vpack.c.b16 %v4276, %v4271
        %v5977 = vpack.c.b16 %v4282, %v4277
        %v5978 = vpack.c.b16 %v4283, %v4278
        %v5979 = vpack.c.b16 %v4284, %v4279
        %v5980 = vpack.c.b16 %v4285, %v4280
        %v5981 = vpack.c.b16 %v4286, %v4281
        %v5982 = vpack.c.b16 %v4292, %v4287
        %v5983 = vpack.c.b16 %v4293, %v4288
        %v5984 = vpack.c.b16 %v4294, %v4289
        %v5985 = vpack.c.b16 %v4295, %v4290
        %v5986 = vpack.c.b16 %v4296, %v4291
        %v5987 = vpack.c.b16 %v4302, %v4297
        %v5988 = vpack.c.b16 %v4303, %v4298
        %v5989 = vpack.c.b16 %v4304, %v4299
        %v5990 = vpack.c.b16 %v4305, %v4300
        %v5991 = vpack.c.b16 %v4306, %v4301
        %v5992 = vpack.c.b16 %v4312, %v4307
        %v5993 = vpack.c.b16 %v4313, %v4308
        %v5994 = vpack.c.b16 %v4314, %v4309
        %v5995 = vpack.c.b16 %v4315, %v4310
        %v5996 = vpack.c.b16 %v4316, %v4311
        %v5997 = vpack.c.b16 %v4322, %v4317
        %v5998 = vpack.c.b16 %v4323, %v4318
        %v5999 = vpack.c.b16 %v4324, %v4319
        %v6000 = vpack.c.b16 %v4325, %v4320
        %v6001 = vpack.c.b16 %v4326, %v4321
        %v6002 = vpack.c.b16 %v4332, %v4327
        %v6003 = vpack.c.b16 %v4333, %v4328
        %v6004 = vpack.c.b16 %v4334, %v4329
        %v6005 = vpack.c.b16 %v4335, %v4330
        %v6006 = vpack.c.b16 %v4336, %v4331
        %v6007 = vpack.c.b16 %v4342, %v4337
        %v6008 = vpack.c.b16 %v4343, %v4338
        %v6009 = vpack.c.b16 %v4344, %v4339
        %v6010 = vpack.c.b16 %v4345, %v4340
        %v6011 = vpack.c.b16 %v4346, %v4341
        %v6012 = vpack.c.b16 %v4352, %v4347
        %v6013 = vpack.c.b16 %v4353, %v4348
        %v6014 = vpack.c.b16 %v4354, %v4349
        %v6015 = vpack.c.b16 %v4355, %v4350
        %v6016 = vpack.c.b16 %v4356, %v4351
        %v6017 = vpack.c.b16 %v4362, %v4357
        %v6018 = vpack.c.b16 %v4363, %v4358
        %v6019 = vpack.c.b16 %v4364, %v4359
        %v6020 = vpack.c.b16 %v4365, %v4360
        %v6021 = vpack.c.b16 %v4366, %v4361
        %v6022 = vpack.c.b16 %v4372, %v4367
        %v6023 = vpack.c.b16 %v4373, %v4368
        %v6024 = vpack.c.b16 %v4374, %v4369
        %v6025 = vpack.c.b16 %v4375, %v4370
        %v6026 = vpack.c.b16 %v4376, %v4371
        %v6027 = vpack.c.b16 %v4382, %v4377
        %v6028 = vpack.c.b16 %v4383, %v4378
        %v6029 = vpack.c.b16 %v4384, %v4379
        %v6030 = vpack.c.b16 %v4385, %v4380
        %v6031 = vpack.c.b16 %v4386, %v4381
        %v6032 = vpack.c.b16 %v4392, %v4387
        %v6033 = vpack.c.b16 %v4393, %v4388
        %v6034 = vpack.c.b16 %v4394, %v4389
        %v6035 = vpack.c.b16 %v4395, %v4390
        %v6036 = vpack.c.b16 %v4396, %v4391
        %v6037 = vpack.c.b16 %v4402, %v4397
        %v6038 = vpack.c.b16 %v4403, %v4398
        %v6039 = vpack.c.b16 %v4404, %v4399
        %v6040 = vpack.c.b16 %v4405, %v4400
        %v6041 = vpack.c.b16 %v4406, %v4401
        %v6042 = vpack.c.b16 %v4412, %v4407
        %v6043 = vpack.c.b16 %v4413, %v4408
        %v6044 = vpack.c.b16 %v4414, %v4409
        %v6045 = vpack.c.b16 %v4415, %v4410
        %v6046 = vpack.c.b16 %v4416, %v4411
        %v6047 = vpack.c.b16 %v4422, %v4417
        %v6048 = vpack.c.b16 %v4423, %v4418
        %v6049 = vpack.c.b16 %v4424, %v4419
        %v6050 = vpack.c.b16 %v4425, %v4420
        %v6051 = vpack.c.b16 %v4426, %v4421
        %v6052 = vpack.c.b16 %v4432, %v4427
        %v6053 = vpack.c.b16 %v4433, %v4428
        %v6054 = vpack.c.b16 %v4434, %v4429
        %v6055 = vpack.c.b16 %v4435, %v4430
        %v6056 = vpack.c.b16 %v4436, %v4431
        %v6057 = vpack.c.b16 %v4442, %v4437
        %v6058 = vpack.c.b16 %v4443, %v4438
        %v6059 = vpack.c.b16 %v4444, %v4439
        %v6060 = vpack.c.b16 %v4445, %v4440
        %v6061 = vpack.c.b16 %v4446, %v4441
        %v6062 = vpack.c.b16 %v4452, %v4447
        %v6063 = vpack.c.b16 %v4453, %v4448
        %v6064 = vpack.c.b16 %v4454, %v4449
        %v6065 = vpack.c.b16 %v4455, %v4450
        %v6066 = vpack.c.b16 %v4456, %v4451
        %v6067 = vpack.c.b16 %v4462, %v4457
        %v6068 = vpack.c.b16 %v4463, %v4458
        %v6069 = vpack.c.b16 %v4464, %v4459
        %v6070 = vpack.c.b16 %v4465, %v4460
        %v6071 = vpack.c.b16 %v4466, %v4461
        %v6072 = vpack.c.b16 %v4472, %v4467
        %v6073 = vpack.c.b16 %v4473, %v4468
        %v6074 = vpack.c.b16 %v4474, %v4469
        %v6075 = vpack.c.b16 %v4475, %v4470
        %v6076 = vpack.c.b16 %v4476, %v4471
        %v6077 = vpack.c.b16 %v4482, %v4477
        %v6078 = vpack.c.b16 %v4483, %v4478
        %v6079 = vpack.c.b16 %v4484, %v4479
        %v6080 = vpack.c.b16 %v4485, %v4480
        %v6081 = vpack.c.b16 %v4486, %v4481
        %v6082 = vpack.c.b16 %v4492, %v4487
        %v6083 = vpack.c.b16 %v4493, %v4488
        %v6084 = vpack.c.b16 %v4494, %v4489
        %v6085 = vpack.c.b16 %v4495, %v4490
        %v6086 = vpack.c.b16 %v4496, %v4491
        %v6087 = vpack.c.b16 %v4502, %v4497
        %v6088 = vpack.c.b16 %v4503, %v4498
        %v6089 = vpack.c.b16 %v4504, %v4499
        %v6090 = vpack.c.b16 %v4505, %v4500
        %v6091 = vpack.c.b16 %v4506, %v4501
        %v6092 = vpack.c.b16 %v4512, %v4507
        %v6093 = vpack.c.b16 %v4513, %v4508
        %v6094 = vpack.c.b16 %v4514, %v4509
        %v6095 = vpack.c.b16 %v4515, %v4510
        %v6096 = vpack.c.b16 %v4516, %v4511
        %v6097 = vpack.c.b16 %v4522, %v4517
        %v6098 = vpack.c.b16 %v4523, %v4518
        %v6099 = vpack.c.b16 %v4524, %v4519
        %v6100 = vpack.c.b16 %v4525, %v4520
        %v6101 = vpack.c.b16 %v4526, %v4521
        %v6102 = vpack.c.b16 %v4532, %v4527
        %v6103 = vpack.c.b16 %v4533, %v4528
        %v6104 = vpack.c.b16 %v4534, %v4529
        %v6105 = vpack.c.b16 %v4535, %v4530
        %v6106 = vpack.c.b16 %v4536, %v4531
        %v6107 = vpack.c.b16 %v4542, %v4537
        %v6108 = vpack.c.b16 %v4543, %v4538
        %v6109 = vpack.c.b16 %v4544, %v4539
        %v6110 = vpack.c.b16 %v4545, %v4540
        %v6111 = vpack.c.b16 %v4546, %v4541
        %v6112 = vpack.c.b16 %v4552, %v4547
        %v6113 = vpack.c.b16 %v4553, %v4548
        %v6114 = vpack.c.b16 %v4554, %v4549
        %v6115 = vpack.c.b16 %v4555, %v4550
        %v6116 = vpack.c.b16 %v4556, %v4551
        %v6117 = vpack.c.b16 %v4562, %v4557
        %v6118 = vpack.c.b16 %v4563, %v4558
        %v6119 = vpack.c.b16 %v4564, %v4559
        %v6120 = vpack.c.b16 %v4565, %v4560
        %v6121 = vpack.c.b16 %v4566, %v4561
        %v6122 = vpack.c.b16 %v4572, %v4567
        %v6123 = vpack.c.b16 %v4573, %v4568
        %v6124 = vpack.c.b16 %v4574, %v4569
        %v6125 = vpack.c.b16 %v4575, %v4570
        %v6126 = vpack.c.b16 %v4576, %v4571
        %v6127 = vpack.c.b16 %v4582, %v4577
        %v6128 = vpack.c.b16 %v4583, %v4578
        %v6129 = vpack.c.b16 %v4584, %v4579
        %v6130 = vpack.c.b16 %v4585, %v4580
        %v6131 = vpack.c.b16 %v4586, %v4581
        %v6132 = vpack.c.b16 %v4592, %v4587
        %v6133 = vpack.c.b16 %v4593, %v4588
        %v6134 = vpack.c.b16 %v4594, %v4589
        %v6135 = vpack.c.b16 %v4595, %v4590
        %v6136 = vpack.c.b16 %v4596, %v4591
        %v6137 = vpack.c.b16 %v4602, %v4597
        %v6138 = vpack.c.b16 %v4603, %v4598
        %v6139 = vpack.c.b16 %v4604, %v4599
        %v6140 = vpack.c.b16 %v4605, %v4600
        %v6141 = vpack.c.b16 %v4606, %v4601
        %v6142 = vpack.c.b16 %v4612, %v4607
        %v6143 = vpack.c.b16 %v4613, %v4608
        %v6144 = vpack.c.b16 %v4614, %v4609
        %v6145 = vpack.c.b16 %v4615, %v4610
        %v6146 = vpack.c.b16 %v4616, %v4611
        %v6147 = vpack.c.b16 %v4622, %v4617
        %v6148 = vpack.c.b16 %v4623, %v4618
        %v6149 = vpack.c.b16 %v4624, %v4619
        %v6150 = vpack.c.b16 %v4625, %v4620
        %v6151 = vpack.c.b16 %v4626, %v4621
        %v6152 = vpack.c.b16 %v4632, %v4627
        %v6153 = vpack.c.b16 %v4633, %v4628
        %v6154 = vpack.c.b16 %v4634, %v4629
        %v6155 = vpack.c.b16 %v4635, %v4630
        %v6156 = vpack.c.b16 %v4636, %v4631
        %v6157 = vpack.c.b16 %v4642, %v4637
        %v6158 = vpack.c.b16 %v4643, %v4638
        %v6159 = vpack.c.b16 %v4644, %v4639
        %v6160 = vpack.c.b16 %v4645, %v4640
        %v6161 = vpack.c.b16 %v4646, %v4641
        %v6162 = vpack.c.b16 %v4652, %v4647
        %v6163 = vpack.c.b16 %v4653, %v4648
        %v6164 = vpack.c.b16 %v4654, %v4649
        %v6165 = vpack.c.b16 %v4655, %v4650
        %v6166 = vpack.c.b16 %v4656, %v4651
        %v6167 = vpack.c.b16 %v4662, %v4657
        %v6168 = vpack.c.b16 %v4663, %v4658
        %v6169 = vpack.c.b16 %v4664, %v4659
        %v6170 = vpack.c.b16 %v4665, %v4660
        %v6171 = vpack.c.b16 %v4666, %v4661
        %v6172 = vpack.c.b16 %v4672, %v4667
        %v6173 = vpack.c.b16 %v4673, %v4668
        %v6174 = vpack.c.b16 %v4674, %v4669
        %v6175 = vpack.c.b16 %v4675, %v4670
        %v6176 = vpack.c.b16 %v4676, %v4671
        %v6177 = vpack.c.b16 %v4682, %v4677
        %v6178 = vpack.c.b16 %v4683, %v4678
        %v6179 = vpack.c.b16 %v4684, %v4679
        %v6180 = vpack.c.b16 %v4685, %v4680
        %v6181 = vpack.c.b16 %v4686, %v4681
        %v6182 = vpack.c.b16 %v4692, %v4687
        %v6183 = vpack.c.b16 %v4693, %v4688
        %v6184 = vpack.c.b16 %v4694, %v4689
        %v6185 = vpack.c.b16 %v4695, %v4690
        %v6186 = vpack.c.b16 %v4696, %v4691
        %v6187 = vpack.c.b16 %v4702, %v4697
        %v6188 = vpack.c.b16 %v4703, %v4698
        %v6189 = vpack.c.b16 %v4704, %v4699
        %v6190 = vpack.c.b16 %v4705, %v4700
        %v6191 = vpack.c.b16 %v4706, %v4701
        %v6192 = vpack.c.b16 %v4712, %v4707
        %v6193 = vpack.c.b16 %v4713, %v4708
        %v6194 = vpack.c.b16 %v4714, %v4709
        %v6195 = vpack.c.b16 %v4715, %v4710
        %v6196 = vpack.c.b16 %v4716, %v4711
        %v6197 = vpack.c.b16 %v4722, %v4717
        %v6198 = vpack.c.b16 %v4723, %v4718
        %v6199 = vpack.c.b16 %v4724, %v4719
        %v6200 = vpack.c.b16 %v4725, %v4720
        %v6201 = vpack.c.b16 %v4726, %v4721
        %v6202 = vpack.c.b16 %v4732, %v4727
        %v6203 = vpack.c.b16 %v4733, %v4728
        %v6204 = vpack.c.b16 %v4734, %v4729
        %v6205 = vpack.c.b16 %v4735, %v4730
        %v6206 = vpack.c.b16 %v4736, %v4731
        %v6207 = vpack.c.b16 %v4742, %v4737
        %v6208 = vpack.c.b16 %v4743, %v4738
        %v6209 = vpack.c.b16 %v4744, %v4739
        %v6210 = vpack.c.b16 %v4745, %v4740
        %v6211 = vpack.c.b16 %v4746, %v4741
        %v6212 = vpack.c.b16 %v4752, %v4747
        %v6213 = vpack.c.b16 %v4753, %v4748
        %v6214 = vpack.c.b16 %v4754, %v4749
        %v6215 = vpack.c.b16 %v4755, %v4750
        %v6216 = vpack.c.b16 %v4756, %v4751
        %v6217 = vpack.c.b16 %v4762, %v4757
        %v6218 = vpack.c.b16 %v4763, %v4758
        %v6219 = vpack.c.b16 %v4764, %v4759
        %v6220 = vpack.c.b16 %v4765, %v4760
        %v6221 = vpack.c.b16 %v4766, %v4761
        %v6222 = vpack.c.b16 %v4772, %v4767
        %v6223 = vpack.c.b16 %v4773, %v4768
        %v6224 = vpack.c.b16 %v4774, %v4769
        %v6225 = vpack.c.b16 %v4775, %v4770
        %v6226 = vpack.c.b16 %v4776, %v4771
        %v6227 = vpack.c.b16 %v4782, %v4777
        %v6228 = vpack.c.b16 %v4783, %v4778
        %v6229 = vpack.c.b16 %v4784, %v4779
        %v6230 = vpack.c.b16 %v4785, %v4780
        %v6231 = vpack.c.b16 %v4786, %v4781
        %v6232 = vpack.c.b16 %v4792, %v4787
        %v6233 = vpack.c.b16 %v4793, %v4788
        %v6234 = vpack.c.b16 %v4794, %v4789
        %v6235 = vpack.c.b16 %v4795, %v4790
        %v6236 = vpack.c.b16 %v4796, %v4791
        %v6237 = vpack.c.b16 %v4802, %v4797
        %v6238 = vpack.c.b16 %v4803, %v4798
        %v6239 = vpack.c.b16 %v4804, %v4799
        %v6240 = vpack.c.b16 %v4805, %v4800
        %v6241 = vpack.c.b16 %v4806, %v4801
        %v6242 = vpack.c.b16 %v4812, %v4807
        %v6243 = vpack.c.b16 %v4813, %v4808
        %v6244 = vpack.c.b16 %v4814, %v4809
        %v6245 = vpack.c.b16 %v4815, %v4810
        %v6246 = vpack.c.b16 %v4816, %v4811
        %v6247 = vpack.c.b16 %v4822, %v4817
        %v6248 = vpack.c.b16 %v4823, %v4818
        %v6249 = vpack.c.b16 %v4824, %v4819
        %v6250 = vpack.c.b16 %v4825, %v4820
        %v6251 = vpack.c.b16 %v4826, %v4821
        %v6252 = vpack.c.b16 %v4832, %v4827
        %v6253 = vpack.c.b16 %v4833, %v4828
        %v6254 = vpack.c.b16 %v4834, %v4829
        %v6255 = vpack.c.b16 %v4835, %v4830
        %v6256 = vpack.c.b16 %v4836, %v4831
        %v6257 = vpack.c.b16 %v4842, %v4837
        %v6258 = vpack.c.b16 %v4843, %v4838
        %v6259 = vpack.c.b16 %v4844, %v4839
        %v6260 = vpack.c.b16 %v4845, %v4840
        %v6261 = vpack.c.b16 %v4846, %v4841
        %v6262 = vpack.c.b16 %v4852, %v4847
        %v6263 = vpack.c.b16 %v4853, %v4848
        %v6264 = vpack.c.b16 %v4854, %v4849
        %v6265 = vpack.c.b16 %v4855, %v4850
        %v6266 = vpack.c.b16 %v4856, %v4851
        %v6267 = vpack.c.b16 %v4862, %v4857
        %v6268 = vpack.c.b16 %v4863, %v4858
        %v6269 = vpack.c.b16 %v4864, %v4859
        %v6270 = vpack.c.b16 %v4865, %v4860
        %v6271 = vpack.c.b16 %v4866, %v4861
        %v6272 = vpack.c.b16 %v4872, %v4867
        %v6273 = vpack.c.b16 %v4873, %v4868
        %v6274 = vpack.c.b16 %v4874, %v4869
        %v6275 = vpack.c.b16 %v4875, %v4870
        %v6276 = vpack.c.b16 %v4876, %v4871
        %v6277 = vpack.c.b16 %v4882, %v4877
        %v6278 = vpack.c.b16 %v4883, %v4878
        %v6279 = vpack.c.b16 %v4884, %v4879
        %v6280 = vpack.c.b16 %v4885, %v4880
        %v6281 = vpack.c.b16 %v4886, %v4881
        %v6282 = vpack.c.b16 %v4892, %v4887
        %v6283 = vpack.c.b16 %v4893, %v4888
        %v6284 = vpack.c.b16 %v4894, %v4889
        %v6285 = vpack.c.b16 %v4895, %v4890
        %v6286 = vpack.c.b16 %v4896, %v4891
        %v6287 = vpack.c.b16 %v4902, %v4897
        %v6288 = vpack.c.b16 %v4903, %v4898
        %v6289 = vpack.c.b16 %v4904, %v4899
        %v6290 = vpack.c.b16 %v4905, %v4900
        %v6291 = vpack.c.b16 %v4906, %v4901
        %v6292 = vpack.c.b16 %v4912, %v4907
        %v6293 = vpack.c.b16 %v4913, %v4908
        %v6294 = vpack.c.b16 %v4914, %v4909
        %v6295 = vpack.c.b16 %v4915, %v4910
        %v6296 = vpack.c.b16 %v4916, %v4911
        %v6297 = vpack.c.b16 %v4922, %v4917
        %v6298 = vpack.c.b16 %v4923, %v4918
        %v6299 = vpack.c.b16 %v4924, %v4919
        %v6300 = vpack.c.b16 %v4925, %v4920
        %v6301 = vpack.c.b16 %v4926, %v4921
        %v6302 = vpack.c.b16 %v4932, %v4927
        %v6303 = vpack.c.b16 %v4933, %v4928
        %v6304 = vpack.c.b16 %v4934, %v4929
        %v6305 = vpack.c.b16 %v4935, %v4930
        %v6306 = vpack.c.b16 %v4936, %v4931
        %v6307 = vpack.c.b16 %v4942, %v4937
        %v6308 = vpack.c.b16 %v4943, %v4938
        %v6309 = vpack.c.b16 %v4944, %v4939
        %v6310 = vpack.c.b16 %v4945, %v4940
        %v6311 = vpack.c.b16 %v4946, %v4941
        %v6312 = vpack.c.b16 %v4952, %v4947
        %v6313 = vpack.c.b16 %v4953, %v4948
        %v6314 = vpack.c.b16 %v4954, %v4949
        %v6315 = vpack.c.b16 %v4955, %v4950
        %v6316 = vpack.c.b16 %v4956, %v4951
        %v6317 = vpack.c.b16 %v4962, %v4957
        %v6318 = vpack.c.b16 %v4963, %v4958
        %v6319 = vpack.c.b16 %v4964, %v4959
        %v6320 = vpack.c.b16 %v4965, %v4960
        %v6321 = vpack.c.b16 %v4966, %v4961
        %v6322 = vpack.c.b16 %v4972, %v4967
        %v6323 = vpack.c.b16 %v4973, %v4968
        %v6324 = vpack.c.b16 %v4974, %v4969
        %v6325 = vpack.c.b16 %v4975, %v4970
        %v6326 = vpack.c.b16 %v4976, %v4971
        %v6327 = vpack.c.b16 %v4982, %v4977
        %v6328 = vpack.c.b16 %v4983, %v4978
        %v6329 = vpack.c.b16 %v4984, %v4979
        %v6330 = vpack.c.b16 %v4985, %v4980
        %v6331 = vpack.c.b16 %v4986, %v4981
        %v6332 = vpack.c.b16 %v4992, %v4987
        %v6333 = vpack.c.b16 %v4993, %v4988
        %v6334 = vpack.c.b16 %v4994, %v4989
        %v6335 = vpack.c.b16 %v4995, %v4990
        %v6336 = vpack.c.b16 %v4996, %v4991
        %v6337 = vpack.c.b16 %v5002, %v4997
        %v6338 = vpack.c.b16 %v5003, %v4998
        %v6339 = vpack.c.b16 %v5004, %v4999
        %v6340 = vpack.c.b16 %v5005, %v5000
        %v6341 = vpack.c.b16 %v5006, %v5001
        %v6342 = vpack.c.b16 %v5012, %v5007
        %v6343 = vpack.c.b16 %v5013, %v5008
        %v6344 = vpack.c.b16 %v5014, %v5009
        %v6345 = vpack.c.b16 %v5015, %v5010
        %v6346 = vpack.c.b16 %v5016, %v5011
        %v6347 = vpack.c.b16 %v5022, %v5017
        %v6348 = vpack.c.b16 %v5023, %v5018
        %v6349 = vpack.c.b16 %v5024, %v5019
        %v6350 = vpack.c.b16 %v5025, %v5020
        %v6351 = vpack.c.b16 %v5026, %v5021
        %v6352 = vpack.c.b16 %v5032, %v5027
        %v6353 = vpack.c.b16 %v5033, %v5028
        %v6354 = vpack.c.b16 %v5034, %v5029
        %v6355 = vpack.c.b16 %v5035, %v5030
        %v6356 = vpack.c.b16 %v5036, %v5031
        %v6357 = vpack.c.b16 %v5042, %v5037
        %v6358 = vpack.c.b16 %v5043, %v5038
        %v6359 = vpack.c.b16 %v5044, %v5039
        %v6360 = vpack.c.b16 %v5045, %v5040
        %v6361 = vpack.c.b16 %v5046, %v5041
        %v6362 = vpack.c.b16 %v5052, %v5047
        %v6363 = vpack.c.b16 %v5053, %v5048
        %v6364 = vpack.c.b16 %v5054, %v5049
        %v6365 = vpack.c.b16 %v5055, %v5050
        %v6366 = vpack.c.b16 %v5056, %v5051
        %v6367 = vpack.c.b16 %v5062, %v5057
        %v6368 = vpack.c.b16 %v5063, %v5058
        %v6369 = vpack.c.b16 %v5064, %v5059
        %v6370 = vpack.c.b16 %v5065, %v5060
        %v6371 = vpack.c.b16 %v5066, %v5061
        %v6372 = vpack.c.b16 %v5072, %v5067
        %v6373 = vpack.c.b16 %v5073, %v5068
        %v6374 = vpack.c.b16 %v5074, %v5069
        %v6375 = vpack.c.b16 %v5075, %v5070
        %v6376 = vpack.c.b16 %v5076, %v5071
        %v6377 = vpack.c.b16 %v5082, %v5077
        %v6378 = vpack.c.b16 %v5083, %v5078
        %v6379 = vpack.c.b16 %v5084, %v5079
        %v6380 = vpack.c.b16 %v5085, %v5080
        %v6381 = vpack.c.b16 %v5086, %v5081
        %v6382 = vpack.c.b16 %v5092, %v5087
        %v6383 = vpack.c.b16 %v5093, %v5088
        %v6384 = vpack.c.b16 %v5094, %v5089
        %v6385 = vpack.c.b16 %v5095, %v5090
        %v6386 = vpack.c.b16 %v5096, %v5091
        %v6387 = vpack.c.b16 %v5102, %v5097
        %v6388 = vpack.c.b16 %v5103, %v5098
        %v6389 = vpack.c.b16 %v5104, %v5099
        %v6390 = vpack.c.b16 %v5105, %v5100
        %v6391 = vpack.c.b16 %v5106, %v5101
        %v6392 = vpack.c.b16 %v5112, %v5107
        %v6393 = vpack.c.b16 %v5113, %v5108
        %v6394 = vpack.c.b16 %v5114, %v5109
        %v6395 = vpack.c.b16 %v5115, %v5110
        %v6396 = vpack.c.b16 %v5116, %v5111
        %v6397 = vpack.c.b16 %v5122, %v5117
        %v6398 = vpack.c.b16 %v5123, %v5118
        %v6399 = vpack.c.b16 %v5124, %v5119
        %v6400 = vpack.c.b16 %v5125, %v5120
        %v6401 = vpack.c.b16 %v5126, %v5121
        %v6402 = vpack.c.b16 %v5132, %v5127
        %v6403 = vpack.c.b16 %v5133, %v5128
        %v6404 = vpack.c.b16 %v5134, %v5129
        %v6405 = vpack.c.b16 %v5135, %v5130
        %v6406 = vpack.c.b16 %v5136, %v5131
        %v6407 = vpack.c.b16 %v5142, %v5137
        %v6408 = vpack.c.b16 %v5143, %v5138
        %v6409 = vpack.c.b16 %v5144, %v5139
        %v6410 = vpack.c.b16 %v5145, %v5140
        %v6411 = vpack.c.b16 %v5146, %v5141
        %v6412 = vpack.c.b16 %v5152, %v5147
        %v6413 = vpack.c.b16 %v5153, %v5148
        %v6414 = vpack.c.b16 %v5154, %v5149
        %v6415 = vpack.c.b16 %v5155, %v5150
        %v6416 = vpack.c.b16 %v5156, %v5151
        %v6417 = vpack.c.b16 %v5162, %v5157
        %v6418 = vpack.c.b16 %v5163, %v5158
        %v6419 = vpack.c.b16 %v5164, %v5159
        %v6420 = vpack.c.b16 %v5165, %v5160
        %v6421 = vpack.c.b16 %v5166, %v5161
        %v6422 = vpack.c.b16 %v5172, %v5167
        %v6423 = vpack.c.b16 %v5173, %v5168
        %v6424 = vpack.c.b16 %v5174, %v5169
        %v6425 = vpack.c.b16 %v5175, %v5170
        %v6426 = vpack.c.b16 %v5176, %v5171
        %v6427 = vpack.c.b16 %v5182, %v5177
        %v6428 = vpack.c.b16 %v5183, %v5178
        %v6429 = vpack.c.b16 %v5184, %v5179
        %v6430 = vpack.c.b16 %v5185, %v5180
        %v6431 = vpack.c.b16 %v5186, %v5181
        %v6432 = vpack.c.b16 %v5192, %v5187
        %v6433 = vpack.c.b16 %v5193, %v5188
        %v6434 = vpack.c.b16 %v5194, %v5189
        %v6435 = vpack.c.b16 %v5195, %v5190
        %v6436 = vpack.c.b16 %v5196, %v5191
        %v6437 = vpack.c.b16 %v5202, %v5197
        %v6438 = vpack.c.b16 %v5203, %v5198
        %v6439 = vpack.c.b16 %v5204, %v5199
        %v6440 = vpack.c.b16 %v5205, %v5200
        %v6441 = vpack.c.b16 %v5206, %v5201
        %v6442 = vpack.c.b16 %v5212, %v5207
        %v6443 = vpack.c.b16 %v5213, %v5208
        %v6444 = vpack.c.b16 %v5214, %v5209
        %v6445 = vpack.c.b16 %v5215, %v5210
        %v6446 = vpack.c.b16 %v5216, %v5211
        %v6447 = vpack.c.b16 %v5222, %v5217
        %v6448 = vpack.c.b16 %v5223, %v5218
        %v6449 = vpack.c.b16 %v5224, %v5219
        %v6450 = vpack.c.b16 %v5225, %v5220
        %v6451 = vpack.c.b16 %v5226, %v5221
        %v6452 = vpack.c.b16 %v5232, %v5227
        %v6453 = vpack.c.b16 %v5233, %v5228
        %v6454 = vpack.c.b16 %v5234, %v5229
        %v6455 = vpack.c.b16 %v5235, %v5230
        %v6456 = vpack.c.b16 %v5236, %v5231
        %v6457 = vpack.c.b16 %v5242, %v5237
        %v6458 = vpack.c.b16 %v5243, %v5238
        %v6459 = vpack.c.b16 %v5244, %v5239
        %v6460 = vpack.c.b16 %v5245, %v5240
        %v6461 = vpack.c.b16 %v5246, %v5241
        %v6462 = vpack.c.b16 %v5252, %v5247
        %v6463 = vpack.c.b16 %v5253, %v5248
        %v6464 = vpack.c.b16 %v5254, %v5249
        %v6465 = vpack.c.b16 %v5255, %v5250
        %v6466 = vpack.c.b16 %v5256, %v5251
        %v6467 = vpack.c.b16 %v5262, %v5257
        %v6468 = vpack.c.b16 %v5263, %v5258
        %v6469 = vpack.c.b16 %v5264, %v5259
        %v6470 = vpack.c.b16 %v5265, %v5260
        %v6471 = vpack.c.b16 %v5266, %v5261
        %v6472 = vpack.c.b16 %v5272, %v5267
        %v6473 = vpack.c.b16 %v5273, %v5268
        %v6474 = vpack.c.b16 %v5274, %v5269
        %v6475 = vpack.c.b16 %v5275, %v5270
        %v6476 = vpack.c.b16 %v5276, %v5271
        %v6477 = vpack.c.b16 %v5282, %v5277
        %v6478 = vpack.c.b16 %v5283, %v5278
        %v6479 = vpack.c.b16 %v5284, %v5279
        %v6480 = vpack.c.b16 %v5285, %v5280
        %v6481 = vpack.c.b16 %v5286, %v5281
        %v6482 = vpack.c.b16 %v5292, %v5287
        %v6483 = vpack.c.b16 %v5293, %v5288
        %v6484 = vpack.c.b16 %v5294, %v5289
        %v6485 = vpack.c.b16 %v5295, %v5290
        %v6486 = vpack.c.b16 %v5296, %v5291
        %v6487 = vpack.c.b16 %v5302, %v5297
        %v6488 = vpack.c.b16 %v5303, %v5298
        %v6489 = vpack.c.b16 %v5304, %v5299
        %v6490 = vpack.c.b16 %v5305, %v5300
        %v6491 = vpack.c.b16 %v5306, %v5301
        %v6492 = vpack.c.b16 %v5312, %v5307
        %v6493 = vpack.c.b16 %v5313, %v5308
        %v6494 = vpack.c.b16 %v5314, %v5309
        %v6495 = vpack.c.b16 %v5315, %v5310
        %v6496 = vpack.c.b16 %v5316, %v5311
        %v6497 = vpack.c.b16 %v5322, %v5317
        %v6498 = vpack.c.b16 %v5323, %v5318
        %v6499 = vpack.c.b16 %v5324, %v5319
        %v6500 = vpack.c.b16 %v5325, %v5320
        %v6501 = vpack.c.b16 %v5326, %v5321
        %v6502 = vpack.c.b16 %v5332, %v5327
        %v6503 = vpack.c.b16 %v5333, %v5328
        %v6504 = vpack.c.b16 %v5334, %v5329
        %v6505 = vpack.c.b16 %v5335, %v5330
        %v6506 = vpack.c.b16 %v5336, %v5331
        %v6507 = vpack.c.b16 %v5342, %v5337
        %v6508 = vpack.c.b16 %v5343, %v5338
        %v6509 = vpack.c.b16 %v5344, %v5339
        %v6510 = vpack.c.b16 %v5345, %v5340
        %v6511 = vpack.c.b16 %v5346, %v5341
        %v6512 = vpack.c.b16 %v5352, %v5347
        %v6513 = vpack.c.b16 %v5353, %v5348
        %v6514 = vpack.c.b16 %v5354, %v5349
        %v6515 = vpack.c.b16 %v5355, %v5350
        %v6516 = vpack.c.b16 %v5356, %v5351
        %v6517 = vpack.c.b16 %v5362, %v5357
        %v6518 = vpack.c.b16 %v5363, %v5358
        %v6519 = vpack.c.b16 %v5364, %v5359
        %v6520 = vpack.c.b16 %v5365, %v5360
        %v6521 = vpack.c.b16 %v5366, %v5361
        %v6522 = vpack.c.b16 %v5372, %v5367
        %v6523 = vpack.c.b16 %v5373, %v5368
        %v6524 = vpack.c.b16 %v5374, %v5369
        %v6525 = vpack.c.b16 %v5375, %v5370
        %v6526 = vpack.c.b16 %v5376, %v5371
        %v6527 = vpack.c.b16 %v5382, %v5377
        %v6528 = vpack.c.b16 %v5383, %v5378
        %v6529 = vpack.c.b16 %v5384, %v5379
        %v6530 = vpack.c.b16 %v5385, %v5380
        %v6531 = vpack.c.b16 %v5386, %v5381
        %v6532 = vpack.c.b16 %v5392, %v5387
        %v6533 = vpack.c.b16 %v5393, %v5388
        %v6534 = vpack.c.b16 %v5394, %v5389
        %v6535 = vpack.c.b16 %v5395, %v5390
        %v6536 = vpack.c.b16 %v5396, %v5391
        %v6537 = vpack.c.b16 %v5402, %v5397
        %v6538 = vpack.c.b16 %v5403, %v5398
        %v6539 = vpack.c.b16 %v5404, %v5399
        %v6540 = vpack.c.b16 %v5405, %v5400
        %v6541 = vpack.c.b16 %v5406, %v5401
        %v6542 = vpack.c.b16 %v5412, %v5407
        %v6543 = vpack.c.b16 %v5413, %v5408
        %v6544 = vpack.c.b16 %v5414, %v5409
        %v6545 = vpack.c.b16 %v5415, %v5410
        %v6546 = vpack.c.b16 %v5416, %v5411
        %v6547 = vpack.c.b16 %v5422, %v5417
        %v6548 = vpack.c.b16 %v5423, %v5418
        %v6549 = vpack.c.b16 %v5424, %v5419
        %v6550 = vpack.c.b16 %v5425, %v5420
        %v6551 = vpack.c.b16 %v5426, %v5421
        %v6552 = vpack.c.b16 %v5432, %v5427
        %v6553 = vpack.c.b16 %v5433, %v5428
        %v6554 = vpack.c.b16 %v5434, %v5429
        %v6555 = vpack.c.b16 %v5435, %v5430
        %v6556 = vpack.c.b16 %v5436, %v5431
        %7677 = vmatpush.bf16.msra.mxu0 %v5472
        %7678 = vmatpush.bf16.msra.mxu0 %v5467
        %7679 = vmatpush.bf16.msra.mxu0 %v5462
        %7680 = vmatpush.bf16.msra.mxu0 %v5457
        %7681 = vmatpush.bf16.msra.mxu0 %v5452
        %7682 = vmatpush.bf16.msra.mxu0 %v5447
        %7683 = vmatpush.bf16.msra.mxu0 %v5442
        %7684 = vmatpush.bf16.msra.mxu0 %v5437
        %7685 = vmatmul.bf16.gmra.mxu0 %v481
        %v7686 = vpop.f32.mrf.mxu0
        %v7687 = vadd.f32 0.0, %v7686
        %v7688 = vpop.f32.mrf.mxu0
        %7689 = vdwg.mxu0
        %7690 = vmatpush.bf16.msra.mxu0 %v5512
        %7691 = vmatpush.bf16.msra.mxu0 %v5507
        %7692 = vmatpush.bf16.msra.mxu0 %v5502
        %7693 = vmatpush.bf16.msra.mxu0 %v5497
        %7694 = vmatpush.bf16.msra.mxu0 %v5492
        %7695 = vmatpush.bf16.msra.mxu0 %v5487
        %7696 = vmatpush.bf16.msra.mxu0 %v5482
        %7697 = vmatpush.bf16.msra.mxu0 %v5477
        %7698 = vmatmul.bf16.gmra.mxu0 %v482
        %v7699 = vpop.f32.mrf.mxu0
        %v7700 = vadd.f32 %v7687, %v7699
        %v7701 = vpop.f32.mrf.mxu0
        %7702 = vdwg.mxu0
        %7703 = vmatpush.bf16.msra.mxu0 %v5552
        %7704 = vmatpush.bf16.msra.mxu0 %v5547
        %7705 = vmatpush.bf16.msra.mxu0 %v5542
        %7706 = vmatpush.bf16.msra.mxu0 %v5537
        %7707 = vmatpush.bf16.msra.mxu0 %v5532
        %7708 = vmatpush.bf16.msra.mxu0 %v5527
        %7709 = vmatpush.bf16.msra.mxu0 %v5522
        %7710 = vmatpush.bf16.msra.mxu0 %v5517
        %7711 = vmatmul.bf16.gmra.mxu0 %v483
        %v7712 = vpop.f32.mrf.mxu0
        %v7713 = vadd.f32 %v7700, %v7712
        %v7714 = vpop.f32.mrf.mxu0
        %7715 = vdwg.mxu0
        %7716 = vmatpush.bf16.msra.mxu0 %v5592
        %7717 = vmatpush.bf16.msra.mxu0 %v5587
        %7718 = vmatpush.bf16.msra.mxu0 %v5582
        %7719 = vmatpush.bf16.msra.mxu0 %v5577
        %7720 = vmatpush.bf16.msra.mxu0 %v5572
        %7721 = vmatpush.bf16.msra.mxu0 %v5567
        %7722 = vmatpush.bf16.msra.mxu0 %v5562
        %7723 = vmatpush.bf16.msra.mxu0 %v5557
        %7724 = vmatmul.bf16.gmra.mxu0 %v484
        %v7725 = vpop.f32.mrf.mxu0
        %v7726 = vadd.f32 %v7713, %v7725
        %v7727 = vpop.f32.mrf.mxu0
        %7728 = vdwg.mxu0
        %7729 = vmatpush.bf16.msra.mxu0 %v5632
        %7730 = vmatpush.bf16.msra.mxu0 %v5627
        %7731 = vmatpush.bf16.msra.mxu0 %v5622
        %7732 = vmatpush.bf16.msra.mxu0 %v5617
        %7733 = vmatpush.bf16.msra.mxu0 %v5612
        %7734 = vmatpush.bf16.msra.mxu0 %v5607
        %7735 = vmatpush.bf16.msra.mxu0 %v5602
        %7736 = vmatpush.bf16.msra.mxu0 %v5597
        %7737 = vmatmul.bf16.gmra.mxu0 %v485
        %v7738 = vpop.f32.mrf.mxu0
        %v7739 = vadd.f32 %v7726, %v7738
        %v7740 = vpop.f32.mrf.mxu0
        %7741 = vdwg.mxu0
        %7742 = vmatpush.bf16.msra.mxu0 %v5672
        %7743 = vmatpush.bf16.msra.mxu0 %v5667
        %7744 = vmatpush.bf16.msra.mxu0 %v5662
        %7745 = vmatpush.bf16.msra.mxu0 %v5657
        %7746 = vmatpush.bf16.msra.mxu0 %v5652
        %7747 = vmatpush.bf16.msra.mxu0 %v5647
        %7748 = vmatpush.bf16.msra.mxu0 %v5642
        %7749 = vmatpush.bf16.msra.mxu0 %v5637
        %7750 = vmatmul.bf16.gmra.mxu0 %v486
        %v7751 = vpop.f32.mrf.mxu0
        %v7752 = vadd.f32 %v7739, %v7751
        %v7753 = vpop.f32.mrf.mxu0
        %7754 = vdwg.mxu0
        %7755 = vmatpush.bf16.msra.mxu0 %v5712
        %7756 = vmatpush.bf16.msra.mxu0 %v5707
        %7757 = vmatpush.bf16.msra.mxu0 %v5702
        %7758 = vmatpush.bf16.msra.mxu0 %v5697
        %7759 = vmatpush.bf16.msra.mxu0 %v5692
        %7760 = vmatpush.bf16.msra.mxu0 %v5687
        %7761 = vmatpush.bf16.msra.mxu0 %v5682
        %7762 = vmatpush.bf16.msra.mxu0 %v5677
        %7763 = vmatmul.bf16.gmra.mxu0 %v487
        %v7764 = vpop.f32.mrf.mxu0
        %v7765 = vadd.f32 %v7752, %v7764
        %v7766 = vpop.f32.mrf.mxu0
        %7767 = vdwg.mxu0
        %7768 = vmatpush.bf16.msra.mxu0 %v5752
        %7769 = vmatpush.bf16.msra.mxu0 %v5747
        %7770 = vmatpush.bf16.msra.mxu0 %v5742
        %7771 = vmatpush.bf16.msra.mxu0 %v5737
        %7772 = vmatpush.bf16.msra.mxu0 %v5732
        %7773 = vmatpush.bf16.msra.mxu0 %v5727
        %7774 = vmatpush.bf16.msra.mxu0 %v5722
        %7775 = vmatpush.bf16.msra.mxu0 %v5717
        %7776 = vmatmul.bf16.gmra.mxu0 %v488
        %v7777 = vpop.f32.mrf.mxu0
        %v7778 = vadd.f32 %v7765, %v7777
        %v7779 = vpop.f32.mrf.mxu0
        %7780 = vdwg.mxu0
        %7781 = vmatpush.bf16.msra.mxu0 %v5792
        %7782 = vmatpush.bf16.msra.mxu0 %v5787
        %7783 = vmatpush.bf16.msra.mxu0 %v5782
        %7784 = vmatpush.bf16.msra.mxu0 %v5777
        %7785 = vmatpush.bf16.msra.mxu0 %v5772
        %7786 = vmatpush.bf16.msra.mxu0 %v5767
        %7787 = vmatpush.bf16.msra.mxu0 %v5762
        %7788 = vmatpush.bf16.msra.mxu0 %v5757
        %7789 = vmatmul.bf16.gmra.mxu0 %v489
        %v7790 = vpop.f32.mrf.mxu0
        %v7791 = vadd.f32 %v7778, %v7790
        %v7792 = vpop.f32.mrf.mxu0
        %7793 = vdwg.mxu0
        %7794 = vmatpush.bf16.msra.mxu0 %v5832
        %7795 = vmatpush.bf16.msra.mxu0 %v5827
        %7796 = vmatpush.bf16.msra.mxu0 %v5822
        %7797 = vmatpush.bf16.msra.mxu0 %v5817
        %7798 = vmatpush.bf16.msra.mxu0 %v5812
        %7799 = vmatpush.bf16.msra.mxu0 %v5807
        %7800 = vmatpush.bf16.msra.mxu0 %v5802
        %7801 = vmatpush.bf16.msra.mxu0 %v5797
        %7802 = vmatmul.bf16.gmra.mxu0 %v490
        %v7803 = vpop.f32.mrf.mxu0
        %v7804 = vadd.f32 %v7791, %v7803
        %v7805 = vpop.f32.mrf.mxu0
        %7806 = vdwg.mxu0
        %7807 = vmatpush.bf16.msra.mxu0 %v5872
        %7808 = vmatpush.bf16.msra.mxu0 %v5867
        %7809 = vmatpush.bf16.msra.mxu0 %v5862
        %7810 = vmatpush.bf16.msra.mxu0 %v5857
        %7811 = vmatpush.bf16.msra.mxu0 %v5852
        %7812 = vmatpush.bf16.msra.mxu0 %v5847
        %7813 = vmatpush.bf16.msra.mxu0 %v5842
        %7814 = vmatpush.bf16.msra.mxu0 %v5837
        %7815 = vmatmul.bf16.gmra.mxu0 %v491
        %v7816 = vpop.f32.mrf.mxu0
        %v7817 = vadd.f32 %v7804, %v7816
        %v7818 = vpop.f32.mrf.mxu0
        %7819 = vdwg.mxu0
        %7820 = vmatpush.bf16.msra.mxu0 %v5912
        %7821 = vmatpush.bf16.msra.mxu0 %v5907
        %7822 = vmatpush.bf16.msra.mxu0 %v5902
        %7823 = vmatpush.bf16.msra.mxu0 %v5897
        %7824 = vmatpush.bf16.msra.mxu0 %v5892
        %7825 = vmatpush.bf16.msra.mxu0 %v5887
        %7826 = vmatpush.bf16.msra.mxu0 %v5882
        %7827 = vmatpush.bf16.msra.mxu0 %v5877
        %7828 = vmatmul.bf16.gmra.mxu0 %v492
        %v7829 = vpop.f32.mrf.mxu0
        %v7830 = vadd.f32 %v7817, %v7829
        %v7831 = vpop.f32.mrf.mxu0
        %7832 = vdwg.mxu0
        %7833 = vmatpush.bf16.msra.mxu0 %v5952
        %7834 = vmatpush.bf16.msra.mxu0 %v5947
        %7835 = vmatpush.bf16.msra.mxu0 %v5942
        %7836 = vmatpush.bf16.msra.mxu0 %v5937
        %7837 = vmatpush.bf16.msra.mxu0 %v5932
        %7838 = vmatpush.bf16.msra.mxu0 %v5927
        %7839 = vmatpush.bf16.msra.mxu0 %v5922
        %7840 = vmatpush.bf16.msra.mxu0 %v5917
        %7841 = vmatmul.bf16.gmra.mxu0 %v493
        %v7842 = vpop.f32.mrf.mxu0
        %v7843 = vadd.f32 %v7830, %v7842
        %v7844 = vpop.f32.mrf.mxu0
        %7845 = vdwg.mxu0
        %7846 = vmatpush.bf16.msra.mxu0 %v5992
        %7847 = vmatpush.bf16.msra.mxu0 %v5987
        %7848 = vmatpush.bf16.msra.mxu0 %v5982
        %7849 = vmatpush.bf16.msra.mxu0 %v5977
        %7850 = vmatpush.bf16.msra.mxu0 %v5972
        %7851 = vmatpush.bf16.msra.mxu0 %v5967
        %7852 = vmatpush.bf16.msra.mxu0 %v5962
        %7853 = vmatpush.bf16.msra.mxu0 %v5957
        %7854 = vmatmul.bf16.gmra.mxu0 %v494
        %v7855 = vpop.f32.mrf.mxu0
        %v7856 = vadd.f32 %v7843, %v7855
        %v7857 = vpop.f32.mrf.mxu0
        %7858 = vdwg.mxu0
        %7859 = vmatpush.bf16.msra.mxu0 %v6032
        %7860 = vmatpush.bf16.msra.mxu0 %v6027
        %7861 = vmatpush.bf16.msra.mxu0 %v6022
        %7862 = vmatpush.bf16.msra.mxu0 %v6017
        %7863 = vmatpush.bf16.msra.mxu0 %v6012
        %7864 = vmatpush.bf16.msra.mxu0 %v6007
        %7865 = vmatpush.bf16.msra.mxu0 %v6002
        %7866 = vmatpush.bf16.msra.mxu0 %v5997
        %7867 = vmatmul.bf16.gmra.mxu0 %v495
        %v7868 = vpop.f32.mrf.mxu0
        %v7869 = vadd.f32 %v7856, %v7868
        %v7870 = vpop.f32.mrf.mxu0
        %7871 = vdwg.mxu0
        %7872 = vmatpush.bf16.msra.mxu0 %v6072
        %7873 = vmatpush.bf16.msra.mxu0 %v6067
        %7874 = vmatpush.bf16.msra.mxu0 %v6062
        %7875 = vmatpush.bf16.msra.mxu0 %v6057
        %7876 = vmatpush.bf16.msra.mxu0 %v6052
        %7877 = vmatpush.bf16.msra.mxu0 %v6047
        %7878 = vmatpush.bf16.msra.mxu0 %v6042
        %7879 = vmatpush.bf16.msra.mxu0 %v6037
        %7880 = vmatmul.bf16.gmra.mxu0 %v496
        %v7881 = vpop.f32.mrf.mxu0
        %v7882 = vadd.f32 %v7869, %v7881
        %v7883 = vpop.f32.mrf.mxu0
        %7884 = vdwg.mxu0
        %7885 = vmatpush.bf16.msra.mxu0 %v6112
        %7886 = vmatpush.bf16.msra.mxu0 %v6107
        %7887 = vmatpush.bf16.msra.mxu0 %v6102
        %7888 = vmatpush.bf16.msra.mxu0 %v6097
        %7889 = vmatpush.bf16.msra.mxu0 %v6092
        %7890 = vmatpush.bf16.msra.mxu0 %v6087
        %7891 = vmatpush.bf16.msra.mxu0 %v6082
        %7892 = vmatpush.bf16.msra.mxu0 %v6077
        %7893 = vmatmul.bf16.gmra.mxu0 %v497
        %v7894 = vpop.f32.mrf.mxu0
        %v7895 = vadd.f32 %v7882, %v7894
        %v7896 = vpop.f32.mrf.mxu0
        %7897 = vdwg.mxu0
        %7898 = vmatpush.bf16.msra.mxu0 %v6152
        %7899 = vmatpush.bf16.msra.mxu0 %v6147
        %7900 = vmatpush.bf16.msra.mxu0 %v6142
        %7901 = vmatpush.bf16.msra.mxu0 %v6137
        %7902 = vmatpush.bf16.msra.mxu0 %v6132
        %7903 = vmatpush.bf16.msra.mxu0 %v6127
        %7904 = vmatpush.bf16.msra.mxu0 %v6122
        %7905 = vmatpush.bf16.msra.mxu0 %v6117
        %7906 = vmatmul.bf16.gmra.mxu0 %v498
        %v7907 = vpop.f32.mrf.mxu0
        %v7908 = vadd.f32 %v7895, %v7907
        %v7909 = vpop.f32.mrf.mxu0
        %7910 = vdwg.mxu0
        %7911 = vmatpush.bf16.msra.mxu0 %v6192
        %7912 = vmatpush.bf16.msra.mxu0 %v6187
        %7913 = vmatpush.bf16.msra.mxu0 %v6182
        %7914 = vmatpush.bf16.msra.mxu0 %v6177
        %7915 = vmatpush.bf16.msra.mxu0 %v6172
        %7916 = vmatpush.bf16.msra.mxu0 %v6167
        %7917 = vmatpush.bf16.msra.mxu0 %v6162
        %7918 = vmatpush.bf16.msra.mxu0 %v6157
        %7919 = vmatmul.bf16.gmra.mxu0 %v499
        %v7920 = vpop.f32.mrf.mxu0
        %v7921 = vadd.f32 %v7908, %v7920
        %v7922 = vpop.f32.mrf.mxu0
        %7923 = vdwg.mxu0
        %7924 = vmatpush.bf16.msra.mxu0 %v6232
        %7925 = vmatpush.bf16.msra.mxu0 %v6227
        %7926 = vmatpush.bf16.msra.mxu0 %v6222
        %7927 = vmatpush.bf16.msra.mxu0 %v6217
        %7928 = vmatpush.bf16.msra.mxu0 %v6212
        %7929 = vmatpush.bf16.msra.mxu0 %v6207
        %7930 = vmatpush.bf16.msra.mxu0 %v6202
        %7931 = vmatpush.bf16.msra.mxu0 %v6197
        %7932 = vmatmul.bf16.gmra.mxu0 %v500
        %v7933 = vpop.f32.mrf.mxu0
        %v7934 = vadd.f32 %v7921, %v7933
        %v7935 = vpop.f32.mrf.mxu0
        %7936 = vdwg.mxu0
        %7937 = vmatpush.bf16.msra.mxu0 %v6272
        %7938 = vmatpush.bf16.msra.mxu0 %v6267
        %7939 = vmatpush.bf16.msra.mxu0 %v6262
        %7940 = vmatpush.bf16.msra.mxu0 %v6257
        %7941 = vmatpush.bf16.msra.mxu0 %v6252
        %7942 = vmatpush.bf16.msra.mxu0 %v6247
        %7943 = vmatpush.bf16.msra.mxu0 %v6242
        %7944 = vmatpush.bf16.msra.mxu0 %v6237
        %7945 = vmatmul.bf16.gmra.mxu0 %v501
        %v7946 = vpop.f32.mrf.mxu0
        %v7947 = vadd.f32 %v7934, %v7946
        %v7948 = vpop.f32.mrf.mxu0
        %7949 = vdwg.mxu0
        %7950 = vmatpush.bf16.msra.mxu0 %v6312
        %7951 = vmatpush.bf16.msra.mxu0 %v6307
        %7952 = vmatpush.bf16.msra.mxu0 %v6302
        %7953 = vmatpush.bf16.msra.mxu0 %v6297
        %7954 = vmatpush.bf16.msra.mxu0 %v6292
        %7955 = vmatpush.bf16.msra.mxu0 %v6287
        %7956 = vmatpush.bf16.msra.mxu0 %v6282
        %7957 = vmatpush.bf16.msra.mxu0 %v6277
        %7958 = vmatmul.bf16.gmra.mxu0 %v502
        %v7959 = vpop.f32.mrf.mxu0
        %v7960 = vadd.f32 %v7947, %v7959
        %v7961 = vpop.f32.mrf.mxu0
        %7962 = vdwg.mxu0
        %7963 = vmatpush.bf16.msra.mxu0 %v6352
        %7964 = vmatpush.bf16.msra.mxu0 %v6347
        %7965 = vmatpush.bf16.msra.mxu0 %v6342
        %7966 = vmatpush.bf16.msra.mxu0 %v6337
        %7967 = vmatpush.bf16.msra.mxu0 %v6332
        %7968 = vmatpush.bf16.msra.mxu0 %v6327
        %7969 = vmatpush.bf16.msra.mxu0 %v6322
        %7970 = vmatpush.bf16.msra.mxu0 %v6317
        %7971 = vmatmul.bf16.gmra.mxu0 %v503
        %v7972 = vpop.f32.mrf.mxu0
        %v7973 = vadd.f32 %v7960, %v7972
        %v7974 = vpop.f32.mrf.mxu0
        %7975 = vdwg.mxu0
        %7976 = vmatpush.bf16.msra.mxu0 %v6392
        %7977 = vmatpush.bf16.msra.mxu0 %v6387
        %7978 = vmatpush.bf16.msra.mxu0 %v6382
        %7979 = vmatpush.bf16.msra.mxu0 %v6377
        %7980 = vmatpush.bf16.msra.mxu0 %v6372
        %7981 = vmatpush.bf16.msra.mxu0 %v6367
        %7982 = vmatpush.bf16.msra.mxu0 %v6362
        %7983 = vmatpush.bf16.msra.mxu0 %v6357
        %7984 = vmatmul.bf16.gmra.mxu0 %v504
        %v7985 = vpop.f32.mrf.mxu0
        %v7986 = vadd.f32 %v7973, %v7985
        %v7987 = vpop.f32.mrf.mxu0
        %7988 = vdwg.mxu0
        %7989 = vmatpush.bf16.msra.mxu0 %v6432
        %7990 = vmatpush.bf16.msra.mxu0 %v6427
        %7991 = vmatpush.bf16.msra.mxu0 %v6422
        %7992 = vmatpush.bf16.msra.mxu0 %v6417
        %7993 = vmatpush.bf16.msra.mxu0 %v6412
        %7994 = vmatpush.bf16.msra.mxu0 %v6407
        %7995 = vmatpush.bf16.msra.mxu0 %v6402
        %7996 = vmatpush.bf16.msra.mxu0 %v6397
        %7997 = vmatmul.bf16.gmra.mxu0 %v505
        %v7998 = vpop.f32.mrf.mxu0
        %v7999 = vadd.f32 %v7986, %v7998
        %v8000 = vpop.f32.mrf.mxu0
        %8001 = vdwg.mxu0
        %8002 = vmatpush.bf16.msra.mxu0 %v6472
        %8003 = vmatpush.bf16.msra.mxu0 %v6467
        %8004 = vmatpush.bf16.msra.mxu0 %v6462
        %8005 = vmatpush.bf16.msra.mxu0 %v6457
        %8006 = vmatpush.bf16.msra.mxu0 %v6452
        %8007 = vmatpush.bf16.msra.mxu0 %v6447
        %8008 = vmatpush.bf16.msra.mxu0 %v6442
        %8009 = vmatpush.bf16.msra.mxu0 %v6437
        %8010 = vmatmul.bf16.gmra.mxu0 %v506
        %v8011 = vpop.f32.mrf.mxu0
        %v8012 = vadd.f32 %v7999, %v8011
        %v8013 = vpop.f32.mrf.mxu0
        %8014 = vdwg.mxu0
        %8015 = vmatpush.bf16.msra.mxu0 %v6512
        %8016 = vmatpush.bf16.msra.mxu0 %v6507
        %8017 = vmatpush.bf16.msra.mxu0 %v6502
        %8018 = vmatpush.bf16.msra.mxu0 %v6497
        %8019 = vmatpush.bf16.msra.mxu0 %v6492
        %8020 = vmatpush.bf16.msra.mxu0 %v6487
        %8021 = vmatpush.bf16.msra.mxu0 %v6482
        %8022 = vmatpush.bf16.msra.mxu0 %v6477
        %8023 = vmatmul.bf16.gmra.mxu0 %v507
        %v8024 = vpop.f32.mrf.mxu0
        %v8025 = vadd.f32 %v8012, %v8024
        %v8026 = vpop.f32.mrf.mxu0
        %8027 = vdwg.mxu0
        %8028 = vmatpush.bf16.msra.mxu0 %v6552
        %8029 = vmatpush.bf16.msra.mxu0 %v6547
        %8030 = vmatpush.bf16.msra.mxu0 %v6542
        %8031 = vmatpush.bf16.msra.mxu0 %v6537
        %8032 = vmatpush.bf16.msra.mxu0 %v6532
        %8033 = vmatpush.bf16.msra.mxu0 %v6527
        %8034 = vmatpush.bf16.msra.mxu0 %v6522
        %8035 = vmatpush.bf16.msra.mxu0 %v6517
        %8036 = vmatmul.bf16.gmra.mxu0 %v508
        %v8037 = vpop.f32.mrf.mxu0
        %v8038 = vadd.f32 %v8025, %v8037
        %v8039 = vpop.f32.mrf.mxu0
        %8040 = vdwg.mxu0
        %8041 = vmatpush.bf16.msra.mxu0 %v5473
        %8042 = vmatpush.bf16.msra.mxu0 %v5468
        %8043 = vmatpush.bf16.msra.mxu0 %v5463
        %8044 = vmatpush.bf16.msra.mxu0 %v5458
        %8045 = vmatpush.bf16.msra.mxu0 %v5453
        %8046 = vmatpush.bf16.msra.mxu0 %v5448
        %8047 = vmatpush.bf16.msra.mxu0 %v5443
        %8048 = vmatpush.bf16.msra.mxu0 %v5438
        %8049 = vmatmul.bf16.gmra.mxu0 %v481
        %v8050 = vpop.f32.mrf.mxu0
        %v8051 = vadd.f32 0.0, %v8050
        %v8052 = vpop.f32.mrf.mxu0
        %8053 = vdwg.mxu0
        %8054 = vmatpush.bf16.msra.mxu0 %v5513
        %8055 = vmatpush.bf16.msra.mxu0 %v5508
        %8056 = vmatpush.bf16.msra.mxu0 %v5503
        %8057 = vmatpush.bf16.msra.mxu0 %v5498
        %8058 = vmatpush.bf16.msra.mxu0 %v5493
        %8059 = vmatpush.bf16.msra.mxu0 %v5488
        %8060 = vmatpush.bf16.msra.mxu0 %v5483
        %8061 = vmatpush.bf16.msra.mxu0 %v5478
        %8062 = vmatmul.bf16.gmra.mxu0 %v482
        %v8063 = vpop.f32.mrf.mxu0
        %v8064 = vadd.f32 %v8051, %v8063
        %v8065 = vpop.f32.mrf.mxu0
        %8066 = vdwg.mxu0
        %8067 = vmatpush.bf16.msra.mxu0 %v5553
        %8068 = vmatpush.bf16.msra.mxu0 %v5548
        %8069 = vmatpush.bf16.msra.mxu0 %v5543
        %8070 = vmatpush.bf16.msra.mxu0 %v5538
        %8071 = vmatpush.bf16.msra.mxu0 %v5533
        %8072 = vmatpush.bf16.msra.mxu0 %v5528
        %8073 = vmatpush.bf16.msra.mxu0 %v5523
        %8074 = vmatpush.bf16.msra.mxu0 %v5518
        %8075 = vmatmul.bf16.gmra.mxu0 %v483
        %v8076 = vpop.f32.mrf.mxu0
        %v8077 = vadd.f32 %v8064, %v8076
        %v8078 = vpop.f32.mrf.mxu0
        %8079 = vdwg.mxu0
        %8080 = vmatpush.bf16.msra.mxu0 %v5593
        %8081 = vmatpush.bf16.msra.mxu0 %v5588
        %8082 = vmatpush.bf16.msra.mxu0 %v5583
        %8083 = vmatpush.bf16.msra.mxu0 %v5578
        %8084 = vmatpush.bf16.msra.mxu0 %v5573
        %8085 = vmatpush.bf16.msra.mxu0 %v5568
        %8086 = vmatpush.bf16.msra.mxu0 %v5563
        %8087 = vmatpush.bf16.msra.mxu0 %v5558
        %8088 = vmatmul.bf16.gmra.mxu0 %v484
        %v8089 = vpop.f32.mrf.mxu0
        %v8090 = vadd.f32 %v8077, %v8089
        %v8091 = vpop.f32.mrf.mxu0
        %8092 = vdwg.mxu0
        %8093 = vmatpush.bf16.msra.mxu0 %v5633
        %8094 = vmatpush.bf16.msra.mxu0 %v5628
        %8095 = vmatpush.bf16.msra.mxu0 %v5623
        %8096 = vmatpush.bf16.msra.mxu0 %v5618
        %8097 = vmatpush.bf16.msra.mxu0 %v5613
        %8098 = vmatpush.bf16.msra.mxu0 %v5608
        %8099 = vmatpush.bf16.msra.mxu0 %v5603
        %8100 = vmatpush.bf16.msra.mxu0 %v5598
        %8101 = vmatmul.bf16.gmra.mxu0 %v485
        %v8102 = vpop.f32.mrf.mxu0
        %v8103 = vadd.f32 %v8090, %v8102
        %v8104 = vpop.f32.mrf.mxu0
        %8105 = vdwg.mxu0
        %8106 = vmatpush.bf16.msra.mxu0 %v5673
        %8107 = vmatpush.bf16.msra.mxu0 %v5668
        %8108 = vmatpush.bf16.msra.mxu0 %v5663
        %8109 = vmatpush.bf16.msra.mxu0 %v5658
        %8110 = vmatpush.bf16.msra.mxu0 %v5653
        %8111 = vmatpush.bf16.msra.mxu0 %v5648
        %8112 = vmatpush.bf16.msra.mxu0 %v5643
        %8113 = vmatpush.bf16.msra.mxu0 %v5638
        %8114 = vmatmul.bf16.gmra.mxu0 %v486
        %v8115 = vpop.f32.mrf.mxu0
        %v8116 = vadd.f32 %v8103, %v8115
        %v8117 = vpop.f32.mrf.mxu0
        %8118 = vdwg.mxu0
        %8119 = vmatpush.bf16.msra.mxu0 %v5713
        %8120 = vmatpush.bf16.msra.mxu0 %v5708
        %8121 = vmatpush.bf16.msra.mxu0 %v5703
        %8122 = vmatpush.bf16.msra.mxu0 %v5698
        %8123 = vmatpush.bf16.msra.mxu0 %v5693
        %8124 = vmatpush.bf16.msra.mxu0 %v5688
        %8125 = vmatpush.bf16.msra.mxu0 %v5683
        %8126 = vmatpush.bf16.msra.mxu0 %v5678
        %8127 = vmatmul.bf16.gmra.mxu0 %v487
        %v8128 = vpop.f32.mrf.mxu0
        %v8129 = vadd.f32 %v8116, %v8128
        %v8130 = vpop.f32.mrf.mxu0
        %8131 = vdwg.mxu0
        %8132 = vmatpush.bf16.msra.mxu0 %v5753
        %8133 = vmatpush.bf16.msra.mxu0 %v5748
        %8134 = vmatpush.bf16.msra.mxu0 %v5743
        %8135 = vmatpush.bf16.msra.mxu0 %v5738
        %8136 = vmatpush.bf16.msra.mxu0 %v5733
        %8137 = vmatpush.bf16.msra.mxu0 %v5728
        %8138 = vmatpush.bf16.msra.mxu0 %v5723
        %8139 = vmatpush.bf16.msra.mxu0 %v5718
        %8140 = vmatmul.bf16.gmra.mxu0 %v488
        %v8141 = vpop.f32.mrf.mxu0
        %v8142 = vadd.f32 %v8129, %v8141
        %v8143 = vpop.f32.mrf.mxu0
        %8144 = vdwg.mxu0
        %8145 = vmatpush.bf16.msra.mxu0 %v5793
        %8146 = vmatpush.bf16.msra.mxu0 %v5788
        %8147 = vmatpush.bf16.msra.mxu0 %v5783
        %8148 = vmatpush.bf16.msra.mxu0 %v5778
        %8149 = vmatpush.bf16.msra.mxu0 %v5773
        %8150 = vmatpush.bf16.msra.mxu0 %v5768
        %8151 = vmatpush.bf16.msra.mxu0 %v5763
        %8152 = vmatpush.bf16.msra.mxu0 %v5758
        %8153 = vmatmul.bf16.gmra.mxu0 %v489
        %v8154 = vpop.f32.mrf.mxu0
        %v8155 = vadd.f32 %v8142, %v8154
        %v8156 = vpop.f32.mrf.mxu0
        %8157 = vdwg.mxu0
        %8158 = vmatpush.bf16.msra.mxu0 %v5833
        %8159 = vmatpush.bf16.msra.mxu0 %v5828
        %8160 = vmatpush.bf16.msra.mxu0 %v5823
        %8161 = vmatpush.bf16.msra.mxu0 %v5818
        %8162 = vmatpush.bf16.msra.mxu0 %v5813
        %8163 = vmatpush.bf16.msra.mxu0 %v5808
        %8164 = vmatpush.bf16.msra.mxu0 %v5803
        %8165 = vmatpush.bf16.msra.mxu0 %v5798
        %8166 = vmatmul.bf16.gmra.mxu0 %v490
        %v8167 = vpop.f32.mrf.mxu0
        %v8168 = vadd.f32 %v8155, %v8167
        %v8169 = vpop.f32.mrf.mxu0
        %8170 = vdwg.mxu0
        %8171 = vmatpush.bf16.msra.mxu0 %v5873
        %8172 = vmatpush.bf16.msra.mxu0 %v5868
        %8173 = vmatpush.bf16.msra.mxu0 %v5863
        %8174 = vmatpush.bf16.msra.mxu0 %v5858
        %8175 = vmatpush.bf16.msra.mxu0 %v5853
        %8176 = vmatpush.bf16.msra.mxu0 %v5848
        %8177 = vmatpush.bf16.msra.mxu0 %v5843
        %8178 = vmatpush.bf16.msra.mxu0 %v5838
        %8179 = vmatmul.bf16.gmra.mxu0 %v491
        %v8180 = vpop.f32.mrf.mxu0
        %v8181 = vadd.f32 %v8168, %v8180
        %v8182 = vpop.f32.mrf.mxu0
        %8183 = vdwg.mxu0
        %8184 = vmatpush.bf16.msra.mxu0 %v5913
        %8185 = vmatpush.bf16.msra.mxu0 %v5908
        %8186 = vmatpush.bf16.msra.mxu0 %v5903
        %8187 = vmatpush.bf16.msra.mxu0 %v5898
        %8188 = vmatpush.bf16.msra.mxu0 %v5893
        %8189 = vmatpush.bf16.msra.mxu0 %v5888
        %8190 = vmatpush.bf16.msra.mxu0 %v5883
        %8191 = vmatpush.bf16.msra.mxu0 %v5878
        %8192 = vmatmul.bf16.gmra.mxu0 %v492
        %v8193 = vpop.f32.mrf.mxu0
        %v8194 = vadd.f32 %v8181, %v8193
        %v8195 = vpop.f32.mrf.mxu0
        %8196 = vdwg.mxu0
        %8197 = vmatpush.bf16.msra.mxu0 %v5953
        %8198 = vmatpush.bf16.msra.mxu0 %v5948
        %8199 = vmatpush.bf16.msra.mxu0 %v5943
        %8200 = vmatpush.bf16.msra.mxu0 %v5938
        %8201 = vmatpush.bf16.msra.mxu0 %v5933
        %8202 = vmatpush.bf16.msra.mxu0 %v5928
        %8203 = vmatpush.bf16.msra.mxu0 %v5923
        %8204 = vmatpush.bf16.msra.mxu0 %v5918
        %8205 = vmatmul.bf16.gmra.mxu0 %v493
        %v8206 = vpop.f32.mrf.mxu0
        %v8207 = vadd.f32 %v8194, %v8206
        %v8208 = vpop.f32.mrf.mxu0
        %8209 = vdwg.mxu0
        %8210 = vmatpush.bf16.msra.mxu0 %v5993
        %8211 = vmatpush.bf16.msra.mxu0 %v5988
        %8212 = vmatpush.bf16.msra.mxu0 %v5983
        %8213 = vmatpush.bf16.msra.mxu0 %v5978
        %8214 = vmatpush.bf16.msra.mxu0 %v5973
        %8215 = vmatpush.bf16.msra.mxu0 %v5968
        %8216 = vmatpush.bf16.msra.mxu0 %v5963
        %8217 = vmatpush.bf16.msra.mxu0 %v5958
        %8218 = vmatmul.bf16.gmra.mxu0 %v494
        %v8219 = vpop.f32.mrf.mxu0
        %v8220 = vadd.f32 %v8207, %v8219
        %v8221 = vpop.f32.mrf.mxu0
        %8222 = vdwg.mxu0
        %8223 = vmatpush.bf16.msra.mxu0 %v6033
        %8224 = vmatpush.bf16.msra.mxu0 %v6028
        %8225 = vmatpush.bf16.msra.mxu0 %v6023
        %8226 = vmatpush.bf16.msra.mxu0 %v6018
        %8227 = vmatpush.bf16.msra.mxu0 %v6013
        %8228 = vmatpush.bf16.msra.mxu0 %v6008
        %8229 = vmatpush.bf16.msra.mxu0 %v6003
        %8230 = vmatpush.bf16.msra.mxu0 %v5998
        %8231 = vmatmul.bf16.gmra.mxu0 %v495
        %v8232 = vpop.f32.mrf.mxu0
        %v8233 = vadd.f32 %v8220, %v8232
        %v8234 = vpop.f32.mrf.mxu0
        %8235 = vdwg.mxu0
        %8236 = vmatpush.bf16.msra.mxu0 %v6073
        %8237 = vmatpush.bf16.msra.mxu0 %v6068
        %8238 = vmatpush.bf16.msra.mxu0 %v6063
        %8239 = vmatpush.bf16.msra.mxu0 %v6058
        %8240 = vmatpush.bf16.msra.mxu0 %v6053
        %8241 = vmatpush.bf16.msra.mxu0 %v6048
        %8242 = vmatpush.bf16.msra.mxu0 %v6043
        %8243 = vmatpush.bf16.msra.mxu0 %v6038
        %8244 = vmatmul.bf16.gmra.mxu0 %v496
        %v8245 = vpop.f32.mrf.mxu0
        %v8246 = vadd.f32 %v8233, %v8245
        %v8247 = vpop.f32.mrf.mxu0
        %8248 = vdwg.mxu0
        %8249 = vmatpush.bf16.msra.mxu0 %v6113
        %8250 = vmatpush.bf16.msra.mxu0 %v6108
        %8251 = vmatpush.bf16.msra.mxu0 %v6103
        %8252 = vmatpush.bf16.msra.mxu0 %v6098
        %8253 = vmatpush.bf16.msra.mxu0 %v6093
        %8254 = vmatpush.bf16.msra.mxu0 %v6088
        %8255 = vmatpush.bf16.msra.mxu0 %v6083
        %8256 = vmatpush.bf16.msra.mxu0 %v6078
        %8257 = vmatmul.bf16.gmra.mxu0 %v497
        %v8258 = vpop.f32.mrf.mxu0
        %v8259 = vadd.f32 %v8246, %v8258
        %v8260 = vpop.f32.mrf.mxu0
        %8261 = vdwg.mxu0
        %8262 = vmatpush.bf16.msra.mxu0 %v6153
        %8263 = vmatpush.bf16.msra.mxu0 %v6148
        %8264 = vmatpush.bf16.msra.mxu0 %v6143
        %8265 = vmatpush.bf16.msra.mxu0 %v6138
        %8266 = vmatpush.bf16.msra.mxu0 %v6133
        %8267 = vmatpush.bf16.msra.mxu0 %v6128
        %8268 = vmatpush.bf16.msra.mxu0 %v6123
        %8269 = vmatpush.bf16.msra.mxu0 %v6118
        %8270 = vmatmul.bf16.gmra.mxu0 %v498
        %v8271 = vpop.f32.mrf.mxu0
        %v8272 = vadd.f32 %v8259, %v8271
        %v8273 = vpop.f32.mrf.mxu0
        %8274 = vdwg.mxu0
        %8275 = vmatpush.bf16.msra.mxu0 %v6193
        %8276 = vmatpush.bf16.msra.mxu0 %v6188
        %8277 = vmatpush.bf16.msra.mxu0 %v6183
        %8278 = vmatpush.bf16.msra.mxu0 %v6178
        %8279 = vmatpush.bf16.msra.mxu0 %v6173
        %8280 = vmatpush.bf16.msra.mxu0 %v6168
        %8281 = vmatpush.bf16.msra.mxu0 %v6163
        %8282 = vmatpush.bf16.msra.mxu0 %v6158
        %8283 = vmatmul.bf16.gmra.mxu0 %v499
        %v8284 = vpop.f32.mrf.mxu0
        %v8285 = vadd.f32 %v8272, %v8284
        %v8286 = vpop.f32.mrf.mxu0
        %8287 = vdwg.mxu0
        %8288 = vmatpush.bf16.msra.mxu0 %v6233
        %8289 = vmatpush.bf16.msra.mxu0 %v6228
        %8290 = vmatpush.bf16.msra.mxu0 %v6223
        %8291 = vmatpush.bf16.msra.mxu0 %v6218
        %8292 = vmatpush.bf16.msra.mxu0 %v6213
        %8293 = vmatpush.bf16.msra.mxu0 %v6208
        %8294 = vmatpush.bf16.msra.mxu0 %v6203
        %8295 = vmatpush.bf16.msra.mxu0 %v6198
        %8296 = vmatmul.bf16.gmra.mxu0 %v500
        %v8297 = vpop.f32.mrf.mxu0
        %v8298 = vadd.f32 %v8285, %v8297
        %v8299 = vpop.f32.mrf.mxu0
        %8300 = vdwg.mxu0
        %8301 = vmatpush.bf16.msra.mxu0 %v6273
        %8302 = vmatpush.bf16.msra.mxu0 %v6268
        %8303 = vmatpush.bf16.msra.mxu0 %v6263
        %8304 = vmatpush.bf16.msra.mxu0 %v6258
        %8305 = vmatpush.bf16.msra.mxu0 %v6253
        %8306 = vmatpush.bf16.msra.mxu0 %v6248
        %8307 = vmatpush.bf16.msra.mxu0 %v6243
        %8308 = vmatpush.bf16.msra.mxu0 %v6238
        %8309 = vmatmul.bf16.gmra.mxu0 %v501
        %v8310 = vpop.f32.mrf.mxu0
        %v8311 = vadd.f32 %v8298, %v8310
        %v8312 = vpop.f32.mrf.mxu0
        %8313 = vdwg.mxu0
        %8314 = vmatpush.bf16.msra.mxu0 %v6313
        %8315 = vmatpush.bf16.msra.mxu0 %v6308
        %8316 = vmatpush.bf16.msra.mxu0 %v6303
        %8317 = vmatpush.bf16.msra.mxu0 %v6298
        %8318 = vmatpush.bf16.msra.mxu0 %v6293
        %8319 = vmatpush.bf16.msra.mxu0 %v6288
        %8320 = vmatpush.bf16.msra.mxu0 %v6283
        %8321 = vmatpush.bf16.msra.mxu0 %v6278
        %8322 = vmatmul.bf16.gmra.mxu0 %v502
        %v8323 = vpop.f32.mrf.mxu0
        %v8324 = vadd.f32 %v8311, %v8323
        %v8325 = vpop.f32.mrf.mxu0
        %8326 = vdwg.mxu0
        %8327 = vmatpush.bf16.msra.mxu0 %v6353
        %8328 = vmatpush.bf16.msra.mxu0 %v6348
        %8329 = vmatpush.bf16.msra.mxu0 %v6343
        %8330 = vmatpush.bf16.msra.mxu0 %v6338
        %8331 = vmatpush.bf16.msra.mxu0 %v6333
        %8332 = vmatpush.bf16.msra.mxu0 %v6328
        %8333 = vmatpush.bf16.msra.mxu0 %v6323
        %8334 = vmatpush.bf16.msra.mxu0 %v6318
        %8335 = vmatmul.bf16.gmra.mxu0 %v503
        %v8336 = vpop.f32.mrf.mxu0
        %v8337 = vadd.f32 %v8324, %v8336
        %v8338 = vpop.f32.mrf.mxu0
        %8339 = vdwg.mxu0
        %8340 = vmatpush.bf16.msra.mxu0 %v6393
        %8341 = vmatpush.bf16.msra.mxu0 %v6388
        %8342 = vmatpush.bf16.msra.mxu0 %v6383
        %8343 = vmatpush.bf16.msra.mxu0 %v6378
        %8344 = vmatpush.bf16.msra.mxu0 %v6373
        %8345 = vmatpush.bf16.msra.mxu0 %v6368
        %8346 = vmatpush.bf16.msra.mxu0 %v6363
        %8347 = vmatpush.bf16.msra.mxu0 %v6358
        %8348 = vmatmul.bf16.gmra.mxu0 %v504
        %v8349 = vpop.f32.mrf.mxu0
        %v8350 = vadd.f32 %v8337, %v8349
        %v8351 = vpop.f32.mrf.mxu0
        %8352 = vdwg.mxu0
        %8353 = vmatpush.bf16.msra.mxu0 %v6433
        %8354 = vmatpush.bf16.msra.mxu0 %v6428
        %8355 = vmatpush.bf16.msra.mxu0 %v6423
        %8356 = vmatpush.bf16.msra.mxu0 %v6418
        %8357 = vmatpush.bf16.msra.mxu0 %v6413
        %8358 = vmatpush.bf16.msra.mxu0 %v6408
        %8359 = vmatpush.bf16.msra.mxu0 %v6403
        %8360 = vmatpush.bf16.msra.mxu0 %v6398
        %8361 = vmatmul.bf16.gmra.mxu0 %v505
        %v8362 = vpop.f32.mrf.mxu0
        %v8363 = vadd.f32 %v8350, %v8362
        %v8364 = vpop.f32.mrf.mxu0
        %8365 = vdwg.mxu0
        %8366 = vmatpush.bf16.msra.mxu0 %v6473
        %8367 = vmatpush.bf16.msra.mxu0 %v6468
        %8368 = vmatpush.bf16.msra.mxu0 %v6463
        %8369 = vmatpush.bf16.msra.mxu0 %v6458
        %8370 = vmatpush.bf16.msra.mxu0 %v6453
        %8371 = vmatpush.bf16.msra.mxu0 %v6448
        %8372 = vmatpush.bf16.msra.mxu0 %v6443
        %8373 = vmatpush.bf16.msra.mxu0 %v6438
        %8374 = vmatmul.bf16.gmra.mxu0 %v506
        %v8375 = vpop.f32.mrf.mxu0
        %v8376 = vadd.f32 %v8363, %v8375
        %v8377 = vpop.f32.mrf.mxu0
        %8378 = vdwg.mxu0
        %8379 = vmatpush.bf16.msra.mxu0 %v6513
        %8380 = vmatpush.bf16.msra.mxu0 %v6508
        %8381 = vmatpush.bf16.msra.mxu0 %v6503
        %8382 = vmatpush.bf16.msra.mxu0 %v6498
        %8383 = vmatpush.bf16.msra.mxu0 %v6493
        %8384 = vmatpush.bf16.msra.mxu0 %v6488
        %8385 = vmatpush.bf16.msra.mxu0 %v6483
        %8386 = vmatpush.bf16.msra.mxu0 %v6478
        %8387 = vmatmul.bf16.gmra.mxu0 %v507
        %v8388 = vpop.f32.mrf.mxu0
        %v8389 = vadd.f32 %v8376, %v8388
        %v8390 = vpop.f32.mrf.mxu0
        %8391 = vdwg.mxu0
        %8392 = vmatpush.bf16.msra.mxu0 %v6553
        %8393 = vmatpush.bf16.msra.mxu0 %v6548
        %8394 = vmatpush.bf16.msra.mxu0 %v6543
        %8395 = vmatpush.bf16.msra.mxu0 %v6538
        %8396 = vmatpush.bf16.msra.mxu0 %v6533
        %8397 = vmatpush.bf16.msra.mxu0 %v6528
        %8398 = vmatpush.bf16.msra.mxu0 %v6523
        %8399 = vmatpush.bf16.msra.mxu0 %v6518
        %8400 = vmatmul.bf16.gmra.mxu0 %v508
        %v8401 = vpop.f32.mrf.mxu0
        %v8402 = vadd.f32 %v8389, %v8401
        %v8403 = vpop.f32.mrf.mxu0
        %8404 = vdwg.mxu0
        %8405 = vmatpush.bf16.msra.mxu0 %v5474
        %8406 = vmatpush.bf16.msra.mxu0 %v5469
        %8407 = vmatpush.bf16.msra.mxu0 %v5464
        %8408 = vmatpush.bf16.msra.mxu0 %v5459
        %8409 = vmatpush.bf16.msra.mxu0 %v5454
        %8410 = vmatpush.bf16.msra.mxu0 %v5449
        %8411 = vmatpush.bf16.msra.mxu0 %v5444
        %8412 = vmatpush.bf16.msra.mxu0 %v5439
        %8413 = vmatmul.bf16.gmra.mxu0 %v481
        %v8414 = vpop.f32.mrf.mxu0
        %v8415 = vadd.f32 0.0, %v8414
        %v8416 = vpop.f32.mrf.mxu0
        %8417 = vdwg.mxu0
        %8418 = vmatpush.bf16.msra.mxu0 %v5514
        %8419 = vmatpush.bf16.msra.mxu0 %v5509
        %8420 = vmatpush.bf16.msra.mxu0 %v5504
        %8421 = vmatpush.bf16.msra.mxu0 %v5499
        %8422 = vmatpush.bf16.msra.mxu0 %v5494
        %8423 = vmatpush.bf16.msra.mxu0 %v5489
        %8424 = vmatpush.bf16.msra.mxu0 %v5484
        %8425 = vmatpush.bf16.msra.mxu0 %v5479
        %8426 = vmatmul.bf16.gmra.mxu0 %v482
        %v8427 = vpop.f32.mrf.mxu0
        %v8428 = vadd.f32 %v8415, %v8427
        %v8429 = vpop.f32.mrf.mxu0
        %8430 = vdwg.mxu0
        %8431 = vmatpush.bf16.msra.mxu0 %v5554
        %8432 = vmatpush.bf16.msra.mxu0 %v5549
        %8433 = vmatpush.bf16.msra.mxu0 %v5544
        %8434 = vmatpush.bf16.msra.mxu0 %v5539
        %8435 = vmatpush.bf16.msra.mxu0 %v5534
        %8436 = vmatpush.bf16.msra.mxu0 %v5529
        %8437 = vmatpush.bf16.msra.mxu0 %v5524
        %8438 = vmatpush.bf16.msra.mxu0 %v5519
        %8439 = vmatmul.bf16.gmra.mxu0 %v483
        %v8440 = vpop.f32.mrf.mxu0
        %v8441 = vadd.f32 %v8428, %v8440
        %v8442 = vpop.f32.mrf.mxu0
        %8443 = vdwg.mxu0
        %8444 = vmatpush.bf16.msra.mxu0 %v5594
        %8445 = vmatpush.bf16.msra.mxu0 %v5589
        %8446 = vmatpush.bf16.msra.mxu0 %v5584
        %8447 = vmatpush.bf16.msra.mxu0 %v5579
        %8448 = vmatpush.bf16.msra.mxu0 %v5574
        %8449 = vmatpush.bf16.msra.mxu0 %v5569
        %8450 = vmatpush.bf16.msra.mxu0 %v5564
        %8451 = vmatpush.bf16.msra.mxu0 %v5559
        %8452 = vmatmul.bf16.gmra.mxu0 %v484
        %v8453 = vpop.f32.mrf.mxu0
        %v8454 = vadd.f32 %v8441, %v8453
        %v8455 = vpop.f32.mrf.mxu0
        %8456 = vdwg.mxu0
        %8457 = vmatpush.bf16.msra.mxu0 %v5634
        %8458 = vmatpush.bf16.msra.mxu0 %v5629
        %8459 = vmatpush.bf16.msra.mxu0 %v5624
        %8460 = vmatpush.bf16.msra.mxu0 %v5619
        %8461 = vmatpush.bf16.msra.mxu0 %v5614
        %8462 = vmatpush.bf16.msra.mxu0 %v5609
        %8463 = vmatpush.bf16.msra.mxu0 %v5604
        %8464 = vmatpush.bf16.msra.mxu0 %v5599
        %8465 = vmatmul.bf16.gmra.mxu0 %v485
        %v8466 = vpop.f32.mrf.mxu0
        %v8467 = vadd.f32 %v8454, %v8466
        %v8468 = vpop.f32.mrf.mxu0
        %8469 = vdwg.mxu0
        %8470 = vmatpush.bf16.msra.mxu0 %v5674
        %8471 = vmatpush.bf16.msra.mxu0 %v5669
        %8472 = vmatpush.bf16.msra.mxu0 %v5664
        %8473 = vmatpush.bf16.msra.mxu0 %v5659
        %8474 = vmatpush.bf16.msra.mxu0 %v5654
        %8475 = vmatpush.bf16.msra.mxu0 %v5649
        %8476 = vmatpush.bf16.msra.mxu0 %v5644
        %8477 = vmatpush.bf16.msra.mxu0 %v5639
        %8478 = vmatmul.bf16.gmra.mxu0 %v486
        %v8479 = vpop.f32.mrf.mxu0
        %v8480 = vadd.f32 %v8467, %v8479
        %v8481 = vpop.f32.mrf.mxu0
        %8482 = vdwg.mxu0
        %8483 = vmatpush.bf16.msra.mxu0 %v5714
        %8484 = vmatpush.bf16.msra.mxu0 %v5709
        %8485 = vmatpush.bf16.msra.mxu0 %v5704
        %8486 = vmatpush.bf16.msra.mxu0 %v5699
        %8487 = vmatpush.bf16.msra.mxu0 %v5694
        %8488 = vmatpush.bf16.msra.mxu0 %v5689
        %8489 = vmatpush.bf16.msra.mxu0 %v5684
        %8490 = vmatpush.bf16.msra.mxu0 %v5679
        %8491 = vmatmul.bf16.gmra.mxu0 %v487
        %v8492 = vpop.f32.mrf.mxu0
        %v8493 = vadd.f32 %v8480, %v8492
        %v8494 = vpop.f32.mrf.mxu0
        %8495 = vdwg.mxu0
        %8496 = vmatpush.bf16.msra.mxu0 %v5754
        %8497 = vmatpush.bf16.msra.mxu0 %v5749
        %8498 = vmatpush.bf16.msra.mxu0 %v5744
        %8499 = vmatpush.bf16.msra.mxu0 %v5739
        %8500 = vmatpush.bf16.msra.mxu0 %v5734
        %8501 = vmatpush.bf16.msra.mxu0 %v5729
        %8502 = vmatpush.bf16.msra.mxu0 %v5724
        %8503 = vmatpush.bf16.msra.mxu0 %v5719
        %8504 = vmatmul.bf16.gmra.mxu0 %v488
        %v8505 = vpop.f32.mrf.mxu0
        %v8506 = vadd.f32 %v8493, %v8505
        %v8507 = vpop.f32.mrf.mxu0
        %8508 = vdwg.mxu0
        %8509 = vmatpush.bf16.msra.mxu0 %v5794
        %8510 = vmatpush.bf16.msra.mxu0 %v5789
        %8511 = vmatpush.bf16.msra.mxu0 %v5784
        %8512 = vmatpush.bf16.msra.mxu0 %v5779
        %8513 = vmatpush.bf16.msra.mxu0 %v5774
        %8514 = vmatpush.bf16.msra.mxu0 %v5769
        %8515 = vmatpush.bf16.msra.mxu0 %v5764
        %8516 = vmatpush.bf16.msra.mxu0 %v5759
        %8517 = vmatmul.bf16.gmra.mxu0 %v489
        %v8518 = vpop.f32.mrf.mxu0
        %v8519 = vadd.f32 %v8506, %v8518
        %v8520 = vpop.f32.mrf.mxu0
        %8521 = vdwg.mxu0
        %8522 = vmatpush.bf16.msra.mxu0 %v5834
        %8523 = vmatpush.bf16.msra.mxu0 %v5829
        %8524 = vmatpush.bf16.msra.mxu0 %v5824
        %8525 = vmatpush.bf16.msra.mxu0 %v5819
        %8526 = vmatpush.bf16.msra.mxu0 %v5814
        %8527 = vmatpush.bf16.msra.mxu0 %v5809
        %8528 = vmatpush.bf16.msra.mxu0 %v5804
        %8529 = vmatpush.bf16.msra.mxu0 %v5799
        %8530 = vmatmul.bf16.gmra.mxu0 %v490
        %v8531 = vpop.f32.mrf.mxu0
        %v8532 = vadd.f32 %v8519, %v8531
        %v8533 = vpop.f32.mrf.mxu0
        %8534 = vdwg.mxu0
        %8535 = vmatpush.bf16.msra.mxu0 %v5874
        %8536 = vmatpush.bf16.msra.mxu0 %v5869
        %8537 = vmatpush.bf16.msra.mxu0 %v5864
        %8538 = vmatpush.bf16.msra.mxu0 %v5859
        %8539 = vmatpush.bf16.msra.mxu0 %v5854
        %8540 = vmatpush.bf16.msra.mxu0 %v5849
        %8541 = vmatpush.bf16.msra.mxu0 %v5844
        %8542 = vmatpush.bf16.msra.mxu0 %v5839
        %8543 = vmatmul.bf16.gmra.mxu0 %v491
        %v8544 = vpop.f32.mrf.mxu0
        %v8545 = vadd.f32 %v8532, %v8544
        %v8546 = vpop.f32.mrf.mxu0
        %8547 = vdwg.mxu0
        %8548 = vmatpush.bf16.msra.mxu0 %v5914
        %8549 = vmatpush.bf16.msra.mxu0 %v5909
        %8550 = vmatpush.bf16.msra.mxu0 %v5904
        %8551 = vmatpush.bf16.msra.mxu0 %v5899
        %8552 = vmatpush.bf16.msra.mxu0 %v5894
        %8553 = vmatpush.bf16.msra.mxu0 %v5889
        %8554 = vmatpush.bf16.msra.mxu0 %v5884
        %8555 = vmatpush.bf16.msra.mxu0 %v5879
        %8556 = vmatmul.bf16.gmra.mxu0 %v492
        %v8557 = vpop.f32.mrf.mxu0
        %v8558 = vadd.f32 %v8545, %v8557
        %v8559 = vpop.f32.mrf.mxu0
        %8560 = vdwg.mxu0
        %8561 = vmatpush.bf16.msra.mxu0 %v5954
        %8562 = vmatpush.bf16.msra.mxu0 %v5949
        %8563 = vmatpush.bf16.msra.mxu0 %v5944
        %8564 = vmatpush.bf16.msra.mxu0 %v5939
        %8565 = vmatpush.bf16.msra.mxu0 %v5934
        %8566 = vmatpush.bf16.msra.mxu0 %v5929
        %8567 = vmatpush.bf16.msra.mxu0 %v5924
        %8568 = vmatpush.bf16.msra.mxu0 %v5919
        %8569 = vmatmul.bf16.gmra.mxu0 %v493
        %v8570 = vpop.f32.mrf.mxu0
        %v8571 = vadd.f32 %v8558, %v8570
        %v8572 = vpop.f32.mrf.mxu0
        %8573 = vdwg.mxu0
        %8574 = vmatpush.bf16.msra.mxu0 %v5994
        %8575 = vmatpush.bf16.msra.mxu0 %v5989
        %8576 = vmatpush.bf16.msra.mxu0 %v5984
        %8577 = vmatpush.bf16.msra.mxu0 %v5979
        %8578 = vmatpush.bf16.msra.mxu0 %v5974
        %8579 = vmatpush.bf16.msra.mxu0 %v5969
        %8580 = vmatpush.bf16.msra.mxu0 %v5964
        %8581 = vmatpush.bf16.msra.mxu0 %v5959
        %8582 = vmatmul.bf16.gmra.mxu0 %v494
        %v8583 = vpop.f32.mrf.mxu0
        %v8584 = vadd.f32 %v8571, %v8583
        %v8585 = vpop.f32.mrf.mxu0
        %8586 = vdwg.mxu0
        %8587 = vmatpush.bf16.msra.mxu0 %v6034
        %8588 = vmatpush.bf16.msra.mxu0 %v6029
        %8589 = vmatpush.bf16.msra.mxu0 %v6024
        %8590 = vmatpush.bf16.msra.mxu0 %v6019
        %8591 = vmatpush.bf16.msra.mxu0 %v6014
        %8592 = vmatpush.bf16.msra.mxu0 %v6009
        %8593 = vmatpush.bf16.msra.mxu0 %v6004
        %8594 = vmatpush.bf16.msra.mxu0 %v5999
        %8595 = vmatmul.bf16.gmra.mxu0 %v495
        %v8596 = vpop.f32.mrf.mxu0
        %v8597 = vadd.f32 %v8584, %v8596
        %v8598 = vpop.f32.mrf.mxu0
        %8599 = vdwg.mxu0
        %8600 = vmatpush.bf16.msra.mxu0 %v6074
        %8601 = vmatpush.bf16.msra.mxu0 %v6069
        %8602 = vmatpush.bf16.msra.mxu0 %v6064
        %8603 = vmatpush.bf16.msra.mxu0 %v6059
        %8604 = vmatpush.bf16.msra.mxu0 %v6054
        %8605 = vmatpush.bf16.msra.mxu0 %v6049
        %8606 = vmatpush.bf16.msra.mxu0 %v6044
        %8607 = vmatpush.bf16.msra.mxu0 %v6039
        %8608 = vmatmul.bf16.gmra.mxu0 %v496
        %v8609 = vpop.f32.mrf.mxu0
        %v8610 = vadd.f32 %v8597, %v8609
        %v8611 = vpop.f32.mrf.mxu0
        %8612 = vdwg.mxu0
        %8613 = vmatpush.bf16.msra.mxu0 %v6114
        %8614 = vmatpush.bf16.msra.mxu0 %v6109
        %8615 = vmatpush.bf16.msra.mxu0 %v6104
        %8616 = vmatpush.bf16.msra.mxu0 %v6099
        %8617 = vmatpush.bf16.msra.mxu0 %v6094
        %8618 = vmatpush.bf16.msra.mxu0 %v6089
        %8619 = vmatpush.bf16.msra.mxu0 %v6084
        %8620 = vmatpush.bf16.msra.mxu0 %v6079
        %8621 = vmatmul.bf16.gmra.mxu0 %v497
        %v8622 = vpop.f32.mrf.mxu0
        %v8623 = vadd.f32 %v8610, %v8622
        %v8624 = vpop.f32.mrf.mxu0
        %8625 = vdwg.mxu0
        %8626 = vmatpush.bf16.msra.mxu0 %v6154
        %8627 = vmatpush.bf16.msra.mxu0 %v6149
        %8628 = vmatpush.bf16.msra.mxu0 %v6144
        %8629 = vmatpush.bf16.msra.mxu0 %v6139
        %8630 = vmatpush.bf16.msra.mxu0 %v6134
        %8631 = vmatpush.bf16.msra.mxu0 %v6129
        %8632 = vmatpush.bf16.msra.mxu0 %v6124
        %8633 = vmatpush.bf16.msra.mxu0 %v6119
        %8634 = vmatmul.bf16.gmra.mxu0 %v498
        %v8635 = vpop.f32.mrf.mxu0
        %v8636 = vadd.f32 %v8623, %v8635
        %v8637 = vpop.f32.mrf.mxu0
        %8638 = vdwg.mxu0
        %8639 = vmatpush.bf16.msra.mxu0 %v6194
        %8640 = vmatpush.bf16.msra.mxu0 %v6189
        %8641 = vmatpush.bf16.msra.mxu0 %v6184
        %8642 = vmatpush.bf16.msra.mxu0 %v6179
        %8643 = vmatpush.bf16.msra.mxu0 %v6174
        %8644 = vmatpush.bf16.msra.mxu0 %v6169
        %8645 = vmatpush.bf16.msra.mxu0 %v6164
        %8646 = vmatpush.bf16.msra.mxu0 %v6159
        %8647 = vmatmul.bf16.gmra.mxu0 %v499
        %v8648 = vpop.f32.mrf.mxu0
        %v8649 = vadd.f32 %v8636, %v8648
        %v8650 = vpop.f32.mrf.mxu0
        %8651 = vdwg.mxu0
        %8652 = vmatpush.bf16.msra.mxu0 %v6234
        %8653 = vmatpush.bf16.msra.mxu0 %v6229
        %8654 = vmatpush.bf16.msra.mxu0 %v6224
        %8655 = vmatpush.bf16.msra.mxu0 %v6219
        %8656 = vmatpush.bf16.msra.mxu0 %v6214
        %8657 = vmatpush.bf16.msra.mxu0 %v6209
        %8658 = vmatpush.bf16.msra.mxu0 %v6204
        %8659 = vmatpush.bf16.msra.mxu0 %v6199
        %8660 = vmatmul.bf16.gmra.mxu0 %v500
        %v8661 = vpop.f32.mrf.mxu0
        %v8662 = vadd.f32 %v8649, %v8661
        %v8663 = vpop.f32.mrf.mxu0
        %8664 = vdwg.mxu0
        %8665 = vmatpush.bf16.msra.mxu0 %v6274
        %8666 = vmatpush.bf16.msra.mxu0 %v6269
        %8667 = vmatpush.bf16.msra.mxu0 %v6264
        %8668 = vmatpush.bf16.msra.mxu0 %v6259
        %8669 = vmatpush.bf16.msra.mxu0 %v6254
        %8670 = vmatpush.bf16.msra.mxu0 %v6249
        %8671 = vmatpush.bf16.msra.mxu0 %v6244
        %8672 = vmatpush.bf16.msra.mxu0 %v6239
        %8673 = vmatmul.bf16.gmra.mxu0 %v501
        %v8674 = vpop.f32.mrf.mxu0
        %v8675 = vadd.f32 %v8662, %v8674
        %v8676 = vpop.f32.mrf.mxu0
        %8677 = vdwg.mxu0
        %8678 = vmatpush.bf16.msra.mxu0 %v6314
        %8679 = vmatpush.bf16.msra.mxu0 %v6309
        %8680 = vmatpush.bf16.msra.mxu0 %v6304
        %8681 = vmatpush.bf16.msra.mxu0 %v6299
        %8682 = vmatpush.bf16.msra.mxu0 %v6294
        %8683 = vmatpush.bf16.msra.mxu0 %v6289
        %8684 = vmatpush.bf16.msra.mxu0 %v6284
        %8685 = vmatpush.bf16.msra.mxu0 %v6279
        %8686 = vmatmul.bf16.gmra.mxu0 %v502
        %v8687 = vpop.f32.mrf.mxu0
        %v8688 = vadd.f32 %v8675, %v8687
        %v8689 = vpop.f32.mrf.mxu0
        %8690 = vdwg.mxu0
        %8691 = vmatpush.bf16.msra.mxu0 %v6354
        %8692 = vmatpush.bf16.msra.mxu0 %v6349
        %8693 = vmatpush.bf16.msra.mxu0 %v6344
        %8694 = vmatpush.bf16.msra.mxu0 %v6339
        %8695 = vmatpush.bf16.msra.mxu0 %v6334
        %8696 = vmatpush.bf16.msra.mxu0 %v6329
        %8697 = vmatpush.bf16.msra.mxu0 %v6324
        %8698 = vmatpush.bf16.msra.mxu0 %v6319
        %8699 = vmatmul.bf16.gmra.mxu0 %v503
        %v8700 = vpop.f32.mrf.mxu0
        %v8701 = vadd.f32 %v8688, %v8700
        %v8702 = vpop.f32.mrf.mxu0
        %8703 = vdwg.mxu0
        %8704 = vmatpush.bf16.msra.mxu0 %v6394
        %8705 = vmatpush.bf16.msra.mxu0 %v6389
        %8706 = vmatpush.bf16.msra.mxu0 %v6384
        %8707 = vmatpush.bf16.msra.mxu0 %v6379
        %8708 = vmatpush.bf16.msra.mxu0 %v6374
        %8709 = vmatpush.bf16.msra.mxu0 %v6369
        %8710 = vmatpush.bf16.msra.mxu0 %v6364
        %8711 = vmatpush.bf16.msra.mxu0 %v6359
        %8712 = vmatmul.bf16.gmra.mxu0 %v504
        %v8713 = vpop.f32.mrf.mxu0
        %v8714 = vadd.f32 %v8701, %v8713
        %v8715 = vpop.f32.mrf.mxu0
        %8716 = vdwg.mxu0
        %8717 = vmatpush.bf16.msra.mxu0 %v6434
        %8718 = vmatpush.bf16.msra.mxu0 %v6429
        %8719 = vmatpush.bf16.msra.mxu0 %v6424
        %8720 = vmatpush.bf16.msra.mxu0 %v6419
        %8721 = vmatpush.bf16.msra.mxu0 %v6414
        %8722 = vmatpush.bf16.msra.mxu0 %v6409
        %8723 = vmatpush.bf16.msra.mxu0 %v6404
        %8724 = vmatpush.bf16.msra.mxu0 %v6399
        %8725 = vmatmul.bf16.gmra.mxu0 %v505
        %v8726 = vpop.f32.mrf.mxu0
        %v8727 = vadd.f32 %v8714, %v8726
        %v8728 = vpop.f32.mrf.mxu0
        %8729 = vdwg.mxu0
        %8730 = vmatpush.bf16.msra.mxu0 %v6474
        %8731 = vmatpush.bf16.msra.mxu0 %v6469
        %8732 = vmatpush.bf16.msra.mxu0 %v6464
        %8733 = vmatpush.bf16.msra.mxu0 %v6459
        %8734 = vmatpush.bf16.msra.mxu0 %v6454
        %8735 = vmatpush.bf16.msra.mxu0 %v6449
        %8736 = vmatpush.bf16.msra.mxu0 %v6444
        %8737 = vmatpush.bf16.msra.mxu0 %v6439
        %8738 = vmatmul.bf16.gmra.mxu0 %v506
        %v8739 = vpop.f32.mrf.mxu0
        %v8740 = vadd.f32 %v8727, %v8739
        %v8741 = vpop.f32.mrf.mxu0
        %8742 = vdwg.mxu0
        %8743 = vmatpush.bf16.msra.mxu0 %v6514
        %8744 = vmatpush.bf16.msra.mxu0 %v6509
        %8745 = vmatpush.bf16.msra.mxu0 %v6504
        %8746 = vmatpush.bf16.msra.mxu0 %v6499
        %8747 = vmatpush.bf16.msra.mxu0 %v6494
        %8748 = vmatpush.bf16.msra.mxu0 %v6489
        %8749 = vmatpush.bf16.msra.mxu0 %v6484
        %8750 = vmatpush.bf16.msra.mxu0 %v6479
        %8751 = vmatmul.bf16.gmra.mxu0 %v507
        %v8752 = vpop.f32.mrf.mxu0
        %v8753 = vadd.f32 %v8740, %v8752
        %v8754 = vpop.f32.mrf.mxu0
        %8755 = vdwg.mxu0
        %8756 = vmatpush.bf16.msra.mxu0 %v6554
        %8757 = vmatpush.bf16.msra.mxu0 %v6549
        %8758 = vmatpush.bf16.msra.mxu0 %v6544
        %8759 = vmatpush.bf16.msra.mxu0 %v6539
        %8760 = vmatpush.bf16.msra.mxu0 %v6534
        %8761 = vmatpush.bf16.msra.mxu0 %v6529
        %8762 = vmatpush.bf16.msra.mxu0 %v6524
        %8763 = vmatpush.bf16.msra.mxu0 %v6519
        %8764 = vmatmul.bf16.gmra.mxu0 %v508
        %v8765 = vpop.f32.mrf.mxu0
        %v8766 = vadd.f32 %v8753, %v8765
        %v8767 = vpop.f32.mrf.mxu0
        %8768 = vdwg.mxu0
        %8769 = vmatpush.bf16.msra.mxu0 %v5475
        %8770 = vmatpush.bf16.msra.mxu0 %v5470
        %8771 = vmatpush.bf16.msra.mxu0 %v5465
        %8772 = vmatpush.bf16.msra.mxu0 %v5460
        %8773 = vmatpush.bf16.msra.mxu0 %v5455
        %8774 = vmatpush.bf16.msra.mxu0 %v5450
        %8775 = vmatpush.bf16.msra.mxu0 %v5445
        %8776 = vmatpush.bf16.msra.mxu0 %v5440
        %8777 = vmatmul.bf16.gmra.mxu0 %v481
        %v8778 = vpop.f32.mrf.mxu0
        %v8779 = vadd.f32 0.0, %v8778
        %v8780 = vpop.f32.mrf.mxu0
        %8781 = vdwg.mxu0
        %8782 = vmatpush.bf16.msra.mxu0 %v5515
        %8783 = vmatpush.bf16.msra.mxu0 %v5510
        %8784 = vmatpush.bf16.msra.mxu0 %v5505
        %8785 = vmatpush.bf16.msra.mxu0 %v5500
        %8786 = vmatpush.bf16.msra.mxu0 %v5495
        %8787 = vmatpush.bf16.msra.mxu0 %v5490
        %8788 = vmatpush.bf16.msra.mxu0 %v5485
        %8789 = vmatpush.bf16.msra.mxu0 %v5480
        %8790 = vmatmul.bf16.gmra.mxu0 %v482
        %v8791 = vpop.f32.mrf.mxu0
        %v8792 = vadd.f32 %v8779, %v8791
        %v8793 = vpop.f32.mrf.mxu0
        %8794 = vdwg.mxu0
        %8795 = vmatpush.bf16.msra.mxu0 %v5555
        %8796 = vmatpush.bf16.msra.mxu0 %v5550
        %8797 = vmatpush.bf16.msra.mxu0 %v5545
        %8798 = vmatpush.bf16.msra.mxu0 %v5540
        %8799 = vmatpush.bf16.msra.mxu0 %v5535
        %8800 = vmatpush.bf16.msra.mxu0 %v5530
        %8801 = vmatpush.bf16.msra.mxu0 %v5525
        %8802 = vmatpush.bf16.msra.mxu0 %v5520
        %8803 = vmatmul.bf16.gmra.mxu0 %v483
        %v8804 = vpop.f32.mrf.mxu0
        %v8805 = vadd.f32 %v8792, %v8804
        %v8806 = vpop.f32.mrf.mxu0
        %8807 = vdwg.mxu0
        %8808 = vmatpush.bf16.msra.mxu0 %v5595
        %8809 = vmatpush.bf16.msra.mxu0 %v5590
        %8810 = vmatpush.bf16.msra.mxu0 %v5585
        %8811 = vmatpush.bf16.msra.mxu0 %v5580
        %8812 = vmatpush.bf16.msra.mxu0 %v5575
        %8813 = vmatpush.bf16.msra.mxu0 %v5570
        %8814 = vmatpush.bf16.msra.mxu0 %v5565
        %8815 = vmatpush.bf16.msra.mxu0 %v5560
        %8816 = vmatmul.bf16.gmra.mxu0 %v484
        %v8817 = vpop.f32.mrf.mxu0
        %v8818 = vadd.f32 %v8805, %v8817
        %v8819 = vpop.f32.mrf.mxu0
        %8820 = vdwg.mxu0
        %8821 = vmatpush.bf16.msra.mxu0 %v5635
        %8822 = vmatpush.bf16.msra.mxu0 %v5630
        %8823 = vmatpush.bf16.msra.mxu0 %v5625
        %8824 = vmatpush.bf16.msra.mxu0 %v5620
        %8825 = vmatpush.bf16.msra.mxu0 %v5615
        %8826 = vmatpush.bf16.msra.mxu0 %v5610
        %8827 = vmatpush.bf16.msra.mxu0 %v5605
        %8828 = vmatpush.bf16.msra.mxu0 %v5600
        %8829 = vmatmul.bf16.gmra.mxu0 %v485
        %v8830 = vpop.f32.mrf.mxu0
        %v8831 = vadd.f32 %v8818, %v8830
        %v8832 = vpop.f32.mrf.mxu0
        %8833 = vdwg.mxu0
        %8834 = vmatpush.bf16.msra.mxu0 %v5675
        %8835 = vmatpush.bf16.msra.mxu0 %v5670
        %8836 = vmatpush.bf16.msra.mxu0 %v5665
        %8837 = vmatpush.bf16.msra.mxu0 %v5660
        %8838 = vmatpush.bf16.msra.mxu0 %v5655
        %8839 = vmatpush.bf16.msra.mxu0 %v5650
        %8840 = vmatpush.bf16.msra.mxu0 %v5645
        %8841 = vmatpush.bf16.msra.mxu0 %v5640
        %8842 = vmatmul.bf16.gmra.mxu0 %v486
        %v8843 = vpop.f32.mrf.mxu0
        %v8844 = vadd.f32 %v8831, %v8843
        %v8845 = vpop.f32.mrf.mxu0
        %8846 = vdwg.mxu0
        %8847 = vmatpush.bf16.msra.mxu0 %v5715
        %8848 = vmatpush.bf16.msra.mxu0 %v5710
        %8849 = vmatpush.bf16.msra.mxu0 %v5705
        %8850 = vmatpush.bf16.msra.mxu0 %v5700
        %8851 = vmatpush.bf16.msra.mxu0 %v5695
        %8852 = vmatpush.bf16.msra.mxu0 %v5690
        %8853 = vmatpush.bf16.msra.mxu0 %v5685
        %8854 = vmatpush.bf16.msra.mxu0 %v5680
        %8855 = vmatmul.bf16.gmra.mxu0 %v487
        %v8856 = vpop.f32.mrf.mxu0
        %v8857 = vadd.f32 %v8844, %v8856
        %v8858 = vpop.f32.mrf.mxu0
        %8859 = vdwg.mxu0
        %8860 = vmatpush.bf16.msra.mxu0 %v5755
        %8861 = vmatpush.bf16.msra.mxu0 %v5750
        %8862 = vmatpush.bf16.msra.mxu0 %v5745
        %8863 = vmatpush.bf16.msra.mxu0 %v5740
        %8864 = vmatpush.bf16.msra.mxu0 %v5735
        %8865 = vmatpush.bf16.msra.mxu0 %v5730
        %8866 = vmatpush.bf16.msra.mxu0 %v5725
        %8867 = vmatpush.bf16.msra.mxu0 %v5720
        %8868 = vmatmul.bf16.gmra.mxu0 %v488
        %v8869 = vpop.f32.mrf.mxu0
        %v8870 = vadd.f32 %v8857, %v8869
        %v8871 = vpop.f32.mrf.mxu0
        %8872 = vdwg.mxu0
        %8873 = vmatpush.bf16.msra.mxu0 %v5795
        %8874 = vmatpush.bf16.msra.mxu0 %v5790
        %8875 = vmatpush.bf16.msra.mxu0 %v5785
        %8876 = vmatpush.bf16.msra.mxu0 %v5780
        %8877 = vmatpush.bf16.msra.mxu0 %v5775
        %8878 = vmatpush.bf16.msra.mxu0 %v5770
        %8879 = vmatpush.bf16.msra.mxu0 %v5765
        %8880 = vmatpush.bf16.msra.mxu0 %v5760
        %8881 = vmatmul.bf16.gmra.mxu0 %v489
        %v8882 = vpop.f32.mrf.mxu0
        %v8883 = vadd.f32 %v8870, %v8882
        %v8884 = vpop.f32.mrf.mxu0
        %8885 = vdwg.mxu0
        %8886 = vmatpush.bf16.msra.mxu0 %v5835
        %8887 = vmatpush.bf16.msra.mxu0 %v5830
        %8888 = vmatpush.bf16.msra.mxu0 %v5825
        %8889 = vmatpush.bf16.msra.mxu0 %v5820
        %8890 = vmatpush.bf16.msra.mxu0 %v5815
        %8891 = vmatpush.bf16.msra.mxu0 %v5810
        %8892 = vmatpush.bf16.msra.mxu0 %v5805
        %8893 = vmatpush.bf16.msra.mxu0 %v5800
        %8894 = vmatmul.bf16.gmra.mxu0 %v490
        %v8895 = vpop.f32.mrf.mxu0
        %v8896 = vadd.f32 %v8883, %v8895
        %v8897 = vpop.f32.mrf.mxu0
        %8898 = vdwg.mxu0
        %8899 = vmatpush.bf16.msra.mxu0 %v5875
        %8900 = vmatpush.bf16.msra.mxu0 %v5870
        %8901 = vmatpush.bf16.msra.mxu0 %v5865
        %8902 = vmatpush.bf16.msra.mxu0 %v5860
        %8903 = vmatpush.bf16.msra.mxu0 %v5855
        %8904 = vmatpush.bf16.msra.mxu0 %v5850
        %8905 = vmatpush.bf16.msra.mxu0 %v5845
        %8906 = vmatpush.bf16.msra.mxu0 %v5840
        %8907 = vmatmul.bf16.gmra.mxu0 %v491
        %v8908 = vpop.f32.mrf.mxu0
        %v8909 = vadd.f32 %v8896, %v8908
        %v8910 = vpop.f32.mrf.mxu0
        %8911 = vdwg.mxu0
        %8912 = vmatpush.bf16.msra.mxu0 %v5915
        %8913 = vmatpush.bf16.msra.mxu0 %v5910
        %8914 = vmatpush.bf16.msra.mxu0 %v5905
        %8915 = vmatpush.bf16.msra.mxu0 %v5900
        %8916 = vmatpush.bf16.msra.mxu0 %v5895
        %8917 = vmatpush.bf16.msra.mxu0 %v5890
        %8918 = vmatpush.bf16.msra.mxu0 %v5885
        %8919 = vmatpush.bf16.msra.mxu0 %v5880
        %8920 = vmatmul.bf16.gmra.mxu0 %v492
        %v8921 = vpop.f32.mrf.mxu0
        %v8922 = vadd.f32 %v8909, %v8921
        %v8923 = vpop.f32.mrf.mxu0
        %8924 = vdwg.mxu0
        %8925 = vmatpush.bf16.msra.mxu0 %v5955
        %8926 = vmatpush.bf16.msra.mxu0 %v5950
        %8927 = vmatpush.bf16.msra.mxu0 %v5945
        %8928 = vmatpush.bf16.msra.mxu0 %v5940
        %8929 = vmatpush.bf16.msra.mxu0 %v5935
        %8930 = vmatpush.bf16.msra.mxu0 %v5930
        %8931 = vmatpush.bf16.msra.mxu0 %v5925
        %8932 = vmatpush.bf16.msra.mxu0 %v5920
        %8933 = vmatmul.bf16.gmra.mxu0 %v493
        %v8934 = vpop.f32.mrf.mxu0
        %v8935 = vadd.f32 %v8922, %v8934
        %v8936 = vpop.f32.mrf.mxu0
        %8937 = vdwg.mxu0
        %8938 = vmatpush.bf16.msra.mxu0 %v5995
        %8939 = vmatpush.bf16.msra.mxu0 %v5990
        %8940 = vmatpush.bf16.msra.mxu0 %v5985
        %8941 = vmatpush.bf16.msra.mxu0 %v5980
        %8942 = vmatpush.bf16.msra.mxu0 %v5975
        %8943 = vmatpush.bf16.msra.mxu0 %v5970
        %8944 = vmatpush.bf16.msra.mxu0 %v5965
        %8945 = vmatpush.bf16.msra.mxu0 %v5960
        %8946 = vmatmul.bf16.gmra.mxu0 %v494
        %v8947 = vpop.f32.mrf.mxu0
        %v8948 = vadd.f32 %v8935, %v8947
        %v8949 = vpop.f32.mrf.mxu0
        %8950 = vdwg.mxu0
        %8951 = vmatpush.bf16.msra.mxu0 %v6035
        %8952 = vmatpush.bf16.msra.mxu0 %v6030
        %8953 = vmatpush.bf16.msra.mxu0 %v6025
        %8954 = vmatpush.bf16.msra.mxu0 %v6020
        %8955 = vmatpush.bf16.msra.mxu0 %v6015
        %8956 = vmatpush.bf16.msra.mxu0 %v6010
        %8957 = vmatpush.bf16.msra.mxu0 %v6005
        %8958 = vmatpush.bf16.msra.mxu0 %v6000
        %8959 = vmatmul.bf16.gmra.mxu0 %v495
        %v8960 = vpop.f32.mrf.mxu0
        %v8961 = vadd.f32 %v8948, %v8960
        %v8962 = vpop.f32.mrf.mxu0
        %8963 = vdwg.mxu0
        %8964 = vmatpush.bf16.msra.mxu0 %v6075
        %8965 = vmatpush.bf16.msra.mxu0 %v6070
        %8966 = vmatpush.bf16.msra.mxu0 %v6065
        %8967 = vmatpush.bf16.msra.mxu0 %v6060
        %8968 = vmatpush.bf16.msra.mxu0 %v6055
        %8969 = vmatpush.bf16.msra.mxu0 %v6050
        %8970 = vmatpush.bf16.msra.mxu0 %v6045
        %8971 = vmatpush.bf16.msra.mxu0 %v6040
        %8972 = vmatmul.bf16.gmra.mxu0 %v496
        %v8973 = vpop.f32.mrf.mxu0
        %v8974 = vadd.f32 %v8961, %v8973
        %v8975 = vpop.f32.mrf.mxu0
        %8976 = vdwg.mxu0
        %8977 = vmatpush.bf16.msra.mxu0 %v6115
        %8978 = vmatpush.bf16.msra.mxu0 %v6110
        %8979 = vmatpush.bf16.msra.mxu0 %v6105
        %8980 = vmatpush.bf16.msra.mxu0 %v6100
        %8981 = vmatpush.bf16.msra.mxu0 %v6095
        %8982 = vmatpush.bf16.msra.mxu0 %v6090
        %8983 = vmatpush.bf16.msra.mxu0 %v6085
        %8984 = vmatpush.bf16.msra.mxu0 %v6080
        %8985 = vmatmul.bf16.gmra.mxu0 %v497
        %v8986 = vpop.f32.mrf.mxu0
        %v8987 = vadd.f32 %v8974, %v8986
        %v8988 = vpop.f32.mrf.mxu0
        %8989 = vdwg.mxu0
        %8990 = vmatpush.bf16.msra.mxu0 %v6155
        %8991 = vmatpush.bf16.msra.mxu0 %v6150
        %8992 = vmatpush.bf16.msra.mxu0 %v6145
        %8993 = vmatpush.bf16.msra.mxu0 %v6140
        %8994 = vmatpush.bf16.msra.mxu0 %v6135
        %8995 = vmatpush.bf16.msra.mxu0 %v6130
        %8996 = vmatpush.bf16.msra.mxu0 %v6125
        %8997 = vmatpush.bf16.msra.mxu0 %v6120
        %8998 = vmatmul.bf16.gmra.mxu0 %v498
        %v8999 = vpop.f32.mrf.mxu0
        %v9000 = vadd.f32 %v8987, %v8999
        %v9001 = vpop.f32.mrf.mxu0
        %9002 = vdwg.mxu0
        %9003 = vmatpush.bf16.msra.mxu0 %v6195
        %9004 = vmatpush.bf16.msra.mxu0 %v6190
        %9005 = vmatpush.bf16.msra.mxu0 %v6185
        %9006 = vmatpush.bf16.msra.mxu0 %v6180
        %9007 = vmatpush.bf16.msra.mxu0 %v6175
        %9008 = vmatpush.bf16.msra.mxu0 %v6170
        %9009 = vmatpush.bf16.msra.mxu0 %v6165
        %9010 = vmatpush.bf16.msra.mxu0 %v6160
        %9011 = vmatmul.bf16.gmra.mxu0 %v499
        %v9012 = vpop.f32.mrf.mxu0
        %v9013 = vadd.f32 %v9000, %v9012
        %v9014 = vpop.f32.mrf.mxu0
        %9015 = vdwg.mxu0
        %9016 = vmatpush.bf16.msra.mxu0 %v6235
        %9017 = vmatpush.bf16.msra.mxu0 %v6230
        %9018 = vmatpush.bf16.msra.mxu0 %v6225
        %9019 = vmatpush.bf16.msra.mxu0 %v6220
        %9020 = vmatpush.bf16.msra.mxu0 %v6215
        %9021 = vmatpush.bf16.msra.mxu0 %v6210
        %9022 = vmatpush.bf16.msra.mxu0 %v6205
        %9023 = vmatpush.bf16.msra.mxu0 %v6200
        %9024 = vmatmul.bf16.gmra.mxu0 %v500
        %v9025 = vpop.f32.mrf.mxu0
        %v9026 = vadd.f32 %v9013, %v9025
        %v9027 = vpop.f32.mrf.mxu0
        %9028 = vdwg.mxu0
        %9029 = vmatpush.bf16.msra.mxu0 %v6275
        %9030 = vmatpush.bf16.msra.mxu0 %v6270
        %9031 = vmatpush.bf16.msra.mxu0 %v6265
        %9032 = vmatpush.bf16.msra.mxu0 %v6260
        %9033 = vmatpush.bf16.msra.mxu0 %v6255
        %9034 = vmatpush.bf16.msra.mxu0 %v6250
        %9035 = vmatpush.bf16.msra.mxu0 %v6245
        %9036 = vmatpush.bf16.msra.mxu0 %v6240
        %9037 = vmatmul.bf16.gmra.mxu0 %v501
        %v9038 = vpop.f32.mrf.mxu0
        %v9039 = vadd.f32 %v9026, %v9038
        %v9040 = vpop.f32.mrf.mxu0
        %9041 = vdwg.mxu0
        %9042 = vmatpush.bf16.msra.mxu0 %v6315
        %9043 = vmatpush.bf16.msra.mxu0 %v6310
        %9044 = vmatpush.bf16.msra.mxu0 %v6305
        %9045 = vmatpush.bf16.msra.mxu0 %v6300
        %9046 = vmatpush.bf16.msra.mxu0 %v6295
        %9047 = vmatpush.bf16.msra.mxu0 %v6290
        %9048 = vmatpush.bf16.msra.mxu0 %v6285
        %9049 = vmatpush.bf16.msra.mxu0 %v6280
        %9050 = vmatmul.bf16.gmra.mxu0 %v502
        %v9051 = vpop.f32.mrf.mxu0
        %v9052 = vadd.f32 %v9039, %v9051
        %v9053 = vpop.f32.mrf.mxu0
        %9054 = vdwg.mxu0
        %9055 = vmatpush.bf16.msra.mxu0 %v6355
        %9056 = vmatpush.bf16.msra.mxu0 %v6350
        %9057 = vmatpush.bf16.msra.mxu0 %v6345
        %9058 = vmatpush.bf16.msra.mxu0 %v6340
        %9059 = vmatpush.bf16.msra.mxu0 %v6335
        %9060 = vmatpush.bf16.msra.mxu0 %v6330
        %9061 = vmatpush.bf16.msra.mxu0 %v6325
        %9062 = vmatpush.bf16.msra.mxu0 %v6320
        %9063 = vmatmul.bf16.gmra.mxu0 %v503
        %v9064 = vpop.f32.mrf.mxu0
        %v9065 = vadd.f32 %v9052, %v9064
        %v9066 = vpop.f32.mrf.mxu0
        %9067 = vdwg.mxu0
        %9068 = vmatpush.bf16.msra.mxu0 %v6395
        %9069 = vmatpush.bf16.msra.mxu0 %v6390
        %9070 = vmatpush.bf16.msra.mxu0 %v6385
        %9071 = vmatpush.bf16.msra.mxu0 %v6380
        %9072 = vmatpush.bf16.msra.mxu0 %v6375
        %9073 = vmatpush.bf16.msra.mxu0 %v6370
        %9074 = vmatpush.bf16.msra.mxu0 %v6365
        %9075 = vmatpush.bf16.msra.mxu0 %v6360
        %9076 = vmatmul.bf16.gmra.mxu0 %v504
        %v9077 = vpop.f32.mrf.mxu0
        %v9078 = vadd.f32 %v9065, %v9077
        %v9079 = vpop.f32.mrf.mxu0
        %9080 = vdwg.mxu0
        %9081 = vmatpush.bf16.msra.mxu0 %v6435
        %9082 = vmatpush.bf16.msra.mxu0 %v6430
        %9083 = vmatpush.bf16.msra.mxu0 %v6425
        %9084 = vmatpush.bf16.msra.mxu0 %v6420
        %9085 = vmatpush.bf16.msra.mxu0 %v6415
        %9086 = vmatpush.bf16.msra.mxu0 %v6410
        %9087 = vmatpush.bf16.msra.mxu0 %v6405
        %9088 = vmatpush.bf16.msra.mxu0 %v6400
        %9089 = vmatmul.bf16.gmra.mxu0 %v505
        %v9090 = vpop.f32.mrf.mxu0
        %v9091 = vadd.f32 %v9078, %v9090
        %v9092 = vpop.f32.mrf.mxu0
        %9093 = vdwg.mxu0
        %9094 = vmatpush.bf16.msra.mxu0 %v6475
        %9095 = vmatpush.bf16.msra.mxu0 %v6470
        %9096 = vmatpush.bf16.msra.mxu0 %v6465
        %9097 = vmatpush.bf16.msra.mxu0 %v6460
        %9098 = vmatpush.bf16.msra.mxu0 %v6455
        %9099 = vmatpush.bf16.msra.mxu0 %v6450
        %9100 = vmatpush.bf16.msra.mxu0 %v6445
        %9101 = vmatpush.bf16.msra.mxu0 %v6440
        %9102 = vmatmul.bf16.gmra.mxu0 %v506
        %v9103 = vpop.f32.mrf.mxu0
        %v9104 = vadd.f32 %v9091, %v9103
        %v9105 = vpop.f32.mrf.mxu0
        %9106 = vdwg.mxu0
        %9107 = vmatpush.bf16.msra.mxu0 %v6515
        %9108 = vmatpush.bf16.msra.mxu0 %v6510
        %9109 = vmatpush.bf16.msra.mxu0 %v6505
        %9110 = vmatpush.bf16.msra.mxu0 %v6500
        %9111 = vmatpush.bf16.msra.mxu0 %v6495
        %9112 = vmatpush.bf16.msra.mxu0 %v6490
        %9113 = vmatpush.bf16.msra.mxu0 %v6485
        %9114 = vmatpush.bf16.msra.mxu0 %v6480
        %9115 = vmatmul.bf16.gmra.mxu0 %v507
        %v9116 = vpop.f32.mrf.mxu0
        %v9117 = vadd.f32 %v9104, %v9116
        %v9118 = vpop.f32.mrf.mxu0
        %9119 = vdwg.mxu0
        %9120 = vmatpush.bf16.msra.mxu0 %v6555
        %9121 = vmatpush.bf16.msra.mxu0 %v6550
        %9122 = vmatpush.bf16.msra.mxu0 %v6545
        %9123 = vmatpush.bf16.msra.mxu0 %v6540
        %9124 = vmatpush.bf16.msra.mxu0 %v6535
        %9125 = vmatpush.bf16.msra.mxu0 %v6530
        %9126 = vmatpush.bf16.msra.mxu0 %v6525
        %9127 = vmatpush.bf16.msra.mxu0 %v6520
        %9128 = vmatmul.bf16.gmra.mxu0 %v508
        %v9129 = vpop.f32.mrf.mxu0
        %v9130 = vadd.f32 %v9117, %v9129
        %v9131 = vpop.f32.mrf.mxu0
        %9132 = vdwg.mxu0
        %9133 = vmatpush.bf16.msra.mxu0 %v5476
        %9134 = vmatpush.bf16.msra.mxu0 %v5471
        %9135 = vmatpush.bf16.msra.mxu0 %v5466
        %9136 = vmatpush.bf16.msra.mxu0 %v5461
        %9137 = vmatpush.bf16.msra.mxu0 %v5456
        %9138 = vmatpush.bf16.msra.mxu0 %v5451
        %9139 = vmatpush.bf16.msra.mxu0 %v5446
        %9140 = vmatpush.bf16.msra.mxu0 %v5441
        %9141 = vmatmul.bf16.gmra.mxu0 %v481
        %v9142 = vpop.f32.mrf.mxu0
        %v9143 = vadd.f32 0.0, %v9142
        %v9144 = vpop.f32.mrf.mxu0
        %9145 = vdwg.mxu0
        %9146 = vmatpush.bf16.msra.mxu0 %v5516
        %9147 = vmatpush.bf16.msra.mxu0 %v5511
        %9148 = vmatpush.bf16.msra.mxu0 %v5506
        %9149 = vmatpush.bf16.msra.mxu0 %v5501
        %9150 = vmatpush.bf16.msra.mxu0 %v5496
        %9151 = vmatpush.bf16.msra.mxu0 %v5491
        %9152 = vmatpush.bf16.msra.mxu0 %v5486
        %9153 = vmatpush.bf16.msra.mxu0 %v5481
        %9154 = vmatmul.bf16.gmra.mxu0 %v482
        %v9155 = vpop.f32.mrf.mxu0
        %v9156 = vadd.f32 %v9143, %v9155
        %v9157 = vpop.f32.mrf.mxu0
        %9158 = vdwg.mxu0
        %9159 = vmatpush.bf16.msra.mxu0 %v5556
        %9160 = vmatpush.bf16.msra.mxu0 %v5551
        %9161 = vmatpush.bf16.msra.mxu0 %v5546
        %9162 = vmatpush.bf16.msra.mxu0 %v5541
        %9163 = vmatpush.bf16.msra.mxu0 %v5536
        %9164 = vmatpush.bf16.msra.mxu0 %v5531
        %9165 = vmatpush.bf16.msra.mxu0 %v5526
        %9166 = vmatpush.bf16.msra.mxu0 %v5521
        %9167 = vmatmul.bf16.gmra.mxu0 %v483
        %v9168 = vpop.f32.mrf.mxu0
        %v9169 = vadd.f32 %v9156, %v9168
        %v9170 = vpop.f32.mrf.mxu0
        %9171 = vdwg.mxu0
        %9172 = vmatpush.bf16.msra.mxu0 %v5596
        %9173 = vmatpush.bf16.msra.mxu0 %v5591
        %9174 = vmatpush.bf16.msra.mxu0 %v5586
        %9175 = vmatpush.bf16.msra.mxu0 %v5581
        %9176 = vmatpush.bf16.msra.mxu0 %v5576
        %9177 = vmatpush.bf16.msra.mxu0 %v5571
        %9178 = vmatpush.bf16.msra.mxu0 %v5566
        %9179 = vmatpush.bf16.msra.mxu0 %v5561
        %9180 = vmatmul.bf16.gmra.mxu0 %v484
        %v9181 = vpop.f32.mrf.mxu0
        %v9182 = vadd.f32 %v9169, %v9181
        %v9183 = vpop.f32.mrf.mxu0
        %9184 = vdwg.mxu0
        %9185 = vmatpush.bf16.msra.mxu0 %v5636
        %9186 = vmatpush.bf16.msra.mxu0 %v5631
        %9187 = vmatpush.bf16.msra.mxu0 %v5626
        %9188 = vmatpush.bf16.msra.mxu0 %v5621
        %9189 = vmatpush.bf16.msra.mxu0 %v5616
        %9190 = vmatpush.bf16.msra.mxu0 %v5611
        %9191 = vmatpush.bf16.msra.mxu0 %v5606
        %9192 = vmatpush.bf16.msra.mxu0 %v5601
        %9193 = vmatmul.bf16.gmra.mxu0 %v485
        %v9194 = vpop.f32.mrf.mxu0
        %v9195 = vadd.f32 %v9182, %v9194
        %v9196 = vpop.f32.mrf.mxu0
        %9197 = vdwg.mxu0
        %9198 = vmatpush.bf16.msra.mxu0 %v5676
        %9199 = vmatpush.bf16.msra.mxu0 %v5671
        %9200 = vmatpush.bf16.msra.mxu0 %v5666
        %9201 = vmatpush.bf16.msra.mxu0 %v5661
        %9202 = vmatpush.bf16.msra.mxu0 %v5656
        %9203 = vmatpush.bf16.msra.mxu0 %v5651
        %9204 = vmatpush.bf16.msra.mxu0 %v5646
        %9205 = vmatpush.bf16.msra.mxu0 %v5641
        %9206 = vmatmul.bf16.gmra.mxu0 %v486
        %v9207 = vpop.f32.mrf.mxu0
        %v9208 = vadd.f32 %v9195, %v9207
        %v9209 = vpop.f32.mrf.mxu0
        %9210 = vdwg.mxu0
        %9211 = vmatpush.bf16.msra.mxu0 %v5716
        %9212 = vmatpush.bf16.msra.mxu0 %v5711
        %9213 = vmatpush.bf16.msra.mxu0 %v5706
        %9214 = vmatpush.bf16.msra.mxu0 %v5701
        %9215 = vmatpush.bf16.msra.mxu0 %v5696
        %9216 = vmatpush.bf16.msra.mxu0 %v5691
        %9217 = vmatpush.bf16.msra.mxu0 %v5686
        %9218 = vmatpush.bf16.msra.mxu0 %v5681
        %9219 = vmatmul.bf16.gmra.mxu0 %v487
        %v9220 = vpop.f32.mrf.mxu0
        %v9221 = vadd.f32 %v9208, %v9220
        %v9222 = vpop.f32.mrf.mxu0
        %9223 = vdwg.mxu0
        %9224 = vmatpush.bf16.msra.mxu0 %v5756
        %9225 = vmatpush.bf16.msra.mxu0 %v5751
        %9226 = vmatpush.bf16.msra.mxu0 %v5746
        %9227 = vmatpush.bf16.msra.mxu0 %v5741
        %9228 = vmatpush.bf16.msra.mxu0 %v5736
        %9229 = vmatpush.bf16.msra.mxu0 %v5731
        %9230 = vmatpush.bf16.msra.mxu0 %v5726
        %9231 = vmatpush.bf16.msra.mxu0 %v5721
        %9232 = vmatmul.bf16.gmra.mxu0 %v488
        %v9233 = vpop.f32.mrf.mxu0
        %v9234 = vadd.f32 %v9221, %v9233
        %v9235 = vpop.f32.mrf.mxu0
        %9236 = vdwg.mxu0
        %9237 = vmatpush.bf16.msra.mxu0 %v5796
        %9238 = vmatpush.bf16.msra.mxu0 %v5791
        %9239 = vmatpush.bf16.msra.mxu0 %v5786
        %9240 = vmatpush.bf16.msra.mxu0 %v5781
        %9241 = vmatpush.bf16.msra.mxu0 %v5776
        %9242 = vmatpush.bf16.msra.mxu0 %v5771
        %9243 = vmatpush.bf16.msra.mxu0 %v5766
        %9244 = vmatpush.bf16.msra.mxu0 %v5761
        %9245 = vmatmul.bf16.gmra.mxu0 %v489
        %v9246 = vpop.f32.mrf.mxu0
        %v9247 = vadd.f32 %v9234, %v9246
        %v9248 = vpop.f32.mrf.mxu0
        %9249 = vdwg.mxu0
        %9250 = vmatpush.bf16.msra.mxu0 %v5836
        %9251 = vmatpush.bf16.msra.mxu0 %v5831
        %9252 = vmatpush.bf16.msra.mxu0 %v5826
        %9253 = vmatpush.bf16.msra.mxu0 %v5821
        %9254 = vmatpush.bf16.msra.mxu0 %v5816
        %9255 = vmatpush.bf16.msra.mxu0 %v5811
        %9256 = vmatpush.bf16.msra.mxu0 %v5806
        %9257 = vmatpush.bf16.msra.mxu0 %v5801
        %9258 = vmatmul.bf16.gmra.mxu0 %v490
        %v9259 = vpop.f32.mrf.mxu0
        %v9260 = vadd.f32 %v9247, %v9259
        %v9261 = vpop.f32.mrf.mxu0
        %9262 = vdwg.mxu0
        %9263 = vmatpush.bf16.msra.mxu0 %v5876
        %9264 = vmatpush.bf16.msra.mxu0 %v5871
        %9265 = vmatpush.bf16.msra.mxu0 %v5866
        %9266 = vmatpush.bf16.msra.mxu0 %v5861
        %9267 = vmatpush.bf16.msra.mxu0 %v5856
        %9268 = vmatpush.bf16.msra.mxu0 %v5851
        %9269 = vmatpush.bf16.msra.mxu0 %v5846
        %9270 = vmatpush.bf16.msra.mxu0 %v5841
        %9271 = vmatmul.bf16.gmra.mxu0 %v491
        %v9272 = vpop.f32.mrf.mxu0
        %v9273 = vadd.f32 %v9260, %v9272
        %v9274 = vpop.f32.mrf.mxu0
        %9275 = vdwg.mxu0
        %9276 = vmatpush.bf16.msra.mxu0 %v5916
        %9277 = vmatpush.bf16.msra.mxu0 %v5911
        %9278 = vmatpush.bf16.msra.mxu0 %v5906
        %9279 = vmatpush.bf16.msra.mxu0 %v5901
        %9280 = vmatpush.bf16.msra.mxu0 %v5896
        %9281 = vmatpush.bf16.msra.mxu0 %v5891
        %9282 = vmatpush.bf16.msra.mxu0 %v5886
        %9283 = vmatpush.bf16.msra.mxu0 %v5881
        %9284 = vmatmul.bf16.gmra.mxu0 %v492
        %v9285 = vpop.f32.mrf.mxu0
        %v9286 = vadd.f32 %v9273, %v9285
        %v9287 = vpop.f32.mrf.mxu0
        %9288 = vdwg.mxu0
        %9289 = vmatpush.bf16.msra.mxu0 %v5956
        %9290 = vmatpush.bf16.msra.mxu0 %v5951
        %9291 = vmatpush.bf16.msra.mxu0 %v5946
        %9292 = vmatpush.bf16.msra.mxu0 %v5941
        %9293 = vmatpush.bf16.msra.mxu0 %v5936
        %9294 = vmatpush.bf16.msra.mxu0 %v5931
        %9295 = vmatpush.bf16.msra.mxu0 %v5926
        %9296 = vmatpush.bf16.msra.mxu0 %v5921
        %9297 = vmatmul.bf16.gmra.mxu0 %v493
        %v9298 = vpop.f32.mrf.mxu0
        %v9299 = vadd.f32 %v9286, %v9298
        %v9300 = vpop.f32.mrf.mxu0
        %9301 = vdwg.mxu0
        %9302 = vmatpush.bf16.msra.mxu0 %v5996
        %9303 = vmatpush.bf16.msra.mxu0 %v5991
        %9304 = vmatpush.bf16.msra.mxu0 %v5986
        %9305 = vmatpush.bf16.msra.mxu0 %v5981
        %9306 = vmatpush.bf16.msra.mxu0 %v5976
        %9307 = vmatpush.bf16.msra.mxu0 %v5971
        %9308 = vmatpush.bf16.msra.mxu0 %v5966
        %9309 = vmatpush.bf16.msra.mxu0 %v5961
        %9310 = vmatmul.bf16.gmra.mxu0 %v494
        %v9311 = vpop.f32.mrf.mxu0
        %v9312 = vadd.f32 %v9299, %v9311
        %v9313 = vpop.f32.mrf.mxu0
        %9314 = vdwg.mxu0
        %9315 = vmatpush.bf16.msra.mxu0 %v6036
        %9316 = vmatpush.bf16.msra.mxu0 %v6031
        %9317 = vmatpush.bf16.msra.mxu0 %v6026
        %9318 = vmatpush.bf16.msra.mxu0 %v6021
        %9319 = vmatpush.bf16.msra.mxu0 %v6016
        %9320 = vmatpush.bf16.msra.mxu0 %v6011
        %9321 = vmatpush.bf16.msra.mxu0 %v6006
        %9322 = vmatpush.bf16.msra.mxu0 %v6001
        %9323 = vmatmul.bf16.gmra.mxu0 %v495
        %v9324 = vpop.f32.mrf.mxu0
        %v9325 = vadd.f32 %v9312, %v9324
        %v9326 = vpop.f32.mrf.mxu0
        %9327 = vdwg.mxu0
        %9328 = vmatpush.bf16.msra.mxu0 %v6076
        %9329 = vmatpush.bf16.msra.mxu0 %v6071
        %9330 = vmatpush.bf16.msra.mxu0 %v6066
        %9331 = vmatpush.bf16.msra.mxu0 %v6061
        %9332 = vmatpush.bf16.msra.mxu0 %v6056
        %9333 = vmatpush.bf16.msra.mxu0 %v6051
        %9334 = vmatpush.bf16.msra.mxu0 %v6046
        %9335 = vmatpush.bf16.msra.mxu0 %v6041
        %9336 = vmatmul.bf16.gmra.mxu0 %v496
        %v9337 = vpop.f32.mrf.mxu0
        %v9338 = vadd.f32 %v9325, %v9337
        %v9339 = vpop.f32.mrf.mxu0
        %9340 = vdwg.mxu0
        %9341 = vmatpush.bf16.msra.mxu0 %v6116
        %9342 = vmatpush.bf16.msra.mxu0 %v6111
        %9343 = vmatpush.bf16.msra.mxu0 %v6106
        %9344 = vmatpush.bf16.msra.mxu0 %v6101
        %9345 = vmatpush.bf16.msra.mxu0 %v6096
        %9346 = vmatpush.bf16.msra.mxu0 %v6091
        %9347 = vmatpush.bf16.msra.mxu0 %v6086
        %9348 = vmatpush.bf16.msra.mxu0 %v6081
        %9349 = vmatmul.bf16.gmra.mxu0 %v497
        %v9350 = vpop.f32.mrf.mxu0
        %v9351 = vadd.f32 %v9338, %v9350
        %v9352 = vpop.f32.mrf.mxu0
        %9353 = vdwg.mxu0
        %9354 = vmatpush.bf16.msra.mxu0 %v6156
        %9355 = vmatpush.bf16.msra.mxu0 %v6151
        %9356 = vmatpush.bf16.msra.mxu0 %v6146
        %9357 = vmatpush.bf16.msra.mxu0 %v6141
        %9358 = vmatpush.bf16.msra.mxu0 %v6136
        %9359 = vmatpush.bf16.msra.mxu0 %v6131
        %9360 = vmatpush.bf16.msra.mxu0 %v6126
        %9361 = vmatpush.bf16.msra.mxu0 %v6121
        %9362 = vmatmul.bf16.gmra.mxu0 %v498
        %v9363 = vpop.f32.mrf.mxu0
        %v9364 = vadd.f32 %v9351, %v9363
        %v9365 = vpop.f32.mrf.mxu0
        %9366 = vdwg.mxu0
        %9367 = vmatpush.bf16.msra.mxu0 %v6196
        %9368 = vmatpush.bf16.msra.mxu0 %v6191
        %9369 = vmatpush.bf16.msra.mxu0 %v6186
        %9370 = vmatpush.bf16.msra.mxu0 %v6181
        %9371 = vmatpush.bf16.msra.mxu0 %v6176
        %9372 = vmatpush.bf16.msra.mxu0 %v6171
        %9373 = vmatpush.bf16.msra.mxu0 %v6166
        %9374 = vmatpush.bf16.msra.mxu0 %v6161
        %9375 = vmatmul.bf16.gmra.mxu0 %v499
        %v9376 = vpop.f32.mrf.mxu0
        %v9377 = vadd.f32 %v9364, %v9376
        %v9378 = vpop.f32.mrf.mxu0
        %9379 = vdwg.mxu0
        %9380 = vmatpush.bf16.msra.mxu0 %v6236
        %9381 = vmatpush.bf16.msra.mxu0 %v6231
        %9382 = vmatpush.bf16.msra.mxu0 %v6226
        %9383 = vmatpush.bf16.msra.mxu0 %v6221
        %9384 = vmatpush.bf16.msra.mxu0 %v6216
        %9385 = vmatpush.bf16.msra.mxu0 %v6211
        %9386 = vmatpush.bf16.msra.mxu0 %v6206
        %9387 = vmatpush.bf16.msra.mxu0 %v6201
        %9388 = vmatmul.bf16.gmra.mxu0 %v500
        %v9389 = vpop.f32.mrf.mxu0
        %v9390 = vadd.f32 %v9377, %v9389
        %v9391 = vpop.f32.mrf.mxu0
        %9392 = vdwg.mxu0
        %9393 = vmatpush.bf16.msra.mxu0 %v6276
        %9394 = vmatpush.bf16.msra.mxu0 %v6271
        %9395 = vmatpush.bf16.msra.mxu0 %v6266
        %9396 = vmatpush.bf16.msra.mxu0 %v6261
        %9397 = vmatpush.bf16.msra.mxu0 %v6256
        %9398 = vmatpush.bf16.msra.mxu0 %v6251
        %9399 = vmatpush.bf16.msra.mxu0 %v6246
        %9400 = vmatpush.bf16.msra.mxu0 %v6241
        %9401 = vmatmul.bf16.gmra.mxu0 %v501
        %v9402 = vpop.f32.mrf.mxu0
        %v9403 = vadd.f32 %v9390, %v9402
        %v9404 = vpop.f32.mrf.mxu0
        %9405 = vdwg.mxu0
        %9406 = vmatpush.bf16.msra.mxu0 %v6316
        %9407 = vmatpush.bf16.msra.mxu0 %v6311
        %9408 = vmatpush.bf16.msra.mxu0 %v6306
        %9409 = vmatpush.bf16.msra.mxu0 %v6301
        %9410 = vmatpush.bf16.msra.mxu0 %v6296
        %9411 = vmatpush.bf16.msra.mxu0 %v6291
        %9412 = vmatpush.bf16.msra.mxu0 %v6286
        %9413 = vmatpush.bf16.msra.mxu0 %v6281
        %9414 = vmatmul.bf16.gmra.mxu0 %v502
        %v9415 = vpop.f32.mrf.mxu0
        %v9416 = vadd.f32 %v9403, %v9415
        %v9417 = vpop.f32.mrf.mxu0
        %9418 = vdwg.mxu0
        %9419 = vmatpush.bf16.msra.mxu0 %v6356
        %9420 = vmatpush.bf16.msra.mxu0 %v6351
        %9421 = vmatpush.bf16.msra.mxu0 %v6346
        %9422 = vmatpush.bf16.msra.mxu0 %v6341
        %9423 = vmatpush.bf16.msra.mxu0 %v6336
        %9424 = vmatpush.bf16.msra.mxu0 %v6331
        %9425 = vmatpush.bf16.msra.mxu0 %v6326
        %9426 = vmatpush.bf16.msra.mxu0 %v6321
        %9427 = vmatmul.bf16.gmra.mxu0 %v503
        %v9428 = vpop.f32.mrf.mxu0
        %v9429 = vadd.f32 %v9416, %v9428
        %v9430 = vpop.f32.mrf.mxu0
        %9431 = vdwg.mxu0
        %9432 = vmatpush.bf16.msra.mxu0 %v6396
        %9433 = vmatpush.bf16.msra.mxu0 %v6391
        %9434 = vmatpush.bf16.msra.mxu0 %v6386
        %9435 = vmatpush.bf16.msra.mxu0 %v6381
        %9436 = vmatpush.bf16.msra.mxu0 %v6376
        %9437 = vmatpush.bf16.msra.mxu0 %v6371
        %9438 = vmatpush.bf16.msra.mxu0 %v6366
        %9439 = vmatpush.bf16.msra.mxu0 %v6361
        %9440 = vmatmul.bf16.gmra.mxu0 %v504
        %v9441 = vpop.f32.mrf.mxu0
        %v9442 = vadd.f32 %v9429, %v9441
        %v9443 = vpop.f32.mrf.mxu0
        %9444 = vdwg.mxu0
        %9445 = vmatpush.bf16.msra.mxu0 %v6436
        %9446 = vmatpush.bf16.msra.mxu0 %v6431
        %9447 = vmatpush.bf16.msra.mxu0 %v6426
        %9448 = vmatpush.bf16.msra.mxu0 %v6421
        %9449 = vmatpush.bf16.msra.mxu0 %v6416
        %9450 = vmatpush.bf16.msra.mxu0 %v6411
        %9451 = vmatpush.bf16.msra.mxu0 %v6406
        %9452 = vmatpush.bf16.msra.mxu0 %v6401
        %9453 = vmatmul.bf16.gmra.mxu0 %v505
        %v9454 = vpop.f32.mrf.mxu0
        %v9455 = vadd.f32 %v9442, %v9454
        %v9456 = vpop.f32.mrf.mxu0
        %9457 = vdwg.mxu0
        %9458 = vmatpush.bf16.msra.mxu0 %v6476
        %9459 = vmatpush.bf16.msra.mxu0 %v6471
        %9460 = vmatpush.bf16.msra.mxu0 %v6466
        %9461 = vmatpush.bf16.msra.mxu0 %v6461
        %9462 = vmatpush.bf16.msra.mxu0 %v6456
        %9463 = vmatpush.bf16.msra.mxu0 %v6451
        %9464 = vmatpush.bf16.msra.mxu0 %v6446
        %9465 = vmatpush.bf16.msra.mxu0 %v6441
        %9466 = vmatmul.bf16.gmra.mxu0 %v506
        %v9467 = vpop.f32.mrf.mxu0
        %v9468 = vadd.f32 %v9455, %v9467
        %v9469 = vpop.f32.mrf.mxu0
        %9470 = vdwg.mxu0
        %9471 = vmatpush.bf16.msra.mxu0 %v6516
        %9472 = vmatpush.bf16.msra.mxu0 %v6511
        %9473 = vmatpush.bf16.msra.mxu0 %v6506
        %9474 = vmatpush.bf16.msra.mxu0 %v6501
        %9475 = vmatpush.bf16.msra.mxu0 %v6496
        %9476 = vmatpush.bf16.msra.mxu0 %v6491
        %9477 = vmatpush.bf16.msra.mxu0 %v6486
        %9478 = vmatpush.bf16.msra.mxu0 %v6481
        %9479 = vmatmul.bf16.gmra.mxu0 %v507
        %v9480 = vpop.f32.mrf.mxu0
        %v9481 = vadd.f32 %v9468, %v9480
        %v9482 = vpop.f32.mrf.mxu0
        %9483 = vdwg.mxu0
        %9484 = vmatpush.bf16.msra.mxu0 %v6556
        %9485 = vmatpush.bf16.msra.mxu0 %v6551
        %9486 = vmatpush.bf16.msra.mxu0 %v6546
        %9487 = vmatpush.bf16.msra.mxu0 %v6541
        %9488 = vmatpush.bf16.msra.mxu0 %v6536
        %9489 = vmatpush.bf16.msra.mxu0 %v6531
        %9490 = vmatpush.bf16.msra.mxu0 %v6526
        %9491 = vmatpush.bf16.msra.mxu0 %v6521
        %9492 = vmatmul.bf16.gmra.mxu0 %v508
        %v9493 = vpop.f32.mrf.mxu0
        %v9494 = vadd.f32 %v9481, %v9493
        %v9495 = vpop.f32.mrf.mxu0
        %9496 = vdwg.mxu0
        %v9501 = vrot.slane %v8402, 6
        %v9502 = vrot.slane %v8766, 4
        %v9503 = vrot.slane %v9130, 2
        %vm9504 = vcmask 1041408
        %v9505 = vsel %vm9504, %v8038, %v9501
        %vm9506 = vcmask 1045508
        %v9507 = vsel %vm9506, %v9502, %v9503
        %vm9508 = vcmask 1043456
        %v9509 = vsel %vm9508, %v9505, %v9507
        %v9511 = vadd.f32 %v401, %v9509
        %v9512 = vadd.f32 %v402, %v9494
        %9513 = vst [vmem:[#allocation2] sm:$0xff] %v9511
        %vm9514 = vcmask 254976
        %9515 = vst.msk [vmem:[#allocation2 + $0x8] sm:$0x3] %vm9514, %v9512
        %p9516 = scmp.eq.s32.totalorder %s26, 6
        // Predicated region
        $region57: #{tpu_custom_call.1} parent=51 // pred_check
          %p9517 = pneg %p9516
        $region58: #{tpu_custom_call.1} parent=51 // pred_check_branch
          %9519 = sbr.rel (%p9517) target = $region60
        $region59: #{tpu_custom_call.1} parent=51 // pred_region
          %v9520 = vld [vmem:[#allocation2] sm:$0xff]
          %v9521 = vld [vmem:[#allocation2 + $0x8] sm:$0x3]
          %v9522 = vld [vmem:[%s2] sm:$0x1f]
          %v9524 = vperm.slane %v9522, 0
          %v9525 = vperm.slane %v9522, 1
          %v9526 = vperm.slane %v9522, 2
          %v9527 = vperm.slane %v9522, 3
          %v9528 = vperm.slane %v9522, 4
          %v9530 = vrot.slane %v9525, 6
          %v9531 = vrot.slane %v9526, 4
          %v9532 = vrot.slane %v9527, 2
          %v9533 = vsel %vm9504, %v9524, %v9530
          %v9534 = vsel %vm9506, %v9531, %v9532
          %v9535 = vsel %vm9508, %v9533, %v9534
          %v9537 = vmul.f32 %v9520, %v9535
          %v9538 = vmul.f32 %v9521, %v9528
          %v9539 = vld [vmem:[%s3] sm:$0x1f]
          %v9541 = vperm.slane %v9539, 0
          %v9542 = vperm.slane %v9539, 1
          %v9543 = vperm.slane %v9539, 2
          %v9544 = vperm.slane %v9539, 3
          %v9545 = vperm.slane %v9539, 4
          %v9547 = vrot.slane %v9542, 6
          %v9548 = vrot.slane %v9543, 4
          %v9549 = vrot.slane %v9544, 2
          %v9550 = vsel %vm9504, %v9541, %v9547
          %v9551 = vsel %vm9506, %v9548, %v9549
          %v9552 = vsel %vm9508, %v9550, %v9551
          %v9554 = vadd.f32 %v9537, %v9552
          %v9555 = vadd.f32 %v9538, %v9545
          %v9556 = vmax.f32 %v9555, 0.0
          %v9557 = vmin.f32 %v9556, 6.0
          %9558 = vst [vmem:[#allocation5] sm:$0xff] %v9554
          %9559 = vst.msk [vmem:[#allocation7] sm:$0x3] %vm9514, %v9557
          %v9560 = vmul.f32 %v9554, %v9554
          %9562 = vst [vmem:[#allocation1] ss:$4 sm:$0xff] %v9560
          %v9563 = vld.sshfl [vmem:[#allocation1] sm:$0xff pattern:$0x73625140]
          %v9564 = vld.sshfl [vmem:[#allocation1 + $0x8] sm:$0xff pattern:$0x73625140]
          %v9565 = vld.sshfl [vmem:[#allocation1 + $0x10] sm:$0xff pattern:$0x73625140]
          %v9566 = vld.sshfl [vmem:[#allocation1 + $0x18] sm:$0xff pattern:$0x73625140]
          %v9571 = vsel %vm9504, %v9563, 0.0
          %v9572 = vsel %vm9504, %v9564, 0.0
          %v9573 = vadd.f32 %v9571, %v9572
          %v9574 = vsel %vm9504, %v9565, 0.0
          %v9575 = vadd.f32 %v9573, %v9574
          %v9576 = vsel %vm9504, %v9566, 0.0
          %v9577 = vadd.f32 %v9575, %v9576
          %9578 = vadd.xlane.f32.xlu0 %v9577
          %v9579 = vpop.xlane.xlu0 %9578
          %v9580 = vrsqrt.pop %v9579
          %v9581 = vmul.f32 %v9580, %v9579
          %v9582 = vmul.f32 %v9581, %v9580
          %v9583 = vmul.f32 0.5, %v9582
          %v9584 = vsub.f32 1.5, %v9583
          %v9585 = vmul.f32 %v9580, %v9584
          %v9586 = vmul.f32 %v9579, %v9585
          %vm9587 = vcmp.eq.f32.partialorder %v9579, inf
          %v9588 = vsel %vm9587, %v9579, %v9586
          %vm9589 = vcmp.eq.f32.partialorder %v9579, 0.0
          %v9590 = vand.u32 %v9579, 2147483648
          %v9591 = vsel %vm9589, %v9590, %v9588
          %v9592 = vmax.f32 %v9591, 1e-12
          %v9595 = vunpack.c.l.s4 269488144
          %v9596 = vunpack.c.0.s8 %v9595
          %v9597 = vperm.slane %v9592, %v9596
          %v9599 = vrcp.pop %v9597
          %v9600 = vmul.f32 %v9597, %v9599
          %v9601 = vsub.f32 1.0, %v9600
          %v9602 = vmul.f32 %v9599, %v9601
          %v9603 = vadd.f32 %v9599, %v9602
          %vm9604 = vweird.f32 %v9597
          %vm9605 = vweird.f32 %v9599
          %vm9606 = vmor %vm9604, %vm9605
          %v9607 = vsel %vm9606, %v9599, %v9603
          %v9608 = vand.u32 2147483647, %v9597
          %vm9609 = vcmp.eq.f32.partialorder %v9608, 8.507059e+37
          %v9610 = vand.u32 %v9597, 2147483648
          %v9611 = vor.u32 1.1754944e-38, %v9610
          %v9612 = vsel %vm9609, %v9611, %v9607
          %v9613 = vmul.f32 %v9554, %v9612
          %v9614 = vld [vmem:[%s4] sm:$0xff]
          %v9615 = vld [vmem:[%s4 + $0x8] sm:$0xff]
          %v9616 = vld [vmem:[%s4 + $0x10] sm:$0xff]
          %v9617 = vld [vmem:[%s4 + $0x18] sm:$0xff]
          %v9618 = vld [vmem:[%s4 + $0x20] sm:$0xff]
          %v9619 = vld [vmem:[%s4 + $0x28] sm:$0xff]
          %v9620 = vld [vmem:[%s4 + $0x30] sm:$0xff]
          %v9621 = vld [vmem:[%s4 + $0x38] sm:$0xff]
          %v9622 = vld [vmem:[%s4 + $0x40] sm:$0xff]
          %v9623 = vld [vmem:[%s4 + $0x48] sm:$0xff]
          %v9624 = vld [vmem:[%s4 + $0x50] sm:$0xff]
          %v9625 = vld [vmem:[%s4 + $0x58] sm:$0xff]
          %v9626 = vld [vmem:[%s4 + $0x60] sm:$0xff]
          %v9627 = vld [vmem:[%s4 + $0x68] sm:$0xff]
          %v9628 = vld [vmem:[%s4 + $0x70] sm:$0xff]
          %v9629 = vld [vmem:[%s4 + $0x78] sm:$0xff]
          %v9630 = vld [vmem:[%s4 + $0x80] sm:$0xff]
          %v9631 = vld [vmem:[%s4 + $0x88] sm:$0xff]
          %v9632 = vld [vmem:[%s4 + $0x90] sm:$0xff]
          %v9633 = vld [vmem:[%s4 + $0x98] sm:$0xff]
          %v9634 = vld [vmem:[%s4 + $0xa0] sm:$0xff]
          %v9635 = vld [vmem:[%s4 + $0xa8] sm:$0xff]
          %v9636 = vld [vmem:[%s4 + $0xb0] sm:$0xff]
          %v9637 = vld [vmem:[%s4 + $0xb8] sm:$0xff]
          %v9638 = vld [vmem:[%s4 + $0xc0] sm:$0xff]
          %v9639 = vld [vmem:[%s4 + $0xc8] sm:$0xff]
          %v9640 = vld [vmem:[%s4 + $0xd0] sm:$0xff]
          %v9641 = vld [vmem:[%s4 + $0xd8] sm:$0xff]
          %v9642 = vld [vmem:[%s4 + $0xe0] sm:$0xff]
          %v9643 = vld [vmem:[%s4 + $0xe8] sm:$0xff]
          %v9644 = vld [vmem:[%s4 + $0xf0] sm:$0xff]
          %v9645 = vld [vmem:[%s4 + $0xf8] sm:$0xff]
          %v9646 = vld [vmem:[%s4 + $0x100] sm:$0xff]
          %v9647 = vld [vmem:[%s4 + $0x108] sm:$0xff]
          %v9648 = vld [vmem:[%s4 + $0x110] sm:$0xff]
          %v9649 = vld [vmem:[%s4 + $0x118] sm:$0xff]
          %v9650 = vld [vmem:[%s4 + $0x120] sm:$0xff]
          %v9651 = vld [vmem:[%s4 + $0x128] sm:$0xff]
          %v9652 = vld [vmem:[%s4 + $0x130] sm:$0xff]
          %v9653 = vld [vmem:[%s4 + $0x138] sm:$0xff]
          %v9654 = vld [vmem:[%s4 + $0x140] sm:$0xff]
          %v9655 = vld [vmem:[%s4 + $0x148] sm:$0xff]
          %v9656 = vld [vmem:[%s4 + $0x150] sm:$0xff]
          %v9657 = vld [vmem:[%s4 + $0x158] sm:$0xff]
          %v9658 = vld [vmem:[%s4 + $0x160] sm:$0xff]
          %v9659 = vld [vmem:[%s4 + $0x168] sm:$0xff]
          %v9660 = vld [vmem:[%s4 + $0x170] sm:$0xff]
          %v9661 = vld [vmem:[%s4 + $0x178] sm:$0xff]
          %v9662 = vld [vmem:[%s4 + $0x180] sm:$0xff]
          %v9663 = vld [vmem:[%s4 + $0x188] sm:$0xff]
          %v9664 = vld [vmem:[%s4 + $0x190] sm:$0xff]
          %v9665 = vld [vmem:[%s4 + $0x198] sm:$0xff]
          %v9666 = vld [vmem:[%s4 + $0x1a0] sm:$0xff]
          %v9667 = vld [vmem:[%s4 + $0x1a8] sm:$0xff]
          %v9668 = vld [vmem:[%s4 + $0x1b0] sm:$0xff]
          %v9669 = vld [vmem:[%s4 + $0x1b8] sm:$0xff]
          %v9670 = vld [vmem:[%s4 + $0x1c0] sm:$0xff]
          %v9671 = vld [vmem:[%s4 + $0x1c8] sm:$0xff]
          %v9672 = vld [vmem:[%s4 + $0x1d0] sm:$0xff]
          %v9673 = vld [vmem:[%s4 + $0x1d8] sm:$0xff]
          %v9674 = vld [vmem:[%s4 + $0x1e0] sm:$0xff]
          %v9675 = vld [vmem:[%s4 + $0x1e8] sm:$0xff]
          %v9676 = vld [vmem:[%s4 + $0x1f0] sm:$0xff]
          %v9677 = vld [vmem:[%s4 + $0x1f8] sm:$0xff]
          %v9678 = vld [vmem:[%s4 + $0x200] sm:$0xff]
          %v9679 = vld [vmem:[%s4 + $0x208] sm:$0xff]
          %v9680 = vld [vmem:[%s4 + $0x210] sm:$0xff]
          %v9681 = vld [vmem:[%s4 + $0x218] sm:$0xff]
          %v9682 = vld [vmem:[%s4 + $0x220] sm:$0xff]
          %v9683 = vld [vmem:[%s4 + $0x228] sm:$0xff]
          %v9684 = vld [vmem:[%s4 + $0x230] sm:$0xff]
          %v9685 = vld [vmem:[%s4 + $0x238] sm:$0xff]
          %v9686 = vld [vmem:[%s4 + $0x240] sm:$0xff]
          %v9687 = vld [vmem:[%s4 + $0x248] sm:$0xff]
          %v9688 = vld [vmem:[%s4 + $0x250] sm:$0xff]
          %v9689 = vld [vmem:[%s4 + $0x258] sm:$0xff]
          %v9690 = vld [vmem:[%s4 + $0x260] sm:$0xff]
          %v9691 = vld [vmem:[%s4 + $0x268] sm:$0xff]
          %v9692 = vld [vmem:[%s4 + $0x270] sm:$0xff]
          %v9693 = vld [vmem:[%s4 + $0x278] sm:$0xff]
          %v9694 = vld [vmem:[%s4 + $0x280] sm:$0xff]
          %v9695 = vld [vmem:[%s4 + $0x288] sm:$0xff]
          %v9696 = vld [vmem:[%s4 + $0x290] sm:$0xff]
          %v9697 = vld [vmem:[%s4 + $0x298] sm:$0xff]
          %v9698 = vld [vmem:[%s4 + $0x2a0] sm:$0xff]
          %v9699 = vld [vmem:[%s4 + $0x2a8] sm:$0xff]
          %v9700 = vld [vmem:[%s4 + $0x2b0] sm:$0xff]
          %v9701 = vld [vmem:[%s4 + $0x2b8] sm:$0xff]
          %v9702 = vld [vmem:[%s4 + $0x2c0] sm:$0xff]
          %v9703 = vld [vmem:[%s4 + $0x2c8] sm:$0xff]
          %v9704 = vld [vmem:[%s4 + $0x2d0] sm:$0xff]
          %v9705 = vld [vmem:[%s4 + $0x2d8] sm:$0xff]
          %v9706 = vld [vmem:[%s4 + $0x2e0] sm:$0xff]
          %v9707 = vld [vmem:[%s4 + $0x2e8] sm:$0xff]
          %v9708 = vld [vmem:[%s4 + $0x2f0] sm:$0xff]
          %v9709 = vld [vmem:[%s4 + $0x2f8] sm:$0xff]
          %v9710 = vld [vmem:[%s4 + $0x300] sm:$0xff]
          %v9711 = vld [vmem:[%s4 + $0x308] sm:$0xff]
          %v9712 = vld [vmem:[%s4 + $0x310] sm:$0xff]
          %v9713 = vld [vmem:[%s4 + $0x318] sm:$0xff]
          %v9714 = vld [vmem:[%s4 + $0x320] sm:$0xff]
          %v9715 = vld [vmem:[%s4 + $0x328] sm:$0xff]
          %v9716 = vld [vmem:[%s4 + $0x330] sm:$0xff]
          %v9717 = vld [vmem:[%s4 + $0x338] sm:$0xff]
          %v9718 = vld [vmem:[%s4 + $0x340] sm:$0xff]
          %v9719 = vld [vmem:[%s4 + $0x348] sm:$0xff]
          %v9720 = vld [vmem:[%s4 + $0x350] sm:$0xff]
          %v9721 = vld [vmem:[%s4 + $0x358] sm:$0xff]
          %v9722 = vld [vmem:[%s4 + $0x360] sm:$0xff]
          %v9723 = vld [vmem:[%s4 + $0x368] sm:$0xff]
          %v9724 = vld [vmem:[%s4 + $0x370] sm:$0xff]
          %v9725 = vld [vmem:[%s4 + $0x378] sm:$0xff]
          %v9726 = vld [vmem:[%s4 + $0x380] sm:$0xff]
          %v9727 = vld [vmem:[%s4 + $0x388] sm:$0xff]
          %v9728 = vld [vmem:[%s4 + $0x390] sm:$0xff]
          %v9729 = vld [vmem:[%s4 + $0x398] sm:$0xff]
          %v9730 = vld [vmem:[%s4 + $0x3a0] sm:$0xff]
          %v9731 = vld [vmem:[%s4 + $0x3a8] sm:$0xff]
          %v9732 = vld [vmem:[%s4 + $0x3b0] sm:$0xff]
          %v9733 = vld [vmem:[%s4 + $0x3b8] sm:$0xff]
          %v9734 = vld [vmem:[%s4 + $0x3c0] sm:$0xff]
          %v9735 = vld [vmem:[%s4 + $0x3c8] sm:$0xff]
          %v9736 = vld [vmem:[%s4 + $0x3d0] sm:$0xff]
          %v9737 = vld [vmem:[%s4 + $0x3d8] sm:$0xff]
          %v9738 = vld [vmem:[%s4 + $0x3e0] sm:$0xff]
          %v9739 = vld [vmem:[%s4 + $0x3e8] sm:$0xff]
          %v9740 = vld [vmem:[%s4 + $0x3f0] sm:$0xff]
          %v9741 = vld [vmem:[%s4 + $0x3f8] sm:$0xff]
          %9743 = vst [vmem:[#allocation1] ss:$4 sm:$0xff] %v9613
          %v9744 = vld.sshfl [vmem:[#allocation1] sm:$0xff pattern:$0x73625140]
          %v9745 = vld.sshfl [vmem:[#allocation1 + $0x8] sm:$0xff pattern:$0x73625140]
          %v9746 = vld.sshfl [vmem:[#allocation1 + $0x10] sm:$0xff pattern:$0x73625140]
          %v9747 = vld.sshfl [vmem:[#allocation1 + $0x18] sm:$0xff pattern:$0x73625140]
          %9752 = vmatpush.msra.mxu0 %v9644
          %9753 = vmatpush.msra.mxu0 %v9642
          %9754 = vmatpush.msra.mxu0 %v9640
          %9755 = vmatpush.msra.mxu0 %v9638
          %9756 = vmatpush.msra.mxu0 %v9636
          %9757 = vmatpush.msra.mxu0 %v9634
          %9758 = vmatpush.msra.mxu0 %v9632
          %9759 = vmatpush.msra.mxu0 %v9630
          %9760 = vmatpush.msra.mxu0 %v9628
          %9761 = vmatpush.msra.mxu0 %v9626
          %9762 = vmatpush.msra.mxu0 %v9624
          %9763 = vmatpush.msra.mxu0 %v9622
          %9764 = vmatpush.msra.mxu0 %v9620
          %9765 = vmatpush.msra.mxu0 %v9618
          %9766 = vmatpush.msra.mxu0 %v9616
          %9767 = vmatpush.msra.mxu0 %v9614
          %9768 = vmatmul.f32.gmra.mxu0 %v9744
          %v9769 = vpop.f32.mrf.mxu0
          %v9770 = vadd.f32 0.0, %v9769
          %9771 = vdwg.mxu0
          %9772 = vmatpush.msra.mxu0 %v9676
          %9773 = vmatpush.msra.mxu0 %v9674
          %9774 = vmatpush.msra.mxu0 %v9672
          %9775 = vmatpush.msra.mxu0 %v9670
          %9776 = vmatpush.msra.mxu0 %v9668
          %9777 = vmatpush.msra.mxu0 %v9666
          %9778 = vmatpush.msra.mxu0 %v9664
          %9779 = vmatpush.msra.mxu0 %v9662
          %9780 = vmatpush.msra.mxu0 %v9660
          %9781 = vmatpush.msra.mxu0 %v9658
          %9782 = vmatpush.msra.mxu0 %v9656
          %9783 = vmatpush.msra.mxu0 %v9654
          %9784 = vmatpush.msra.mxu0 %v9652
          %9785 = vmatpush.msra.mxu0 %v9650
          %9786 = vmatpush.msra.mxu0 %v9648
          %9787 = vmatpush.msra.mxu0 %v9646
          %9788 = vmatmul.f32.gmra.mxu0 %v9745
          %v9789 = vpop.f32.mrf.mxu0
          %v9790 = vadd.f32 %v9770, %v9789
          %9791 = vdwg.mxu0
          %9792 = vmatpush.msra.mxu0 %v9708
          %9793 = vmatpush.msra.mxu0 %v9706
          %9794 = vmatpush.msra.mxu0 %v9704
          %9795 = vmatpush.msra.mxu0 %v9702
          %9796 = vmatpush.msra.mxu0 %v9700
          %9797 = vmatpush.msra.mxu0 %v9698
          %9798 = vmatpush.msra.mxu0 %v9696
          %9799 = vmatpush.msra.mxu0 %v9694
          %9800 = vmatpush.msra.mxu0 %v9692
          %9801 = vmatpush.msra.mxu0 %v9690
          %9802 = vmatpush.msra.mxu0 %v9688
          %9803 = vmatpush.msra.mxu0 %v9686
          %9804 = vmatpush.msra.mxu0 %v9684
          %9805 = vmatpush.msra.mxu0 %v9682
          %9806 = vmatpush.msra.mxu0 %v9680
          %9807 = vmatpush.msra.mxu0 %v9678
          %9808 = vmatmul.f32.gmra.mxu0 %v9746
          %v9809 = vpop.f32.mrf.mxu0
          %v9810 = vadd.f32 %v9790, %v9809
          %9811 = vdwg.mxu0
          %9812 = vmatpush.msra.mxu0 %v9740
          %9813 = vmatpush.msra.mxu0 %v9738
          %9814 = vmatpush.msra.mxu0 %v9736
          %9815 = vmatpush.msra.mxu0 %v9734
          %9816 = vmatpush.msra.mxu0 %v9732
          %9817 = vmatpush.msra.mxu0 %v9730
          %9818 = vmatpush.msra.mxu0 %v9728
          %9819 = vmatpush.msra.mxu0 %v9726
          %9820 = vmatpush.msra.mxu0 %v9724
          %9821 = vmatpush.msra.mxu0 %v9722
          %9822 = vmatpush.msra.mxu0 %v9720
          %9823 = vmatpush.msra.mxu0 %v9718
          %9824 = vmatpush.msra.mxu0 %v9716
          %9825 = vmatpush.msra.mxu0 %v9714
          %9826 = vmatpush.msra.mxu0 %v9712
          %9827 = vmatpush.msra.mxu0 %v9710
          %9828 = vmatmul.f32.gmra.mxu0 %v9747
          %v9829 = vpop.f32.mrf.mxu0
          %v9830 = vadd.f32 %v9810, %v9829
          %9831 = vdwg.mxu0
          %9832 = vmatpush.msra.mxu0 %v9645
          %9833 = vmatpush.msra.mxu0 %v9643
          %9834 = vmatpush.msra.mxu0 %v9641
          %9835 = vmatpush.msra.mxu0 %v9639
          %9836 = vmatpush.msra.mxu0 %v9637
          %9837 = vmatpush.msra.mxu0 %v9635
          %9838 = vmatpush.msra.mxu0 %v9633
          %9839 = vmatpush.msra.mxu0 %v9631
          %9840 = vmatpush.msra.mxu0 %v9629
          %9841 = vmatpush.msra.mxu0 %v9627
          %9842 = vmatpush.msra.mxu0 %v9625
          %9843 = vmatpush.msra.mxu0 %v9623
          %9844 = vmatpush.msra.mxu0 %v9621
          %9845 = vmatpush.msra.mxu0 %v9619
          %9846 = vmatpush.msra.mxu0 %v9617
          %9847 = vmatpush.msra.mxu0 %v9615
          %9848 = vmatmul.f32.gmra.mxu0 %v9744
          %v9849 = vpop.f32.mrf.mxu0
          %v9850 = vadd.f32 0.0, %v9849
          %9851 = vdwg.mxu0
          %9852 = vmatpush.msra.mxu0 %v9677
          %9853 = vmatpush.msra.mxu0 %v9675
          %9854 = vmatpush.msra.mxu0 %v9673
          %9855 = vmatpush.msra.mxu0 %v9671
          %9856 = vmatpush.msra.mxu0 %v9669
          %9857 = vmatpush.msra.mxu0 %v9667
          %9858 = vmatpush.msra.mxu0 %v9665
          %9859 = vmatpush.msra.mxu0 %v9663
          %9860 = vmatpush.msra.mxu0 %v9661
          %9861 = vmatpush.msra.mxu0 %v9659
          %9862 = vmatpush.msra.mxu0 %v9657
          %9863 = vmatpush.msra.mxu0 %v9655
          %9864 = vmatpush.msra.mxu0 %v9653
          %9865 = vmatpush.msra.mxu0 %v9651
          %9866 = vmatpush.msra.mxu0 %v9649
          %9867 = vmatpush.msra.mxu0 %v9647
          %9868 = vmatmul.f32.gmra.mxu0 %v9745
          %v9869 = vpop.f32.mrf.mxu0
          %v9870 = vadd.f32 %v9850, %v9869
          %9871 = vdwg.mxu0
          %9872 = vmatpush.msra.mxu0 %v9709
          %9873 = vmatpush.msra.mxu0 %v9707
          %9874 = vmatpush.msra.mxu0 %v9705
          %9875 = vmatpush.msra.mxu0 %v9703
          %9876 = vmatpush.msra.mxu0 %v9701
          %9877 = vmatpush.msra.mxu0 %v9699
          %9878 = vmatpush.msra.mxu0 %v9697
          %9879 = vmatpush.msra.mxu0 %v9695
          %9880 = vmatpush.msra.mxu0 %v9693
          %9881 = vmatpush.msra.mxu0 %v9691
          %9882 = vmatpush.msra.mxu0 %v9689
          %9883 = vmatpush.msra.mxu0 %v9687
          %9884 = vmatpush.msra.mxu0 %v9685
          %9885 = vmatpush.msra.mxu0 %v9683
          %9886 = vmatpush.msra.mxu0 %v9681
          %9887 = vmatpush.msra.mxu0 %v9679
          %9888 = vmatmul.f32.gmra.mxu0 %v9746
          %v9889 = vpop.f32.mrf.mxu0
          %v9890 = vadd.f32 %v9870, %v9889
          %9891 = vdwg.mxu0
          %9892 = vmatpush.msra.mxu0 %v9741
          %9893 = vmatpush.msra.mxu0 %v9739
          %9894 = vmatpush.msra.mxu0 %v9737
          %9895 = vmatpush.msra.mxu0 %v9735
          %9896 = vmatpush.msra.mxu0 %v9733
          %9897 = vmatpush.msra.mxu0 %v9731
          %9898 = vmatpush.msra.mxu0 %v9729
          %9899 = vmatpush.msra.mxu0 %v9727
          %9900 = vmatpush.msra.mxu0 %v9725
          %9901 = vmatpush.msra.mxu0 %v9723
          %9902 = vmatpush.msra.mxu0 %v9721
          %9903 = vmatpush.msra.mxu0 %v9719
          %9904 = vmatpush.msra.mxu0 %v9717
          %9905 = vmatpush.msra.mxu0 %v9715
          %9906 = vmatpush.msra.mxu0 %v9713
          %9907 = vmatpush.msra.mxu0 %v9711
          %9908 = vmatmul.f32.gmra.mxu0 %v9747
          %v9909 = vpop.f32.mrf.mxu0
          %v9910 = vadd.f32 %v9890, %v9909
          %9911 = vdwg.mxu0
          %v9912 = vmul.f32 %v9830, %v9830
          %v9913 = vmul.f32 %v9910, %v9910
          %v9914 = vsub.f32 1.0, %v9912
          %v9915 = vsub.f32 1.0, %v9913
          %v9916 = vmax.f32 %v9914, 1e-09
          %v9917 = vmax.f32 %v9915, 1e-09
          %v9918 = vmin.f32 %v9916, 1.0
          %v9919 = vmin.f32 %v9917, 1.0
          %v9920 = vrsqrt.pop %v9918
          %v9921 = vmul.f32 %v9920, %v9918
          %v9922 = vmul.f32 %v9921, %v9920
          %v9923 = vmul.f32 0.5, %v9922
          %v9924 = vsub.f32 1.5, %v9923
          %v9925 = vmul.f32 %v9920, %v9924
          %v9926 = vmul.f32 %v9918, %v9925
          %vm9927 = vcmp.eq.f32.partialorder %v9918, inf
          %v9928 = vsel %vm9927, %v9918, %v9926
          %vm9929 = vcmp.eq.f32.partialorder %v9918, 0.0
          %v9930 = vand.u32 %v9918, 2147483648
          %v9931 = vsel %vm9929, %v9930, %v9928
          %v9932 = vrsqrt.pop %v9919
          %v9933 = vmul.f32 %v9932, %v9919
          %v9934 = vmul.f32 %v9933, %v9932
          %v9935 = vmul.f32 0.5, %v9934
          %v9936 = vsub.f32 1.5, %v9935
          %v9937 = vmul.f32 %v9932, %v9936
          %v9938 = vmul.f32 %v9919, %v9937
          %vm9939 = vcmp.eq.f32.partialorder %v9919, inf
          %v9940 = vsel %vm9939, %v9919, %v9938
          %vm9941 = vcmp.eq.f32.partialorder %v9919, 0.0
          %v9942 = vand.u32 %v9919, 2147483648
          %v9943 = vsel %vm9941, %v9942, %v9940
          %v9944 = vmul.f32 %v9830, 0.87758255
          %v9945 = vmul.f32 %v9910, 0.87758255
          %v9946 = vmul.f32 %v9931, 0.47942555
          %v9947 = vmul.f32 %v9943, 0.47942555
          %v9948 = vsub.f32 %v9944, %v9946
          %v9949 = vsub.f32 %v9945, %v9947
          %vm9950 = vcmp.gt.f32.partialorder %v9830, -0.87758255
          %vm9951 = vcmp.gt.f32.partialorder %v9910, -0.87758255
          %v9952 = vsub.f32 %v9830, 0.23971277
          %v9953 = vsub.f32 %v9910, 0.23971277
          %v9954 = vsel %vm9950, %v9948, %v9952
          %v9955 = vsel %vm9951, %v9949, %v9953
          %v9956 = vlaneseq
          %v9957 = vand.u32 %v9956, 127
          %v9958 = vadd.s32 %v9957, 128
          %v9959 = vld [vmem:[%s5] sm:$0x3]
          %9960 = vset.pattern.permute.xlu0 0
          %9961 = vperm.xlu0 %9960, %v9959
          %v9962 = vpop.permute.xlu0 %9961
          %vm9963 = vcmp.eq.s32.totalorder %v9957, %v9962
          %vm9964 = vcmp.eq.s32.totalorder %v9958, %v9962
          %v9965 = vsel %vm9963, 1, 0
          %v9966 = vsel %vm9964, 1, 0
          %v9967 = vcvt.s32.f32 %v9965
          %v9968 = vcvt.s32.f32 %v9966
          %v9969 = vmul.f32 %v9967, %v9954
          %v9970 = vmul.f32 %v9968, %v9955
          %v9971 = vsub.f32 1.0, %v9967
          %v9972 = vsub.f32 1.0, %v9968
          %v9973 = vmul.f32 %v9971, %v9830
          %v9974 = vmul.f32 %v9972, %v9910
          %v9975 = vadd.f32 %v9969, %v9973
          %v9976 = vadd.f32 %v9970, %v9974
          %v9977 = vmul.f32 %v9975, 64.0
          %v9978 = vmul.f32 %v9976, 64.0
          %v9981 = vrot.slane %v9978, 6
          %v9982 = vsel %vm9504, %v9977, %v9981
          %9984 = vst [vmem:[#allocation3] sm:$0xf] %v9982
          %v9985 = vld [vmem:[%s6] sm:$0xff]
          %v9986 = vld [vmem:[%s6 + $0x8] sm:$0xff]
          %v9987 = vld [vmem:[%s6 + $0x10] sm:$0xff]
          %v9988 = vld [vmem:[%s6 + $0x18] sm:$0xff]
          %v9989 = vld [vmem:[%s7] sm:$0x1]
          %v9991 = vperm.slane %v9989, 0
          %vm9993 = vcmask 261120
          %v9995 = vsel %vm9993, %v9557, 0
          %9997 = vmatpush.msra.mxu0 0.0
          %9998 = vmatpush.msra.mxu0 0.0
          %9999 = vmatpush.msra.mxu0 0.0
          %10000 = vmatpush.msra.mxu0 0.0
          %10001 = vmatpush.msra.mxu0 0.0
          %10002 = vmatpush.msra.mxu0 0.0
          %10003 = vmatpush.msra.mxu0 0.0
          %10004 = vmatpush.msra.mxu0 0.0
          %10005 = vmatpush.msra.mxu0 0.0
          %10006 = vmatpush.msra.mxu0 0.0
          %10007 = vmatpush.msra.mxu0 0.0
          %10008 = vmatpush.msra.mxu0 0.0
          %10009 = vmatpush.msra.mxu0 %v9988
          %10010 = vmatpush.msra.mxu0 %v9987
          %10011 = vmatpush.msra.mxu0 %v9986
          %10012 = vmatpush.msra.mxu0 %v9985
          %10013 = vmatmul.f32.gmra.mxu0 %v9995
          %v10014 = vpop.f32.mrf.mxu0
          %v10015 = vadd.f32 %v9991, %v10014
          %10016 = vdwg.mxu0
          %vm10017 = vcmask 9216
          %10018 = vst.msk [vmem:[#allocation8] sm:$0x3] %vm10017, %v10015
        $region60: #{tpu_custom_call.1} parent=51 // pred_fallthru
          _
        // Predicated region
        $region61: #{tpu_custom_call.1} parent=51 // pred_check
          %p10019 = pneg %p217
        $region62: #{tpu_custom_call.1} parent=51 // pred_check_branch
          %10021 = sbr.rel (%p10019) target = $region64
        $region63: #{tpu_custom_call.1} parent=51 // pred_region
          %10023 = vsyncadd [#allocation4], 0
          %s10025 = sshll.u32 [#allocation3], 4
          %s10026 = int_to_ptr.vmem [resolvable:$true] %s10025
          %s10027 = sshll.u32 %s8, 4
          %s10028 = int_to_ptr.hbm [resolvable:$true] %s10027
          %10030 = dma.vmem_to_hbm [thread:$0]  %s10026, 64, %s10028, [#allocation4]
        $region64: #{tpu_custom_call.1} parent=51 // pred_fallthru
          _
        // Predicated region
        $region65: #{tpu_custom_call.1} parent=51 // pred_check
          %p10031 = pneg %p238
        $region66: #{tpu_custom_call.1} parent=51 // pred_check_branch
          %10033 = sbr.rel (%p10031) target = $region68
        $region67: #{tpu_custom_call.1} parent=51 // pred_region
          %10035 = vsyncadd [#allocation6], 0
          %s10037 = sshll.u32 [#allocation5], 4
          %s10038 = int_to_ptr.vmem [resolvable:$true] %s10037
          %s10039 = sshll.u32 %s9, 4
          %s10040 = int_to_ptr.hbm [resolvable:$true] %s10039
          %10042 = dma.vmem_to_hbm [thread:$0]  %s10038, 128, %s10040, [#allocation6]
        $region68: #{tpu_custom_call.1} parent=51 // pred_fallthru
          _
        // Predicated region
        $region69: #{tpu_custom_call.1} parent=51 // pred_check
          %p10043 = pneg %p259
        $region70: #{tpu_custom_call.1} parent=51 // pred_check_branch
          %10045 = sbr.rel (%p10043) target = $region72
        $region71: #{tpu_custom_call.1} parent=51 // pred_region
          %10047 = vsyncadd [#allocation6], 0
          %s10049 = sshll.u32 [#allocation7], 4
          %s10050 = int_to_ptr.vmem [resolvable:$true] %s10049
          %s10051 = sshll.u32 %s10, 4
          %s10052 = int_to_ptr.hbm [resolvable:$true] %s10051
          %10054 = dma.vmem_to_hbm [thread:$0]  %s10050, 32, %s10052, [#allocation6]
        $region72: #{tpu_custom_call.1} parent=51 // pred_fallthru
          _
        // Predicated region
        $region73: #{tpu_custom_call.1} parent=51 // pred_check
          %p10055 = pneg %p280
        $region74: #{tpu_custom_call.1} parent=51 // pred_check_branch
          %10057 = sbr.rel (%p10055) target = $region76
        $region75: #{tpu_custom_call.1} parent=51 // pred_region
          %10059 = vsyncadd [#allocation9], 0
          %s10061 = sshll.u32 [#allocation8], 4
          %s10062 = int_to_ptr.vmem [resolvable:$true] %s10061
          %s10063 = sshll.u32 %s11, 4
          %s10064 = int_to_ptr.hbm [resolvable:$true] %s10063
          %10066 = dma.vmem_to_hbm [thread:$0]  %s10062, 32, %s10064, [#allocation9]
        $region76: #{tpu_custom_call.1} parent=51 // pred_fallthru
          _
        // Predicated region
        $region77: #{tpu_custom_call.1} parent=51 // pred_check
          %p10067 = pneg %p217
        $region78: #{tpu_custom_call.1} parent=51 // pred_check_branch
          %10069 = sbr.rel (%p10067) target = $region80
        $region79: #{tpu_custom_call.1} parent=51 // pred_region
          %10071 = dma.done [#allocation4], 64
        $region80: #{tpu_custom_call.1} parent=51 // pred_fallthru
          _
        // Predicated region
        $region81: #{tpu_custom_call.1} parent=51 // pred_check
          %p10072 = pneg %p238
        $region82: #{tpu_custom_call.1} parent=51 // pred_check_branch
          %10074 = sbr.rel (%p10072) target = $region84
        $region83: #{tpu_custom_call.1} parent=51 // pred_region
          %10076 = dma.done [#allocation6], 128
        $region84: #{tpu_custom_call.1} parent=51 // pred_fallthru
          _
        // Predicated region
        $region85: #{tpu_custom_call.1} parent=51 // pred_check
          %p10077 = pneg %p259
        $region86: #{tpu_custom_call.1} parent=51 // pred_check_branch
          %10079 = sbr.rel (%p10077) target = $region88
        $region87: #{tpu_custom_call.1} parent=51 // pred_region
          %10081 = dma.done [#allocation6], 32
        $region88: #{tpu_custom_call.1} parent=51 // pred_fallthru
          _
        // Predicated region
        $region89: #{tpu_custom_call.1} parent=51 // pred_check
          %p10082 = pneg %p280
        $region90: #{tpu_custom_call.1} parent=51 // pred_check_branch
          %10084 = sbr.rel (%p10082) target = $region92
        $region91: #{tpu_custom_call.1} parent=51 // pred_region
          %10086 = dma.done [#allocation9], 32
        $region92: #{tpu_custom_call.1} parent=51 // pred_fallthru
          _
      $region52: #{tpu_custom_call.1} parent=5 // pred_fallthru
        _
      %p10087 = scmp.le.s32.totalorder 2, %s21
      // Predicated region
      $region93: #{tpu_custom_call.1} parent=5 // pred_check
        %p10088 = pneg %p10087
      $region94: #{tpu_custom_call.1} parent=5 // pred_check_branch
        %10090 = sbr.rel (%p10088) target = $region96
      $region95: #{tpu_custom_call.1} parent=5 // pred_region
        %s10091 = ssub.s32 %s21, 2
      $region96: #{tpu_custom_call.1} parent=5 // pred_fallthru
        _
    $region6: #{tpu_custom_call.1} parent=1 // loop_footer
      %s25 = sadd.s32 1, %s21
    $region7: #{tpu_custom_call.1} parent=1 // loop_footer_branch
      %20 = sbr.rel target = $region3
    $region8: #{tpu_custom_call.1} parent=1 // loop_exit
      _
    %10092 = vsyncpa [#allocation4], 1
    %s10093 = scalar_lea.sflag [#allocation4], 1
    %10094 = vsyncpa %s10093, 1
    %10095 = vsyncpa [#allocation6], 1
    %10096 = vsyncpa [#allocation9], 1

</llo_original>
